<compile_context>
chip_gen: v7x
topology: tpu7x:2x2x1
jax: 0.10.0
libtpu: 0.0.40
codegen_flags: <defaults>
</compile_context>

<pallas_src>
import functools
import math

import numpy as np
import jax
import jax.numpy as jnp
from jax import lax
from jax.experimental import pallas as pl
from jax.experimental.pallas import tpu as pltpu


_PAD = 16  # sublane-aligned zero padding for the shifted depthwise-conv reads


# ----------------------------- in-kernel helpers ------------------------------

def _layernorm(x, w, b, eps=1e-5):
    mu = jnp.mean(x, axis=-1, keepdims=True)
    var = jnp.mean((x - mu) ** 2, axis=-1, keepdims=True)
    return (x - mu) * lax.rsqrt(var + eps) * w + b


def _gelu_exact(x):
    # PyTorch nn.GELU() default = exact erf formulation
    return x * 0.5 * (1.0 + lax.erf(x * (1.0 / math.sqrt(2.0))))


# -------------------------- fused TransformerBlock kernel ---------------------

def block_kernel(x_ref, ln1w, ln1b, qkvw, pw, pb, ln2w, ln2b,
                 fc1w, fc1b, dww, dwb, mask_ref, fc2w, fc2b,
                 o_ref, pad_ref, *, num_heads, H, W):
    Bb, N, C = x_ref.shape
    BN = Bb * N
    hd = C // num_heads
    M = fc1w.shape[1]

    # Stack the batch block along the sublane (row) axis — layout-free reshape.
    x = x_ref[...].reshape(BN, C)                                   # f32

    # ---------------- attention branch ----------------
    h = _layernorm(x, ln1w[...], ln1b[...])
    # One lane-dense fused QKV matmul; attention scale pre-folded into the Q columns.
    qkv = jnp.dot(h.astype(jnp.bfloat16), qkvw[...],
                  preferred_element_type=jnp.float32)               # (BN, 3C) f32

    attn_parts = []
    for b in range(Bb):                       # scores never cross batch elements
        qkv_b = qkv[b * N:(b + 1) * N, :]     # sublane-aligned row slice (N, 3C)
        acc = jnp.zeros((N, C), jnp.float32)  # per-batch proj accumulator
        for hi in range(num_heads):           # small static unroll; tiny live values
            q_h = qkv_b[:, hi * hd:(hi + 1) * hd].astype(jnp.bfloat16)
            k_h = qkv_b[:, C + hi * hd:C + (hi + 1) * hd].astype(jnp.bfloat16)
            v_h = qkv_b[:, 2 * C + hi * hd:2 * C + (hi + 1) * hd].astype(jnp.bfloat16)
            # scores: contract head_dim of q with head_dim of k (NT matmul)
            s = lax.dot_general(q_h, k_h, (((1,), (1,)), ((), ())),
                                preferred_element_type=jnp.float32)     # (N, N)
            s = s - jnp.max(s, axis=-1, keepdims=True)
            p = jnp.exp(s)
            p = p * pl.reciprocal(jnp.sum(p, axis=-1, keepdims=True), approx=True)
            o_h = jnp.dot(p.astype(jnp.bfloat16), v_h,
                          preferred_element_type=jnp.float32)           # (N, hd)
            # accumulate this head straight through its proj slice -> full 128 lanes
            acc = acc + jnp.dot(o_h.astype(jnp.bfloat16), pw[hi],
                                preferred_element_type=jnp.float32)     # (N, C)
        attn_parts.append(acc)
    attn = attn_parts[0] if Bb == 1 else jnp.concatenate(attn_parts, axis=0)

    x1 = x + attn + pb[...]                   # residual 1 (proj bias added once)

    # ---------------- MLP branch (fc1 -> DWConv3x3 -> GELU -> fc2) -------------
    h2 = _layernorm(x1, ln2w[...], ln2b[...])
    y = jnp.dot(h2.astype(jnp.bfloat16), fc1w[...],
                preferred_element_type=jnp.float32) + fc1b[...]     # (BN, M) f32

    # Depthwise 3x3 conv, padding=1, on the token axis: write y once into a
    # zero-padded VMEM scratch, read 9 shifted (token offset di*W+dj) slices, apply
    # precomputed 0/1 validity masks and per-channel tap weights on the VPU.
    pad_ref[pl.ds(0, _PAD), :] = jnp.zeros((_PAD, M), jnp.float32)
    pad_ref[pl.ds(_PAD + BN, _PAD), :] = jnp.zeros((_PAD, M), jnp.float32)
    pad_ref[pl.ds(_PAD, BN), :] = y

    conv = jnp.zeros((BN, M), jnp.float32)
    for t in range(9):
        di, dj = t // 3 - 1, t % 3 - 1
        off = di * W + dj
        shifted = pad_ref[pl.ds(_PAD + off, BN), :]       # y[n + off] (zero padded)
        conv = conv + shifted * mask_ref[t] * dww[t]
    y = _gelu_exact(conv + dwb[...])
    y = jnp.dot(y.astype(jnp.bfloat16), fc2w[...],
                preferred_element_type=jnp.float32) + fc2b[...]

    o_ref[...] = (x1 + y).reshape(Bb, N, C)               # residual 2


# ------------------------------- host-side wrapper -----------------------------

def _pick_batch_block(B):
    """Single-TensorCore chips (v2-v6): fold the whole batch into one grid step.
    Multi-core chips (v7x): one batch element per grid step -> megacore splits it."""
    try:
        kind = jax.devices()[0].device_kind.lower()
    except Exception:
        kind = ""
    if "v7" in kind and B > 1:
        return 1
    return B


def _make_conv_masks(H, W, Bb):
    """(9, Bb*H*W, 1) 0/1 validity masks for the 9 depthwise-conv taps."""
    N = H * W
    m = np.zeros((9, Bb * N, 1), np.float32)
    for t in range(9):
        di, dj = t // 3 - 1, t % 3 - 1
        for b in range(Bb):
            for y in range(H):
                for x in range(W):
                    if 0 <= y + di < H and 0 <= x + dj < W:
                        m[t, b * N + y * W + x, 0] = 1.0
    return jnp.asarray(m)


def transformer_block(x, params, *, H, W, num_heads, batch_block=None):
    B, N, C = x.shape
    assert N == H * W
    Bb = batch_block or _pick_batch_block(B)
    assert B % Bb == 0
    BN = Bb * N
    hd = C // num_heads
    M = params["fc1_w"].shape[1]
    masks = _make_conv_masks(H, W, Bb)

    w2 = lambda s: pl.BlockSpec(s, lambda g: (0, 0))
    w3 = lambda s: pl.BlockSpec(s, lambda g: (0, 0, 0))

    kernel = functools.partial(block_kernel, num_heads=num_heads, H=H, W=W)
    return pl.pallas_call(
        kernel,
        out_shape=jax.ShapeDtypeStruct((B, N, C), jnp.float32),
        grid=(B // Bb,),
        in_specs=[
            pl.BlockSpec((Bb, N, C), lambda g: (g, 0, 0)),    # activations
            w2((1, C)), w2((1, C)),                           # ln1 w, b (f32)
            w2((C, 3 * C)),                                   # fused qkv weight (bf16)
            w3((num_heads, hd, C)),                           # per-head proj weight (bf16)
            w2((1, C)),                                       # proj bias (f32)
            w2((1, C)), w2((1, C)),                           # ln2 w, b (f32)
            w2((C, M)), w2((1, M)),                           # fc1 w (bf16), b (f32)
            w3((9, 1, M)), w2((1, M)),                        # dwconv tap weights, bias (f32)
            w3((9, BN, 1)),                                   # dwconv validity masks (f32)
            w2((M, C)), w2((1, C)),                           # fc2 w (bf16), b (f32)
        ],
        out_specs=pl.BlockSpec((Bb, N, C), lambda g: (g, 0, 0)),
        scratch_shapes=[pltpu.VMEM((BN + 2 * _PAD, M), jnp.float32)],
        compiler_params=pltpu.CompilerParams(
            dimension_semantics=("parallel",)),               # megacore over batch (v7x)
    )(x,
      params["ln1_w"], params["ln1_b"],
      params["qkv_w"], params["proj_w"], params["proj_b"],
      params["ln2_w"], params["ln2_b"],
      params["fc1_w"], params["fc1_b"],
      params["dw_w"], params["dw_b"], masks,
      params["fc2_w"], params["fc2_b"])


# ------------------------- params (raw f32 + kernel packing) -------------------

def init_raw_params(key, *, dim, num_heads, mlp_hidden):
    """PyTorch-layout f32 parameters (y = x @ W conventions)."""
    ks = jax.random.split(key, 8)
    nrm = lambda k, s, std=0.02: std * jax.random.normal(k, s, jnp.float32)
    return {
        "ln1_w": jnp.ones((1, dim), jnp.float32),
        "ln1_b": jnp.zeros((1, dim), jnp.float32),
        # qkv_bias=False (module default) -> no q / kv bias
        "q_w": nrm(ks[0], (dim, dim)),                  # q = h @ q_w
        "kv_w": nrm(ks[1], (dim, 2 * dim)),             # [k | v] = h @ kv_w
        "proj_w": nrm(ks[2], (dim, dim)),
        "proj_b": jnp.zeros((1, dim), jnp.float32),
        "ln2_w": jnp.ones((1, dim), jnp.float32),
        "ln2_b": jnp.zeros((1, dim), jnp.float32),
        "fc1_w": nrm(ks[3], (dim, mlp_hidden)),
        "fc1_b": jnp.zeros((1, mlp_hidden), jnp.float32),
        "dw_w": nrm(ks[4], (3, 3, mlp_hidden), std=math.sqrt(2.0 / 9.0)),
        "dw_b": jnp.zeros((1, mlp_hidden), jnp.float32),
        "fc2_w": nrm(ks[5], (mlp_hidden, dim)),
        "fc2_b": jnp.zeros((1, dim), jnp.float32),
    }


def prepare_kernel_params(raw, *, num_heads):
    """Kernel layout: bf16 matmul weights, attention scale folded into the Q columns
    of the fused QKV weight, proj weight split per head on a leading axis."""
    dim = raw["q_w"].shape[0]
    hd = dim // num_heads
    scale = hd ** -0.5
    p = dict(raw)
    del p["q_w"]
    del p["kv_w"]
    p["qkv_w"] = jnp.concatenate([raw["q_w"] * scale, raw["kv_w"]],
                                 axis=1).astype(jnp.bfloat16)          # (C, 3C)
    p["proj_w"] = raw["proj_w"].reshape(num_heads, hd, dim).astype(jnp.bfloat16)
    p["fc1_w"] = raw["fc1_w"].astype(jnp.bfloat16)
    p["fc2_w"] = raw["fc2_w"].astype(jnp.bfloat16)
    p["dw_w"] = raw["dw_w"].reshape(9, 1, -1)                          # f32, VPU path
    return p


# ------------------------- plain-JAX reference (checking) ---------------------

def reference_block(x, raw, H, W, num_heads):
    B, N, C = x.shape
    hd = C // num_heads
    scale = hd ** -0.5

    h = _layernorm(x, raw["ln1_w"], raw["ln1_b"])
    q = jnp.einsum("bnc,cd->bnd", h, raw["q_w"]).reshape(B, N, num_heads, hd)
    kv = jnp.einsum("bnc,cd->bnd", h, raw["kv_w"]).reshape(B, N, 2, num_heads, hd)
    k, v = kv[:, :, 0], kv[:, :, 1]
    s = jnp.einsum("bnhd,bmhd->bhnm", q, k) * scale
    a = jax.nn.softmax(s, axis=-1)
    o = jnp.einsum("bhnm,bmhd->bnhd", a, v).reshape(B, N, C)
    attn = jnp.einsum("bnc,cd->bnd", o, raw["proj_w"]) + raw["proj_b"]
    x = x + attn

    h2 = _layernorm(x, raw["ln2_w"], raw["ln2_b"])
    y = jnp.einsum("bnc,cm->bnm", h2, raw["fc1_w"]) + raw["fc1_b"]
    M = y.shape[-1]
    img = y.reshape(B, H, W, M)
    kern = raw["dw_w"].reshape(3, 3, 1, M)
    conv = lax.conv_general_dilated(img, kern, (1, 1), "SAME",
                                    dimension_numbers=("NHWC", "HWIO", "NHWC"),
                                    feature_group_count=M)
    y = conv.reshape(B, N, M) + raw["dw_b"]
    y = _gelu_exact(y)
    y = jnp.einsum("bnm,mc->bnc", y, raw["fc2_w"]) + raw["fc2_b"]
    return x + y


# ------------------------------------ main -------------------------------------

if __name__ == "__main__":
    B, H, W = 2, 8, 8                  # sequence length N = H*W = 64
    dim, num_heads = 128, 4            # lane-dense embedding dim, head_dim = 32
    mlp_ratio = 4.0
    N = H * W
    mlp_hidden = int(dim * mlp_ratio)  # 512

    key = jax.random.PRNGKey(0)
    pkey, xkey = jax.random.split(key)
    raw = init_raw_params(pkey, dim=dim, num_heads=num_heads, mlp_hidden=mlp_hidden)
    params = prepare_kernel_params(raw, num_heads=num_heads)
    x = jax.random.normal(xkey, (B, N, dim), jnp.float32)

    out = transformer_block(x, params, H=H, W=W, num_heads=num_heads)
    jax.block_until_ready(out)
    assert out.shape == (B, N, dim), out.shape

    ref = reference_block(x, raw, H, W, num_heads)
    err = float(jnp.max(jnp.abs(out - ref)))
    # bf16 matmul operands + approx-reciprocal softmax vs f32 reference
    assert err < 5e-2, f"max abs err {err}"

    print("KERNEL_OK")
</pallas_src>

<mosaic_0001>
module attributes {stable_mosaic.version = 11 : i64} {
  func.func @block_kernel(%arg0: i32, %arg1: memref<2x64x128xf32, #tpu.memory_space<vmem>>, %arg2: memref<1x128xf32, #tpu.memory_space<vmem>>, %arg3: memref<1x128xf32, #tpu.memory_space<vmem>>, %arg4: memref<128x384xbf16, #tpu.memory_space<vmem>>, %arg5: memref<4x32x128xbf16, #tpu.memory_space<vmem>>, %arg6: memref<1x128xf32, #tpu.memory_space<vmem>>, %arg7: memref<1x128xf32, #tpu.memory_space<vmem>>, %arg8: memref<1x128xf32, #tpu.memory_space<vmem>>, %arg9: memref<128x512xbf16, #tpu.memory_space<vmem>>, %arg10: memref<1x512xf32, #tpu.memory_space<vmem>>, %arg11: memref<9x1x512xf32, #tpu.memory_space<vmem>>, %arg12: memref<1x512xf32, #tpu.memory_space<vmem>>, %arg13: memref<9x128x1xf32, #tpu.memory_space<vmem>>, %arg14: memref<512x128xbf16, #tpu.memory_space<vmem>>, %arg15: memref<1x128xf32, #tpu.memory_space<vmem>>, %arg16: memref<2x64x128xf32, #tpu.memory_space<vmem>>, %arg17: memref<160x512xf32, #tpu.memory_space<vmem>>) attributes {dimension_semantics = [#tpu.dimension_semantics<parallel>], iteration_bounds = array<i64: 1>, scalar_prefetch = 0 : i64, scratch_operands = 1 : i64, tpu.core_type = #tpu.core_type<tc>, window_params = [{transform_indices = @transform_0, window_bounds = array<i64: 2, 64, 128>}, {pipeline_mode = #tpu.pipeline_mode<synchronous>, transform_indices = @transform_1, window_bounds = array<i64: 1, 128>}, {pipeline_mode = #tpu.pipeline_mode<synchronous>, transform_indices = @transform_2, window_bounds = array<i64: 1, 128>}, {pipeline_mode = #tpu.pipeline_mode<synchronous>, transform_indices = @transform_3, window_bounds = array<i64: 128, 384>}, {pipeline_mode = #tpu.pipeline_mode<synchronous>, transform_indices = @transform_4, window_bounds = array<i64: 4, 32, 128>}, {pipeline_mode = #tpu.pipeline_mode<synchronous>, transform_indices = @transform_5, window_bounds = array<i64: 1, 128>}, {pipeline_mode = #tpu.pipeline_mode<synchronous>, transform_indices = @transform_6, window_bounds = array<i64: 1, 128>}, {pipeline_mode = #tpu.pipeline_mode<synchronous>, transform_indices = @transform_7, window_bounds = array<i64: 1, 128>}, {pipeline_mode = #tpu.pipeline_mode<synchronous>, transform_indices = @transform_8, window_bounds = array<i64: 128, 512>}, {pipeline_mode = #tpu.pipeline_mode<synchronous>, transform_indices = @transform_9, window_bounds = array<i64: 1, 512>}, {pipeline_mode = #tpu.pipeline_mode<synchronous>, transform_indices = @transform_10, window_bounds = array<i64: 9, 1, 512>}, {pipeline_mode = #tpu.pipeline_mode<synchronous>, transform_indices = @transform_11, window_bounds = array<i64: 1, 512>}, {pipeline_mode = #tpu.pipeline_mode<synchronous>, transform_indices = @transform_12, window_bounds = array<i64: 9, 128, 1>}, {pipeline_mode = #tpu.pipeline_mode<synchronous>, transform_indices = @transform_13, window_bounds = array<i64: 512, 128>}, {pipeline_mode = #tpu.pipeline_mode<synchronous>, transform_indices = @transform_14, window_bounds = array<i64: 1, 128>}, {transform_indices = @transform_15, window_bounds = array<i64: 2, 64, 128>}]} {
    %c0 = arith.constant 0 : index
    %c0_0 = arith.constant 0 : index
    %c0_1 = arith.constant 0 : index
    %0 = vector.load %arg1[%c0, %c0_0, %c0_1] : memref<2x64x128xf32, #tpu.memory_space<vmem>>, vector<2x64x128xf32>
    %1 = vector.shape_cast %0 : vector<2x64x128xf32> to vector<128x128xf32>
    %c0_2 = arith.constant 0 : index
    %c0_3 = arith.constant 0 : index
    %2 = vector.load %arg2[%c0_2, %c0_3] : memref<1x128xf32, #tpu.memory_space<vmem>>, vector<1x128xf32>
    %c0_4 = arith.constant 0 : index
    %c0_5 = arith.constant 0 : index
    %3 = vector.load %arg3[%c0_4, %c0_5] : memref<1x128xf32, #tpu.memory_space<vmem>>, vector<1x128xf32>
    %cst = arith.constant dense<0.000000e+00> : vector<128xf32>
    %4 = vector.multi_reduction <add>, %1, %cst [1] : vector<128x128xf32> to vector<128xf32>
    %5 = vector.shape_cast %4 : vector<128xf32> to vector<128x1xf32>
    %cst_6 = arith.constant 1.280000e+02 : f32
    %6 = vector.broadcast %cst_6 : f32 to vector<128x1xf32>
    %7 = arith.divf %5, %6 : vector<128x1xf32>
    %8 = vector.broadcast %7 : vector<128x1xf32> to vector<128x128xf32>
    %9 = arith.subf %1, %8 : vector<128x128xf32>
    %10 = arith.mulf %9, %9 : vector<128x128xf32>
    %cst_7 = arith.constant dense<0.000000e+00> : vector<128xf32>
    %11 = vector.multi_reduction <add>, %10, %cst_7 [1] : vector<128x128xf32> to vector<128xf32>
    %12 = vector.shape_cast %11 : vector<128xf32> to vector<128x1xf32>
    %cst_8 = arith.constant 1.280000e+02 : f32
    %13 = vector.broadcast %cst_8 : f32 to vector<128x1xf32>
    %14 = arith.divf %12, %13 : vector<128x1xf32>
    %15 = vector.broadcast %7 : vector<128x1xf32> to vector<128x128xf32>
    %16 = arith.subf %1, %15 : vector<128x128xf32>
    %cst_9 = arith.constant 9.99999974E-6 : f32
    %17 = vector.broadcast %cst_9 : f32 to vector<128x1xf32>
    %18 = arith.addf %14, %17 : vector<128x1xf32>
    %19 = math.rsqrt %18 : vector<128x1xf32>
    %20 = vector.broadcast %19 : vector<128x1xf32> to vector<128x128xf32>
    %21 = arith.mulf %16, %20 : vector<128x128xf32>
    %22 = vector.broadcast %2 : vector<1x128xf32> to vector<128x128xf32>
    %23 = arith.mulf %21, %22 : vector<128x128xf32>
    %24 = vector.broadcast %3 : vector<1x128xf32> to vector<128x128xf32>
    %25 = arith.addf %23, %24 : vector<128x128xf32>
    %26 = arith.truncf %25 : vector<128x128xf32> to vector<128x128xbf16>
    %c0_10 = arith.constant 0 : index
    %c0_11 = arith.constant 0 : index
    %27 = vector.load %arg4[%c0_10, %c0_11] : memref<128x384xbf16, #tpu.memory_space<vmem>>, vector<128x384xbf16>
    %cst_12 = arith.constant dense<0.000000e+00> : vector<128x384xf32>
    %28 = tpu.matmul %26, %27, %cst_12 {dimension_numbers = #tpu.dot_dimension_numbers<[1], [0], [0], [1], [0, 0, 1, 1], [], []>} : vector<128x128xbf16>, vector<128x384xbf16>, vector<128x384xf32> -> vector<128x384xf32>
    %29 = vector.extract_strided_slice %28 {offsets = [0, 0], sizes = [64, 384], strides = [1, 1]} : vector<128x384xf32> to vector<64x384xf32>
    %cst_13 = arith.constant 0.000000e+00 : f32
    %30 = vector.broadcast %cst_13 : f32 to vector<64x128xf32>
    %31 = vector.extract_strided_slice %29 {offsets = [0, 0], sizes = [64, 32], strides = [1, 1]} : vector<64x384xf32> to vector<64x32xf32>
    %32 = arith.truncf %31 : vector<64x32xf32> to vector<64x32xbf16>
    %33 = vector.extract_strided_slice %29 {offsets = [0, 128], sizes = [64, 32], strides = [1, 1]} : vector<64x384xf32> to vector<64x32xf32>
    %34 = arith.truncf %33 : vector<64x32xf32> to vector<64x32xbf16>
    %35 = vector.extract_strided_slice %29 {offsets = [0, 256], sizes = [64, 32], strides = [1, 1]} : vector<64x384xf32> to vector<64x32xf32>
    %36 = arith.truncf %35 : vector<64x32xf32> to vector<64x32xbf16>
    %cst_14 = arith.constant dense<0.000000e+00> : vector<64x64xf32>
    %37 = tpu.matmul %32, %34, %cst_14 {dimension_numbers = #tpu.dot_dimension_numbers<[1], [1], [0], [0], [0, 0, 1, 0], [], []>} : vector<64x32xbf16>, vector<64x32xbf16>, vector<64x64xf32> -> vector<64x64xf32>
    %cst_15 = arith.constant dense<0xFF800000> : vector<64xf32>
    %38 = vector.multi_reduction <maximumf>, %37, %cst_15 [1] : vector<64x64xf32> to vector<64xf32>
    %39 = vector.shape_cast %38 : vector<64xf32> to vector<64x1xf32>
    %40 = vector.broadcast %39 : vector<64x1xf32> to vector<64x64xf32>
    %41 = arith.subf %37, %40 : vector<64x64xf32>
    %42 = math.exp %41 : vector<64x64xf32>
    %cst_16 = arith.constant dense<0.000000e+00> : vector<64xf32>
    %43 = vector.multi_reduction <add>, %42, %cst_16 [1] : vector<64x64xf32> to vector<64xf32>
    %44 = vector.shape_cast %43 : vector<64xf32> to vector<64x1xf32>
    %45 = tpu.reciprocal %44 {approx = true} : vector<64x1xf32> -> vector<64x1xf32>
    %46 = vector.broadcast %45 : vector<64x1xf32> to vector<64x64xf32>
    %47 = arith.mulf %42, %46 : vector<64x64xf32>
    %48 = arith.truncf %47 : vector<64x64xf32> to vector<64x64xbf16>
    %cst_17 = arith.constant dense<0.000000e+00> : vector<64x32xf32>
    %49 = tpu.matmul %48, %36, %cst_17 {dimension_numbers = #tpu.dot_dimension_numbers<[1], [0], [0], [1], [0, 0, 1, 1], [], []>} : vector<64x64xbf16>, vector<64x32xbf16>, vector<64x32xf32> -> vector<64x32xf32>
    %50 = arith.truncf %49 : vector<64x32xf32> to vector<64x32xbf16>
    %c0_18 = arith.constant 0 : index
    %c0_19 = arith.constant 0 : index
    %c0_20 = arith.constant 0 : index
    %51 = vector.load %arg5[%c0_18, %c0_19, %c0_20] : memref<4x32x128xbf16, #tpu.memory_space<vmem>>, vector<1x32x128xbf16>
    %52 = vector.shape_cast %51 : vector<1x32x128xbf16> to vector<32x128xbf16>
    %cst_21 = arith.constant dense<0.000000e+00> : vector<64x128xf32>
    %53 = tpu.matmul %50, %52, %cst_21 {dimension_numbers = #tpu.dot_dimension_numbers<[1], [0], [0], [1], [0, 0, 1, 1], [], []>} : vector<64x32xbf16>, vector<32x128xbf16>, vector<64x128xf32> -> vector<64x128xf32>
    %54 = arith.addf %30, %53 : vector<64x128xf32>
    %55 = vector.extract_strided_slice %29 {offsets = [0, 32], sizes = [64, 32], strides = [1, 1]} : vector<64x384xf32> to vector<64x32xf32>
    %56 = arith.truncf %55 : vector<64x32xf32> to vector<64x32xbf16>
    %57 = vector.extract_strided_slice %29 {offsets = [0, 160], sizes = [64, 32], strides = [1, 1]} : vector<64x384xf32> to vector<64x32xf32>
    %58 = arith.truncf %57 : vector<64x32xf32> to vector<64x32xbf16>
    %59 = vector.extract_strided_slice %29 {offsets = [0, 288], sizes = [64, 32], strides = [1, 1]} : vector<64x384xf32> to vector<64x32xf32>
    %60 = arith.truncf %59 : vector<64x32xf32> to vector<64x32xbf16>
    %cst_22 = arith.constant dense<0.000000e+00> : vector<64x64xf32>
    %61 = tpu.matmul %56, %58, %cst_22 {dimension_numbers = #tpu.dot_dimension_numbers<[1], [1], [0], [0], [0, 0, 1, 0], [], []>} : vector<64x32xbf16>, vector<64x32xbf16>, vector<64x64xf32> -> vector<64x64xf32>
    %cst_23 = arith.constant dense<0xFF800000> : vector<64xf32>
    %62 = vector.multi_reduction <maximumf>, %61, %cst_23 [1] : vector<64x64xf32> to vector<64xf32>
    %63 = vector.shape_cast %62 : vector<64xf32> to vector<64x1xf32>
    %64 = vector.broadcast %63 : vector<64x1xf32> to vector<64x64xf32>
    %65 = arith.subf %61, %64 : vector<64x64xf32>
    %66 = math.exp %65 : vector<64x64xf32>
    %cst_24 = arith.constant dense<0.000000e+00> : vector<64xf32>
    %67 = vector.multi_reduction <add>, %66, %cst_24 [1] : vector<64x64xf32> to vector<64xf32>
    %68 = vector.shape_cast %67 : vector<64xf32> to vector<64x1xf32>
    %69 = tpu.reciprocal %68 {approx = true} : vector<64x1xf32> -> vector<64x1xf32>
    %70 = vector.broadcast %69 : vector<64x1xf32> to vector<64x64xf32>
    %71 = arith.mulf %66, %70 : vector<64x64xf32>
    %72 = arith.truncf %71 : vector<64x64xf32> to vector<64x64xbf16>
    %cst_25 = arith.constant dense<0.000000e+00> : vector<64x32xf32>
    %73 = tpu.matmul %72, %60, %cst_25 {dimension_numbers = #tpu.dot_dimension_numbers<[1], [0], [0], [1], [0, 0, 1, 1], [], []>} : vector<64x64xbf16>, vector<64x32xbf16>, vector<64x32xf32> -> vector<64x32xf32>
    %74 = arith.truncf %73 : vector<64x32xf32> to vector<64x32xbf16>
    %c1 = arith.constant 1 : index
    %c0_26 = arith.constant 0 : index
    %c0_27 = arith.constant 0 : index
    %75 = vector.load %arg5[%c1, %c0_26, %c0_27] : memref<4x32x128xbf16, #tpu.memory_space<vmem>>, vector<1x32x128xbf16>
    %76 = vector.shape_cast %75 : vector<1x32x128xbf16> to vector<32x128xbf16>
    %cst_28 = arith.constant dense<0.000000e+00> : vector<64x128xf32>
    %77 = tpu.matmul %74, %76, %cst_28 {dimension_numbers = #tpu.dot_dimension_numbers<[1], [0], [0], [1], [0, 0, 1, 1], [], []>} : vector<64x32xbf16>, vector<32x128xbf16>, vector<64x128xf32> -> vector<64x128xf32>
    %78 = arith.addf %54, %77 : vector<64x128xf32>
    %79 = vector.extract_strided_slice %29 {offsets = [0, 64], sizes = [64, 32], strides = [1, 1]} : vector<64x384xf32> to vector<64x32xf32>
    %80 = arith.truncf %79 : vector<64x32xf32> to vector<64x32xbf16>
    %81 = vector.extract_strided_slice %29 {offsets = [0, 192], sizes = [64, 32], strides = [1, 1]} : vector<64x384xf32> to vector<64x32xf32>
    %82 = arith.truncf %81 : vector<64x32xf32> to vector<64x32xbf16>
    %83 = vector.extract_strided_slice %29 {offsets = [0, 320], sizes = [64, 32], strides = [1, 1]} : vector<64x384xf32> to vector<64x32xf32>
    %84 = arith.truncf %83 : vector<64x32xf32> to vector<64x32xbf16>
    %cst_29 = arith.constant dense<0.000000e+00> : vector<64x64xf32>
    %85 = tpu.matmul %80, %82, %cst_29 {dimension_numbers = #tpu.dot_dimension_numbers<[1], [1], [0], [0], [0, 0, 1, 0], [], []>} : vector<64x32xbf16>, vector<64x32xbf16>, vector<64x64xf32> -> vector<64x64xf32>
    %cst_30 = arith.constant dense<0xFF800000> : vector<64xf32>
    %86 = vector.multi_reduction <maximumf>, %85, %cst_30 [1] : vector<64x64xf32> to vector<64xf32>
    %87 = vector.shape_cast %86 : vector<64xf32> to vector<64x1xf32>
    %88 = vector.broadcast %87 : vector<64x1xf32> to vector<64x64xf32>
    %89 = arith.subf %85, %88 : vector<64x64xf32>
    %90 = math.exp %89 : vector<64x64xf32>
    %cst_31 = arith.constant dense<0.000000e+00> : vector<64xf32>
    %91 = vector.multi_reduction <add>, %90, %cst_31 [1] : vector<64x64xf32> to vector<64xf32>
    %92 = vector.shape_cast %91 : vector<64xf32> to vector<64x1xf32>
    %93 = tpu.reciprocal %92 {approx = true} : vector<64x1xf32> -> vector<64x1xf32>
    %94 = vector.broadcast %93 : vector<64x1xf32> to vector<64x64xf32>
    %95 = arith.mulf %90, %94 : vector<64x64xf32>
    %96 = arith.truncf %95 : vector<64x64xf32> to vector<64x64xbf16>
    %cst_32 = arith.constant dense<0.000000e+00> : vector<64x32xf32>
    %97 = tpu.matmul %96, %84, %cst_32 {dimension_numbers = #tpu.dot_dimension_numbers<[1], [0], [0], [1], [0, 0, 1, 1], [], []>} : vector<64x64xbf16>, vector<64x32xbf16>, vector<64x32xf32> -> vector<64x32xf32>
    %98 = arith.truncf %97 : vector<64x32xf32> to vector<64x32xbf16>
    %c2 = arith.constant 2 : index
    %c0_33 = arith.constant 0 : index
    %c0_34 = arith.constant 0 : index
    %99 = vector.load %arg5[%c2, %c0_33, %c0_34] : memref<4x32x128xbf16, #tpu.memory_space<vmem>>, vector<1x32x128xbf16>
    %100 = vector.shape_cast %99 : vector<1x32x128xbf16> to vector<32x128xbf16>
    %cst_35 = arith.constant dense<0.000000e+00> : vector<64x128xf32>
    %101 = tpu.matmul %98, %100, %cst_35 {dimension_numbers = #tpu.dot_dimension_numbers<[1], [0], [0], [1], [0, 0, 1, 1], [], []>} : vector<64x32xbf16>, vector<32x128xbf16>, vector<64x128xf32> -> vector<64x128xf32>
    %102 = arith.addf %78, %101 : vector<64x128xf32>
    %103 = vector.extract_strided_slice %29 {offsets = [0, 96], sizes = [64, 32], strides = [1, 1]} : vector<64x384xf32> to vector<64x32xf32>
    %104 = arith.truncf %103 : vector<64x32xf32> to vector<64x32xbf16>
    %105 = vector.extract_strided_slice %29 {offsets = [0, 224], sizes = [64, 32], strides = [1, 1]} : vector<64x384xf32> to vector<64x32xf32>
    %106 = arith.truncf %105 : vector<64x32xf32> to vector<64x32xbf16>
    %107 = vector.extract_strided_slice %29 {offsets = [0, 352], sizes = [64, 32], strides = [1, 1]} : vector<64x384xf32> to vector<64x32xf32>
    %108 = arith.truncf %107 : vector<64x32xf32> to vector<64x32xbf16>
    %cst_36 = arith.constant dense<0.000000e+00> : vector<64x64xf32>
    %109 = tpu.matmul %104, %106, %cst_36 {dimension_numbers = #tpu.dot_dimension_numbers<[1], [1], [0], [0], [0, 0, 1, 0], [], []>} : vector<64x32xbf16>, vector<64x32xbf16>, vector<64x64xf32> -> vector<64x64xf32>
    %cst_37 = arith.constant dense<0xFF800000> : vector<64xf32>
    %110 = vector.multi_reduction <maximumf>, %109, %cst_37 [1] : vector<64x64xf32> to vector<64xf32>
    %111 = vector.shape_cast %110 : vector<64xf32> to vector<64x1xf32>
    %112 = vector.broadcast %111 : vector<64x1xf32> to vector<64x64xf32>
    %113 = arith.subf %109, %112 : vector<64x64xf32>
    %114 = math.exp %113 : vector<64x64xf32>
    %cst_38 = arith.constant dense<0.000000e+00> : vector<64xf32>
    %115 = vector.multi_reduction <add>, %114, %cst_38 [1] : vector<64x64xf32> to vector<64xf32>
    %116 = vector.shape_cast %115 : vector<64xf32> to vector<64x1xf32>
    %117 = tpu.reciprocal %116 {approx = true} : vector<64x1xf32> -> vector<64x1xf32>
    %118 = vector.broadcast %117 : vector<64x1xf32> to vector<64x64xf32>
    %119 = arith.mulf %114, %118 : vector<64x64xf32>
    %120 = arith.truncf %119 : vector<64x64xf32> to vector<64x64xbf16>
    %cst_39 = arith.constant dense<0.000000e+00> : vector<64x32xf32>
    %121 = tpu.matmul %120, %108, %cst_39 {dimension_numbers = #tpu.dot_dimension_numbers<[1], [0], [0], [1], [0, 0, 1, 1], [], []>} : vector<64x64xbf16>, vector<64x32xbf16>, vector<64x32xf32> -> vector<64x32xf32>
    %122 = arith.truncf %121 : vector<64x32xf32> to vector<64x32xbf16>
    %c3 = arith.constant 3 : index
    %c0_40 = arith.constant 0 : index
    %c0_41 = arith.constant 0 : index
    %123 = vector.load %arg5[%c3, %c0_40, %c0_41] : memref<4x32x128xbf16, #tpu.memory_space<vmem>>, vector<1x32x128xbf16>
    %124 = vector.shape_cast %123 : vector<1x32x128xbf16> to vector<32x128xbf16>
    %cst_42 = arith.constant dense<0.000000e+00> : vector<64x128xf32>
    %125 = tpu.matmul %122, %124, %cst_42 {dimension_numbers = #tpu.dot_dimension_numbers<[1], [0], [0], [1], [0, 0, 1, 1], [], []>} : vector<64x32xbf16>, vector<32x128xbf16>, vector<64x128xf32> -> vector<64x128xf32>
    %126 = arith.addf %102, %125 : vector<64x128xf32>
    %127 = vector.extract_strided_slice %28 {offsets = [64, 0], sizes = [64, 384], strides = [1, 1]} : vector<128x384xf32> to vector<64x384xf32>
    %cst_43 = arith.constant 0.000000e+00 : f32
    %128 = vector.broadcast %cst_43 : f32 to vector<64x128xf32>
    %129 = vector.extract_strided_slice %127 {offsets = [0, 0], sizes = [64, 32], strides = [1, 1]} : vector<64x384xf32> to vector<64x32xf32>
    %130 = arith.truncf %129 : vector<64x32xf32> to vector<64x32xbf16>
    %131 = vector.extract_strided_slice %127 {offsets = [0, 128], sizes = [64, 32], strides = [1, 1]} : vector<64x384xf32> to vector<64x32xf32>
    %132 = arith.truncf %131 : vector<64x32xf32> to vector<64x32xbf16>
    %133 = vector.extract_strided_slice %127 {offsets = [0, 256], sizes = [64, 32], strides = [1, 1]} : vector<64x384xf32> to vector<64x32xf32>
    %134 = arith.truncf %133 : vector<64x32xf32> to vector<64x32xbf16>
    %cst_44 = arith.constant dense<0.000000e+00> : vector<64x64xf32>
    %135 = tpu.matmul %130, %132, %cst_44 {dimension_numbers = #tpu.dot_dimension_numbers<[1], [1], [0], [0], [0, 0, 1, 0], [], []>} : vector<64x32xbf16>, vector<64x32xbf16>, vector<64x64xf32> -> vector<64x64xf32>
    %cst_45 = arith.constant dense<0xFF800000> : vector<64xf32>
    %136 = vector.multi_reduction <maximumf>, %135, %cst_45 [1] : vector<64x64xf32> to vector<64xf32>
    %137 = vector.shape_cast %136 : vector<64xf32> to vector<64x1xf32>
    %138 = vector.broadcast %137 : vector<64x1xf32> to vector<64x64xf32>
    %139 = arith.subf %135, %138 : vector<64x64xf32>
    %140 = math.exp %139 : vector<64x64xf32>
    %cst_46 = arith.constant dense<0.000000e+00> : vector<64xf32>
    %141 = vector.multi_reduction <add>, %140, %cst_46 [1] : vector<64x64xf32> to vector<64xf32>
    %142 = vector.shape_cast %141 : vector<64xf32> to vector<64x1xf32>
    %143 = tpu.reciprocal %142 {approx = true} : vector<64x1xf32> -> vector<64x1xf32>
    %144 = vector.broadcast %143 : vector<64x1xf32> to vector<64x64xf32>
    %145 = arith.mulf %140, %144 : vector<64x64xf32>
    %146 = arith.truncf %145 : vector<64x64xf32> to vector<64x64xbf16>
    %cst_47 = arith.constant dense<0.000000e+00> : vector<64x32xf32>
    %147 = tpu.matmul %146, %134, %cst_47 {dimension_numbers = #tpu.dot_dimension_numbers<[1], [0], [0], [1], [0, 0, 1, 1], [], []>} : vector<64x64xbf16>, vector<64x32xbf16>, vector<64x32xf32> -> vector<64x32xf32>
    %148 = arith.truncf %147 : vector<64x32xf32> to vector<64x32xbf16>
    %c0_48 = arith.constant 0 : index
    %c0_49 = arith.constant 0 : index
    %c0_50 = arith.constant 0 : index
    %149 = vector.load %arg5[%c0_48, %c0_49, %c0_50] : memref<4x32x128xbf16, #tpu.memory_space<vmem>>, vector<1x32x128xbf16>
    %150 = vector.shape_cast %149 : vector<1x32x128xbf16> to vector<32x128xbf16>
    %cst_51 = arith.constant dense<0.000000e+00> : vector<64x128xf32>
    %151 = tpu.matmul %148, %150, %cst_51 {dimension_numbers = #tpu.dot_dimension_numbers<[1], [0], [0], [1], [0, 0, 1, 1], [], []>} : vector<64x32xbf16>, vector<32x128xbf16>, vector<64x128xf32> -> vector<64x128xf32>
    %152 = arith.addf %128, %151 : vector<64x128xf32>
    %153 = vector.extract_strided_slice %127 {offsets = [0, 32], sizes = [64, 32], strides = [1, 1]} : vector<64x384xf32> to vector<64x32xf32>
    %154 = arith.truncf %153 : vector<64x32xf32> to vector<64x32xbf16>
    %155 = vector.extract_strided_slice %127 {offsets = [0, 160], sizes = [64, 32], strides = [1, 1]} : vector<64x384xf32> to vector<64x32xf32>
    %156 = arith.truncf %155 : vector<64x32xf32> to vector<64x32xbf16>
    %157 = vector.extract_strided_slice %127 {offsets = [0, 288], sizes = [64, 32], strides = [1, 1]} : vector<64x384xf32> to vector<64x32xf32>
    %158 = arith.truncf %157 : vector<64x32xf32> to vector<64x32xbf16>
    %cst_52 = arith.constant dense<0.000000e+00> : vector<64x64xf32>
    %159 = tpu.matmul %154, %156, %cst_52 {dimension_numbers = #tpu.dot_dimension_numbers<[1], [1], [0], [0], [0, 0, 1, 0], [], []>} : vector<64x32xbf16>, vector<64x32xbf16>, vector<64x64xf32> -> vector<64x64xf32>
    %cst_53 = arith.constant dense<0xFF800000> : vector<64xf32>
    %160 = vector.multi_reduction <maximumf>, %159, %cst_53 [1] : vector<64x64xf32> to vector<64xf32>
    %161 = vector.shape_cast %160 : vector<64xf32> to vector<64x1xf32>
    %162 = vector.broadcast %161 : vector<64x1xf32> to vector<64x64xf32>
    %163 = arith.subf %159, %162 : vector<64x64xf32>
    %164 = math.exp %163 : vector<64x64xf32>
    %cst_54 = arith.constant dense<0.000000e+00> : vector<64xf32>
    %165 = vector.multi_reduction <add>, %164, %cst_54 [1] : vector<64x64xf32> to vector<64xf32>
    %166 = vector.shape_cast %165 : vector<64xf32> to vector<64x1xf32>
    %167 = tpu.reciprocal %166 {approx = true} : vector<64x1xf32> -> vector<64x1xf32>
    %168 = vector.broadcast %167 : vector<64x1xf32> to vector<64x64xf32>
    %169 = arith.mulf %164, %168 : vector<64x64xf32>
    %170 = arith.truncf %169 : vector<64x64xf32> to vector<64x64xbf16>
    %cst_55 = arith.constant dense<0.000000e+00> : vector<64x32xf32>
    %171 = tpu.matmul %170, %158, %cst_55 {dimension_numbers = #tpu.dot_dimension_numbers<[1], [0], [0], [1], [0, 0, 1, 1], [], []>} : vector<64x64xbf16>, vector<64x32xbf16>, vector<64x32xf32> -> vector<64x32xf32>
    %172 = arith.truncf %171 : vector<64x32xf32> to vector<64x32xbf16>
    %c1_56 = arith.constant 1 : index
    %c0_57 = arith.constant 0 : index
    %c0_58 = arith.constant 0 : index
    %173 = vector.load %arg5[%c1_56, %c0_57, %c0_58] : memref<4x32x128xbf16, #tpu.memory_space<vmem>>, vector<1x32x128xbf16>
    %174 = vector.shape_cast %173 : vector<1x32x128xbf16> to vector<32x128xbf16>
    %cst_59 = arith.constant dense<0.000000e+00> : vector<64x128xf32>
    %175 = tpu.matmul %172, %174, %cst_59 {dimension_numbers = #tpu.dot_dimension_numbers<[1], [0], [0], [1], [0, 0, 1, 1], [], []>} : vector<64x32xbf16>, vector<32x128xbf16>, vector<64x128xf32> -> vector<64x128xf32>
    %176 = arith.addf %152, %175 : vector<64x128xf32>
    %177 = vector.extract_strided_slice %127 {offsets = [0, 64], sizes = [64, 32], strides = [1, 1]} : vector<64x384xf32> to vector<64x32xf32>
    %178 = arith.truncf %177 : vector<64x32xf32> to vector<64x32xbf16>
    %179 = vector.extract_strided_slice %127 {offsets = [0, 192], sizes = [64, 32], strides = [1, 1]} : vector<64x384xf32> to vector<64x32xf32>
    %180 = arith.truncf %179 : vector<64x32xf32> to vector<64x32xbf16>
    %181 = vector.extract_strided_slice %127 {offsets = [0, 320], sizes = [64, 32], strides = [1, 1]} : vector<64x384xf32> to vector<64x32xf32>
    %182 = arith.truncf %181 : vector<64x32xf32> to vector<64x32xbf16>
    %cst_60 = arith.constant dense<0.000000e+00> : vector<64x64xf32>
    %183 = tpu.matmul %178, %180, %cst_60 {dimension_numbers = #tpu.dot_dimension_numbers<[1], [1], [0], [0], [0, 0, 1, 0], [], []>} : vector<64x32xbf16>, vector<64x32xbf16>, vector<64x64xf32> -> vector<64x64xf32>
    %cst_61 = arith.constant dense<0xFF800000> : vector<64xf32>
    %184 = vector.multi_reduction <maximumf>, %183, %cst_61 [1] : vector<64x64xf32> to vector<64xf32>
    %185 = vector.shape_cast %184 : vector<64xf32> to vector<64x1xf32>
    %186 = vector.broadcast %185 : vector<64x1xf32> to vector<64x64xf32>
    %187 = arith.subf %183, %186 : vector<64x64xf32>
    %188 = math.exp %187 : vector<64x64xf32>
    %cst_62 = arith.constant dense<0.000000e+00> : vector<64xf32>
    %189 = vector.multi_reduction <add>, %188, %cst_62 [1] : vector<64x64xf32> to vector<64xf32>
    %190 = vector.shape_cast %189 : vector<64xf32> to vector<64x1xf32>
    %191 = tpu.reciprocal %190 {approx = true} : vector<64x1xf32> -> vector<64x1xf32>
    %192 = vector.broadcast %191 : vector<64x1xf32> to vector<64x64xf32>
    %193 = arith.mulf %188, %192 : vector<64x64xf32>
    %194 = arith.truncf %193 : vector<64x64xf32> to vector<64x64xbf16>
    %cst_63 = arith.constant dense<0.000000e+00> : vector<64x32xf32>
    %195 = tpu.matmul %194, %182, %cst_63 {dimension_numbers = #tpu.dot_dimension_numbers<[1], [0], [0], [1], [0, 0, 1, 1], [], []>} : vector<64x64xbf16>, vector<64x32xbf16>, vector<64x32xf32> -> vector<64x32xf32>
    %196 = arith.truncf %195 : vector<64x32xf32> to vector<64x32xbf16>
    %c2_64 = arith.constant 2 : index
    %c0_65 = arith.constant 0 : index
    %c0_66 = arith.constant 0 : index
    %197 = vector.load %arg5[%c2_64, %c0_65, %c0_66] : memref<4x32x128xbf16, #tpu.memory_space<vmem>>, vector<1x32x128xbf16>
    %198 = vector.shape_cast %197 : vector<1x32x128xbf16> to vector<32x128xbf16>
    %cst_67 = arith.constant dense<0.000000e+00> : vector<64x128xf32>
    %199 = tpu.matmul %196, %198, %cst_67 {dimension_numbers = #tpu.dot_dimension_numbers<[1], [0], [0], [1], [0, 0, 1, 1], [], []>} : vector<64x32xbf16>, vector<32x128xbf16>, vector<64x128xf32> -> vector<64x128xf32>
    %200 = arith.addf %176, %199 : vector<64x128xf32>
    %201 = vector.extract_strided_slice %127 {offsets = [0, 96], sizes = [64, 32], strides = [1, 1]} : vector<64x384xf32> to vector<64x32xf32>
    %202 = arith.truncf %201 : vector<64x32xf32> to vector<64x32xbf16>
    %203 = vector.extract_strided_slice %127 {offsets = [0, 224], sizes = [64, 32], strides = [1, 1]} : vector<64x384xf32> to vector<64x32xf32>
    %204 = arith.truncf %203 : vector<64x32xf32> to vector<64x32xbf16>
    %205 = vector.extract_strided_slice %127 {offsets = [0, 352], sizes = [64, 32], strides = [1, 1]} : vector<64x384xf32> to vector<64x32xf32>
    %206 = arith.truncf %205 : vector<64x32xf32> to vector<64x32xbf16>
    %cst_68 = arith.constant dense<0.000000e+00> : vector<64x64xf32>
    %207 = tpu.matmul %202, %204, %cst_68 {dimension_numbers = #tpu.dot_dimension_numbers<[1], [1], [0], [0], [0, 0, 1, 0], [], []>} : vector<64x32xbf16>, vector<64x32xbf16>, vector<64x64xf32> -> vector<64x64xf32>
    %cst_69 = arith.constant dense<0xFF800000> : vector<64xf32>
    %208 = vector.multi_reduction <maximumf>, %207, %cst_69 [1] : vector<64x64xf32> to vector<64xf32>
    %209 = vector.shape_cast %208 : vector<64xf32> to vector<64x1xf32>
    %210 = vector.broadcast %209 : vector<64x1xf32> to vector<64x64xf32>
    %211 = arith.subf %207, %210 : vector<64x64xf32>
    %212 = math.exp %211 : vector<64x64xf32>
    %cst_70 = arith.constant dense<0.000000e+00> : vector<64xf32>
    %213 = vector.multi_reduction <add>, %212, %cst_70 [1] : vector<64x64xf32> to vector<64xf32>
    %214 = vector.shape_cast %213 : vector<64xf32> to vector<64x1xf32>
    %215 = tpu.reciprocal %214 {approx = true} : vector<64x1xf32> -> vector<64x1xf32>
    %216 = vector.broadcast %215 : vector<64x1xf32> to vector<64x64xf32>
    %217 = arith.mulf %212, %216 : vector<64x64xf32>
    %218 = arith.truncf %217 : vector<64x64xf32> to vector<64x64xbf16>
    %cst_71 = arith.constant dense<0.000000e+00> : vector<64x32xf32>
    %219 = tpu.matmul %218, %206, %cst_71 {dimension_numbers = #tpu.dot_dimension_numbers<[1], [0], [0], [1], [0, 0, 1, 1], [], []>} : vector<64x64xbf16>, vector<64x32xbf16>, vector<64x32xf32> -> vector<64x32xf32>
    %220 = arith.truncf %219 : vector<64x32xf32> to vector<64x32xbf16>
    %c3_72 = arith.constant 3 : index
    %c0_73 = arith.constant 0 : index
    %c0_74 = arith.constant 0 : index
    %221 = vector.load %arg5[%c3_72, %c0_73, %c0_74] : memref<4x32x128xbf16, #tpu.memory_space<vmem>>, vector<1x32x128xbf16>
    %222 = vector.shape_cast %221 : vector<1x32x128xbf16> to vector<32x128xbf16>
    %cst_75 = arith.constant dense<0.000000e+00> : vector<64x128xf32>
    %223 = tpu.matmul %220, %222, %cst_75 {dimension_numbers = #tpu.dot_dimension_numbers<[1], [0], [0], [1], [0, 0, 1, 1], [], []>} : vector<64x32xbf16>, vector<32x128xbf16>, vector<64x128xf32> -> vector<64x128xf32>
    %224 = arith.addf %200, %223 : vector<64x128xf32>
    %225 = tpu.concatenate %126, %224 in 0 : vector<64x128xf32>, vector<64x128xf32> -> vector<128x128xf32>
    %226 = arith.addf %1, %225 : vector<128x128xf32>
    %c0_76 = arith.constant 0 : index
    %c0_77 = arith.constant 0 : index
    %227 = vector.load %arg6[%c0_76, %c0_77] : memref<1x128xf32, #tpu.memory_space<vmem>>, vector<1x128xf32>
    %228 = vector.broadcast %227 : vector<1x128xf32> to vector<128x128xf32>
    %229 = arith.addf %226, %228 : vector<128x128xf32>
    %c0_78 = arith.constant 0 : index
    %c0_79 = arith.constant 0 : index
    %230 = vector.load %arg7[%c0_78, %c0_79] : memref<1x128xf32, #tpu.memory_space<vmem>>, vector<1x128xf32>
    %c0_80 = arith.constant 0 : index
    %c0_81 = arith.constant 0 : index
    %231 = vector.load %arg8[%c0_80, %c0_81] : memref<1x128xf32, #tpu.memory_space<vmem>>, vector<1x128xf32>
    %cst_82 = arith.constant dense<0.000000e+00> : vector<128xf32>
    %232 = vector.multi_reduction <add>, %229, %cst_82 [1] : vector<128x128xf32> to vector<128xf32>
    %233 = vector.shape_cast %232 : vector<128xf32> to vector<128x1xf32>
    %cst_83 = arith.constant 1.280000e+02 : f32
    %234 = vector.broadcast %cst_83 : f32 to vector<128x1xf32>
    %235 = arith.divf %233, %234 : vector<128x1xf32>
    %236 = vector.broadcast %235 : vector<128x1xf32> to vector<128x128xf32>
    %237 = arith.subf %229, %236 : vector<128x128xf32>
    %238 = arith.mulf %237, %237 : vector<128x128xf32>
    %cst_84 = arith.constant dense<0.000000e+00> : vector<128xf32>
    %239 = vector.multi_reduction <add>, %238, %cst_84 [1] : vector<128x128xf32> to vector<128xf32>
    %240 = vector.shape_cast %239 : vector<128xf32> to vector<128x1xf32>
    %cst_85 = arith.constant 1.280000e+02 : f32
    %241 = vector.broadcast %cst_85 : f32 to vector<128x1xf32>
    %242 = arith.divf %240, %241 : vector<128x1xf32>
    %243 = vector.broadcast %235 : vector<128x1xf32> to vector<128x128xf32>
    %244 = arith.subf %229, %243 : vector<128x128xf32>
    %cst_86 = arith.constant 9.99999974E-6 : f32
    %245 = vector.broadcast %cst_86 : f32 to vector<128x1xf32>
    %246 = arith.addf %242, %245 : vector<128x1xf32>
    %247 = math.rsqrt %246 : vector<128x1xf32>
    %248 = vector.broadcast %247 : vector<128x1xf32> to vector<128x128xf32>
    %249 = arith.mulf %244, %248 : vector<128x128xf32>
    %250 = vector.broadcast %230 : vector<1x128xf32> to vector<128x128xf32>
    %251 = arith.mulf %249, %250 : vector<128x128xf32>
    %252 = vector.broadcast %231 : vector<1x128xf32> to vector<128x128xf32>
    %253 = arith.addf %251, %252 : vector<128x128xf32>
    %254 = arith.truncf %253 : vector<128x128xf32> to vector<128x128xbf16>
    %c0_87 = arith.constant 0 : index
    %c0_88 = arith.constant 0 : index
    %255 = vector.load %arg9[%c0_87, %c0_88] : memref<128x512xbf16, #tpu.memory_space<vmem>>, vector<128x512xbf16>
    %cst_89 = arith.constant dense<0.000000e+00> : vector<128x512xf32>
    %256 = tpu.matmul %254, %255, %cst_89 {dimension_numbers = #tpu.dot_dimension_numbers<[1], [0], [0], [1], [0, 0, 1, 1], [], []>} : vector<128x128xbf16>, vector<128x512xbf16>, vector<128x512xf32> -> vector<128x512xf32>
    %c0_90 = arith.constant 0 : index
    %c0_91 = arith.constant 0 : index
    %257 = vector.load %arg10[%c0_90, %c0_91] : memref<1x512xf32, #tpu.memory_space<vmem>>, vector<1x512xf32>
    %258 = vector.broadcast %257 : vector<1x512xf32> to vector<128x512xf32>
    %259 = arith.addf %256, %258 : vector<128x512xf32>
    %cst_92 = arith.constant 0.000000e+00 : f32
    %260 = vector.broadcast %cst_92 : f32 to vector<16x512xf32>
    %c0_93 = arith.constant 0 : index
    %c0_94 = arith.constant 0 : index
    %261 = vector.load %arg17[%c0_93, %c0_94] : memref<160x512xf32, #tpu.memory_space<vmem>>, vector<16x512xf32>
    tpu.vector_store %arg17[%c0_93, %c0_94], %260 {strides = array<i32>} : memref<160x512xf32, #tpu.memory_space<vmem>>, vector<16x512xf32>,
    %cst_95 = arith.constant 0.000000e+00 : f32
    %262 = vector.broadcast %cst_95 : f32 to vector<16x512xf32>
    %c144 = arith.constant 144 : index
    %c0_96 = arith.constant 0 : index
    %263 = vector.load %arg17[%c144, %c0_96] : memref<160x512xf32, #tpu.memory_space<vmem>>, vector<16x512xf32>
    tpu.vector_store %arg17[%c144, %c0_96], %262 {strides = array<i32>} : memref<160x512xf32, #tpu.memory_space<vmem>>, vector<16x512xf32>,
    %c16 = arith.constant 16 : index
    %c0_97 = arith.constant 0 : index
    %264 = vector.load %arg17[%c16, %c0_97] : memref<160x512xf32, #tpu.memory_space<vmem>>, vector<128x512xf32>
    tpu.vector_store %arg17[%c16, %c0_97], %259 {strides = array<i32>} : memref<160x512xf32, #tpu.memory_space<vmem>>, vector<128x512xf32>,
    %cst_98 = arith.constant 0.000000e+00 : f32
    %265 = vector.broadcast %cst_98 : f32 to vector<128x512xf32>
    %c7 = arith.constant 7 : index
    %c0_99 = arith.constant 0 : index
    %266 = vector.load %arg17[%c7, %c0_99] : memref<160x512xf32, #tpu.memory_space<vmem>>, vector<128x512xf32>
    %c0_100 = arith.constant 0 : index
    %c0_101 = arith.constant 0 : index
    %c0_102 = arith.constant 0 : index
    %267 = vector.load %arg13[%c0_100, %c0_101, %c0_102] : memref<9x128x1xf32, #tpu.memory_space<vmem>>, vector<1x128x1xf32>
    %268 = vector.shape_cast %267 : vector<1x128x1xf32> to vector<128x1xf32>
    %269 = vector.broadcast %268 : vector<128x1xf32> to vector<128x512xf32>
    %270 = arith.mulf %266, %269 : vector<128x512xf32>
    %c0_103 = arith.constant 0 : index
    %c0_104 = arith.constant 0 : index
    %c0_105 = arith.constant 0 : index
    %271 = vector.load %arg11[%c0_103, %c0_104, %c0_105] : memref<9x1x512xf32, #tpu.memory_space<vmem>>, vector<1x1x512xf32>
    %272 = vector.shape_cast %271 : vector<1x1x512xf32> to vector<1x512xf32>
    %273 = vector.broadcast %272 : vector<1x512xf32> to vector<128x512xf32>
    %274 = arith.mulf %270, %273 : vector<128x512xf32>
    %275 = arith.addf %265, %274 : vector<128x512xf32>
    %c8 = arith.constant 8 : index
    %c0_106 = arith.constant 0 : index
    %276 = vector.load %arg17[%c8, %c0_106] : memref<160x512xf32, #tpu.memory_space<vmem>>, vector<128x512xf32>
    %c1_107 = arith.constant 1 : index
    %c0_108 = arith.constant 0 : index
    %c0_109 = arith.constant 0 : index
    %277 = vector.load %arg13[%c1_107, %c0_108, %c0_109] : memref<9x128x1xf32, #tpu.memory_space<vmem>>, vector<1x128x1xf32>
    %278 = vector.shape_cast %277 : vector<1x128x1xf32> to vector<128x1xf32>
    %279 = vector.broadcast %278 : vector<128x1xf32> to vector<128x512xf32>
    %280 = arith.mulf %276, %279 : vector<128x512xf32>
    %c1_110 = arith.constant 1 : index
    %c0_111 = arith.constant 0 : index
    %c0_112 = arith.constant 0 : index
    %281 = vector.load %arg11[%c1_110, %c0_111, %c0_112] : memref<9x1x512xf32, #tpu.memory_space<vmem>>, vector<1x1x512xf32>
    %282 = vector.shape_cast %281 : vector<1x1x512xf32> to vector<1x512xf32>
    %283 = vector.broadcast %282 : vector<1x512xf32> to vector<128x512xf32>
    %284 = arith.mulf %280, %283 : vector<128x512xf32>
    %285 = arith.addf %275, %284 : vector<128x512xf32>
    %c9 = arith.constant 9 : index
    %c0_113 = arith.constant 0 : index
    %286 = vector.load %arg17[%c9, %c0_113] : memref<160x512xf32, #tpu.memory_space<vmem>>, vector<128x512xf32>
    %c2_114 = arith.constant 2 : index
    %c0_115 = arith.constant 0 : index
    %c0_116 = arith.constant 0 : index
    %287 = vector.load %arg13[%c2_114, %c0_115, %c0_116] : memref<9x128x1xf32, #tpu.memory_space<vmem>>, vector<1x128x1xf32>
    %288 = vector.shape_cast %287 : vector<1x128x1xf32> to vector<128x1xf32>
    %289 = vector.broadcast %288 : vector<128x1xf32> to vector<128x512xf32>
    %290 = arith.mulf %286, %289 : vector<128x512xf32>
    %c2_117 = arith.constant 2 : index
    %c0_118 = arith.constant 0 : index
    %c0_119 = arith.constant 0 : index
    %291 = vector.load %arg11[%c2_117, %c0_118, %c0_119] : memref<9x1x512xf32, #tpu.memory_space<vmem>>, vector<1x1x512xf32>
    %292 = vector.shape_cast %291 : vector<1x1x512xf32> to vector<1x512xf32>
    %293 = vector.broadcast %292 : vector<1x512xf32> to vector<128x512xf32>
    %294 = arith.mulf %290, %293 : vector<128x512xf32>
    %295 = arith.addf %285, %294 : vector<128x512xf32>
    %c15 = arith.constant 15 : index
    %c0_120 = arith.constant 0 : index
    %296 = vector.load %arg17[%c15, %c0_120] : memref<160x512xf32, #tpu.memory_space<vmem>>, vector<128x512xf32>
    %c3_121 = arith.constant 3 : index
    %c0_122 = arith.constant 0 : index
    %c0_123 = arith.constant 0 : index
    %297 = vector.load %arg13[%c3_121, %c0_122, %c0_123] : memref<9x128x1xf32, #tpu.memory_space<vmem>>, vector<1x128x1xf32>
    %298 = vector.shape_cast %297 : vector<1x128x1xf32> to vector<128x1xf32>
    %299 = vector.broadcast %298 : vector<128x1xf32> to vector<128x512xf32>
    %300 = arith.mulf %296, %299 : vector<128x512xf32>
    %c3_124 = arith.constant 3 : index
    %c0_125 = arith.constant 0 : index
    %c0_126 = arith.constant 0 : index
    %301 = vector.load %arg11[%c3_124, %c0_125, %c0_126] : memref<9x1x512xf32, #tpu.memory_space<vmem>>, vector<1x1x512xf32>
    %302 = vector.shape_cast %301 : vector<1x1x512xf32> to vector<1x512xf32>
    %303 = vector.broadcast %302 : vector<1x512xf32> to vector<128x512xf32>
    %304 = arith.mulf %300, %303 : vector<128x512xf32>
    %305 = arith.addf %295, %304 : vector<128x512xf32>
    %c16_127 = arith.constant 16 : index
    %c0_128 = arith.constant 0 : index
    %306 = vector.load %arg17[%c16_127, %c0_128] : memref<160x512xf32, #tpu.memory_space<vmem>>, vector<128x512xf32>
    %c4 = arith.constant 4 : index
    %c0_129 = arith.constant 0 : index
    %c0_130 = arith.constant 0 : index
    %307 = vector.load %arg13[%c4, %c0_129, %c0_130] : memref<9x128x1xf32, #tpu.memory_space<vmem>>, vector<1x128x1xf32>
    %308 = vector.shape_cast %307 : vector<1x128x1xf32> to vector<128x1xf32>
    %309 = vector.broadcast %308 : vector<128x1xf32> to vector<128x512xf32>
    %310 = arith.mulf %306, %309 : vector<128x512xf32>
    %c4_131 = arith.constant 4 : index
    %c0_132 = arith.constant 0 : index
    %c0_133 = arith.constant 0 : index
    %311 = vector.load %arg11[%c4_131, %c0_132, %c0_133] : memref<9x1x512xf32, #tpu.memory_space<vmem>>, vector<1x1x512xf32>
    %312 = vector.shape_cast %311 : vector<1x1x512xf32> to vector<1x512xf32>
    %313 = vector.broadcast %312 : vector<1x512xf32> to vector<128x512xf32>
    %314 = arith.mulf %310, %313 : vector<128x512xf32>
    %315 = arith.addf %305, %314 : vector<128x512xf32>
    %c17 = arith.constant 17 : index
    %c0_134 = arith.constant 0 : index
    %316 = vector.load %arg17[%c17, %c0_134] : memref<160x512xf32, #tpu.memory_space<vmem>>, vector<128x512xf32>
    %c5 = arith.constant 5 : index
    %c0_135 = arith.constant 0 : index
    %c0_136 = arith.constant 0 : index
    %317 = vector.load %arg13[%c5, %c0_135, %c0_136] : memref<9x128x1xf32, #tpu.memory_space<vmem>>, vector<1x128x1xf32>
    %318 = vector.shape_cast %317 : vector<1x128x1xf32> to vector<128x1xf32>
    %319 = vector.broadcast %318 : vector<128x1xf32> to vector<128x512xf32>
    %320 = arith.mulf %316, %319 : vector<128x512xf32>
    %c5_137 = arith.constant 5 : index
    %c0_138 = arith.constant 0 : index
    %c0_139 = arith.constant 0 : index
    %321 = vector.load %arg11[%c5_137, %c0_138, %c0_139] : memref<9x1x512xf32, #tpu.memory_space<vmem>>, vector<1x1x512xf32>
    %322 = vector.shape_cast %321 : vector<1x1x512xf32> to vector<1x512xf32>
    %323 = vector.broadcast %322 : vector<1x512xf32> to vector<128x512xf32>
    %324 = arith.mulf %320, %323 : vector<128x512xf32>
    %325 = arith.addf %315, %324 : vector<128x512xf32>
    %c23 = arith.constant 23 : index
    %c0_140 = arith.constant 0 : index
    %326 = vector.load %arg17[%c23, %c0_140] : memref<160x512xf32, #tpu.memory_space<vmem>>, vector<128x512xf32>
    %c6 = arith.constant 6 : index
    %c0_141 = arith.constant 0 : index
    %c0_142 = arith.constant 0 : index
    %327 = vector.load %arg13[%c6, %c0_141, %c0_142] : memref<9x128x1xf32, #tpu.memory_space<vmem>>, vector<1x128x1xf32>
    %328 = vector.shape_cast %327 : vector<1x128x1xf32> to vector<128x1xf32>
    %329 = vector.broadcast %328 : vector<128x1xf32> to vector<128x512xf32>
    %330 = arith.mulf %326, %329 : vector<128x512xf32>
    %c6_143 = arith.constant 6 : index
    %c0_144 = arith.constant 0 : index
    %c0_145 = arith.constant 0 : index
    %331 = vector.load %arg11[%c6_143, %c0_144, %c0_145] : memref<9x1x512xf32, #tpu.memory_space<vmem>>, vector<1x1x512xf32>
    %332 = vector.shape_cast %331 : vector<1x1x512xf32> to vector<1x512xf32>
    %333 = vector.broadcast %332 : vector<1x512xf32> to vector<128x512xf32>
    %334 = arith.mulf %330, %333 : vector<128x512xf32>
    %335 = arith.addf %325, %334 : vector<128x512xf32>
    %c24 = arith.constant 24 : index
    %c0_146 = arith.constant 0 : index
    %336 = vector.load %arg17[%c24, %c0_146] : memref<160x512xf32, #tpu.memory_space<vmem>>, vector<128x512xf32>
    %c7_147 = arith.constant 7 : index
    %c0_148 = arith.constant 0 : index
    %c0_149 = arith.constant 0 : index
    %337 = vector.load %arg13[%c7_147, %c0_148, %c0_149] : memref<9x128x1xf32, #tpu.memory_space<vmem>>, vector<1x128x1xf32>
    %338 = vector.shape_cast %337 : vector<1x128x1xf32> to vector<128x1xf32>
    %339 = vector.broadcast %338 : vector<128x1xf32> to vector<128x512xf32>
    %340 = arith.mulf %336, %339 : vector<128x512xf32>
    %c7_150 = arith.constant 7 : index
    %c0_151 = arith.constant 0 : index
    %c0_152 = arith.constant 0 : index
    %341 = vector.load %arg11[%c7_150, %c0_151, %c0_152] : memref<9x1x512xf32, #tpu.memory_space<vmem>>, vector<1x1x512xf32>
    %342 = vector.shape_cast %341 : vector<1x1x512xf32> to vector<1x512xf32>
    %343 = vector.broadcast %342 : vector<1x512xf32> to vector<128x512xf32>
    %344 = arith.mulf %340, %343 : vector<128x512xf32>
    %345 = arith.addf %335, %344 : vector<128x512xf32>
    %c25 = arith.constant 25 : index
    %c0_153 = arith.constant 0 : index
    %346 = vector.load %arg17[%c25, %c0_153] : memref<160x512xf32, #tpu.memory_space<vmem>>, vector<128x512xf32>
    %c8_154 = arith.constant 8 : index
    %c0_155 = arith.constant 0 : index
    %c0_156 = arith.constant 0 : index
    %347 = vector.load %arg13[%c8_154, %c0_155, %c0_156] : memref<9x128x1xf32, #tpu.memory_space<vmem>>, vector<1x128x1xf32>
    %348 = vector.shape_cast %347 : vector<1x128x1xf32> to vector<128x1xf32>
    %349 = vector.broadcast %348 : vector<128x1xf32> to vector<128x512xf32>
    %350 = arith.mulf %346, %349 : vector<128x512xf32>
    %c8_157 = arith.constant 8 : index
    %c0_158 = arith.constant 0 : index
    %c0_159 = arith.constant 0 : index
    %351 = vector.load %arg11[%c8_157, %c0_158, %c0_159] : memref<9x1x512xf32, #tpu.memory_space<vmem>>, vector<1x1x512xf32>
    %352 = vector.shape_cast %351 : vector<1x1x512xf32> to vector<1x512xf32>
    %353 = vector.broadcast %352 : vector<1x512xf32> to vector<128x512xf32>
    %354 = arith.mulf %350, %353 : vector<128x512xf32>
    %355 = arith.addf %345, %354 : vector<128x512xf32>
    %c0_160 = arith.constant 0 : index
    %c0_161 = arith.constant 0 : index
    %356 = vector.load %arg12[%c0_160, %c0_161] : memref<1x512xf32, #tpu.memory_space<vmem>>, vector<1x512xf32>
    %357 = vector.broadcast %356 : vector<1x512xf32> to vector<128x512xf32>
    %358 = arith.addf %355, %357 : vector<128x512xf32>
    %cst_162 = arith.constant 5.000000e-01 : f32
    %359 = vector.broadcast %cst_162 : f32 to vector<128x512xf32>
    %360 = arith.mulf %358, %359 : vector<128x512xf32>
    %cst_163 = arith.constant 0.707106769 : f32
    %361 = vector.broadcast %cst_163 : f32 to vector<128x512xf32>
    %362 = arith.mulf %358, %361 : vector<128x512xf32>
    %363 = math.erf %362 : vector<128x512xf32>
    %cst_164 = arith.constant 1.000000e+00 : f32
    %364 = vector.broadcast %cst_164 : f32 to vector<128x512xf32>
    %365 = arith.addf %364, %363 : vector<128x512xf32>
    %366 = arith.mulf %360, %365 : vector<128x512xf32>
    %367 = arith.truncf %366 : vector<128x512xf32> to vector<128x512xbf16>
    %c0_165 = arith.constant 0 : index
    %c0_166 = arith.constant 0 : index
    %368 = vector.load %arg14[%c0_165, %c0_166] : memref<512x128xbf16, #tpu.memory_space<vmem>>, vector<512x128xbf16>
    %cst_167 = arith.constant dense<0.000000e+00> : vector<128x128xf32>
    %369 = tpu.matmul %367, %368, %cst_167 {dimension_numbers = #tpu.dot_dimension_numbers<[1], [0], [0], [1], [0, 0, 1, 1], [], []>} : vector<128x512xbf16>, vector<512x128xbf16>, vector<128x128xf32> -> vector<128x128xf32>
    %c0_168 = arith.constant 0 : index
    %c0_169 = arith.constant 0 : index
    %370 = vector.load %arg15[%c0_168, %c0_169] : memref<1x128xf32, #tpu.memory_space<vmem>>, vector<1x128xf32>
    %371 = vector.broadcast %370 : vector<1x128xf32> to vector<128x128xf32>
    %372 = arith.addf %369, %371 : vector<128x128xf32>
    %373 = arith.addf %229, %372 : vector<128x128xf32>
    %374 = vector.shape_cast %373 : vector<128x128xf32> to vector<2x64x128xf32>
    %c0_170 = arith.constant 0 : index
    %c0_171 = arith.constant 0 : index
    %c0_172 = arith.constant 0 : index
    %375 = vector.load %arg16[%c0_170, %c0_171, %c0_172] : memref<2x64x128xf32, #tpu.memory_space<vmem>>, vector<2x64x128xf32>
    tpu.vector_store %arg16[%c0_170, %c0_171, %c0_172], %374 {strides = array<i32>} : memref<2x64x128xf32, #tpu.memory_space<vmem>>, vector<2x64x128xf32>,
    return
  }
  func.func @transform_0(%arg0: i32) -> (i32, i32, i32) {
    %c0_i32 = arith.constant 0 : i32
    %c0_i32_0 = arith.constant 0 : i32
    %c0_i32_1 = arith.constant 0 : i32
    return %arg0, %c0_i32, %c0_i32_0 : i32, i32, i32
  }
  func.func @transform_1(%arg0: i32) -> (i32, i32) {
    %c0_i32 = arith.constant 0 : i32
    %c0_i32_0 = arith.constant 0 : i32
    %c0_i32_1 = arith.constant 0 : i32
    return %c0_i32, %c0_i32_0 : i32, i32
  }
  func.func @transform_2(%arg0: i32) -> (i32, i32) {
    %c0_i32 = arith.constant 0 : i32
    %c0_i32_0 = arith.constant 0 : i32
    %c0_i32_1 = arith.constant 0 : i32
    return %c0_i32, %c0_i32_0 : i32, i32
  }
  func.func @transform_3(%arg0: i32) -> (i32, i32) {
    %c0_i32 = arith.constant 0 : i32
    %c0_i32_0 = arith.constant 0 : i32
    %c0_i32_1 = arith.constant 0 : i32
    return %c0_i32, %c0_i32_0 : i32, i32
  }
  func.func @transform_4(%arg0: i32) -> (i32, i32, i32) {
    %c0_i32 = arith.constant 0 : i32
    %c0_i32_0 = arith.constant 0 : i32
    %c0_i32_1 = arith.constant 0 : i32
    %c0_i32_2 = arith.constant 0 : i32
    return %c0_i32, %c0_i32_0, %c0_i32_1 : i32, i32, i32
  }
  func.func @transform_5(%arg0: i32) -> (i32, i32) {
    %c0_i32 = arith.constant 0 : i32
    %c0_i32_0 = arith.constant 0 : i32
    %c0_i32_1 = arith.constant 0 : i32
    return %c0_i32, %c0_i32_0 : i32, i32
  }
  func.func @transform_6(%arg0: i32) -> (i32, i32) {
    %c0_i32 = arith.constant 0 : i32
    %c0_i32_0 = arith.constant 0 : i32
    %c0_i32_1 = arith.constant 0 : i32
    return %c0_i32, %c0_i32_0 : i32, i32
  }
  func.func @transform_7(%arg0: i32) -> (i32, i32) {
    %c0_i32 = arith.constant 0 : i32
    %c0_i32_0 = arith.constant 0 : i32
    %c0_i32_1 = arith.constant 0 : i32
    return %c0_i32, %c0_i32_0 : i32, i32
  }
  func.func @transform_8(%arg0: i32) -> (i32, i32) {
    %c0_i32 = arith.constant 0 : i32
    %c0_i32_0 = arith.constant 0 : i32
    %c0_i32_1 = arith.constant 0 : i32
    return %c0_i32, %c0_i32_0 : i32, i32
  }
  func.func @transform_9(%arg0: i32) -> (i32, i32) {
    %c0_i32 = arith.constant 0 : i32
    %c0_i32_0 = arith.constant 0 : i32
    %c0_i32_1 = arith.constant 0 : i32
    return %c0_i32, %c0_i32_0 : i32, i32
  }
  func.func @transform_10(%arg0: i32) -> (i32, i32, i32) {
    %c0_i32 = arith.constant 0 : i32
    %c0_i32_0 = arith.constant 0 : i32
    %c0_i32_1 = arith.constant 0 : i32
    %c0_i32_2 = arith.constant 0 : i32
    return %c0_i32, %c0_i32_0, %c0_i32_1 : i32, i32, i32
  }
  func.func @transform_11(%arg0: i32) -> (i32, i32) {
    %c0_i32 = arith.constant 0 : i32
    %c0_i32_0 = arith.constant 0 : i32
    %c0_i32_1 = arith.constant 0 : i32
    return %c0_i32, %c0_i32_0 : i32, i32
  }
  func.func @transform_12(%arg0: i32) -> (i32, i32, i32) {
    %c0_i32 = arith.constant 0 : i32
    %c0_i32_0 = arith.constant 0 : i32
    %c0_i32_1 = arith.constant 0 : i32
    %c0_i32_2 = arith.constant 0 : i32
    return %c0_i32, %c0_i32_0, %c0_i32_1 : i32, i32, i32
  }
  func.func @transform_13(%arg0: i32) -> (i32, i32) {
    %c0_i32 = arith.constant 0 : i32
    %c0_i32_0 = arith.constant 0 : i32
    %c0_i32_1 = arith.constant 0 : i32
    return %c0_i32, %c0_i32_0 : i32, i32
  }
  func.func @transform_14(%arg0: i32) -> (i32, i32) {
    %c0_i32 = arith.constant 0 : i32
    %c0_i32_0 = arith.constant 0 : i32
    %c0_i32_1 = arith.constant 0 : i32
    return %c0_i32, %c0_i32_0 : i32, i32
  }
  func.func @transform_15(%arg0: i32) -> (i32, i32, i32) {
    %c0_i32 = arith.constant 0 : i32
    %c0_i32_0 = arith.constant 0 : i32
    %c0_i32_1 = arith.constant 0 : i32
    return %arg0, %c0_i32, %c0_i32_0 : i32, i32, i32
  }
}

</mosaic_0001>

<llo_original>
// kernel: tpu_custom_call.1
$region0: #{tpu_custom_call.1}
  #allocation0 [shape = 'u32[]', space=smem, size = 0x4, offset = 0x4, fixed_abs, tag = 'smem constant byte address 0x4 - core index']
  #allocation1 [shape = 'u32[144,128]{1,0:T(1,128)}', space=vmem, size = 0x12000, scoped, tag = 'internal scratch']
  #allocation2 [shape = 'f32[160,512]{1,0:T(8,128)}', space=vmem, size = 0x50000, scoped, tag = 'scratch operand']
  %s0 = inlined_call_operand.vmem [shape: f32[2,64,128], index: 0, kind: input, shape index: {}]
  %s1 = inlined_call_operand.vmem [shape: f32[1,128], index: 1, kind: input, shape index: {}]
  %s2 = inlined_call_operand.vmem [shape: f32[1,128], index: 2, kind: input, shape index: {}]
  %s3 = inlined_call_operand.vmem [shape: bf16[128,384], index: 3, kind: input, shape index: {}]
  %s4 = inlined_call_operand.vmem [shape: bf16[4,32,128], index: 4, kind: input, shape index: {}]
  %s5 = inlined_call_operand.vmem [shape: f32[1,128], index: 5, kind: input, shape index: {}]
  %s6 = inlined_call_operand.vmem [shape: f32[1,128], index: 6, kind: input, shape index: {}]
  %s7 = inlined_call_operand.vmem [shape: f32[1,128], index: 7, kind: input, shape index: {}]
  %s8 = inlined_call_operand.vmem [shape: bf16[128,512], index: 8, kind: input, shape index: {}]
  %s9 = inlined_call_operand.vmem [shape: f32[1,512], index: 9, kind: input, shape index: {}]
  %s10 = inlined_call_operand.vmem [shape: f32[9,1,512], index: 10, kind: input, shape index: {}]
  %s11 = inlined_call_operand.vmem [shape: f32[1,512], index: 11, kind: input, shape index: {}]
  %s12 = inlined_call_operand.vmem [shape: f32[9,128,1], index: 12, kind: input, shape index: {}]
  %s13 = inlined_call_operand.vmem [shape: bf16[512,128], index: 13, kind: input, shape index: {}]
  %s14 = inlined_call_operand.vmem [shape: f32[1,128], index: 14, kind: input, shape index: {}]
  %s15 = inlined_call_operand.hbm [shape: f32[2,64,128], index: 15, kind: output, shape index: {}]
  %s16 = sld [smem:[#allocation0]]
  $region70: #{tpu_custom_call.1} parent=0
    _
  %s18 = ssub.s32 1, %s16
  %s19 = scalar_select 0, %s18, %s16
  $region1: #{tpu_custom_call.1} parent=0
    #allocation3 [shape = 'u8[65536]{0}', space=vmem, size = 0x10000, scoped, tag = 'output window, operand 0, single buffered']
    #allocation4 [shape = 's32[1]{0}', space=sflag, size = 0x4, scoped, tag = 'scoped memory for tpu_custom_call.1']
    %20 = vsyncpa [#allocation4], 0
    // Predicated region
    $region2: #{tpu_custom_call.1} parent=1 // pred_check
      _
    $region3: #{tpu_custom_call.1} parent=1 // pred_check_branch
      %22 = sbr.rel (0) target = $region5
    $region4: #{tpu_custom_call.1} parent=1 // pred_region
      _
    $region5: #{tpu_custom_call.1} parent=1 // pred_fallthru
      _
    // Predicated region
    $region6: #{tpu_custom_call.1} parent=1 // pred_check
      _
    $region7: #{tpu_custom_call.1} parent=1 // pred_check_branch
      %24 = sbr.rel (0) target = $region9
    $region8: #{tpu_custom_call.1} parent=1 // pred_region
      _
    $region9: #{tpu_custom_call.1} parent=1 // pred_fallthru
      _
    // Predicated region
    $region10: #{tpu_custom_call.1} parent=1 // pred_check
      _
    $region11: #{tpu_custom_call.1} parent=1 // pred_check_branch
      %26 = sbr.rel (0) target = $region13
    $region12: #{tpu_custom_call.1} parent=1 // pred_region
      _
    $region13: #{tpu_custom_call.1} parent=1 // pred_fallthru
      _
    // Predicated region
    $region14: #{tpu_custom_call.1} parent=1 // pred_check
      _
    $region15: #{tpu_custom_call.1} parent=1 // pred_check_branch
      %28 = sbr.rel (0) target = $region17
    $region16: #{tpu_custom_call.1} parent=1 // pred_region
      _
    $region17: #{tpu_custom_call.1} parent=1 // pred_fallthru
      _
    // Predicated region
    $region18: #{tpu_custom_call.1} parent=1 // pred_check
      _
    $region19: #{tpu_custom_call.1} parent=1 // pred_check_branch
      %30 = sbr.rel (0) target = $region21
    $region20: #{tpu_custom_call.1} parent=1 // pred_region
      _
    $region21: #{tpu_custom_call.1} parent=1 // pred_fallthru
      _
    // Predicated region
    $region22: #{tpu_custom_call.1} parent=1 // pred_check
      _
    $region23: #{tpu_custom_call.1} parent=1 // pred_check_branch
      %32 = sbr.rel (0) target = $region25
    $region24: #{tpu_custom_call.1} parent=1 // pred_region
      _
    $region25: #{tpu_custom_call.1} parent=1 // pred_fallthru
      _
    // Predicated region
    $region26: #{tpu_custom_call.1} parent=1 // pred_check
      _
    $region27: #{tpu_custom_call.1} parent=1 // pred_check_branch
      %34 = sbr.rel (0) target = $region29
    $region28: #{tpu_custom_call.1} parent=1 // pred_region
      _
    $region29: #{tpu_custom_call.1} parent=1 // pred_fallthru
      _
    // Predicated region
    $region30: #{tpu_custom_call.1} parent=1 // pred_check
      _
    $region31: #{tpu_custom_call.1} parent=1 // pred_check_branch
      %36 = sbr.rel (0) target = $region33
    $region32: #{tpu_custom_call.1} parent=1 // pred_region
      _
    $region33: #{tpu_custom_call.1} parent=1 // pred_fallthru
      _
    // Predicated region
    $region34: #{tpu_custom_call.1} parent=1 // pred_check
      _
    $region35: #{tpu_custom_call.1} parent=1 // pred_check_branch
      %38 = sbr.rel (0) target = $region37
    $region36: #{tpu_custom_call.1} parent=1 // pred_region
      _
    $region37: #{tpu_custom_call.1} parent=1 // pred_fallthru
      _
    // Predicated region
    $region38: #{tpu_custom_call.1} parent=1 // pred_check
      _
    $region39: #{tpu_custom_call.1} parent=1 // pred_check_branch
      %40 = sbr.rel (0) target = $region41
    $region40: #{tpu_custom_call.1} parent=1 // pred_region
      _
    $region41: #{tpu_custom_call.1} parent=1 // pred_fallthru
      _
    // Predicated region
    $region42: #{tpu_custom_call.1} parent=1 // pred_check
      _
    $region43: #{tpu_custom_call.1} parent=1 // pred_check_branch
      %42 = sbr.rel (0) target = $region45
    $region44: #{tpu_custom_call.1} parent=1 // pred_region
      _
    $region45: #{tpu_custom_call.1} parent=1 // pred_fallthru
      _
    // Predicated region
    $region46: #{tpu_custom_call.1} parent=1 // pred_check
      _
    $region47: #{tpu_custom_call.1} parent=1 // pred_check_branch
      %44 = sbr.rel (0) target = $region49
    $region48: #{tpu_custom_call.1} parent=1 // pred_region
      _
    $region49: #{tpu_custom_call.1} parent=1 // pred_fallthru
      _
    // Predicated region
    $region50: #{tpu_custom_call.1} parent=1 // pred_check
      _
    $region51: #{tpu_custom_call.1} parent=1 // pred_check_branch
      %46 = sbr.rel (0) target = $region53
    $region52: #{tpu_custom_call.1} parent=1 // pred_region
      _
    $region53: #{tpu_custom_call.1} parent=1 // pred_fallthru
      _
    // Predicated region
    $region54: #{tpu_custom_call.1} parent=1 // pred_check
      _
    $region55: #{tpu_custom_call.1} parent=1 // pred_check_branch
      %48 = sbr.rel (0) target = $region57
    $region56: #{tpu_custom_call.1} parent=1 // pred_region
      _
    $region57: #{tpu_custom_call.1} parent=1 // pred_fallthru
      _
    // Predicated region
    $region58: #{tpu_custom_call.1} parent=1 // pred_check
      _
    $region59: #{tpu_custom_call.1} parent=1 // pred_check_branch
      %50 = sbr.rel (0) target = $region61
    $region60: #{tpu_custom_call.1} parent=1 // pred_region
      _
    $region61: #{tpu_custom_call.1} parent=1 // pred_fallthru
      _
    %v52 = vld [vmem:[%s0] sm:$0xff]
    %v53 = vld [vmem:[%s0 + $0x8] sm:$0xff]
    %v54 = vld [vmem:[%s0 + $0x10] sm:$0xff]
    %v55 = vld [vmem:[%s0 + $0x18] sm:$0xff]
    %v56 = vld [vmem:[%s0 + $0x20] sm:$0xff]
    %v57 = vld [vmem:[%s0 + $0x28] sm:$0xff]
    %v58 = vld [vmem:[%s0 + $0x30] sm:$0xff]
    %v59 = vld [vmem:[%s0 + $0x38] sm:$0xff]
    %v60 = vld [vmem:[%s0 + $0x40] sm:$0xff]
    %v61 = vld [vmem:[%s0 + $0x48] sm:$0xff]
    %v62 = vld [vmem:[%s0 + $0x50] sm:$0xff]
    %v63 = vld [vmem:[%s0 + $0x58] sm:$0xff]
    %v64 = vld [vmem:[%s0 + $0x60] sm:$0xff]
    %v65 = vld [vmem:[%s0 + $0x68] sm:$0xff]
    %v66 = vld [vmem:[%s0 + $0x70] sm:$0xff]
    %v67 = vld [vmem:[%s0 + $0x78] sm:$0xff]
    %v68 = vld [vmem:[%s1] sm:$0x1]
    %v69 = vld [vmem:[%s2] sm:$0x1]
    %70 = vadd.xlane.f32.xlu0 %v52
    %v71 = vpop.xlane.xlu0 %70
    %72 = vadd.xlane.f32.xlu0 %v53
    %v73 = vpop.xlane.xlu0 %72
    %74 = vadd.xlane.f32.xlu0 %v54
    %v75 = vpop.xlane.xlu0 %74
    %76 = vadd.xlane.f32.xlu0 %v55
    %v77 = vpop.xlane.xlu0 %76
    %78 = vadd.xlane.f32.xlu0 %v56
    %v79 = vpop.xlane.xlu0 %78
    %80 = vadd.xlane.f32.xlu0 %v57
    %v81 = vpop.xlane.xlu0 %80
    %82 = vadd.xlane.f32.xlu0 %v58
    %v83 = vpop.xlane.xlu0 %82
    %84 = vadd.xlane.f32.xlu0 %v59
    %v85 = vpop.xlane.xlu0 %84
    %86 = vadd.xlane.f32.xlu0 %v60
    %v87 = vpop.xlane.xlu0 %86
    %88 = vadd.xlane.f32.xlu0 %v61
    %v89 = vpop.xlane.xlu0 %88
    %90 = vadd.xlane.f32.xlu0 %v62
    %v91 = vpop.xlane.xlu0 %90
    %92 = vadd.xlane.f32.xlu0 %v63
    %v93 = vpop.xlane.xlu0 %92
    %94 = vadd.xlane.f32.xlu0 %v64
    %v95 = vpop.xlane.xlu0 %94
    %96 = vadd.xlane.f32.xlu0 %v65
    %v97 = vpop.xlane.xlu0 %96
    %98 = vadd.xlane.f32.xlu0 %v66
    %v99 = vpop.xlane.xlu0 %98
    %100 = vadd.xlane.f32.xlu0 %v67
    %v101 = vpop.xlane.xlu0 %100
    %v102 = vrcp.pop 128.0
    %v103 = vmul.f32 %v71, %v102
    %v104 = vmul.f32 %v73, %v102
    %v105 = vmul.f32 %v75, %v102
    %v106 = vmul.f32 %v77, %v102
    %v107 = vmul.f32 %v79, %v102
    %v108 = vmul.f32 %v81, %v102
    %v109 = vmul.f32 %v83, %v102
    %v110 = vmul.f32 %v85, %v102
    %v111 = vmul.f32 %v87, %v102
    %v112 = vmul.f32 %v89, %v102
    %v113 = vmul.f32 %v91, %v102
    %v114 = vmul.f32 %v93, %v102
    %v115 = vmul.f32 %v95, %v102
    %v116 = vmul.f32 %v97, %v102
    %v117 = vmul.f32 %v99, %v102
    %v118 = vmul.f32 %v101, %v102
    %v119 = vsub.f32 %v52, %v103
    %v120 = vsub.f32 %v53, %v104
    %v121 = vsub.f32 %v54, %v105
    %v122 = vsub.f32 %v55, %v106
    %v123 = vsub.f32 %v56, %v107
    %v124 = vsub.f32 %v57, %v108
    %v125 = vsub.f32 %v58, %v109
    %v126 = vsub.f32 %v59, %v110
    %v127 = vsub.f32 %v60, %v111
    %v128 = vsub.f32 %v61, %v112
    %v129 = vsub.f32 %v62, %v113
    %v130 = vsub.f32 %v63, %v114
    %v131 = vsub.f32 %v64, %v115
    %v132 = vsub.f32 %v65, %v116
    %v133 = vsub.f32 %v66, %v117
    %v134 = vsub.f32 %v67, %v118
    %v135 = vmul.f32 %v119, %v119
    %v136 = vmul.f32 %v120, %v120
    %v137 = vmul.f32 %v121, %v121
    %v138 = vmul.f32 %v122, %v122
    %v139 = vmul.f32 %v123, %v123
    %v140 = vmul.f32 %v124, %v124
    %v141 = vmul.f32 %v125, %v125
    %v142 = vmul.f32 %v126, %v126
    %v143 = vmul.f32 %v127, %v127
    %v144 = vmul.f32 %v128, %v128
    %v145 = vmul.f32 %v129, %v129
    %v146 = vmul.f32 %v130, %v130
    %v147 = vmul.f32 %v131, %v131
    %v148 = vmul.f32 %v132, %v132
    %v149 = vmul.f32 %v133, %v133
    %v150 = vmul.f32 %v134, %v134
    %151 = vadd.xlane.f32.xlu0 %v135
    %v152 = vpop.xlane.xlu0 %151
    %153 = vadd.xlane.f32.xlu0 %v136
    %v154 = vpop.xlane.xlu0 %153
    %155 = vadd.xlane.f32.xlu0 %v137
    %v156 = vpop.xlane.xlu0 %155
    %157 = vadd.xlane.f32.xlu0 %v138
    %v158 = vpop.xlane.xlu0 %157
    %159 = vadd.xlane.f32.xlu0 %v139
    %v160 = vpop.xlane.xlu0 %159
    %161 = vadd.xlane.f32.xlu0 %v140
    %v162 = vpop.xlane.xlu0 %161
    %163 = vadd.xlane.f32.xlu0 %v141
    %v164 = vpop.xlane.xlu0 %163
    %165 = vadd.xlane.f32.xlu0 %v142
    %v166 = vpop.xlane.xlu0 %165
    %167 = vadd.xlane.f32.xlu0 %v143
    %v168 = vpop.xlane.xlu0 %167
    %169 = vadd.xlane.f32.xlu0 %v144
    %v170 = vpop.xlane.xlu0 %169
    %171 = vadd.xlane.f32.xlu0 %v145
    %v172 = vpop.xlane.xlu0 %171
    %173 = vadd.xlane.f32.xlu0 %v146
    %v174 = vpop.xlane.xlu0 %173
    %175 = vadd.xlane.f32.xlu0 %v147
    %v176 = vpop.xlane.xlu0 %175
    %177 = vadd.xlane.f32.xlu0 %v148
    %v178 = vpop.xlane.xlu0 %177
    %179 = vadd.xlane.f32.xlu0 %v149
    %v180 = vpop.xlane.xlu0 %179
    %181 = vadd.xlane.f32.xlu0 %v150
    %v182 = vpop.xlane.xlu0 %181
    %v183 = vmul.f32 %v152, %v102
    %v184 = vmul.f32 %v154, %v102
    %v185 = vmul.f32 %v156, %v102
    %v186 = vmul.f32 %v158, %v102
    %v187 = vmul.f32 %v160, %v102
    %v188 = vmul.f32 %v162, %v102
    %v189 = vmul.f32 %v164, %v102
    %v190 = vmul.f32 %v166, %v102
    %v191 = vmul.f32 %v168, %v102
    %v192 = vmul.f32 %v170, %v102
    %v193 = vmul.f32 %v172, %v102
    %v194 = vmul.f32 %v174, %v102
    %v195 = vmul.f32 %v176, %v102
    %v196 = vmul.f32 %v178, %v102
    %v197 = vmul.f32 %v180, %v102
    %v198 = vmul.f32 %v182, %v102
    %v199 = vadd.f32 %v183, 1e-05
    %v200 = vadd.f32 %v184, 1e-05
    %v201 = vadd.f32 %v185, 1e-05
    %v202 = vadd.f32 %v186, 1e-05
    %v203 = vadd.f32 %v187, 1e-05
    %v204 = vadd.f32 %v188, 1e-05
    %v205 = vadd.f32 %v189, 1e-05
    %v206 = vadd.f32 %v190, 1e-05
    %v207 = vadd.f32 %v191, 1e-05
    %v208 = vadd.f32 %v192, 1e-05
    %v209 = vadd.f32 %v193, 1e-05
    %v210 = vadd.f32 %v194, 1e-05
    %v211 = vadd.f32 %v195, 1e-05
    %v212 = vadd.f32 %v196, 1e-05
    %v213 = vadd.f32 %v197, 1e-05
    %v214 = vadd.f32 %v198, 1e-05
    %v215 = vrsqrt.pop %v199
    %v216 = vrsqrt.pop %v200
    %v217 = vrsqrt.pop %v201
    %v218 = vrsqrt.pop %v202
    %v219 = vrsqrt.pop %v203
    %v220 = vrsqrt.pop %v204
    %v221 = vrsqrt.pop %v205
    %v222 = vrsqrt.pop %v206
    %v223 = vrsqrt.pop %v207
    %v224 = vrsqrt.pop %v208
    %v225 = vrsqrt.pop %v209
    %v226 = vrsqrt.pop %v210
    %v227 = vrsqrt.pop %v211
    %v228 = vrsqrt.pop %v212
    %v229 = vrsqrt.pop %v213
    %v230 = vrsqrt.pop %v214
    %v231 = vmul.f32 %v119, %v215
    %v232 = vmul.f32 %v120, %v216
    %v233 = vmul.f32 %v121, %v217
    %v234 = vmul.f32 %v122, %v218
    %v235 = vmul.f32 %v123, %v219
    %v236 = vmul.f32 %v124, %v220
    %v237 = vmul.f32 %v125, %v221
    %v238 = vmul.f32 %v126, %v222
    %v239 = vmul.f32 %v127, %v223
    %v240 = vmul.f32 %v128, %v224
    %v241 = vmul.f32 %v129, %v225
    %v242 = vmul.f32 %v130, %v226
    %v243 = vmul.f32 %v131, %v227
    %v244 = vmul.f32 %v132, %v228
    %v245 = vmul.f32 %v133, %v229
    %v246 = vmul.f32 %v134, %v230
    %v248 = vlaneseq
    %v249 = vshrl.u32 %v248, 7
    %v250 = vsub.s32 0, %v249
    %v251 = vrot.slane %v68, %v250
    %v253 = vmul.f32 %v231, %v251
    %v254 = vmul.f32 %v232, %v251
    %v255 = vmul.f32 %v233, %v251
    %v256 = vmul.f32 %v234, %v251
    %v257 = vmul.f32 %v235, %v251
    %v258 = vmul.f32 %v236, %v251
    %v259 = vmul.f32 %v237, %v251
    %v260 = vmul.f32 %v238, %v251
    %v261 = vmul.f32 %v239, %v251
    %v262 = vmul.f32 %v240, %v251
    %v263 = vmul.f32 %v241, %v251
    %v264 = vmul.f32 %v242, %v251
    %v265 = vmul.f32 %v243, %v251
    %v266 = vmul.f32 %v244, %v251
    %v267 = vmul.f32 %v245, %v251
    %v268 = vmul.f32 %v246, %v251
    %v270 = vlaneseq
    %v271 = vshrl.u32 %v270, 7
    %v272 = vsub.s32 0, %v271
    %v273 = vrot.slane %v69, %v272
    %v275 = vadd.f32 %v253, %v273
    %v276 = vadd.f32 %v254, %v273
    %v277 = vadd.f32 %v255, %v273
    %v278 = vadd.f32 %v256, %v273
    %v279 = vadd.f32 %v257, %v273
    %v280 = vadd.f32 %v258, %v273
    %v281 = vadd.f32 %v259, %v273
    %v282 = vadd.f32 %v260, %v273
    %v283 = vadd.f32 %v261, %v273
    %v284 = vadd.f32 %v262, %v273
    %v285 = vadd.f32 %v263, %v273
    %v286 = vadd.f32 %v264, %v273
    %v287 = vadd.f32 %v265, %v273
    %v288 = vadd.f32 %v266, %v273
    %v289 = vadd.f32 %v267, %v273
    %v290 = vadd.f32 %v268, %v273
    %v291 = vpack.c.bf16 %v276, %v275
    %v292 = vpack.c.bf16 %v278, %v277
    %v293 = vpack.c.bf16 %v280, %v279
    %v294 = vpack.c.bf16 %v282, %v281
    %v295 = vpack.c.bf16 %v284, %v283
    %v296 = vpack.c.bf16 %v286, %v285
    %v297 = vpack.c.bf16 %v288, %v287
    %v298 = vpack.c.bf16 %v290, %v289
    %v299 = vld [vmem:[%s3] sm:$0xff]
    %v300 = vld [vmem:[%s3 + $0x8] sm:$0xf]
    %v301 = vld [vmem:[%s3 + $0xc] sm:$0xff]
    %v302 = vld [vmem:[%s3 + $0x14] sm:$0xf]
    %v303 = vld [vmem:[%s3 + $0x18] sm:$0xff]
    %v304 = vld [vmem:[%s3 + $0x20] sm:$0xf]
    %v305 = vld [vmem:[%s3 + $0x24] sm:$0xff]
    %v306 = vld [vmem:[%s3 + $0x2c] sm:$0xf]
    %v307 = vld [vmem:[%s3 + $0x30] sm:$0xff]
    %v308 = vld [vmem:[%s3 + $0x38] sm:$0xf]
    %v309 = vld [vmem:[%s3 + $0x3c] sm:$0xff]
    %v310 = vld [vmem:[%s3 + $0x44] sm:$0xf]
    %v311 = vld [vmem:[%s3 + $0x48] sm:$0xff]
    %v312 = vld [vmem:[%s3 + $0x50] sm:$0xf]
    %v313 = vld [vmem:[%s3 + $0x54] sm:$0xff]
    %v314 = vld [vmem:[%s3 + $0x5c] sm:$0xf]
    %v315 = vld [vmem:[%s3 + $0x60] sm:$0xff]
    %v316 = vld [vmem:[%s3 + $0x68] sm:$0xf]
    %v317 = vld [vmem:[%s3 + $0x6c] sm:$0xff]
    %v318 = vld [vmem:[%s3 + $0x74] sm:$0xf]
    %v319 = vld [vmem:[%s3 + $0x78] sm:$0xff]
    %v320 = vld [vmem:[%s3 + $0x80] sm:$0xf]
    %v321 = vld [vmem:[%s3 + $0x84] sm:$0xff]
    %v322 = vld [vmem:[%s3 + $0x8c] sm:$0xf]
    %v323 = vld [vmem:[%s3 + $0x90] sm:$0xff]
    %v324 = vld [vmem:[%s3 + $0x98] sm:$0xf]
    %v325 = vld [vmem:[%s3 + $0x9c] sm:$0xff]
    %v326 = vld [vmem:[%s3 + $0xa4] sm:$0xf]
    %v327 = vld [vmem:[%s3 + $0xa8] sm:$0xff]
    %v328 = vld [vmem:[%s3 + $0xb0] sm:$0xf]
    %v329 = vld [vmem:[%s3 + $0xb4] sm:$0xff]
    %v330 = vld [vmem:[%s3 + $0xbc] sm:$0xf]
    %v363 = vunpack.c.l.b16 %v299
    %v364 = vunpack.c.h.b16 %v299
    %v365 = vunpack.c.l.b16 %v300
    %v366 = vunpack.c.l.b16 %v301
    %v367 = vunpack.c.h.b16 %v301
    %v368 = vunpack.c.l.b16 %v302
    %v369 = vunpack.c.l.b16 %v303
    %v370 = vunpack.c.h.b16 %v303
    %v371 = vunpack.c.l.b16 %v304
    %v372 = vunpack.c.l.b16 %v305
    %v373 = vunpack.c.h.b16 %v305
    %v374 = vunpack.c.l.b16 %v306
    %v375 = vunpack.c.l.b16 %v307
    %v376 = vunpack.c.h.b16 %v307
    %v377 = vunpack.c.l.b16 %v308
    %v378 = vunpack.c.l.b16 %v309
    %v379 = vunpack.c.h.b16 %v309
    %v380 = vunpack.c.l.b16 %v310
    %v381 = vunpack.c.l.b16 %v311
    %v382 = vunpack.c.h.b16 %v311
    %v383 = vunpack.c.l.b16 %v312
    %v384 = vunpack.c.l.b16 %v313
    %v385 = vunpack.c.h.b16 %v313
    %v386 = vunpack.c.l.b16 %v314
    %v387 = vunpack.c.l.b16 %v315
    %v388 = vunpack.c.h.b16 %v315
    %v389 = vunpack.c.l.b16 %v316
    %v390 = vunpack.c.l.b16 %v317
    %v391 = vunpack.c.h.b16 %v317
    %v392 = vunpack.c.l.b16 %v318
    %v393 = vunpack.c.l.b16 %v319
    %v394 = vunpack.c.h.b16 %v319
    %v395 = vunpack.c.l.b16 %v320
    %v396 = vunpack.c.l.b16 %v321
    %v397 = vunpack.c.h.b16 %v321
    %v398 = vunpack.c.l.b16 %v322
    %v399 = vunpack.c.l.b16 %v323
    %v400 = vunpack.c.h.b16 %v323
    %v401 = vunpack.c.l.b16 %v324
    %v402 = vunpack.c.l.b16 %v325
    %v403 = vunpack.c.h.b16 %v325
    %v404 = vunpack.c.l.b16 %v326
    %v405 = vunpack.c.l.b16 %v327
    %v406 = vunpack.c.h.b16 %v327
    %v407 = vunpack.c.l.b16 %v328
    %v408 = vunpack.c.l.b16 %v329
    %v409 = vunpack.c.h.b16 %v329
    %v410 = vunpack.c.l.b16 %v330
    %v411 = vpack.c.b16 %v366, %v363
    %v412 = vpack.c.b16 %v367, %v364
    %v413 = vpack.c.b16 %v368, %v365
    %v414 = vpack.c.b16 %v372, %v369
    %v415 = vpack.c.b16 %v373, %v370
    %v416 = vpack.c.b16 %v374, %v371
    %v417 = vpack.c.b16 %v378, %v375
    %v418 = vpack.c.b16 %v379, %v376
    %v419 = vpack.c.b16 %v380, %v377
    %v420 = vpack.c.b16 %v384, %v381
    %v421 = vpack.c.b16 %v385, %v382
    %v422 = vpack.c.b16 %v386, %v383
    %v423 = vpack.c.b16 %v390, %v387
    %v424 = vpack.c.b16 %v391, %v388
    %v425 = vpack.c.b16 %v392, %v389
    %v426 = vpack.c.b16 %v396, %v393
    %v427 = vpack.c.b16 %v397, %v394
    %v428 = vpack.c.b16 %v398, %v395
    %v429 = vpack.c.b16 %v402, %v399
    %v430 = vpack.c.b16 %v403, %v400
    %v431 = vpack.c.b16 %v404, %v401
    %v432 = vpack.c.b16 %v408, %v405
    %v433 = vpack.c.b16 %v409, %v406
    %v434 = vpack.c.b16 %v410, %v407
    %459 = vmatprep.subr.bf16.mxu0 %v412
    %460 = vmatpush1.bf16.msra.mxu0 %v411
    %461 = vmatprep.subr.bf16.mxu0 %v415
    %462 = vmatpush1.bf16.msra.mxu0 %v414
    %463 = vmatprep.subr.bf16.mxu0 %v418
    %464 = vmatpush1.bf16.msra.mxu0 %v417
    %465 = vmatprep.subr.bf16.mxu0 %v421
    %466 = vmatpush1.bf16.msra.mxu0 %v420
    %467 = vmatprep.subr.bf16.mxu0 %v424
    %468 = vmatpush1.bf16.msra.mxu0 %v423
    %469 = vmatprep.subr.bf16.mxu0 %v427
    %470 = vmatpush1.bf16.msra.mxu0 %v426
    %471 = vmatprep.subr.bf16.mxu0 %v430
    %472 = vmatpush1.bf16.msra.mxu0 %v429
    %473 = vmatprep.subr.bf16.mxu0 %v433
    %474 = vmatpush1.bf16.msra.mxu0 %v432
    %475 = vmatprep.subr.bf16.mxu0 0
    %476 = vmatpush1.bf16.msra.mxu0 0
    %477 = vmatprep.subr.bf16.mxu0 0
    %478 = vmatpush1.bf16.msra.mxu0 0
    %479 = vmatprep.subr.bf16.mxu0 0
    %480 = vmatpush1.bf16.msra.mxu0 0
    %481 = vmatprep.subr.bf16.mxu0 0
    %482 = vmatpush1.bf16.msra.mxu0 0
    %483 = vmatprep.subr.bf16.mxu0 0
    %484 = vmatpush1.bf16.msra.mxu0 0
    %485 = vmatprep.subr.bf16.mxu0 0
    %486 = vmatpush1.bf16.msra.mxu0 0
    %487 = vmatprep.subr.bf16.mxu0 0
    %488 = vmatpush1.bf16.msra.mxu0 0
    %489 = vmatprep.subr.bf16.mxu0 0
    %490 = vmatpush1.bf16.msra.mxu0 0
    %491 = vmatprep.mubr.bf16.mxu0 0
    %492 = vmatmul.mubr.bf16.gmra.mrb[0].mxu0 %v291
    %v493 = vpop.f32.mrb[0].mxu0
    %v494 = vadd.f32 0.0, %v493
    %v495 = vpop.f32.mrb[0].mxu0
    %v496 = vadd.f32 0.0, %v495
    %v497 = vpop.f32.mrb[0].mxu0
    %v498 = vadd.f32 0.0, %v497
    %v499 = vpop.f32.mrb[0].mxu0
    %v500 = vadd.f32 0.0, %v499
    %501 = vmatprep.mubr.bf16.mxu0 0
    %502 = vmatmul.mubr.bf16.gmra.mrb[0].mxu0 %v292
    %v503 = vpop.f32.mrb[0].mxu0
    %v504 = vadd.f32 0.0, %v503
    %v505 = vpop.f32.mrb[0].mxu0
    %v506 = vadd.f32 0.0, %v505
    %v507 = vpop.f32.mrb[0].mxu0
    %v508 = vadd.f32 0.0, %v507
    %v509 = vpop.f32.mrb[0].mxu0
    %v510 = vadd.f32 0.0, %v509
    %511 = vmatprep.mubr.bf16.mxu0 0
    %512 = vmatmul.mubr.bf16.gmra.mrb[0].mxu0 %v293
    %v513 = vpop.f32.mrb[0].mxu0
    %v514 = vadd.f32 0.0, %v513
    %v515 = vpop.f32.mrb[0].mxu0
    %v516 = vadd.f32 0.0, %v515
    %v517 = vpop.f32.mrb[0].mxu0
    %v518 = vadd.f32 0.0, %v517
    %v519 = vpop.f32.mrb[0].mxu0
    %v520 = vadd.f32 0.0, %v519
    %521 = vmatprep.mubr.bf16.mxu0 0
    %522 = vmatmul.mubr.bf16.gmra.mrb[0].mxu0 %v294
    %v523 = vpop.f32.mrb[0].mxu0
    %v524 = vadd.f32 0.0, %v523
    %v525 = vpop.f32.mrb[0].mxu0
    %v526 = vadd.f32 0.0, %v525
    %v527 = vpop.f32.mrb[0].mxu0
    %v528 = vadd.f32 0.0, %v527
    %v529 = vpop.f32.mrb[0].mxu0
    %v530 = vadd.f32 0.0, %v529
    %531 = vmatprep.mubr.bf16.mxu0 0
    %532 = vmatmul.mubr.bf16.gmra.mrb[0].mxu0 %v295
    %v533 = vpop.f32.mrb[0].mxu0
    %v534 = vadd.f32 0.0, %v533
    %v535 = vpop.f32.mrb[0].mxu0
    %v536 = vadd.f32 0.0, %v535
    %v537 = vpop.f32.mrb[0].mxu0
    %v538 = vadd.f32 0.0, %v537
    %v539 = vpop.f32.mrb[0].mxu0
    %v540 = vadd.f32 0.0, %v539
    %541 = vmatprep.mubr.bf16.mxu0 0
    %542 = vmatmul.mubr.bf16.gmra.mrb[0].mxu0 %v296
    %v543 = vpop.f32.mrb[0].mxu0
    %v544 = vadd.f32 0.0, %v543
    %v545 = vpop.f32.mrb[0].mxu0
    %v546 = vadd.f32 0.0, %v545
    %v547 = vpop.f32.mrb[0].mxu0
    %v548 = vadd.f32 0.0, %v547
    %v549 = vpop.f32.mrb[0].mxu0
    %v550 = vadd.f32 0.0, %v549
    %551 = vmatprep.mubr.bf16.mxu0 0
    %552 = vmatmul.mubr.bf16.gmra.mrb[0].mxu0 %v297
    %v553 = vpop.f32.mrb[0].mxu0
    %v554 = vadd.f32 0.0, %v553
    %v555 = vpop.f32.mrb[0].mxu0
    %v556 = vadd.f32 0.0, %v555
    %v557 = vpop.f32.mrb[0].mxu0
    %v558 = vadd.f32 0.0, %v557
    %v559 = vpop.f32.mrb[0].mxu0
    %v560 = vadd.f32 0.0, %v559
    %561 = vmatprep.mubr.bf16.mxu0 0
    %562 = vmatmul.mubr.bf16.gmra.mrb[0].mxu0 %v298
    %v563 = vpop.f32.mrb[0].mxu0
    %v564 = vadd.f32 0.0, %v563
    %v565 = vpop.f32.mrb[0].mxu0
    %v566 = vadd.f32 0.0, %v565
    %v567 = vpop.f32.mrb[0].mxu0
    %v568 = vadd.f32 0.0, %v567
    %v569 = vpop.f32.mrb[0].mxu0
    %v570 = vadd.f32 0.0, %v569
    %571 = vdwg.mxu0
    %572 = vmatprep.subr.bf16.mxu0 0
    %573 = vmatpush1.bf16.msra.mxu0 %v413
    %574 = vmatprep.subr.bf16.mxu0 0
    %575 = vmatpush1.bf16.msra.mxu0 %v416
    %576 = vmatprep.subr.bf16.mxu0 0
    %577 = vmatpush1.bf16.msra.mxu0 %v419
    %578 = vmatprep.subr.bf16.mxu0 0
    %579 = vmatpush1.bf16.msra.mxu0 %v422
    %580 = vmatprep.subr.bf16.mxu0 0
    %581 = vmatpush1.bf16.msra.mxu0 %v425
    %582 = vmatprep.subr.bf16.mxu0 0
    %583 = vmatpush1.bf16.msra.mxu0 %v428
    %584 = vmatprep.subr.bf16.mxu0 0
    %585 = vmatpush1.bf16.msra.mxu0 %v431
    %586 = vmatprep.subr.bf16.mxu0 0
    %587 = vmatpush1.bf16.msra.mxu0 %v434
    %588 = vmatprep.subr.bf16.mxu0 0
    %589 = vmatpush1.bf16.msra.mxu0 0
    %590 = vmatprep.subr.bf16.mxu0 0
    %591 = vmatpush1.bf16.msra.mxu0 0
    %592 = vmatprep.subr.bf16.mxu0 0
    %593 = vmatpush1.bf16.msra.mxu0 0
    %594 = vmatprep.subr.bf16.mxu0 0
    %595 = vmatpush1.bf16.msra.mxu0 0
    %596 = vmatprep.subr.bf16.mxu0 0
    %597 = vmatpush1.bf16.msra.mxu0 0
    %598 = vmatprep.subr.bf16.mxu0 0
    %599 = vmatpush1.bf16.msra.mxu0 0
    %600 = vmatprep.subr.bf16.mxu0 0
    %601 = vmatpush1.bf16.msra.mxu0 0
    %602 = vmatprep.subr.bf16.mxu0 0
    %603 = vmatpush1.bf16.msra.mxu0 0
    %604 = vmatprep.mubr.bf16.mxu0 0
    %605 = vmatmul.mubr.bf16.gmra.mrb[0].mxu0 %v291
    %v606 = vpop.f32.mrb[0].mxu0
    %v607 = vadd.f32 0.0, %v606
    %v608 = vpop.f32.mrb[0].mxu0
    %v609 = vpop.f32.mrb[0].mxu0
    %v610 = vadd.f32 0.0, %v609
    %v611 = vpop.f32.mrb[0].mxu0
    %612 = vmatprep.mubr.bf16.mxu0 0
    %613 = vmatmul.mubr.bf16.gmra.mrb[0].mxu0 %v292
    %v614 = vpop.f32.mrb[0].mxu0
    %v615 = vadd.f32 0.0, %v614
    %v616 = vpop.f32.mrb[0].mxu0
    %v617 = vpop.f32.mrb[0].mxu0
    %v618 = vadd.f32 0.0, %v617
    %v619 = vpop.f32.mrb[0].mxu0
    %620 = vmatprep.mubr.bf16.mxu0 0
    %621 = vmatmul.mubr.bf16.gmra.mrb[0].mxu0 %v293
    %v622 = vpop.f32.mrb[0].mxu0
    %v623 = vadd.f32 0.0, %v622
    %v624 = vpop.f32.mrb[0].mxu0
    %v625 = vpop.f32.mrb[0].mxu0
    %v626 = vadd.f32 0.0, %v625
    %v627 = vpop.f32.mrb[0].mxu0
    %628 = vmatprep.mubr.bf16.mxu0 0
    %629 = vmatmul.mubr.bf16.gmra.mrb[0].mxu0 %v294
    %v630 = vpop.f32.mrb[0].mxu0
    %v631 = vadd.f32 0.0, %v630
    %v632 = vpop.f32.mrb[0].mxu0
    %v633 = vpop.f32.mrb[0].mxu0
    %v634 = vadd.f32 0.0, %v633
    %v635 = vpop.f32.mrb[0].mxu0
    %636 = vmatprep.mubr.bf16.mxu0 0
    %637 = vmatmul.mubr.bf16.gmra.mrb[0].mxu0 %v295
    %v638 = vpop.f32.mrb[0].mxu0
    %v639 = vadd.f32 0.0, %v638
    %v640 = vpop.f32.mrb[0].mxu0
    %v641 = vpop.f32.mrb[0].mxu0
    %v642 = vadd.f32 0.0, %v641
    %v643 = vpop.f32.mrb[0].mxu0
    %644 = vmatprep.mubr.bf16.mxu0 0
    %645 = vmatmul.mubr.bf16.gmra.mrb[0].mxu0 %v296
    %v646 = vpop.f32.mrb[0].mxu0
    %v647 = vadd.f32 0.0, %v646
    %v648 = vpop.f32.mrb[0].mxu0
    %v649 = vpop.f32.mrb[0].mxu0
    %v650 = vadd.f32 0.0, %v649
    %v651 = vpop.f32.mrb[0].mxu0
    %652 = vmatprep.mubr.bf16.mxu0 0
    %653 = vmatmul.mubr.bf16.gmra.mrb[0].mxu0 %v297
    %v654 = vpop.f32.mrb[0].mxu0
    %v655 = vadd.f32 0.0, %v654
    %v656 = vpop.f32.mrb[0].mxu0
    %v657 = vpop.f32.mrb[0].mxu0
    %v658 = vadd.f32 0.0, %v657
    %v659 = vpop.f32.mrb[0].mxu0
    %660 = vmatprep.mubr.bf16.mxu0 0
    %661 = vmatmul.mubr.bf16.gmra.mrb[0].mxu0 %v298
    %v662 = vpop.f32.mrb[0].mxu0
    %v663 = vadd.f32 0.0, %v662
    %v664 = vpop.f32.mrb[0].mxu0
    %v665 = vpop.f32.mrb[0].mxu0
    %v666 = vadd.f32 0.0, %v665
    %v667 = vpop.f32.mrb[0].mxu0
    %668 = vdwg.mxu0
    %v669 = vpack.c.bf16 %v498, %v494
    %v670 = vpack.c.bf16 %v508, %v504
    %v671 = vpack.c.bf16 %v518, %v514
    %v672 = vpack.c.bf16 %v528, %v524
    %v673 = vpack.c.bf16 %v500, %v496
    %v674 = vpack.c.bf16 %v510, %v506
    %v675 = vpack.c.bf16 %v520, %v516
    %v676 = vpack.c.bf16 %v530, %v526
    %v677 = vpack.c.bf16 %v610, %v607
    %v678 = vpack.c.bf16 %v618, %v615
    %v679 = vpack.c.bf16 %v626, %v623
    %v680 = vpack.c.bf16 %v634, %v631
    %vm681 = vcmask 261120
    %v683 = vsel %vm681, %v669, 0
    %v686 = vsel %vm681, %v670, 0
    %v689 = vsel %vm681, %v671, 0
    %v692 = vsel %vm681, %v672, 0
    %v695 = vsel %vm681, %v673, 0
    %v698 = vsel %vm681, %v674, 0
    %v701 = vsel %vm681, %v675, 0
    %v704 = vsel %vm681, %v676, 0
    %706 = vmatprep.subr.bf16.mxu0 0
    %707 = vmatpush1.bf16.xpose.msra.mxu0 %v695
    %708 = vmatprep.subr.bf16.mxu0 0
    %709 = vmatpush1.bf16.xpose.msra.mxu0 %v698
    %710 = vmatprep.subr.bf16.mxu0 0
    %711 = vmatpush1.bf16.xpose.msra.mxu0 %v701
    %712 = vmatprep.subr.bf16.mxu0 0
    %713 = vmatpush1.bf16.xpose.msra.mxu0 %v704
    %714 = vmatprep.subr.bf16.mxu0 0
    %715 = vmatpush1.bf16.xpose.msra.mxu0 0
    %716 = vmatprep.subr.bf16.mxu0 0
    %717 = vmatpush1.bf16.xpose.msra.mxu0 0
    %718 = vmatprep.subr.bf16.mxu0 0
    %719 = vmatpush1.bf16.xpose.msra.mxu0 0
    %720 = vmatprep.subr.bf16.mxu0 0
    %721 = vmatpush1.bf16.xpose.msra.mxu0 0
    %722 = vmatprep.subr.bf16.mxu0 0
    %723 = vmatpush1.bf16.xpose.msra.mxu0 0
    %724 = vmatprep.subr.bf16.mxu0 0
    %725 = vmatpush1.bf16.xpose.msra.mxu0 0
    %726 = vmatprep.subr.bf16.mxu0 0
    %727 = vmatpush1.bf16.xpose.msra.mxu0 0
    %728 = vmatprep.subr.bf16.mxu0 0
    %729 = vmatpush1.bf16.xpose.msra.mxu0 0
    %730 = vmatprep.subr.bf16.mxu0 0
    %731 = vmatpush1.bf16.xpose.msra.mxu0 0
    %732 = vmatprep.subr.bf16.mxu0 0
    %733 = vmatpush1.bf16.xpose.msra.mxu0 0
    %734 = vmatprep.subr.bf16.mxu0 0
    %735 = vmatpush1.bf16.xpose.msra.mxu0 0
    %736 = vmatprep.subr.bf16.mxu0 0
    %737 = vmatpush1.bf16.xpose.msra.mxu0 0
    %738 = vmatprep.mubr.bf16.mxu0 0
    %739 = vmatmul.mubr.bf16.gmra.mrb[0].mxu0 %v683
    %v740 = vpop.f32.mrb[0].mxu0
    %v741 = vadd.f32 0.0, %v740
    %v742 = vpop.f32.mrb[0].mxu0
    %v743 = vpop.f32.mrb[0].mxu0
    %v744 = vadd.f32 0.0, %v743
    %v745 = vpop.f32.mrb[0].mxu0
    %746 = vmatprep.mubr.bf16.mxu0 0
    %747 = vmatmul.mubr.bf16.gmra.mrb[0].mxu0 %v686
    %v748 = vpop.f32.mrb[0].mxu0
    %v749 = vadd.f32 0.0, %v748
    %v750 = vpop.f32.mrb[0].mxu0
    %v751 = vpop.f32.mrb[0].mxu0
    %v752 = vadd.f32 0.0, %v751
    %v753 = vpop.f32.mrb[0].mxu0
    %754 = vmatprep.mubr.bf16.mxu0 0
    %755 = vmatmul.mubr.bf16.gmra.mrb[0].mxu0 %v689
    %v756 = vpop.f32.mrb[0].mxu0
    %v757 = vadd.f32 0.0, %v756
    %v758 = vpop.f32.mrb[0].mxu0
    %v759 = vpop.f32.mrb[0].mxu0
    %v760 = vadd.f32 0.0, %v759
    %v761 = vpop.f32.mrb[0].mxu0
    %762 = vmatprep.mubr.bf16.mxu0 0
    %763 = vmatmul.mubr.bf16.gmra.mrb[0].mxu0 %v692
    %v764 = vpop.f32.mrb[0].mxu0
    %v765 = vadd.f32 0.0, %v764
    %v766 = vpop.f32.mrb[0].mxu0
    %v767 = vpop.f32.mrb[0].mxu0
    %v768 = vadd.f32 0.0, %v767
    %v769 = vpop.f32.mrb[0].mxu0
    %770 = vdwg.mxu0
    %vm771 = vcmask 523264
    %v772 = vsel %vm771, %v741, -inf
    %773 = vmax.xlane.f32.xlu0 %v772
    %v774 = vpop.xlane.xlu0 %773
    %v775 = vsel %vm771, %v744, -inf
    %776 = vmax.xlane.f32.xlu0 %v775
    %v777 = vpop.xlane.xlu0 %776
    %v778 = vsel %vm771, %v749, -inf
    %779 = vmax.xlane.f32.xlu0 %v778
    %v780 = vpop.xlane.xlu0 %779
    %v781 = vsel %vm771, %v752, -inf
    %782 = vmax.xlane.f32.xlu0 %v781
    %v783 = vpop.xlane.xlu0 %782
    %v784 = vsel %vm771, %v757, -inf
    %785 = vmax.xlane.f32.xlu0 %v784
    %v786 = vpop.xlane.xlu0 %785
    %v787 = vsel %vm771, %v760, -inf
    %788 = vmax.xlane.f32.xlu0 %v787
    %v789 = vpop.xlane.xlu0 %788
    %v790 = vsel %vm771, %v765, -inf
    %791 = vmax.xlane.f32.xlu0 %v790
    %v792 = vpop.xlane.xlu0 %791
    %v793 = vsel %vm771, %v768, -inf
    %794 = vmax.xlane.f32.xlu0 %v793
    %v795 = vpop.xlane.xlu0 %794
    %v796 = vsub.f32 %v741, %v774
    %v797 = vsub.f32 %v744, %v777
    %v798 = vsub.f32 %v749, %v780
    %v799 = vsub.f32 %v752, %v783
    %v800 = vsub.f32 %v757, %v786
    %v801 = vsub.f32 %v760, %v789
    %v802 = vsub.f32 %v765, %v792
    %v803 = vsub.f32 %v768, %v795
    %v804 = vmul.f32 %v796, 1.442695
    %v805 = vpow.pop %v804
    %v806 = vmul.f32 %v797, 1.442695
    %v807 = vpow.pop %v806
    %v808 = vmul.f32 %v798, 1.442695
    %v809 = vpow.pop %v808
    %v810 = vmul.f32 %v799, 1.442695
    %v811 = vpow.pop %v810
    %v812 = vmul.f32 %v800, 1.442695
    %v813 = vpow.pop %v812
    %v814 = vmul.f32 %v801, 1.442695
    %v815 = vpow.pop %v814
    %v816 = vmul.f32 %v802, 1.442695
    %v817 = vpow.pop %v816
    %v818 = vmul.f32 %v803, 1.442695
    %v819 = vpow.pop %v818
    %v820 = vsel %vm771, %v805, 0.0
    %821 = vadd.xlane.f32.xlu0 %v820
    %v822 = vpop.xlane.xlu0 %821
    %v823 = vsel %vm771, %v807, 0.0
    %824 = vadd.xlane.f32.xlu0 %v823
    %v825 = vpop.xlane.xlu0 %824
    %v826 = vsel %vm771, %v809, 0.0
    %827 = vadd.xlane.f32.xlu0 %v826
    %v828 = vpop.xlane.xlu0 %827
    %v829 = vsel %vm771, %v811, 0.0
    %830 = vadd.xlane.f32.xlu0 %v829
    %v831 = vpop.xlane.xlu0 %830
    %v832 = vsel %vm771, %v813, 0.0
    %833 = vadd.xlane.f32.xlu0 %v832
    %v834 = vpop.xlane.xlu0 %833
    %v835 = vsel %vm771, %v815, 0.0
    %836 = vadd.xlane.f32.xlu0 %v835
    %v837 = vpop.xlane.xlu0 %836
    %v838 = vsel %vm771, %v817, 0.0
    %839 = vadd.xlane.f32.xlu0 %v838
    %v840 = vpop.xlane.xlu0 %839
    %v841 = vsel %vm771, %v819, 0.0
    %842 = vadd.xlane.f32.xlu0 %v841
    %v843 = vpop.xlane.xlu0 %842
    %v844 = vrcp.pop %v822
    %v845 = vrcp.pop %v825
    %v846 = vrcp.pop %v828
    %v847 = vrcp.pop %v831
    %v848 = vrcp.pop %v834
    %v849 = vrcp.pop %v837
    %v850 = vrcp.pop %v840
    %v851 = vrcp.pop %v843
    %v852 = vmul.f32 %v805, %v844
    %v853 = vmul.f32 %v807, %v845
    %v854 = vmul.f32 %v809, %v846
    %v855 = vmul.f32 %v811, %v847
    %v856 = vmul.f32 %v813, %v848
    %v857 = vmul.f32 %v815, %v849
    %v858 = vmul.f32 %v817, %v850
    %v859 = vmul.f32 %v819, %v851
    %v860 = vpack.c.bf16 %v853, %v852
    %v861 = vpack.c.bf16 %v855, %v854
    %v862 = vpack.c.bf16 %v857, %v856
    %v863 = vpack.c.bf16 %v859, %v858
    %v865 = vsel %vm771, %v860, 0
    %v868 = vsel %vm771, %v861, 0
    %v871 = vsel %vm771, %v862, 0
    %v874 = vsel %vm771, %v863, 0
    %876 = vmatprep.subr.bf16.mxu0 0
    %877 = vmatpush1.bf16.msra.mxu0 %v677
    %878 = vmatprep.subr.bf16.mxu0 0
    %879 = vmatpush1.bf16.msra.mxu0 %v678
    %880 = vmatprep.subr.bf16.mxu0 0
    %881 = vmatpush1.bf16.msra.mxu0 %v679
    %882 = vmatprep.subr.bf16.mxu0 0
    %883 = vmatpush1.bf16.msra.mxu0 %v680
    %884 = vmatprep.subr.bf16.mxu0 0
    %885 = vmatpush1.bf16.msra.mxu0 0
    %886 = vmatprep.subr.bf16.mxu0 0
    %887 = vmatpush1.bf16.msra.mxu0 0
    %888 = vmatprep.subr.bf16.mxu0 0
    %889 = vmatpush1.bf16.msra.mxu0 0
    %890 = vmatprep.subr.bf16.mxu0 0
    %891 = vmatpush1.bf16.msra.mxu0 0
    %892 = vmatprep.subr.bf16.mxu0 0
    %893 = vmatpush1.bf16.msra.mxu0 0
    %894 = vmatprep.subr.bf16.mxu0 0
    %895 = vmatpush1.bf16.msra.mxu0 0
    %896 = vmatprep.subr.bf16.mxu0 0
    %897 = vmatpush1.bf16.msra.mxu0 0
    %898 = vmatprep.subr.bf16.mxu0 0
    %899 = vmatpush1.bf16.msra.mxu0 0
    %900 = vmatprep.subr.bf16.mxu0 0
    %901 = vmatpush1.bf16.msra.mxu0 0
    %902 = vmatprep.subr.bf16.mxu0 0
    %903 = vmatpush1.bf16.msra.mxu0 0
    %904 = vmatprep.subr.bf16.mxu0 0
    %905 = vmatpush1.bf16.msra.mxu0 0
    %906 = vmatprep.subr.bf16.mxu0 0
    %907 = vmatpush1.bf16.msra.mxu0 0
    %908 = vmatprep.mubr.bf16.mxu0 0
    %909 = vmatmul.mubr.bf16.gmra.mrb[0].mxu0 %v865
    %v910 = vpop.f32.mrb[0].mxu0
    %v911 = vadd.f32 0.0, %v910
    %v912 = vpop.f32.mrb[0].mxu0
    %v913 = vpop.f32.mrb[0].mxu0
    %v914 = vadd.f32 0.0, %v913
    %v915 = vpop.f32.mrb[0].mxu0
    %916 = vmatprep.mubr.bf16.mxu0 0
    %917 = vmatmul.mubr.bf16.gmra.mrb[0].mxu0 %v868
    %v918 = vpop.f32.mrb[0].mxu0
    %v919 = vadd.f32 0.0, %v918
    %v920 = vpop.f32.mrb[0].mxu0
    %v921 = vpop.f32.mrb[0].mxu0
    %v922 = vadd.f32 0.0, %v921
    %v923 = vpop.f32.mrb[0].mxu0
    %924 = vmatprep.mubr.bf16.mxu0 0
    %925 = vmatmul.mubr.bf16.gmra.mrb[0].mxu0 %v871
    %v926 = vpop.f32.mrb[0].mxu0
    %v927 = vadd.f32 0.0, %v926
    %v928 = vpop.f32.mrb[0].mxu0
    %v929 = vpop.f32.mrb[0].mxu0
    %v930 = vadd.f32 0.0, %v929
    %v931 = vpop.f32.mrb[0].mxu0
    %932 = vmatprep.mubr.bf16.mxu0 0
    %933 = vmatmul.mubr.bf16.gmra.mrb[0].mxu0 %v874
    %v934 = vpop.f32.mrb[0].mxu0
    %v935 = vadd.f32 0.0, %v934
    %v936 = vpop.f32.mrb[0].mxu0
    %v937 = vpop.f32.mrb[0].mxu0
    %v938 = vadd.f32 0.0, %v937
    %v939 = vpop.f32.mrb[0].mxu0
    %940 = vdwg.mxu0
    %v941 = vpack.c.bf16 %v914, %v911
    %v942 = vpack.c.bf16 %v922, %v919
    %v943 = vpack.c.bf16 %v930, %v927
    %v944 = vpack.c.bf16 %v938, %v935
    %v945 = vld [vmem:[%s4] sm:$0xf]
    %v946 = vld [vmem:[%s4 + $0x4] sm:$0xf]
    %v947 = vld [vmem:[%s4 + $0x8] sm:$0xf]
    %v948 = vld [vmem:[%s4 + $0xc] sm:$0xf]
    %953 = vrot.lane.b32.xlu0 %v669, 96
    %v954 = vpop.permute.xlu0 %953
    %955 = vrot.lane.b32.xlu0 %v670, 96
    %v956 = vpop.permute.xlu0 %955
    %957 = vrot.lane.b32.xlu0 %v671, 96
    %v958 = vpop.permute.xlu0 %957
    %959 = vrot.lane.b32.xlu0 %v672, 96
    %v960 = vpop.permute.xlu0 %959
    %965 = vrot.lane.b32.xlu0 %v673, 96
    %v966 = vpop.permute.xlu0 %965
    %967 = vrot.lane.b32.xlu0 %v674, 96
    %v968 = vpop.permute.xlu0 %967
    %969 = vrot.lane.b32.xlu0 %v675, 96
    %v970 = vpop.permute.xlu0 %969
    %971 = vrot.lane.b32.xlu0 %v676, 96
    %v972 = vpop.permute.xlu0 %971
    %v974 = vsel %vm681, %v954, 0
    %v977 = vsel %vm681, %v956, 0
    %v980 = vsel %vm681, %v958, 0
    %v983 = vsel %vm681, %v960, 0
    %v986 = vsel %vm681, %v966, 0
    %v989 = vsel %vm681, %v968, 0
    %v992 = vsel %vm681, %v970, 0
    %v995 = vsel %vm681, %v972, 0
    %997 = vmatprep.subr.bf16.mxu0 0
    %998 = vmatpush1.bf16.xpose.msra.mxu0 %v986
    %999 = vmatprep.subr.bf16.mxu0 0
    %1000 = vmatpush1.bf16.xpose.msra.mxu0 %v989
    %1001 = vmatprep.subr.bf16.mxu0 0
    %1002 = vmatpush1.bf16.xpose.msra.mxu0 %v992
    %1003 = vmatprep.subr.bf16.mxu0 0
    %1004 = vmatpush1.bf16.xpose.msra.mxu0 %v995
    %1005 = vmatprep.subr.bf16.mxu0 0
    %1006 = vmatpush1.bf16.xpose.msra.mxu0 0
    %1007 = vmatprep.subr.bf16.mxu0 0
    %1008 = vmatpush1.bf16.xpose.msra.mxu0 0
    %1009 = vmatprep.subr.bf16.mxu0 0
    %1010 = vmatpush1.bf16.xpose.msra.mxu0 0
    %1011 = vmatprep.subr.bf16.mxu0 0
    %1012 = vmatpush1.bf16.xpose.msra.mxu0 0
    %1013 = vmatprep.subr.bf16.mxu0 0
    %1014 = vmatpush1.bf16.xpose.msra.mxu0 0
    %1015 = vmatprep.subr.bf16.mxu0 0
    %1016 = vmatpush1.bf16.xpose.msra.mxu0 0
    %1017 = vmatprep.subr.bf16.mxu0 0
    %1018 = vmatpush1.bf16.xpose.msra.mxu0 0
    %1019 = vmatprep.subr.bf16.mxu0 0
    %1020 = vmatpush1.bf16.xpose.msra.mxu0 0
    %1021 = vmatprep.subr.bf16.mxu0 0
    %1022 = vmatpush1.bf16.xpose.msra.mxu0 0
    %1023 = vmatprep.subr.bf16.mxu0 0
    %1024 = vmatpush1.bf16.xpose.msra.mxu0 0
    %1025 = vmatprep.subr.bf16.mxu0 0
    %1026 = vmatpush1.bf16.xpose.msra.mxu0 0
    %1027 = vmatprep.subr.bf16.mxu0 0
    %1028 = vmatpush1.bf16.xpose.msra.mxu0 0
    %1029 = vmatprep.mubr.bf16.mxu0 0
    %1030 = vmatmul.mubr.bf16.gmra.mrb[0].mxu0 %v974
    %v1031 = vpop.f32.mrb[0].mxu0
    %v1032 = vadd.f32 0.0, %v1031
    %v1033 = vpop.f32.mrb[0].mxu0
    %v1034 = vpop.f32.mrb[0].mxu0
    %v1035 = vadd.f32 0.0, %v1034
    %v1036 = vpop.f32.mrb[0].mxu0
    %1037 = vmatprep.mubr.bf16.mxu0 0
    %1038 = vmatmul.mubr.bf16.gmra.mrb[0].mxu0 %v977
    %v1039 = vpop.f32.mrb[0].mxu0
    %v1040 = vadd.f32 0.0, %v1039
    %v1041 = vpop.f32.mrb[0].mxu0
    %v1042 = vpop.f32.mrb[0].mxu0
    %v1043 = vadd.f32 0.0, %v1042
    %v1044 = vpop.f32.mrb[0].mxu0
    %1045 = vmatprep.mubr.bf16.mxu0 0
    %1046 = vmatmul.mubr.bf16.gmra.mrb[0].mxu0 %v980
    %v1047 = vpop.f32.mrb[0].mxu0
    %v1048 = vadd.f32 0.0, %v1047
    %v1049 = vpop.f32.mrb[0].mxu0
    %v1050 = vpop.f32.mrb[0].mxu0
    %v1051 = vadd.f32 0.0, %v1050
    %v1052 = vpop.f32.mrb[0].mxu0
    %1053 = vmatprep.mubr.bf16.mxu0 0
    %1054 = vmatmul.mubr.bf16.gmra.mrb[0].mxu0 %v983
    %v1055 = vpop.f32.mrb[0].mxu0
    %v1056 = vadd.f32 0.0, %v1055
    %v1057 = vpop.f32.mrb[0].mxu0
    %v1058 = vpop.f32.mrb[0].mxu0
    %v1059 = vadd.f32 0.0, %v1058
    %v1060 = vpop.f32.mrb[0].mxu0
    %1061 = vdwg.mxu0
    %v1062 = vsel %vm771, %v1032, -inf
    %1063 = vmax.xlane.f32.xlu0 %v1062
    %v1064 = vpop.xlane.xlu0 %1063
    %v1065 = vsel %vm771, %v1035, -inf
    %1066 = vmax.xlane.f32.xlu0 %v1065
    %v1067 = vpop.xlane.xlu0 %1066
    %v1068 = vsel %vm771, %v1040, -inf
    %1069 = vmax.xlane.f32.xlu0 %v1068
    %v1070 = vpop.xlane.xlu0 %1069
    %v1071 = vsel %vm771, %v1043, -inf
    %1072 = vmax.xlane.f32.xlu0 %v1071
    %v1073 = vpop.xlane.xlu0 %1072
    %v1074 = vsel %vm771, %v1048, -inf
    %1075 = vmax.xlane.f32.xlu0 %v1074
    %v1076 = vpop.xlane.xlu0 %1075
    %v1077 = vsel %vm771, %v1051, -inf
    %1078 = vmax.xlane.f32.xlu0 %v1077
    %v1079 = vpop.xlane.xlu0 %1078
    %v1080 = vsel %vm771, %v1056, -inf
    %1081 = vmax.xlane.f32.xlu0 %v1080
    %v1082 = vpop.xlane.xlu0 %1081
    %v1083 = vsel %vm771, %v1059, -inf
    %1084 = vmax.xlane.f32.xlu0 %v1083
    %v1085 = vpop.xlane.xlu0 %1084
    %v1086 = vsub.f32 %v1032, %v1064
    %v1087 = vsub.f32 %v1035, %v1067
    %v1088 = vsub.f32 %v1040, %v1070
    %v1089 = vsub.f32 %v1043, %v1073
    %v1090 = vsub.f32 %v1048, %v1076
    %v1091 = vsub.f32 %v1051, %v1079
    %v1092 = vsub.f32 %v1056, %v1082
    %v1093 = vsub.f32 %v1059, %v1085
    %v1094 = vmul.f32 %v1086, 1.442695
    %v1095 = vpow.pop %v1094
    %v1096 = vmul.f32 %v1087, 1.442695
    %v1097 = vpow.pop %v1096
    %v1098 = vmul.f32 %v1088, 1.442695
    %v1099 = vpow.pop %v1098
    %v1100 = vmul.f32 %v1089, 1.442695
    %v1101 = vpow.pop %v1100
    %v1102 = vmul.f32 %v1090, 1.442695
    %v1103 = vpow.pop %v1102
    %v1104 = vmul.f32 %v1091, 1.442695
    %v1105 = vpow.pop %v1104
    %v1106 = vmul.f32 %v1092, 1.442695
    %v1107 = vpow.pop %v1106
    %v1108 = vmul.f32 %v1093, 1.442695
    %v1109 = vpow.pop %v1108
    %v1110 = vsel %vm771, %v1095, 0.0
    %1111 = vadd.xlane.f32.xlu0 %v1110
    %v1112 = vpop.xlane.xlu0 %1111
    %v1113 = vsel %vm771, %v1097, 0.0
    %1114 = vadd.xlane.f32.xlu0 %v1113
    %v1115 = vpop.xlane.xlu0 %1114
    %v1116 = vsel %vm771, %v1099, 0.0
    %1117 = vadd.xlane.f32.xlu0 %v1116
    %v1118 = vpop.xlane.xlu0 %1117
    %v1119 = vsel %vm771, %v1101, 0.0
    %1120 = vadd.xlane.f32.xlu0 %v1119
    %v1121 = vpop.xlane.xlu0 %1120
    %v1122 = vsel %vm771, %v1103, 0.0
    %1123 = vadd.xlane.f32.xlu0 %v1122
    %v1124 = vpop.xlane.xlu0 %1123
    %v1125 = vsel %vm771, %v1105, 0.0
    %1126 = vadd.xlane.f32.xlu0 %v1125
    %v1127 = vpop.xlane.xlu0 %1126
    %v1128 = vsel %vm771, %v1107, 0.0
    %1129 = vadd.xlane.f32.xlu0 %v1128
    %v1130 = vpop.xlane.xlu0 %1129
    %v1131 = vsel %vm771, %v1109, 0.0
    %1132 = vadd.xlane.f32.xlu0 %v1131
    %v1133 = vpop.xlane.xlu0 %1132
    %v1134 = vrcp.pop %v1112
    %v1135 = vrcp.pop %v1115
    %v1136 = vrcp.pop %v1118
    %v1137 = vrcp.pop %v1121
    %v1138 = vrcp.pop %v1124
    %v1139 = vrcp.pop %v1127
    %v1140 = vrcp.pop %v1130
    %v1141 = vrcp.pop %v1133
    %v1142 = vmul.f32 %v1095, %v1134
    %v1143 = vmul.f32 %v1097, %v1135
    %v1144 = vmul.f32 %v1099, %v1136
    %v1145 = vmul.f32 %v1101, %v1137
    %v1146 = vmul.f32 %v1103, %v1138
    %v1147 = vmul.f32 %v1105, %v1139
    %v1148 = vmul.f32 %v1107, %v1140
    %v1149 = vmul.f32 %v1109, %v1141
    %v1150 = vpack.c.bf16 %v1143, %v1142
    %v1151 = vpack.c.bf16 %v1145, %v1144
    %v1152 = vpack.c.bf16 %v1147, %v1146
    %v1153 = vpack.c.bf16 %v1149, %v1148
    %1158 = vrot.lane.b32.xlu0 %v677, 96
    %v1159 = vpop.permute.xlu0 %1158
    %1160 = vrot.lane.b32.xlu0 %v678, 96
    %v1161 = vpop.permute.xlu0 %1160
    %1162 = vrot.lane.b32.xlu0 %v679, 96
    %v1163 = vpop.permute.xlu0 %1162
    %1164 = vrot.lane.b32.xlu0 %v680, 96
    %v1165 = vpop.permute.xlu0 %1164
    %v1171 = vsel %vm771, %v1150, 0
    %v1174 = vsel %vm771, %v1151, 0
    %v1177 = vsel %vm771, %v1152, 0
    %v1180 = vsel %vm771, %v1153, 0
    %1182 = vmatprep.subr.bf16.mxu0 0
    %1183 = vmatpush1.bf16.msra.mxu0 %v1159
    %1184 = vmatprep.subr.bf16.mxu0 0
    %1185 = vmatpush1.bf16.msra.mxu0 %v1161
    %1186 = vmatprep.subr.bf16.mxu0 0
    %1187 = vmatpush1.bf16.msra.mxu0 %v1163
    %1188 = vmatprep.subr.bf16.mxu0 0
    %1189 = vmatpush1.bf16.msra.mxu0 %v1165
    %1190 = vmatprep.subr.bf16.mxu0 0
    %1191 = vmatpush1.bf16.msra.mxu0 0
    %1192 = vmatprep.subr.bf16.mxu0 0
    %1193 = vmatpush1.bf16.msra.mxu0 0
    %1194 = vmatprep.subr.bf16.mxu0 0
    %1195 = vmatpush1.bf16.msra.mxu0 0
    %1196 = vmatprep.subr.bf16.mxu0 0
    %1197 = vmatpush1.bf16.msra.mxu0 0
    %1198 = vmatprep.subr.bf16.mxu0 0
    %1199 = vmatpush1.bf16.msra.mxu0 0
    %1200 = vmatprep.subr.bf16.mxu0 0
    %1201 = vmatpush1.bf16.msra.mxu0 0
    %1202 = vmatprep.subr.bf16.mxu0 0
    %1203 = vmatpush1.bf16.msra.mxu0 0
    %1204 = vmatprep.subr.bf16.mxu0 0
    %1205 = vmatpush1.bf16.msra.mxu0 0
    %1206 = vmatprep.subr.bf16.mxu0 0
    %1207 = vmatpush1.bf16.msra.mxu0 0
    %1208 = vmatprep.subr.bf16.mxu0 0
    %1209 = vmatpush1.bf16.msra.mxu0 0
    %1210 = vmatprep.subr.bf16.mxu0 0
    %1211 = vmatpush1.bf16.msra.mxu0 0
    %1212 = vmatprep.subr.bf16.mxu0 0
    %1213 = vmatpush1.bf16.msra.mxu0 0
    %1214 = vmatprep.mubr.bf16.mxu0 0
    %1215 = vmatmul.mubr.bf16.gmra.mrb[0].mxu0 %v1171
    %v1216 = vpop.f32.mrb[0].mxu0
    %v1217 = vadd.f32 0.0, %v1216
    %v1218 = vpop.f32.mrb[0].mxu0
    %v1219 = vpop.f32.mrb[0].mxu0
    %v1220 = vadd.f32 0.0, %v1219
    %v1221 = vpop.f32.mrb[0].mxu0
    %1222 = vmatprep.mubr.bf16.mxu0 0
    %1223 = vmatmul.mubr.bf16.gmra.mrb[0].mxu0 %v1174
    %v1224 = vpop.f32.mrb[0].mxu0
    %v1225 = vadd.f32 0.0, %v1224
    %v1226 = vpop.f32.mrb[0].mxu0
    %v1227 = vpop.f32.mrb[0].mxu0
    %v1228 = vadd.f32 0.0, %v1227
    %v1229 = vpop.f32.mrb[0].mxu0
    %1230 = vmatprep.mubr.bf16.mxu0 0
    %1231 = vmatmul.mubr.bf16.gmra.mrb[0].mxu0 %v1177
    %v1232 = vpop.f32.mrb[0].mxu0
    %v1233 = vadd.f32 0.0, %v1232
    %v1234 = vpop.f32.mrb[0].mxu0
    %v1235 = vpop.f32.mrb[0].mxu0
    %v1236 = vadd.f32 0.0, %v1235
    %v1237 = vpop.f32.mrb[0].mxu0
    %1238 = vmatprep.mubr.bf16.mxu0 0
    %1239 = vmatmul.mubr.bf16.gmra.mrb[0].mxu0 %v1180
    %v1240 = vpop.f32.mrb[0].mxu0
    %v1241 = vadd.f32 0.0, %v1240
    %v1242 = vpop.f32.mrb[0].mxu0
    %v1243 = vpop.f32.mrb[0].mxu0
    %v1244 = vadd.f32 0.0, %v1243
    %v1245 = vpop.f32.mrb[0].mxu0
    %1246 = vdwg.mxu0
    %v1247 = vpack.c.bf16 %v1220, %v1217
    %v1248 = vpack.c.bf16 %v1228, %v1225
    %v1249 = vpack.c.bf16 %v1236, %v1233
    %v1250 = vpack.c.bf16 %v1244, %v1241
    %s1251 = scalar_lea.vmem %s4, 16
    %v1252 = vld [vmem:[%s1251] sm:$0xf]
    %v1253 = vld [vmem:[%s1251 + $0x4] sm:$0xf]
    %v1254 = vld [vmem:[%s1251 + $0x8] sm:$0xf]
    %v1255 = vld [vmem:[%s1251 + $0xc] sm:$0xf]
    %v1260 = vunpack.c.l.b16 %v1252
    %v1261 = vunpack.c.l.b16 %v1253
    %v1262 = vunpack.c.l.b16 %v1254
    %v1263 = vunpack.c.l.b16 %v1255
    %v1264 = vpack.c.b16 %v1261, %v1260
    %v1265 = vpack.c.b16 %v1263, %v1262
    %v1269 = vsel %vm681, %v1247, 0
    %v1272 = vsel %vm681, %v1248, 0
    %v1275 = vsel %vm681, %v1249, 0
    %v1278 = vsel %vm681, %v1250, 0
    %1280 = vmatprep.subr.bf16.mxu0 0
    %1281 = vmatpush1.bf16.msra.mxu0 %v1264
    %1282 = vmatprep.subr.bf16.mxu0 0
    %1283 = vmatpush1.bf16.msra.mxu0 %v1265
    %1284 = vmatprep.subr.bf16.mxu0 0
    %1285 = vmatpush1.bf16.msra.mxu0 0
    %1286 = vmatprep.subr.bf16.mxu0 0
    %1287 = vmatpush1.bf16.msra.mxu0 0
    %1288 = vmatprep.subr.bf16.mxu0 0
    %1289 = vmatpush1.bf16.msra.mxu0 0
    %1290 = vmatprep.subr.bf16.mxu0 0
    %1291 = vmatpush1.bf16.msra.mxu0 0
    %1292 = vmatprep.subr.bf16.mxu0 0
    %1293 = vmatpush1.bf16.msra.mxu0 0
    %1294 = vmatprep.subr.bf16.mxu0 0
    %1295 = vmatpush1.bf16.msra.mxu0 0
    %1296 = vmatprep.subr.bf16.mxu0 0
    %1297 = vmatpush1.bf16.msra.mxu0 0
    %1298 = vmatprep.subr.bf16.mxu0 0
    %1299 = vmatpush1.bf16.msra.mxu0 0
    %1300 = vmatprep.subr.bf16.mxu0 0
    %1301 = vmatpush1.bf16.msra.mxu0 0
    %1302 = vmatprep.subr.bf16.mxu0 0
    %1303 = vmatpush1.bf16.msra.mxu0 0
    %1304 = vmatprep.subr.bf16.mxu0 0
    %1305 = vmatpush1.bf16.msra.mxu0 0
    %1306 = vmatprep.subr.bf16.mxu0 0
    %1307 = vmatpush1.bf16.msra.mxu0 0
    %1308 = vmatprep.subr.bf16.mxu0 0
    %1309 = vmatpush1.bf16.msra.mxu0 0
    %1310 = vmatprep.subr.bf16.mxu0 0
    %1311 = vmatpush1.bf16.msra.mxu0 0
    %1312 = vmatprep.mubr.bf16.mxu0 0
    %1313 = vmatmul.mubr.bf16.gmra.mrb[0].mxu0 %v1269
    %v1314 = vpop.f32.mrb[0].mxu0
    %v1315 = vadd.f32 0.0, %v1314
    %v1316 = vpop.f32.mrb[0].mxu0
    %v1317 = vpop.f32.mrb[0].mxu0
    %v1318 = vadd.f32 0.0, %v1317
    %v1319 = vpop.f32.mrb[0].mxu0
    %1320 = vmatprep.mubr.bf16.mxu0 0
    %1321 = vmatmul.mubr.bf16.gmra.mrb[0].mxu0 %v1272
    %v1322 = vpop.f32.mrb[0].mxu0
    %v1323 = vadd.f32 0.0, %v1322
    %v1324 = vpop.f32.mrb[0].mxu0
    %v1325 = vpop.f32.mrb[0].mxu0
    %v1326 = vadd.f32 0.0, %v1325
    %v1327 = vpop.f32.mrb[0].mxu0
    %1328 = vmatprep.mubr.bf16.mxu0 0
    %1329 = vmatmul.mubr.bf16.gmra.mrb[0].mxu0 %v1275
    %v1330 = vpop.f32.mrb[0].mxu0
    %v1331 = vadd.f32 0.0, %v1330
    %v1332 = vpop.f32.mrb[0].mxu0
    %v1333 = vpop.f32.mrb[0].mxu0
    %v1334 = vadd.f32 0.0, %v1333
    %v1335 = vpop.f32.mrb[0].mxu0
    %1336 = vmatprep.mubr.bf16.mxu0 0
    %1337 = vmatmul.mubr.bf16.gmra.mrb[0].mxu0 %v1278
    %v1338 = vpop.f32.mrb[0].mxu0
    %v1339 = vadd.f32 0.0, %v1338
    %v1340 = vpop.f32.mrb[0].mxu0
    %v1341 = vpop.f32.mrb[0].mxu0
    %v1342 = vadd.f32 0.0, %v1341
    %v1343 = vpop.f32.mrb[0].mxu0
    %1344 = vdwg.mxu0
    %v1349 = vunpack.c.l.b16 %v945
    %v1350 = vunpack.c.l.b16 %v946
    %v1351 = vunpack.c.l.b16 %v947
    %v1352 = vunpack.c.l.b16 %v948
    %v1353 = vpack.c.b16 %v1350, %v1349
    %v1354 = vpack.c.b16 %v1352, %v1351
    %v1358 = vsel %vm681, %v941, 0
    %v1361 = vsel %vm681, %v942, 0
    %v1364 = vsel %vm681, %v943, 0
    %v1367 = vsel %vm681, %v944, 0
    %1369 = vmatprep.subr.bf16.mxu0 0
    %1370 = vmatpush1.bf16.msra.mxu0 %v1353
    %1371 = vmatprep.subr.bf16.mxu0 0
    %1372 = vmatpush1.bf16.msra.mxu0 %v1354
    %1373 = vmatprep.subr.bf16.mxu0 0
    %1374 = vmatpush1.bf16.msra.mxu0 0
    %1375 = vmatprep.subr.bf16.mxu0 0
    %1376 = vmatpush1.bf16.msra.mxu0 0
    %1377 = vmatprep.subr.bf16.mxu0 0
    %1378 = vmatpush1.bf16.msra.mxu0 0
    %1379 = vmatprep.subr.bf16.mxu0 0
    %1380 = vmatpush1.bf16.msra.mxu0 0
    %1381 = vmatprep.subr.bf16.mxu0 0
    %1382 = vmatpush1.bf16.msra.mxu0 0
    %1383 = vmatprep.subr.bf16.mxu0 0
    %1384 = vmatpush1.bf16.msra.mxu0 0
    %1385 = vmatprep.subr.bf16.mxu0 0
    %1386 = vmatpush1.bf16.msra.mxu0 0
    %1387 = vmatprep.subr.bf16.mxu0 0
    %1388 = vmatpush1.bf16.msra.mxu0 0
    %1389 = vmatprep.subr.bf16.mxu0 0
    %1390 = vmatpush1.bf16.msra.mxu0 0
    %1391 = vmatprep.subr.bf16.mxu0 0
    %1392 = vmatpush1.bf16.msra.mxu0 0
    %1393 = vmatprep.subr.bf16.mxu0 0
    %1394 = vmatpush1.bf16.msra.mxu0 0
    %1395 = vmatprep.subr.bf16.mxu0 0
    %1396 = vmatpush1.bf16.msra.mxu0 0
    %1397 = vmatprep.subr.bf16.mxu0 0
    %1398 = vmatpush1.bf16.msra.mxu0 0
    %1399 = vmatprep.subr.bf16.mxu0 0
    %1400 = vmatpush1.bf16.msra.mxu0 0
    %1401 = vmatprep.mubr.bf16.mxu0 0
    %1402 = vmatmul.mubr.bf16.gmra.mrb[0].mxu0 %v1358
    %v1403 = vpop.f32.mrb[0].mxu0
    %v1404 = vadd.f32 %v1315, %v1403
    %v1405 = vpop.f32.mrb[0].mxu0
    %v1406 = vpop.f32.mrb[0].mxu0
    %v1407 = vadd.f32 %v1318, %v1406
    %v1408 = vpop.f32.mrb[0].mxu0
    %1409 = vmatprep.mubr.bf16.mxu0 0
    %1410 = vmatmul.mubr.bf16.gmra.mrb[0].mxu0 %v1361
    %v1411 = vpop.f32.mrb[0].mxu0
    %v1412 = vadd.f32 %v1323, %v1411
    %v1413 = vpop.f32.mrb[0].mxu0
    %v1414 = vpop.f32.mrb[0].mxu0
    %v1415 = vadd.f32 %v1326, %v1414
    %v1416 = vpop.f32.mrb[0].mxu0
    %1417 = vmatprep.mubr.bf16.mxu0 0
    %1418 = vmatmul.mubr.bf16.gmra.mrb[0].mxu0 %v1364
    %v1419 = vpop.f32.mrb[0].mxu0
    %v1420 = vadd.f32 %v1331, %v1419
    %v1421 = vpop.f32.mrb[0].mxu0
    %v1422 = vpop.f32.mrb[0].mxu0
    %v1423 = vadd.f32 %v1334, %v1422
    %v1424 = vpop.f32.mrb[0].mxu0
    %1425 = vmatprep.mubr.bf16.mxu0 0
    %1426 = vmatmul.mubr.bf16.gmra.mrb[0].mxu0 %v1367
    %v1427 = vpop.f32.mrb[0].mxu0
    %v1428 = vadd.f32 %v1339, %v1427
    %v1429 = vpop.f32.mrb[0].mxu0
    %v1430 = vpop.f32.mrb[0].mxu0
    %v1431 = vadd.f32 %v1342, %v1430
    %v1432 = vpop.f32.mrb[0].mxu0
    %1433 = vdwg.mxu0
    %1434 = vrot.lane.b32.xlu0 %v669, 64
    %v1435 = vpop.permute.xlu0 %1434
    %1436 = vrot.lane.b32.xlu0 %v670, 64
    %v1437 = vpop.permute.xlu0 %1436
    %1438 = vrot.lane.b32.xlu0 %v671, 64
    %v1439 = vpop.permute.xlu0 %1438
    %1440 = vrot.lane.b32.xlu0 %v672, 64
    %v1441 = vpop.permute.xlu0 %1440
    %1442 = vrot.lane.b32.xlu0 %v673, 64
    %v1443 = vpop.permute.xlu0 %1442
    %1444 = vrot.lane.b32.xlu0 %v674, 64
    %v1445 = vpop.permute.xlu0 %1444
    %1446 = vrot.lane.b32.xlu0 %v675, 64
    %v1447 = vpop.permute.xlu0 %1446
    %1448 = vrot.lane.b32.xlu0 %v676, 64
    %v1449 = vpop.permute.xlu0 %1448
    %v1451 = vsel %vm681, %v1435, 0
    %v1454 = vsel %vm681, %v1437, 0
    %v1457 = vsel %vm681, %v1439, 0
    %v1460 = vsel %vm681, %v1441, 0
    %v1463 = vsel %vm681, %v1443, 0
    %v1466 = vsel %vm681, %v1445, 0
    %v1469 = vsel %vm681, %v1447, 0
    %v1472 = vsel %vm681, %v1449, 0
    %1474 = vmatprep.subr.bf16.mxu0 0
    %1475 = vmatpush1.bf16.xpose.msra.mxu0 %v1463
    %1476 = vmatprep.subr.bf16.mxu0 0
    %1477 = vmatpush1.bf16.xpose.msra.mxu0 %v1466
    %1478 = vmatprep.subr.bf16.mxu0 0
    %1479 = vmatpush1.bf16.xpose.msra.mxu0 %v1469
    %1480 = vmatprep.subr.bf16.mxu0 0
    %1481 = vmatpush1.bf16.xpose.msra.mxu0 %v1472
    %1482 = vmatprep.subr.bf16.mxu0 0
    %1483 = vmatpush1.bf16.xpose.msra.mxu0 0
    %1484 = vmatprep.subr.bf16.mxu0 0
    %1485 = vmatpush1.bf16.xpose.msra.mxu0 0
    %1486 = vmatprep.subr.bf16.mxu0 0
    %1487 = vmatpush1.bf16.xpose.msra.mxu0 0
    %1488 = vmatprep.subr.bf16.mxu0 0
    %1489 = vmatpush1.bf16.xpose.msra.mxu0 0
    %1490 = vmatprep.subr.bf16.mxu0 0
    %1491 = vmatpush1.bf16.xpose.msra.mxu0 0
    %1492 = vmatprep.subr.bf16.mxu0 0
    %1493 = vmatpush1.bf16.xpose.msra.mxu0 0
    %1494 = vmatprep.subr.bf16.mxu0 0
    %1495 = vmatpush1.bf16.xpose.msra.mxu0 0
    %1496 = vmatprep.subr.bf16.mxu0 0
    %1497 = vmatpush1.bf16.xpose.msra.mxu0 0
    %1498 = vmatprep.subr.bf16.mxu0 0
    %1499 = vmatpush1.bf16.xpose.msra.mxu0 0
    %1500 = vmatprep.subr.bf16.mxu0 0
    %1501 = vmatpush1.bf16.xpose.msra.mxu0 0
    %1502 = vmatprep.subr.bf16.mxu0 0
    %1503 = vmatpush1.bf16.xpose.msra.mxu0 0
    %1504 = vmatprep.subr.bf16.mxu0 0
    %1505 = vmatpush1.bf16.xpose.msra.mxu0 0
    %1506 = vmatprep.mubr.bf16.mxu0 0
    %1507 = vmatmul.mubr.bf16.gmra.mrb[0].mxu0 %v1451
    %v1508 = vpop.f32.mrb[0].mxu0
    %v1509 = vadd.f32 0.0, %v1508
    %v1510 = vpop.f32.mrb[0].mxu0
    %v1511 = vpop.f32.mrb[0].mxu0
    %v1512 = vadd.f32 0.0, %v1511
    %v1513 = vpop.f32.mrb[0].mxu0
    %1514 = vmatprep.mubr.bf16.mxu0 0
    %1515 = vmatmul.mubr.bf16.gmra.mrb[0].mxu0 %v1454
    %v1516 = vpop.f32.mrb[0].mxu0
    %v1517 = vadd.f32 0.0, %v1516
    %v1518 = vpop.f32.mrb[0].mxu0
    %v1519 = vpop.f32.mrb[0].mxu0
    %v1520 = vadd.f32 0.0, %v1519
    %v1521 = vpop.f32.mrb[0].mxu0
    %1522 = vmatprep.mubr.bf16.mxu0 0
    %1523 = vmatmul.mubr.bf16.gmra.mrb[0].mxu0 %v1457
    %v1524 = vpop.f32.mrb[0].mxu0
    %v1525 = vadd.f32 0.0, %v1524
    %v1526 = vpop.f32.mrb[0].mxu0
    %v1527 = vpop.f32.mrb[0].mxu0
    %v1528 = vadd.f32 0.0, %v1527
    %v1529 = vpop.f32.mrb[0].mxu0
    %1530 = vmatprep.mubr.bf16.mxu0 0
    %1531 = vmatmul.mubr.bf16.gmra.mrb[0].mxu0 %v1460
    %v1532 = vpop.f32.mrb[0].mxu0
    %v1533 = vadd.f32 0.0, %v1532
    %v1534 = vpop.f32.mrb[0].mxu0
    %v1535 = vpop.f32.mrb[0].mxu0
    %v1536 = vadd.f32 0.0, %v1535
    %v1537 = vpop.f32.mrb[0].mxu0
    %1538 = vdwg.mxu0
    %v1539 = vsel %vm771, %v1509, -inf
    %1540 = vmax.xlane.f32.xlu0 %v1539
    %v1541 = vpop.xlane.xlu0 %1540
    %v1542 = vsel %vm771, %v1512, -inf
    %1543 = vmax.xlane.f32.xlu0 %v1542
    %v1544 = vpop.xlane.xlu0 %1543
    %v1545 = vsel %vm771, %v1517, -inf
    %1546 = vmax.xlane.f32.xlu0 %v1545
    %v1547 = vpop.xlane.xlu0 %1546
    %v1548 = vsel %vm771, %v1520, -inf
    %1549 = vmax.xlane.f32.xlu0 %v1548
    %v1550 = vpop.xlane.xlu0 %1549
    %v1551 = vsel %vm771, %v1525, -inf
    %1552 = vmax.xlane.f32.xlu0 %v1551
    %v1553 = vpop.xlane.xlu0 %1552
    %v1554 = vsel %vm771, %v1528, -inf
    %1555 = vmax.xlane.f32.xlu0 %v1554
    %v1556 = vpop.xlane.xlu0 %1555
    %v1557 = vsel %vm771, %v1533, -inf
    %1558 = vmax.xlane.f32.xlu0 %v1557
    %v1559 = vpop.xlane.xlu0 %1558
    %v1560 = vsel %vm771, %v1536, -inf
    %1561 = vmax.xlane.f32.xlu0 %v1560
    %v1562 = vpop.xlane.xlu0 %1561
    %v1563 = vsub.f32 %v1509, %v1541
    %v1564 = vsub.f32 %v1512, %v1544
    %v1565 = vsub.f32 %v1517, %v1547
    %v1566 = vsub.f32 %v1520, %v1550
    %v1567 = vsub.f32 %v1525, %v1553
    %v1568 = vsub.f32 %v1528, %v1556
    %v1569 = vsub.f32 %v1533, %v1559
    %v1570 = vsub.f32 %v1536, %v1562
    %v1571 = vmul.f32 %v1563, 1.442695
    %v1572 = vpow.pop %v1571
    %v1573 = vmul.f32 %v1564, 1.442695
    %v1574 = vpow.pop %v1573
    %v1575 = vmul.f32 %v1565, 1.442695
    %v1576 = vpow.pop %v1575
    %v1577 = vmul.f32 %v1566, 1.442695
    %v1578 = vpow.pop %v1577
    %v1579 = vmul.f32 %v1567, 1.442695
    %v1580 = vpow.pop %v1579
    %v1581 = vmul.f32 %v1568, 1.442695
    %v1582 = vpow.pop %v1581
    %v1583 = vmul.f32 %v1569, 1.442695
    %v1584 = vpow.pop %v1583
    %v1585 = vmul.f32 %v1570, 1.442695
    %v1586 = vpow.pop %v1585
    %v1587 = vsel %vm771, %v1572, 0.0
    %1588 = vadd.xlane.f32.xlu0 %v1587
    %v1589 = vpop.xlane.xlu0 %1588
    %v1590 = vsel %vm771, %v1574, 0.0
    %1591 = vadd.xlane.f32.xlu0 %v1590
    %v1592 = vpop.xlane.xlu0 %1591
    %v1593 = vsel %vm771, %v1576, 0.0
    %1594 = vadd.xlane.f32.xlu0 %v1593
    %v1595 = vpop.xlane.xlu0 %1594
    %v1596 = vsel %vm771, %v1578, 0.0
    %1597 = vadd.xlane.f32.xlu0 %v1596
    %v1598 = vpop.xlane.xlu0 %1597
    %v1599 = vsel %vm771, %v1580, 0.0
    %1600 = vadd.xlane.f32.xlu0 %v1599
    %v1601 = vpop.xlane.xlu0 %1600
    %v1602 = vsel %vm771, %v1582, 0.0
    %1603 = vadd.xlane.f32.xlu0 %v1602
    %v1604 = vpop.xlane.xlu0 %1603
    %v1605 = vsel %vm771, %v1584, 0.0
    %1606 = vadd.xlane.f32.xlu0 %v1605
    %v1607 = vpop.xlane.xlu0 %1606
    %v1608 = vsel %vm771, %v1586, 0.0
    %1609 = vadd.xlane.f32.xlu0 %v1608
    %v1610 = vpop.xlane.xlu0 %1609
    %v1611 = vrcp.pop %v1589
    %v1612 = vrcp.pop %v1592
    %v1613 = vrcp.pop %v1595
    %v1614 = vrcp.pop %v1598
    %v1615 = vrcp.pop %v1601
    %v1616 = vrcp.pop %v1604
    %v1617 = vrcp.pop %v1607
    %v1618 = vrcp.pop %v1610
    %v1619 = vmul.f32 %v1572, %v1611
    %v1620 = vmul.f32 %v1574, %v1612
    %v1621 = vmul.f32 %v1576, %v1613
    %v1622 = vmul.f32 %v1578, %v1614
    %v1623 = vmul.f32 %v1580, %v1615
    %v1624 = vmul.f32 %v1582, %v1616
    %v1625 = vmul.f32 %v1584, %v1617
    %v1626 = vmul.f32 %v1586, %v1618
    %v1627 = vpack.c.bf16 %v1620, %v1619
    %v1628 = vpack.c.bf16 %v1622, %v1621
    %v1629 = vpack.c.bf16 %v1624, %v1623
    %v1630 = vpack.c.bf16 %v1626, %v1625
    %1631 = vrot.lane.b32.xlu0 %v677, 64
    %v1632 = vpop.permute.xlu0 %1631
    %1633 = vrot.lane.b32.xlu0 %v678, 64
    %v1634 = vpop.permute.xlu0 %1633
    %1635 = vrot.lane.b32.xlu0 %v679, 64
    %v1636 = vpop.permute.xlu0 %1635
    %1637 = vrot.lane.b32.xlu0 %v680, 64
    %v1638 = vpop.permute.xlu0 %1637
    %v1644 = vsel %vm771, %v1627, 0
    %v1647 = vsel %vm771, %v1628, 0
    %v1650 = vsel %vm771, %v1629, 0
    %v1653 = vsel %vm771, %v1630, 0
    %1655 = vmatprep.subr.bf16.mxu0 0
    %1656 = vmatpush1.bf16.msra.mxu0 %v1632
    %1657 = vmatprep.subr.bf16.mxu0 0
    %1658 = vmatpush1.bf16.msra.mxu0 %v1634
    %1659 = vmatprep.subr.bf16.mxu0 0
    %1660 = vmatpush1.bf16.msra.mxu0 %v1636
    %1661 = vmatprep.subr.bf16.mxu0 0
    %1662 = vmatpush1.bf16.msra.mxu0 %v1638
    %1663 = vmatprep.subr.bf16.mxu0 0
    %1664 = vmatpush1.bf16.msra.mxu0 0
    %1665 = vmatprep.subr.bf16.mxu0 0
    %1666 = vmatpush1.bf16.msra.mxu0 0
    %1667 = vmatprep.subr.bf16.mxu0 0
    %1668 = vmatpush1.bf16.msra.mxu0 0
    %1669 = vmatprep.subr.bf16.mxu0 0
    %1670 = vmatpush1.bf16.msra.mxu0 0
    %1671 = vmatprep.subr.bf16.mxu0 0
    %1672 = vmatpush1.bf16.msra.mxu0 0
    %1673 = vmatprep.subr.bf16.mxu0 0
    %1674 = vmatpush1.bf16.msra.mxu0 0
    %1675 = vmatprep.subr.bf16.mxu0 0
    %1676 = vmatpush1.bf16.msra.mxu0 0
    %1677 = vmatprep.subr.bf16.mxu0 0
    %1678 = vmatpush1.bf16.msra.mxu0 0
    %1679 = vmatprep.subr.bf16.mxu0 0
    %1680 = vmatpush1.bf16.msra.mxu0 0
    %1681 = vmatprep.subr.bf16.mxu0 0
    %1682 = vmatpush1.bf16.msra.mxu0 0
    %1683 = vmatprep.subr.bf16.mxu0 0
    %1684 = vmatpush1.bf16.msra.mxu0 0
    %1685 = vmatprep.subr.bf16.mxu0 0
    %1686 = vmatpush1.bf16.msra.mxu0 0
    %1687 = vmatprep.mubr.bf16.mxu0 0
    %1688 = vmatmul.mubr.bf16.gmra.mrb[0].mxu0 %v1644
    %v1689 = vpop.f32.mrb[0].mxu0
    %v1690 = vadd.f32 0.0, %v1689
    %v1691 = vpop.f32.mrb[0].mxu0
    %v1692 = vpop.f32.mrb[0].mxu0
    %v1693 = vadd.f32 0.0, %v1692
    %v1694 = vpop.f32.mrb[0].mxu0
    %1695 = vmatprep.mubr.bf16.mxu0 0
    %1696 = vmatmul.mubr.bf16.gmra.mrb[0].mxu0 %v1647
    %v1697 = vpop.f32.mrb[0].mxu0
    %v1698 = vadd.f32 0.0, %v1697
    %v1699 = vpop.f32.mrb[0].mxu0
    %v1700 = vpop.f32.mrb[0].mxu0
    %v1701 = vadd.f32 0.0, %v1700
    %v1702 = vpop.f32.mrb[0].mxu0
    %1703 = vmatprep.mubr.bf16.mxu0 0
    %1704 = vmatmul.mubr.bf16.gmra.mrb[0].mxu0 %v1650
    %v1705 = vpop.f32.mrb[0].mxu0
    %v1706 = vadd.f32 0.0, %v1705
    %v1707 = vpop.f32.mrb[0].mxu0
    %v1708 = vpop.f32.mrb[0].mxu0
    %v1709 = vadd.f32 0.0, %v1708
    %v1710 = vpop.f32.mrb[0].mxu0
    %1711 = vmatprep.mubr.bf16.mxu0 0
    %1712 = vmatmul.mubr.bf16.gmra.mrb[0].mxu0 %v1653
    %v1713 = vpop.f32.mrb[0].mxu0
    %v1714 = vadd.f32 0.0, %v1713
    %v1715 = vpop.f32.mrb[0].mxu0
    %v1716 = vpop.f32.mrb[0].mxu0
    %v1717 = vadd.f32 0.0, %v1716
    %v1718 = vpop.f32.mrb[0].mxu0
    %1719 = vdwg.mxu0
    %v1720 = vpack.c.bf16 %v1693, %v1690
    %v1721 = vpack.c.bf16 %v1701, %v1698
    %v1722 = vpack.c.bf16 %v1709, %v1706
    %v1723 = vpack.c.bf16 %v1717, %v1714
    %s1724 = scalar_lea.vmem %s4, 32
    %v1725 = vld [vmem:[%s1724] sm:$0xf]
    %v1726 = vld [vmem:[%s1724 + $0x4] sm:$0xf]
    %v1727 = vld [vmem:[%s1724 + $0x8] sm:$0xf]
    %v1728 = vld [vmem:[%s1724 + $0xc] sm:$0xf]
    %v1733 = vunpack.c.l.b16 %v1725
    %v1734 = vunpack.c.l.b16 %v1726
    %v1735 = vunpack.c.l.b16 %v1727
    %v1736 = vunpack.c.l.b16 %v1728
    %v1737 = vpack.c.b16 %v1734, %v1733
    %v1738 = vpack.c.b16 %v1736, %v1735
    %v1742 = vsel %vm681, %v1720, 0
    %v1745 = vsel %vm681, %v1721, 0
    %v1748 = vsel %vm681, %v1722, 0
    %v1751 = vsel %vm681, %v1723, 0
    %1753 = vmatprep.subr.bf16.mxu0 0
    %1754 = vmatpush1.bf16.msra.mxu0 %v1737
    %1755 = vmatprep.subr.bf16.mxu0 0
    %1756 = vmatpush1.bf16.msra.mxu0 %v1738
    %1757 = vmatprep.subr.bf16.mxu0 0
    %1758 = vmatpush1.bf16.msra.mxu0 0
    %1759 = vmatprep.subr.bf16.mxu0 0
    %1760 = vmatpush1.bf16.msra.mxu0 0
    %1761 = vmatprep.subr.bf16.mxu0 0
    %1762 = vmatpush1.bf16.msra.mxu0 0
    %1763 = vmatprep.subr.bf16.mxu0 0
    %1764 = vmatpush1.bf16.msra.mxu0 0
    %1765 = vmatprep.subr.bf16.mxu0 0
    %1766 = vmatpush1.bf16.msra.mxu0 0
    %1767 = vmatprep.subr.bf16.mxu0 0
    %1768 = vmatpush1.bf16.msra.mxu0 0
    %1769 = vmatprep.subr.bf16.mxu0 0
    %1770 = vmatpush1.bf16.msra.mxu0 0
    %1771 = vmatprep.subr.bf16.mxu0 0
    %1772 = vmatpush1.bf16.msra.mxu0 0
    %1773 = vmatprep.subr.bf16.mxu0 0
    %1774 = vmatpush1.bf16.msra.mxu0 0
    %1775 = vmatprep.subr.bf16.mxu0 0
    %1776 = vmatpush1.bf16.msra.mxu0 0
    %1777 = vmatprep.subr.bf16.mxu0 0
    %1778 = vmatpush1.bf16.msra.mxu0 0
    %1779 = vmatprep.subr.bf16.mxu0 0
    %1780 = vmatpush1.bf16.msra.mxu0 0
    %1781 = vmatprep.subr.bf16.mxu0 0
    %1782 = vmatpush1.bf16.msra.mxu0 0
    %1783 = vmatprep.subr.bf16.mxu0 0
    %1784 = vmatpush1.bf16.msra.mxu0 0
    %1785 = vmatprep.mubr.bf16.mxu0 0
    %1786 = vmatmul.mubr.bf16.gmra.mrb[0].mxu0 %v1742
    %v1787 = vpop.f32.mrb[0].mxu0
    %v1788 = vadd.f32 0.0, %v1787
    %v1789 = vpop.f32.mrb[0].mxu0
    %v1790 = vpop.f32.mrb[0].mxu0
    %v1791 = vadd.f32 0.0, %v1790
    %v1792 = vpop.f32.mrb[0].mxu0
    %1793 = vmatprep.mubr.bf16.mxu0 0
    %1794 = vmatmul.mubr.bf16.gmra.mrb[0].mxu0 %v1745
    %v1795 = vpop.f32.mrb[0].mxu0
    %v1796 = vadd.f32 0.0, %v1795
    %v1797 = vpop.f32.mrb[0].mxu0
    %v1798 = vpop.f32.mrb[0].mxu0
    %v1799 = vadd.f32 0.0, %v1798
    %v1800 = vpop.f32.mrb[0].mxu0
    %1801 = vmatprep.mubr.bf16.mxu0 0
    %1802 = vmatmul.mubr.bf16.gmra.mrb[0].mxu0 %v1748
    %v1803 = vpop.f32.mrb[0].mxu0
    %v1804 = vadd.f32 0.0, %v1803
    %v1805 = vpop.f32.mrb[0].mxu0
    %v1806 = vpop.f32.mrb[0].mxu0
    %v1807 = vadd.f32 0.0, %v1806
    %v1808 = vpop.f32.mrb[0].mxu0
    %1809 = vmatprep.mubr.bf16.mxu0 0
    %1810 = vmatmul.mubr.bf16.gmra.mrb[0].mxu0 %v1751
    %v1811 = vpop.f32.mrb[0].mxu0
    %v1812 = vadd.f32 0.0, %v1811
    %v1813 = vpop.f32.mrb[0].mxu0
    %v1814 = vpop.f32.mrb[0].mxu0
    %v1815 = vadd.f32 0.0, %v1814
    %v1816 = vpop.f32.mrb[0].mxu0
    %1817 = vdwg.mxu0
    %v1818 = vadd.f32 %v1404, %v1788
    %v1819 = vadd.f32 %v1407, %v1791
    %v1820 = vadd.f32 %v1412, %v1796
    %v1821 = vadd.f32 %v1415, %v1799
    %v1822 = vadd.f32 %v1420, %v1804
    %v1823 = vadd.f32 %v1423, %v1807
    %v1824 = vadd.f32 %v1428, %v1812
    %v1825 = vadd.f32 %v1431, %v1815
    %1826 = vrot.lane.b32.xlu0 %v669, 32
    %v1827 = vpop.permute.xlu0 %1826
    %1828 = vrot.lane.b32.xlu0 %v670, 32
    %v1829 = vpop.permute.xlu0 %1828
    %1830 = vrot.lane.b32.xlu0 %v671, 32
    %v1831 = vpop.permute.xlu0 %1830
    %1832 = vrot.lane.b32.xlu0 %v672, 32
    %v1833 = vpop.permute.xlu0 %1832
    %1834 = vrot.lane.b32.xlu0 %v673, 32
    %v1835 = vpop.permute.xlu0 %1834
    %1836 = vrot.lane.b32.xlu0 %v674, 32
    %v1837 = vpop.permute.xlu0 %1836
    %1838 = vrot.lane.b32.xlu0 %v675, 32
    %v1839 = vpop.permute.xlu0 %1838
    %1840 = vrot.lane.b32.xlu0 %v676, 32
    %v1841 = vpop.permute.xlu0 %1840
    %v1843 = vsel %vm681, %v1827, 0
    %v1846 = vsel %vm681, %v1829, 0
    %v1849 = vsel %vm681, %v1831, 0
    %v1852 = vsel %vm681, %v1833, 0
    %v1855 = vsel %vm681, %v1835, 0
    %v1858 = vsel %vm681, %v1837, 0
    %v1861 = vsel %vm681, %v1839, 0
    %v1864 = vsel %vm681, %v1841, 0
    %1866 = vmatprep.subr.bf16.mxu0 0
    %1867 = vmatpush1.bf16.xpose.msra.mxu0 %v1855
    %1868 = vmatprep.subr.bf16.mxu0 0
    %1869 = vmatpush1.bf16.xpose.msra.mxu0 %v1858
    %1870 = vmatprep.subr.bf16.mxu0 0
    %1871 = vmatpush1.bf16.xpose.msra.mxu0 %v1861
    %1872 = vmatprep.subr.bf16.mxu0 0
    %1873 = vmatpush1.bf16.xpose.msra.mxu0 %v1864
    %1874 = vmatprep.subr.bf16.mxu0 0
    %1875 = vmatpush1.bf16.xpose.msra.mxu0 0
    %1876 = vmatprep.subr.bf16.mxu0 0
    %1877 = vmatpush1.bf16.xpose.msra.mxu0 0
    %1878 = vmatprep.subr.bf16.mxu0 0
    %1879 = vmatpush1.bf16.xpose.msra.mxu0 0
    %1880 = vmatprep.subr.bf16.mxu0 0
    %1881 = vmatpush1.bf16.xpose.msra.mxu0 0
    %1882 = vmatprep.subr.bf16.mxu0 0
    %1883 = vmatpush1.bf16.xpose.msra.mxu0 0
    %1884 = vmatprep.subr.bf16.mxu0 0
    %1885 = vmatpush1.bf16.xpose.msra.mxu0 0
    %1886 = vmatprep.subr.bf16.mxu0 0
    %1887 = vmatpush1.bf16.xpose.msra.mxu0 0
    %1888 = vmatprep.subr.bf16.mxu0 0
    %1889 = vmatpush1.bf16.xpose.msra.mxu0 0
    %1890 = vmatprep.subr.bf16.mxu0 0
    %1891 = vmatpush1.bf16.xpose.msra.mxu0 0
    %1892 = vmatprep.subr.bf16.mxu0 0
    %1893 = vmatpush1.bf16.xpose.msra.mxu0 0
    %1894 = vmatprep.subr.bf16.mxu0 0
    %1895 = vmatpush1.bf16.xpose.msra.mxu0 0
    %1896 = vmatprep.subr.bf16.mxu0 0
    %1897 = vmatpush1.bf16.xpose.msra.mxu0 0
    %1898 = vmatprep.mubr.bf16.mxu0 0
    %1899 = vmatmul.mubr.bf16.gmra.mrb[0].mxu0 %v1843
    %v1900 = vpop.f32.mrb[0].mxu0
    %v1901 = vadd.f32 0.0, %v1900
    %v1902 = vpop.f32.mrb[0].mxu0
    %v1903 = vpop.f32.mrb[0].mxu0
    %v1904 = vadd.f32 0.0, %v1903
    %v1905 = vpop.f32.mrb[0].mxu0
    %1906 = vmatprep.mubr.bf16.mxu0 0
    %1907 = vmatmul.mubr.bf16.gmra.mrb[0].mxu0 %v1846
    %v1908 = vpop.f32.mrb[0].mxu0
    %v1909 = vadd.f32 0.0, %v1908
    %v1910 = vpop.f32.mrb[0].mxu0
    %v1911 = vpop.f32.mrb[0].mxu0
    %v1912 = vadd.f32 0.0, %v1911
    %v1913 = vpop.f32.mrb[0].mxu0
    %1914 = vmatprep.mubr.bf16.mxu0 0
    %1915 = vmatmul.mubr.bf16.gmra.mrb[0].mxu0 %v1849
    %v1916 = vpop.f32.mrb[0].mxu0
    %v1917 = vadd.f32 0.0, %v1916
    %v1918 = vpop.f32.mrb[0].mxu0
    %v1919 = vpop.f32.mrb[0].mxu0
    %v1920 = vadd.f32 0.0, %v1919
    %v1921 = vpop.f32.mrb[0].mxu0
    %1922 = vmatprep.mubr.bf16.mxu0 0
    %1923 = vmatmul.mubr.bf16.gmra.mrb[0].mxu0 %v1852
    %v1924 = vpop.f32.mrb[0].mxu0
    %v1925 = vadd.f32 0.0, %v1924
    %v1926 = vpop.f32.mrb[0].mxu0
    %v1927 = vpop.f32.mrb[0].mxu0
    %v1928 = vadd.f32 0.0, %v1927
    %v1929 = vpop.f32.mrb[0].mxu0
    %1930 = vdwg.mxu0
    %v1931 = vsel %vm771, %v1901, -inf
    %1932 = vmax.xlane.f32.xlu0 %v1931
    %v1933 = vpop.xlane.xlu0 %1932
    %v1934 = vsel %vm771, %v1904, -inf
    %1935 = vmax.xlane.f32.xlu0 %v1934
    %v1936 = vpop.xlane.xlu0 %1935
    %v1937 = vsel %vm771, %v1909, -inf
    %1938 = vmax.xlane.f32.xlu0 %v1937
    %v1939 = vpop.xlane.xlu0 %1938
    %v1940 = vsel %vm771, %v1912, -inf
    %1941 = vmax.xlane.f32.xlu0 %v1940
    %v1942 = vpop.xlane.xlu0 %1941
    %v1943 = vsel %vm771, %v1917, -inf
    %1944 = vmax.xlane.f32.xlu0 %v1943
    %v1945 = vpop.xlane.xlu0 %1944
    %v1946 = vsel %vm771, %v1920, -inf
    %1947 = vmax.xlane.f32.xlu0 %v1946
    %v1948 = vpop.xlane.xlu0 %1947
    %v1949 = vsel %vm771, %v1925, -inf
    %1950 = vmax.xlane.f32.xlu0 %v1949
    %v1951 = vpop.xlane.xlu0 %1950
    %v1952 = vsel %vm771, %v1928, -inf
    %1953 = vmax.xlane.f32.xlu0 %v1952
    %v1954 = vpop.xlane.xlu0 %1953
    %v1955 = vsub.f32 %v1901, %v1933
    %v1956 = vsub.f32 %v1904, %v1936
    %v1957 = vsub.f32 %v1909, %v1939
    %v1958 = vsub.f32 %v1912, %v1942
    %v1959 = vsub.f32 %v1917, %v1945
    %v1960 = vsub.f32 %v1920, %v1948
    %v1961 = vsub.f32 %v1925, %v1951
    %v1962 = vsub.f32 %v1928, %v1954
    %v1963 = vmul.f32 %v1955, 1.442695
    %v1964 = vpow.pop %v1963
    %v1965 = vmul.f32 %v1956, 1.442695
    %v1966 = vpow.pop %v1965
    %v1967 = vmul.f32 %v1957, 1.442695
    %v1968 = vpow.pop %v1967
    %v1969 = vmul.f32 %v1958, 1.442695
    %v1970 = vpow.pop %v1969
    %v1971 = vmul.f32 %v1959, 1.442695
    %v1972 = vpow.pop %v1971
    %v1973 = vmul.f32 %v1960, 1.442695
    %v1974 = vpow.pop %v1973
    %v1975 = vmul.f32 %v1961, 1.442695
    %v1976 = vpow.pop %v1975
    %v1977 = vmul.f32 %v1962, 1.442695
    %v1978 = vpow.pop %v1977
    %v1979 = vsel %vm771, %v1964, 0.0
    %1980 = vadd.xlane.f32.xlu0 %v1979
    %v1981 = vpop.xlane.xlu0 %1980
    %v1982 = vsel %vm771, %v1966, 0.0
    %1983 = vadd.xlane.f32.xlu0 %v1982
    %v1984 = vpop.xlane.xlu0 %1983
    %v1985 = vsel %vm771, %v1968, 0.0
    %1986 = vadd.xlane.f32.xlu0 %v1985
    %v1987 = vpop.xlane.xlu0 %1986
    %v1988 = vsel %vm771, %v1970, 0.0
    %1989 = vadd.xlane.f32.xlu0 %v1988
    %v1990 = vpop.xlane.xlu0 %1989
    %v1991 = vsel %vm771, %v1972, 0.0
    %1992 = vadd.xlane.f32.xlu0 %v1991
    %v1993 = vpop.xlane.xlu0 %1992
    %v1994 = vsel %vm771, %v1974, 0.0
    %1995 = vadd.xlane.f32.xlu0 %v1994
    %v1996 = vpop.xlane.xlu0 %1995
    %v1997 = vsel %vm771, %v1976, 0.0
    %1998 = vadd.xlane.f32.xlu0 %v1997
    %v1999 = vpop.xlane.xlu0 %1998
    %v2000 = vsel %vm771, %v1978, 0.0
    %2001 = vadd.xlane.f32.xlu0 %v2000
    %v2002 = vpop.xlane.xlu0 %2001
    %v2003 = vrcp.pop %v1981
    %v2004 = vrcp.pop %v1984
    %v2005 = vrcp.pop %v1987
    %v2006 = vrcp.pop %v1990
    %v2007 = vrcp.pop %v1993
    %v2008 = vrcp.pop %v1996
    %v2009 = vrcp.pop %v1999
    %v2010 = vrcp.pop %v2002
    %v2011 = vmul.f32 %v1964, %v2003
    %v2012 = vmul.f32 %v1966, %v2004
    %v2013 = vmul.f32 %v1968, %v2005
    %v2014 = vmul.f32 %v1970, %v2006
    %v2015 = vmul.f32 %v1972, %v2007
    %v2016 = vmul.f32 %v1974, %v2008
    %v2017 = vmul.f32 %v1976, %v2009
    %v2018 = vmul.f32 %v1978, %v2010
    %v2019 = vpack.c.bf16 %v2012, %v2011
    %v2020 = vpack.c.bf16 %v2014, %v2013
    %v2021 = vpack.c.bf16 %v2016, %v2015
    %v2022 = vpack.c.bf16 %v2018, %v2017
    %2023 = vrot.lane.b32.xlu0 %v677, 32
    %v2024 = vpop.permute.xlu0 %2023
    %2025 = vrot.lane.b32.xlu0 %v678, 32
    %v2026 = vpop.permute.xlu0 %2025
    %2027 = vrot.lane.b32.xlu0 %v679, 32
    %v2028 = vpop.permute.xlu0 %2027
    %2029 = vrot.lane.b32.xlu0 %v680, 32
    %v2030 = vpop.permute.xlu0 %2029
    %v2036 = vsel %vm771, %v2019, 0
    %v2039 = vsel %vm771, %v2020, 0
    %v2042 = vsel %vm771, %v2021, 0
    %v2045 = vsel %vm771, %v2022, 0
    %2047 = vmatprep.subr.bf16.mxu0 0
    %2048 = vmatpush1.bf16.msra.mxu0 %v2024
    %2049 = vmatprep.subr.bf16.mxu0 0
    %2050 = vmatpush1.bf16.msra.mxu0 %v2026
    %2051 = vmatprep.subr.bf16.mxu0 0
    %2052 = vmatpush1.bf16.msra.mxu0 %v2028
    %2053 = vmatprep.subr.bf16.mxu0 0
    %2054 = vmatpush1.bf16.msra.mxu0 %v2030
    %2055 = vmatprep.subr.bf16.mxu0 0
    %2056 = vmatpush1.bf16.msra.mxu0 0
    %2057 = vmatprep.subr.bf16.mxu0 0
    %2058 = vmatpush1.bf16.msra.mxu0 0
    %2059 = vmatprep.subr.bf16.mxu0 0
    %2060 = vmatpush1.bf16.msra.mxu0 0
    %2061 = vmatprep.subr.bf16.mxu0 0
    %2062 = vmatpush1.bf16.msra.mxu0 0
    %2063 = vmatprep.subr.bf16.mxu0 0
    %2064 = vmatpush1.bf16.msra.mxu0 0
    %2065 = vmatprep.subr.bf16.mxu0 0
    %2066 = vmatpush1.bf16.msra.mxu0 0
    %2067 = vmatprep.subr.bf16.mxu0 0
    %2068 = vmatpush1.bf16.msra.mxu0 0
    %2069 = vmatprep.subr.bf16.mxu0 0
    %2070 = vmatpush1.bf16.msra.mxu0 0
    %2071 = vmatprep.subr.bf16.mxu0 0
    %2072 = vmatpush1.bf16.msra.mxu0 0
    %2073 = vmatprep.subr.bf16.mxu0 0
    %2074 = vmatpush1.bf16.msra.mxu0 0
    %2075 = vmatprep.subr.bf16.mxu0 0
    %2076 = vmatpush1.bf16.msra.mxu0 0
    %2077 = vmatprep.subr.bf16.mxu0 0
    %2078 = vmatpush1.bf16.msra.mxu0 0
    %2079 = vmatprep.mubr.bf16.mxu0 0
    %2080 = vmatmul.mubr.bf16.gmra.mrb[0].mxu0 %v2036
    %v2081 = vpop.f32.mrb[0].mxu0
    %v2082 = vadd.f32 0.0, %v2081
    %v2083 = vpop.f32.mrb[0].mxu0
    %v2084 = vpop.f32.mrb[0].mxu0
    %v2085 = vadd.f32 0.0, %v2084
    %v2086 = vpop.f32.mrb[0].mxu0
    %2087 = vmatprep.mubr.bf16.mxu0 0
    %2088 = vmatmul.mubr.bf16.gmra.mrb[0].mxu0 %v2039
    %v2089 = vpop.f32.mrb[0].mxu0
    %v2090 = vadd.f32 0.0, %v2089
    %v2091 = vpop.f32.mrb[0].mxu0
    %v2092 = vpop.f32.mrb[0].mxu0
    %v2093 = vadd.f32 0.0, %v2092
    %v2094 = vpop.f32.mrb[0].mxu0
    %2095 = vmatprep.mubr.bf16.mxu0 0
    %2096 = vmatmul.mubr.bf16.gmra.mrb[0].mxu0 %v2042
    %v2097 = vpop.f32.mrb[0].mxu0
    %v2098 = vadd.f32 0.0, %v2097
    %v2099 = vpop.f32.mrb[0].mxu0
    %v2100 = vpop.f32.mrb[0].mxu0
    %v2101 = vadd.f32 0.0, %v2100
    %v2102 = vpop.f32.mrb[0].mxu0
    %2103 = vmatprep.mubr.bf16.mxu0 0
    %2104 = vmatmul.mubr.bf16.gmra.mrb[0].mxu0 %v2045
    %v2105 = vpop.f32.mrb[0].mxu0
    %v2106 = vadd.f32 0.0, %v2105
    %v2107 = vpop.f32.mrb[0].mxu0
    %v2108 = vpop.f32.mrb[0].mxu0
    %v2109 = vadd.f32 0.0, %v2108
    %v2110 = vpop.f32.mrb[0].mxu0
    %2111 = vdwg.mxu0
    %v2112 = vpack.c.bf16 %v2085, %v2082
    %v2113 = vpack.c.bf16 %v2093, %v2090
    %v2114 = vpack.c.bf16 %v2101, %v2098
    %v2115 = vpack.c.bf16 %v2109, %v2106
    %s2116 = scalar_lea.vmem %s4, 48
    %v2117 = vld [vmem:[%s2116] sm:$0xf]
    %v2118 = vld [vmem:[%s2116 + $0x4] sm:$0xf]
    %v2119 = vld [vmem:[%s2116 + $0x8] sm:$0xf]
    %v2120 = vld [vmem:[%s2116 + $0xc] sm:$0xf]
    %v2125 = vunpack.c.l.b16 %v2117
    %v2126 = vunpack.c.l.b16 %v2118
    %v2127 = vunpack.c.l.b16 %v2119
    %v2128 = vunpack.c.l.b16 %v2120
    %v2129 = vpack.c.b16 %v2126, %v2125
    %v2130 = vpack.c.b16 %v2128, %v2127
    %v2134 = vsel %vm681, %v2112, 0
    %v2137 = vsel %vm681, %v2113, 0
    %v2140 = vsel %vm681, %v2114, 0
    %v2143 = vsel %vm681, %v2115, 0
    %2145 = vmatprep.subr.bf16.mxu0 0
    %2146 = vmatpush1.bf16.msra.mxu0 %v2129
    %2147 = vmatprep.subr.bf16.mxu0 0
    %2148 = vmatpush1.bf16.msra.mxu0 %v2130
    %2149 = vmatprep.subr.bf16.mxu0 0
    %2150 = vmatpush1.bf16.msra.mxu0 0
    %2151 = vmatprep.subr.bf16.mxu0 0
    %2152 = vmatpush1.bf16.msra.mxu0 0
    %2153 = vmatprep.subr.bf16.mxu0 0
    %2154 = vmatpush1.bf16.msra.mxu0 0
    %2155 = vmatprep.subr.bf16.mxu0 0
    %2156 = vmatpush1.bf16.msra.mxu0 0
    %2157 = vmatprep.subr.bf16.mxu0 0
    %2158 = vmatpush1.bf16.msra.mxu0 0
    %2159 = vmatprep.subr.bf16.mxu0 0
    %2160 = vmatpush1.bf16.msra.mxu0 0
    %2161 = vmatprep.subr.bf16.mxu0 0
    %2162 = vmatpush1.bf16.msra.mxu0 0
    %2163 = vmatprep.subr.bf16.mxu0 0
    %2164 = vmatpush1.bf16.msra.mxu0 0
    %2165 = vmatprep.subr.bf16.mxu0 0
    %2166 = vmatpush1.bf16.msra.mxu0 0
    %2167 = vmatprep.subr.bf16.mxu0 0
    %2168 = vmatpush1.bf16.msra.mxu0 0
    %2169 = vmatprep.subr.bf16.mxu0 0
    %2170 = vmatpush1.bf16.msra.mxu0 0
    %2171 = vmatprep.subr.bf16.mxu0 0
    %2172 = vmatpush1.bf16.msra.mxu0 0
    %2173 = vmatprep.subr.bf16.mxu0 0
    %2174 = vmatpush1.bf16.msra.mxu0 0
    %2175 = vmatprep.subr.bf16.mxu0 0
    %2176 = vmatpush1.bf16.msra.mxu0 0
    %2177 = vmatprep.mubr.bf16.mxu0 0
    %2178 = vmatmul.mubr.bf16.gmra.mrb[0].mxu0 %v2134
    %v2179 = vpop.f32.mrb[0].mxu0
    %v2180 = vadd.f32 0.0, %v2179
    %v2181 = vpop.f32.mrb[0].mxu0
    %v2182 = vpop.f32.mrb[0].mxu0
    %v2183 = vadd.f32 0.0, %v2182
    %v2184 = vpop.f32.mrb[0].mxu0
    %2185 = vmatprep.mubr.bf16.mxu0 0
    %2186 = vmatmul.mubr.bf16.gmra.mrb[0].mxu0 %v2137
    %v2187 = vpop.f32.mrb[0].mxu0
    %v2188 = vadd.f32 0.0, %v2187
    %v2189 = vpop.f32.mrb[0].mxu0
    %v2190 = vpop.f32.mrb[0].mxu0
    %v2191 = vadd.f32 0.0, %v2190
    %v2192 = vpop.f32.mrb[0].mxu0
    %2193 = vmatprep.mubr.bf16.mxu0 0
    %2194 = vmatmul.mubr.bf16.gmra.mrb[0].mxu0 %v2140
    %v2195 = vpop.f32.mrb[0].mxu0
    %v2196 = vadd.f32 0.0, %v2195
    %v2197 = vpop.f32.mrb[0].mxu0
    %v2198 = vpop.f32.mrb[0].mxu0
    %v2199 = vadd.f32 0.0, %v2198
    %v2200 = vpop.f32.mrb[0].mxu0
    %2201 = vmatprep.mubr.bf16.mxu0 0
    %2202 = vmatmul.mubr.bf16.gmra.mrb[0].mxu0 %v2143
    %v2203 = vpop.f32.mrb[0].mxu0
    %v2204 = vadd.f32 0.0, %v2203
    %v2205 = vpop.f32.mrb[0].mxu0
    %v2206 = vpop.f32.mrb[0].mxu0
    %v2207 = vadd.f32 0.0, %v2206
    %v2208 = vpop.f32.mrb[0].mxu0
    %2209 = vdwg.mxu0
    %v2210 = vadd.f32 %v1818, %v2180
    %v2211 = vadd.f32 %v1819, %v2183
    %v2212 = vadd.f32 %v1820, %v2188
    %v2213 = vadd.f32 %v1821, %v2191
    %v2214 = vadd.f32 %v1822, %v2196
    %v2215 = vadd.f32 %v1823, %v2199
    %v2216 = vadd.f32 %v1824, %v2204
    %v2217 = vadd.f32 %v1825, %v2207
    %v2218 = vpack.c.bf16 %v538, %v534
    %v2219 = vpack.c.bf16 %v548, %v544
    %v2220 = vpack.c.bf16 %v558, %v554
    %v2221 = vpack.c.bf16 %v568, %v564
    %v2222 = vpack.c.bf16 %v540, %v536
    %v2223 = vpack.c.bf16 %v550, %v546
    %v2224 = vpack.c.bf16 %v560, %v556
    %v2225 = vpack.c.bf16 %v570, %v566
    %v2226 = vpack.c.bf16 %v642, %v639
    %v2227 = vpack.c.bf16 %v650, %v647
    %v2228 = vpack.c.bf16 %v658, %v655
    %v2229 = vpack.c.bf16 %v666, %v663
    %v2231 = vsel %vm681, %v2218, 0
    %v2234 = vsel %vm681, %v2219, 0
    %v2237 = vsel %vm681, %v2220, 0
    %v2240 = vsel %vm681, %v2221, 0
    %v2243 = vsel %vm681, %v2222, 0
    %v2246 = vsel %vm681, %v2223, 0
    %v2249 = vsel %vm681, %v2224, 0
    %v2252 = vsel %vm681, %v2225, 0
    %2254 = vmatprep.subr.bf16.mxu0 0
    %2255 = vmatpush1.bf16.xpose.msra.mxu0 %v2243
    %2256 = vmatprep.subr.bf16.mxu0 0
    %2257 = vmatpush1.bf16.xpose.msra.mxu0 %v2246
    %2258 = vmatprep.subr.bf16.mxu0 0
    %2259 = vmatpush1.bf16.xpose.msra.mxu0 %v2249
    %2260 = vmatprep.subr.bf16.mxu0 0
    %2261 = vmatpush1.bf16.xpose.msra.mxu0 %v2252
    %2262 = vmatprep.subr.bf16.mxu0 0
    %2263 = vmatpush1.bf16.xpose.msra.mxu0 0
    %2264 = vmatprep.subr.bf16.mxu0 0
    %2265 = vmatpush1.bf16.xpose.msra.mxu0 0
    %2266 = vmatprep.subr.bf16.mxu0 0
    %2267 = vmatpush1.bf16.xpose.msra.mxu0 0
    %2268 = vmatprep.subr.bf16.mxu0 0
    %2269 = vmatpush1.bf16.xpose.msra.mxu0 0
    %2270 = vmatprep.subr.bf16.mxu0 0
    %2271 = vmatpush1.bf16.xpose.msra.mxu0 0
    %2272 = vmatprep.subr.bf16.mxu0 0
    %2273 = vmatpush1.bf16.xpose.msra.mxu0 0
    %2274 = vmatprep.subr.bf16.mxu0 0
    %2275 = vmatpush1.bf16.xpose.msra.mxu0 0
    %2276 = vmatprep.subr.bf16.mxu0 0
    %2277 = vmatpush1.bf16.xpose.msra.mxu0 0
    %2278 = vmatprep.subr.bf16.mxu0 0
    %2279 = vmatpush1.bf16.xpose.msra.mxu0 0
    %2280 = vmatprep.subr.bf16.mxu0 0
    %2281 = vmatpush1.bf16.xpose.msra.mxu0 0
    %2282 = vmatprep.subr.bf16.mxu0 0
    %2283 = vmatpush1.bf16.xpose.msra.mxu0 0
    %2284 = vmatprep.subr.bf16.mxu0 0
    %2285 = vmatpush1.bf16.xpose.msra.mxu0 0
    %2286 = vmatprep.mubr.bf16.mxu0 0
    %2287 = vmatmul.mubr.bf16.gmra.mrb[0].mxu0 %v2231
    %v2288 = vpop.f32.mrb[0].mxu0
    %v2289 = vadd.f32 0.0, %v2288
    %v2290 = vpop.f32.mrb[0].mxu0
    %v2291 = vpop.f32.mrb[0].mxu0
    %v2292 = vadd.f32 0.0, %v2291
    %v2293 = vpop.f32.mrb[0].mxu0
    %2294 = vmatprep.mubr.bf16.mxu0 0
    %2295 = vmatmul.mubr.bf16.gmra.mrb[0].mxu0 %v2234
    %v2296 = vpop.f32.mrb[0].mxu0
    %v2297 = vadd.f32 0.0, %v2296
    %v2298 = vpop.f32.mrb[0].mxu0
    %v2299 = vpop.f32.mrb[0].mxu0
    %v2300 = vadd.f32 0.0, %v2299
    %v2301 = vpop.f32.mrb[0].mxu0
    %2302 = vmatprep.mubr.bf16.mxu0 0
    %2303 = vmatmul.mubr.bf16.gmra.mrb[0].mxu0 %v2237
    %v2304 = vpop.f32.mrb[0].mxu0
    %v2305 = vadd.f32 0.0, %v2304
    %v2306 = vpop.f32.mrb[0].mxu0
    %v2307 = vpop.f32.mrb[0].mxu0
    %v2308 = vadd.f32 0.0, %v2307
    %v2309 = vpop.f32.mrb[0].mxu0
    %2310 = vmatprep.mubr.bf16.mxu0 0
    %2311 = vmatmul.mubr.bf16.gmra.mrb[0].mxu0 %v2240
    %v2312 = vpop.f32.mrb[0].mxu0
    %v2313 = vadd.f32 0.0, %v2312
    %v2314 = vpop.f32.mrb[0].mxu0
    %v2315 = vpop.f32.mrb[0].mxu0
    %v2316 = vadd.f32 0.0, %v2315
    %v2317 = vpop.f32.mrb[0].mxu0
    %2318 = vdwg.mxu0
    %v2319 = vsel %vm771, %v2289, -inf
    %2320 = vmax.xlane.f32.xlu0 %v2319
    %v2321 = vpop.xlane.xlu0 %2320
    %v2322 = vsel %vm771, %v2292, -inf
    %2323 = vmax.xlane.f32.xlu0 %v2322
    %v2324 = vpop.xlane.xlu0 %2323
    %v2325 = vsel %vm771, %v2297, -inf
    %2326 = vmax.xlane.f32.xlu0 %v2325
    %v2327 = vpop.xlane.xlu0 %2326
    %v2328 = vsel %vm771, %v2300, -inf
    %2329 = vmax.xlane.f32.xlu0 %v2328
    %v2330 = vpop.xlane.xlu0 %2329
    %v2331 = vsel %vm771, %v2305, -inf
    %2332 = vmax.xlane.f32.xlu0 %v2331
    %v2333 = vpop.xlane.xlu0 %2332
    %v2334 = vsel %vm771, %v2308, -inf
    %2335 = vmax.xlane.f32.xlu0 %v2334
    %v2336 = vpop.xlane.xlu0 %2335
    %v2337 = vsel %vm771, %v2313, -inf
    %2338 = vmax.xlane.f32.xlu0 %v2337
    %v2339 = vpop.xlane.xlu0 %2338
    %v2340 = vsel %vm771, %v2316, -inf
    %2341 = vmax.xlane.f32.xlu0 %v2340
    %v2342 = vpop.xlane.xlu0 %2341
    %v2343 = vsub.f32 %v2289, %v2321
    %v2344 = vsub.f32 %v2292, %v2324
    %v2345 = vsub.f32 %v2297, %v2327
    %v2346 = vsub.f32 %v2300, %v2330
    %v2347 = vsub.f32 %v2305, %v2333
    %v2348 = vsub.f32 %v2308, %v2336
    %v2349 = vsub.f32 %v2313, %v2339
    %v2350 = vsub.f32 %v2316, %v2342
    %v2351 = vmul.f32 %v2343, 1.442695
    %v2352 = vpow.pop %v2351
    %v2353 = vmul.f32 %v2344, 1.442695
    %v2354 = vpow.pop %v2353
    %v2355 = vmul.f32 %v2345, 1.442695
    %v2356 = vpow.pop %v2355
    %v2357 = vmul.f32 %v2346, 1.442695
    %v2358 = vpow.pop %v2357
    %v2359 = vmul.f32 %v2347, 1.442695
    %v2360 = vpow.pop %v2359
    %v2361 = vmul.f32 %v2348, 1.442695
    %v2362 = vpow.pop %v2361
    %v2363 = vmul.f32 %v2349, 1.442695
    %v2364 = vpow.pop %v2363
    %v2365 = vmul.f32 %v2350, 1.442695
    %v2366 = vpow.pop %v2365
    %v2367 = vsel %vm771, %v2352, 0.0
    %2368 = vadd.xlane.f32.xlu0 %v2367
    %v2369 = vpop.xlane.xlu0 %2368
    %v2370 = vsel %vm771, %v2354, 0.0
    %2371 = vadd.xlane.f32.xlu0 %v2370
    %v2372 = vpop.xlane.xlu0 %2371
    %v2373 = vsel %vm771, %v2356, 0.0
    %2374 = vadd.xlane.f32.xlu0 %v2373
    %v2375 = vpop.xlane.xlu0 %2374
    %v2376 = vsel %vm771, %v2358, 0.0
    %2377 = vadd.xlane.f32.xlu0 %v2376
    %v2378 = vpop.xlane.xlu0 %2377
    %v2379 = vsel %vm771, %v2360, 0.0
    %2380 = vadd.xlane.f32.xlu0 %v2379
    %v2381 = vpop.xlane.xlu0 %2380
    %v2382 = vsel %vm771, %v2362, 0.0
    %2383 = vadd.xlane.f32.xlu0 %v2382
    %v2384 = vpop.xlane.xlu0 %2383
    %v2385 = vsel %vm771, %v2364, 0.0
    %2386 = vadd.xlane.f32.xlu0 %v2385
    %v2387 = vpop.xlane.xlu0 %2386
    %v2388 = vsel %vm771, %v2366, 0.0
    %2389 = vadd.xlane.f32.xlu0 %v2388
    %v2390 = vpop.xlane.xlu0 %2389
    %v2391 = vrcp.pop %v2369
    %v2392 = vrcp.pop %v2372
    %v2393 = vrcp.pop %v2375
    %v2394 = vrcp.pop %v2378
    %v2395 = vrcp.pop %v2381
    %v2396 = vrcp.pop %v2384
    %v2397 = vrcp.pop %v2387
    %v2398 = vrcp.pop %v2390
    %v2399 = vmul.f32 %v2352, %v2391
    %v2400 = vmul.f32 %v2354, %v2392
    %v2401 = vmul.f32 %v2356, %v2393
    %v2402 = vmul.f32 %v2358, %v2394
    %v2403 = vmul.f32 %v2360, %v2395
    %v2404 = vmul.f32 %v2362, %v2396
    %v2405 = vmul.f32 %v2364, %v2397
    %v2406 = vmul.f32 %v2366, %v2398
    %v2407 = vpack.c.bf16 %v2400, %v2399
    %v2408 = vpack.c.bf16 %v2402, %v2401
    %v2409 = vpack.c.bf16 %v2404, %v2403
    %v2410 = vpack.c.bf16 %v2406, %v2405
    %v2412 = vsel %vm771, %v2407, 0
    %v2415 = vsel %vm771, %v2408, 0
    %v2418 = vsel %vm771, %v2409, 0
    %v2421 = vsel %vm771, %v2410, 0
    %2423 = vmatprep.subr.bf16.mxu0 0
    %2424 = vmatpush1.bf16.msra.mxu0 %v2226
    %2425 = vmatprep.subr.bf16.mxu0 0
    %2426 = vmatpush1.bf16.msra.mxu0 %v2227
    %2427 = vmatprep.subr.bf16.mxu0 0
    %2428 = vmatpush1.bf16.msra.mxu0 %v2228
    %2429 = vmatprep.subr.bf16.mxu0 0
    %2430 = vmatpush1.bf16.msra.mxu0 %v2229
    %2431 = vmatprep.subr.bf16.mxu0 0
    %2432 = vmatpush1.bf16.msra.mxu0 0
    %2433 = vmatprep.subr.bf16.mxu0 0
    %2434 = vmatpush1.bf16.msra.mxu0 0
    %2435 = vmatprep.subr.bf16.mxu0 0
    %2436 = vmatpush1.bf16.msra.mxu0 0
    %2437 = vmatprep.subr.bf16.mxu0 0
    %2438 = vmatpush1.bf16.msra.mxu0 0
    %2439 = vmatprep.subr.bf16.mxu0 0
    %2440 = vmatpush1.bf16.msra.mxu0 0
    %2441 = vmatprep.subr.bf16.mxu0 0
    %2442 = vmatpush1.bf16.msra.mxu0 0
    %2443 = vmatprep.subr.bf16.mxu0 0
    %2444 = vmatpush1.bf16.msra.mxu0 0
    %2445 = vmatprep.subr.bf16.mxu0 0
    %2446 = vmatpush1.bf16.msra.mxu0 0
    %2447 = vmatprep.subr.bf16.mxu0 0
    %2448 = vmatpush1.bf16.msra.mxu0 0
    %2449 = vmatprep.subr.bf16.mxu0 0
    %2450 = vmatpush1.bf16.msra.mxu0 0
    %2451 = vmatprep.subr.bf16.mxu0 0
    %2452 = vmatpush1.bf16.msra.mxu0 0
    %2453 = vmatprep.subr.bf16.mxu0 0
    %2454 = vmatpush1.bf16.msra.mxu0 0
    %2455 = vmatprep.mubr.bf16.mxu0 0
    %2456 = vmatmul.mubr.bf16.gmra.mrb[0].mxu0 %v2412
    %v2457 = vpop.f32.mrb[0].mxu0
    %v2458 = vadd.f32 0.0, %v2457
    %v2459 = vpop.f32.mrb[0].mxu0
    %v2460 = vpop.f32.mrb[0].mxu0
    %v2461 = vadd.f32 0.0, %v2460
    %v2462 = vpop.f32.mrb[0].mxu0
    %2463 = vmatprep.mubr.bf16.mxu0 0
    %2464 = vmatmul.mubr.bf16.gmra.mrb[0].mxu0 %v2415
    %v2465 = vpop.f32.mrb[0].mxu0
    %v2466 = vadd.f32 0.0, %v2465
    %v2467 = vpop.f32.mrb[0].mxu0
    %v2468 = vpop.f32.mrb[0].mxu0
    %v2469 = vadd.f32 0.0, %v2468
    %v2470 = vpop.f32.mrb[0].mxu0
    %2471 = vmatprep.mubr.bf16.mxu0 0
    %2472 = vmatmul.mubr.bf16.gmra.mrb[0].mxu0 %v2418
    %v2473 = vpop.f32.mrb[0].mxu0
    %v2474 = vadd.f32 0.0, %v2473
    %v2475 = vpop.f32.mrb[0].mxu0
    %v2476 = vpop.f32.mrb[0].mxu0
    %v2477 = vadd.f32 0.0, %v2476
    %v2478 = vpop.f32.mrb[0].mxu0
    %2479 = vmatprep.mubr.bf16.mxu0 0
    %2480 = vmatmul.mubr.bf16.gmra.mrb[0].mxu0 %v2421
    %v2481 = vpop.f32.mrb[0].mxu0
    %v2482 = vadd.f32 0.0, %v2481
    %v2483 = vpop.f32.mrb[0].mxu0
    %v2484 = vpop.f32.mrb[0].mxu0
    %v2485 = vadd.f32 0.0, %v2484
    %v2486 = vpop.f32.mrb[0].mxu0
    %2487 = vdwg.mxu0
    %v2488 = vpack.c.bf16 %v2461, %v2458
    %v2489 = vpack.c.bf16 %v2469, %v2466
    %v2490 = vpack.c.bf16 %v2477, %v2474
    %v2491 = vpack.c.bf16 %v2485, %v2482
    %2496 = vrot.lane.b32.xlu0 %v2218, 96
    %v2497 = vpop.permute.xlu0 %2496
    %2498 = vrot.lane.b32.xlu0 %v2219, 96
    %v2499 = vpop.permute.xlu0 %2498
    %2500 = vrot.lane.b32.xlu0 %v2220, 96
    %v2501 = vpop.permute.xlu0 %2500
    %2502 = vrot.lane.b32.xlu0 %v2221, 96
    %v2503 = vpop.permute.xlu0 %2502
    %2508 = vrot.lane.b32.xlu0 %v2222, 96
    %v2509 = vpop.permute.xlu0 %2508
    %2510 = vrot.lane.b32.xlu0 %v2223, 96
    %v2511 = vpop.permute.xlu0 %2510
    %2512 = vrot.lane.b32.xlu0 %v2224, 96
    %v2513 = vpop.permute.xlu0 %2512
    %2514 = vrot.lane.b32.xlu0 %v2225, 96
    %v2515 = vpop.permute.xlu0 %2514
    %v2517 = vsel %vm681, %v2497, 0
    %v2520 = vsel %vm681, %v2499, 0
    %v2523 = vsel %vm681, %v2501, 0
    %v2526 = vsel %vm681, %v2503, 0
    %v2529 = vsel %vm681, %v2509, 0
    %v2532 = vsel %vm681, %v2511, 0
    %v2535 = vsel %vm681, %v2513, 0
    %v2538 = vsel %vm681, %v2515, 0
    %2540 = vmatprep.subr.bf16.mxu0 0
    %2541 = vmatpush1.bf16.xpose.msra.mxu0 %v2529
    %2542 = vmatprep.subr.bf16.mxu0 0
    %2543 = vmatpush1.bf16.xpose.msra.mxu0 %v2532
    %2544 = vmatprep.subr.bf16.mxu0 0
    %2545 = vmatpush1.bf16.xpose.msra.mxu0 %v2535
    %2546 = vmatprep.subr.bf16.mxu0 0
    %2547 = vmatpush1.bf16.xpose.msra.mxu0 %v2538
    %2548 = vmatprep.subr.bf16.mxu0 0
    %2549 = vmatpush1.bf16.xpose.msra.mxu0 0
    %2550 = vmatprep.subr.bf16.mxu0 0
    %2551 = vmatpush1.bf16.xpose.msra.mxu0 0
    %2552 = vmatprep.subr.bf16.mxu0 0
    %2553 = vmatpush1.bf16.xpose.msra.mxu0 0
    %2554 = vmatprep.subr.bf16.mxu0 0
    %2555 = vmatpush1.bf16.xpose.msra.mxu0 0
    %2556 = vmatprep.subr.bf16.mxu0 0
    %2557 = vmatpush1.bf16.xpose.msra.mxu0 0
    %2558 = vmatprep.subr.bf16.mxu0 0
    %2559 = vmatpush1.bf16.xpose.msra.mxu0 0
    %2560 = vmatprep.subr.bf16.mxu0 0
    %2561 = vmatpush1.bf16.xpose.msra.mxu0 0
    %2562 = vmatprep.subr.bf16.mxu0 0
    %2563 = vmatpush1.bf16.xpose.msra.mxu0 0
    %2564 = vmatprep.subr.bf16.mxu0 0
    %2565 = vmatpush1.bf16.xpose.msra.mxu0 0
    %2566 = vmatprep.subr.bf16.mxu0 0
    %2567 = vmatpush1.bf16.xpose.msra.mxu0 0
    %2568 = vmatprep.subr.bf16.mxu0 0
    %2569 = vmatpush1.bf16.xpose.msra.mxu0 0
    %2570 = vmatprep.subr.bf16.mxu0 0
    %2571 = vmatpush1.bf16.xpose.msra.mxu0 0
    %2572 = vmatprep.mubr.bf16.mxu0 0
    %2573 = vmatmul.mubr.bf16.gmra.mrb[0].mxu0 %v2517
    %v2574 = vpop.f32.mrb[0].mxu0
    %v2575 = vadd.f32 0.0, %v2574
    %v2576 = vpop.f32.mrb[0].mxu0
    %v2577 = vpop.f32.mrb[0].mxu0
    %v2578 = vadd.f32 0.0, %v2577
    %v2579 = vpop.f32.mrb[0].mxu0
    %2580 = vmatprep.mubr.bf16.mxu0 0
    %2581 = vmatmul.mubr.bf16.gmra.mrb[0].mxu0 %v2520
    %v2582 = vpop.f32.mrb[0].mxu0
    %v2583 = vadd.f32 0.0, %v2582
    %v2584 = vpop.f32.mrb[0].mxu0
    %v2585 = vpop.f32.mrb[0].mxu0
    %v2586 = vadd.f32 0.0, %v2585
    %v2587 = vpop.f32.mrb[0].mxu0
    %2588 = vmatprep.mubr.bf16.mxu0 0
    %2589 = vmatmul.mubr.bf16.gmra.mrb[0].mxu0 %v2523
    %v2590 = vpop.f32.mrb[0].mxu0
    %v2591 = vadd.f32 0.0, %v2590
    %v2592 = vpop.f32.mrb[0].mxu0
    %v2593 = vpop.f32.mrb[0].mxu0
    %v2594 = vadd.f32 0.0, %v2593
    %v2595 = vpop.f32.mrb[0].mxu0
    %2596 = vmatprep.mubr.bf16.mxu0 0
    %2597 = vmatmul.mubr.bf16.gmra.mrb[0].mxu0 %v2526
    %v2598 = vpop.f32.mrb[0].mxu0
    %v2599 = vadd.f32 0.0, %v2598
    %v2600 = vpop.f32.mrb[0].mxu0
    %v2601 = vpop.f32.mrb[0].mxu0
    %v2602 = vadd.f32 0.0, %v2601
    %v2603 = vpop.f32.mrb[0].mxu0
    %2604 = vdwg.mxu0
    %v2605 = vsel %vm771, %v2575, -inf
    %2606 = vmax.xlane.f32.xlu0 %v2605
    %v2607 = vpop.xlane.xlu0 %2606
    %v2608 = vsel %vm771, %v2578, -inf
    %2609 = vmax.xlane.f32.xlu0 %v2608
    %v2610 = vpop.xlane.xlu0 %2609
    %v2611 = vsel %vm771, %v2583, -inf
    %2612 = vmax.xlane.f32.xlu0 %v2611
    %v2613 = vpop.xlane.xlu0 %2612
    %v2614 = vsel %vm771, %v2586, -inf
    %2615 = vmax.xlane.f32.xlu0 %v2614
    %v2616 = vpop.xlane.xlu0 %2615
    %v2617 = vsel %vm771, %v2591, -inf
    %2618 = vmax.xlane.f32.xlu0 %v2617
    %v2619 = vpop.xlane.xlu0 %2618
    %v2620 = vsel %vm771, %v2594, -inf
    %2621 = vmax.xlane.f32.xlu0 %v2620
    %v2622 = vpop.xlane.xlu0 %2621
    %v2623 = vsel %vm771, %v2599, -inf
    %2624 = vmax.xlane.f32.xlu0 %v2623
    %v2625 = vpop.xlane.xlu0 %2624
    %v2626 = vsel %vm771, %v2602, -inf
    %2627 = vmax.xlane.f32.xlu0 %v2626
    %v2628 = vpop.xlane.xlu0 %2627
    %v2629 = vsub.f32 %v2575, %v2607
    %v2630 = vsub.f32 %v2578, %v2610
    %v2631 = vsub.f32 %v2583, %v2613
    %v2632 = vsub.f32 %v2586, %v2616
    %v2633 = vsub.f32 %v2591, %v2619
    %v2634 = vsub.f32 %v2594, %v2622
    %v2635 = vsub.f32 %v2599, %v2625
    %v2636 = vsub.f32 %v2602, %v2628
    %v2637 = vmul.f32 %v2629, 1.442695
    %v2638 = vpow.pop %v2637
    %v2639 = vmul.f32 %v2630, 1.442695
    %v2640 = vpow.pop %v2639
    %v2641 = vmul.f32 %v2631, 1.442695
    %v2642 = vpow.pop %v2641
    %v2643 = vmul.f32 %v2632, 1.442695
    %v2644 = vpow.pop %v2643
    %v2645 = vmul.f32 %v2633, 1.442695
    %v2646 = vpow.pop %v2645
    %v2647 = vmul.f32 %v2634, 1.442695
    %v2648 = vpow.pop %v2647
    %v2649 = vmul.f32 %v2635, 1.442695
    %v2650 = vpow.pop %v2649
    %v2651 = vmul.f32 %v2636, 1.442695
    %v2652 = vpow.pop %v2651
    %v2653 = vsel %vm771, %v2638, 0.0
    %2654 = vadd.xlane.f32.xlu0 %v2653
    %v2655 = vpop.xlane.xlu0 %2654
    %v2656 = vsel %vm771, %v2640, 0.0
    %2657 = vadd.xlane.f32.xlu0 %v2656
    %v2658 = vpop.xlane.xlu0 %2657
    %v2659 = vsel %vm771, %v2642, 0.0
    %2660 = vadd.xlane.f32.xlu0 %v2659
    %v2661 = vpop.xlane.xlu0 %2660
    %v2662 = vsel %vm771, %v2644, 0.0
    %2663 = vadd.xlane.f32.xlu0 %v2662
    %v2664 = vpop.xlane.xlu0 %2663
    %v2665 = vsel %vm771, %v2646, 0.0
    %2666 = vadd.xlane.f32.xlu0 %v2665
    %v2667 = vpop.xlane.xlu0 %2666
    %v2668 = vsel %vm771, %v2648, 0.0
    %2669 = vadd.xlane.f32.xlu0 %v2668
    %v2670 = vpop.xlane.xlu0 %2669
    %v2671 = vsel %vm771, %v2650, 0.0
    %2672 = vadd.xlane.f32.xlu0 %v2671
    %v2673 = vpop.xlane.xlu0 %2672
    %v2674 = vsel %vm771, %v2652, 0.0
    %2675 = vadd.xlane.f32.xlu0 %v2674
    %v2676 = vpop.xlane.xlu0 %2675
    %v2677 = vrcp.pop %v2655
    %v2678 = vrcp.pop %v2658
    %v2679 = vrcp.pop %v2661
    %v2680 = vrcp.pop %v2664
    %v2681 = vrcp.pop %v2667
    %v2682 = vrcp.pop %v2670
    %v2683 = vrcp.pop %v2673
    %v2684 = vrcp.pop %v2676
    %v2685 = vmul.f32 %v2638, %v2677
    %v2686 = vmul.f32 %v2640, %v2678
    %v2687 = vmul.f32 %v2642, %v2679
    %v2688 = vmul.f32 %v2644, %v2680
    %v2689 = vmul.f32 %v2646, %v2681
    %v2690 = vmul.f32 %v2648, %v2682
    %v2691 = vmul.f32 %v2650, %v2683
    %v2692 = vmul.f32 %v2652, %v2684
    %v2693 = vpack.c.bf16 %v2686, %v2685
    %v2694 = vpack.c.bf16 %v2688, %v2687
    %v2695 = vpack.c.bf16 %v2690, %v2689
    %v2696 = vpack.c.bf16 %v2692, %v2691
    %2701 = vrot.lane.b32.xlu0 %v2226, 96
    %v2702 = vpop.permute.xlu0 %2701
    %2703 = vrot.lane.b32.xlu0 %v2227, 96
    %v2704 = vpop.permute.xlu0 %2703
    %2705 = vrot.lane.b32.xlu0 %v2228, 96
    %v2706 = vpop.permute.xlu0 %2705
    %2707 = vrot.lane.b32.xlu0 %v2229, 96
    %v2708 = vpop.permute.xlu0 %2707
    %v2714 = vsel %vm771, %v2693, 0
    %v2717 = vsel %vm771, %v2694, 0
    %v2720 = vsel %vm771, %v2695, 0
    %v2723 = vsel %vm771, %v2696, 0
    %2725 = vmatprep.subr.bf16.mxu0 0
    %2726 = vmatpush1.bf16.msra.mxu0 %v2702
    %2727 = vmatprep.subr.bf16.mxu0 0
    %2728 = vmatpush1.bf16.msra.mxu0 %v2704
    %2729 = vmatprep.subr.bf16.mxu0 0
    %2730 = vmatpush1.bf16.msra.mxu0 %v2706
    %2731 = vmatprep.subr.bf16.mxu0 0
    %2732 = vmatpush1.bf16.msra.mxu0 %v2708
    %2733 = vmatprep.subr.bf16.mxu0 0
    %2734 = vmatpush1.bf16.msra.mxu0 0
    %2735 = vmatprep.subr.bf16.mxu0 0
    %2736 = vmatpush1.bf16.msra.mxu0 0
    %2737 = vmatprep.subr.bf16.mxu0 0
    %2738 = vmatpush1.bf16.msra.mxu0 0
    %2739 = vmatprep.subr.bf16.mxu0 0
    %2740 = vmatpush1.bf16.msra.mxu0 0
    %2741 = vmatprep.subr.bf16.mxu0 0
    %2742 = vmatpush1.bf16.msra.mxu0 0
    %2743 = vmatprep.subr.bf16.mxu0 0
    %2744 = vmatpush1.bf16.msra.mxu0 0
    %2745 = vmatprep.subr.bf16.mxu0 0
    %2746 = vmatpush1.bf16.msra.mxu0 0
    %2747 = vmatprep.subr.bf16.mxu0 0
    %2748 = vmatpush1.bf16.msra.mxu0 0
    %2749 = vmatprep.subr.bf16.mxu0 0
    %2750 = vmatpush1.bf16.msra.mxu0 0
    %2751 = vmatprep.subr.bf16.mxu0 0
    %2752 = vmatpush1.bf16.msra.mxu0 0
    %2753 = vmatprep.subr.bf16.mxu0 0
    %2754 = vmatpush1.bf16.msra.mxu0 0
    %2755 = vmatprep.subr.bf16.mxu0 0
    %2756 = vmatpush1.bf16.msra.mxu0 0
    %2757 = vmatprep.mubr.bf16.mxu0 0
    %2758 = vmatmul.mubr.bf16.gmra.mrb[0].mxu0 %v2714
    %v2759 = vpop.f32.mrb[0].mxu0
    %v2760 = vadd.f32 0.0, %v2759
    %v2761 = vpop.f32.mrb[0].mxu0
    %v2762 = vpop.f32.mrb[0].mxu0
    %v2763 = vadd.f32 0.0, %v2762
    %v2764 = vpop.f32.mrb[0].mxu0
    %2765 = vmatprep.mubr.bf16.mxu0 0
    %2766 = vmatmul.mubr.bf16.gmra.mrb[0].mxu0 %v2717
    %v2767 = vpop.f32.mrb[0].mxu0
    %v2768 = vadd.f32 0.0, %v2767
    %v2769 = vpop.f32.mrb[0].mxu0
    %v2770 = vpop.f32.mrb[0].mxu0
    %v2771 = vadd.f32 0.0, %v2770
    %v2772 = vpop.f32.mrb[0].mxu0
    %2773 = vmatprep.mubr.bf16.mxu0 0
    %2774 = vmatmul.mubr.bf16.gmra.mrb[0].mxu0 %v2720
    %v2775 = vpop.f32.mrb[0].mxu0
    %v2776 = vadd.f32 0.0, %v2775
    %v2777 = vpop.f32.mrb[0].mxu0
    %v2778 = vpop.f32.mrb[0].mxu0
    %v2779 = vadd.f32 0.0, %v2778
    %v2780 = vpop.f32.mrb[0].mxu0
    %2781 = vmatprep.mubr.bf16.mxu0 0
    %2782 = vmatmul.mubr.bf16.gmra.mrb[0].mxu0 %v2723
    %v2783 = vpop.f32.mrb[0].mxu0
    %v2784 = vadd.f32 0.0, %v2783
    %v2785 = vpop.f32.mrb[0].mxu0
    %v2786 = vpop.f32.mrb[0].mxu0
    %v2787 = vadd.f32 0.0, %v2786
    %v2788 = vpop.f32.mrb[0].mxu0
    %2789 = vdwg.mxu0
    %v2790 = vpack.c.bf16 %v2763, %v2760
    %v2791 = vpack.c.bf16 %v2771, %v2768
    %v2792 = vpack.c.bf16 %v2779, %v2776
    %v2793 = vpack.c.bf16 %v2787, %v2784
    %v2795 = vsel %vm681, %v2790, 0
    %v2798 = vsel %vm681, %v2791, 0
    %v2801 = vsel %vm681, %v2792, 0
    %v2804 = vsel %vm681, %v2793, 0
    %2806 = vmatprep.subr.bf16.mxu0 0
    %2807 = vmatpush1.bf16.msra.mxu0 %v1264
    %2808 = vmatprep.subr.bf16.mxu0 0
    %2809 = vmatpush1.bf16.msra.mxu0 %v1265
    %2810 = vmatprep.subr.bf16.mxu0 0
    %2811 = vmatpush1.bf16.msra.mxu0 0
    %2812 = vmatprep.subr.bf16.mxu0 0
    %2813 = vmatpush1.bf16.msra.mxu0 0
    %2814 = vmatprep.subr.bf16.mxu0 0
    %2815 = vmatpush1.bf16.msra.mxu0 0
    %2816 = vmatprep.subr.bf16.mxu0 0
    %2817 = vmatpush1.bf16.msra.mxu0 0
    %2818 = vmatprep.subr.bf16.mxu0 0
    %2819 = vmatpush1.bf16.msra.mxu0 0
    %2820 = vmatprep.subr.bf16.mxu0 0
    %2821 = vmatpush1.bf16.msra.mxu0 0
    %2822 = vmatprep.subr.bf16.mxu0 0
    %2823 = vmatpush1.bf16.msra.mxu0 0
    %2824 = vmatprep.subr.bf16.mxu0 0
    %2825 = vmatpush1.bf16.msra.mxu0 0
    %2826 = vmatprep.subr.bf16.mxu0 0
    %2827 = vmatpush1.bf16.msra.mxu0 0
    %2828 = vmatprep.subr.bf16.mxu0 0
    %2829 = vmatpush1.bf16.msra.mxu0 0
    %2830 = vmatprep.subr.bf16.mxu0 0
    %2831 = vmatpush1.bf16.msra.mxu0 0
    %2832 = vmatprep.subr.bf16.mxu0 0
    %2833 = vmatpush1.bf16.msra.mxu0 0
    %2834 = vmatprep.subr.bf16.mxu0 0
    %2835 = vmatpush1.bf16.msra.mxu0 0
    %2836 = vmatprep.subr.bf16.mxu0 0
    %2837 = vmatpush1.bf16.msra.mxu0 0
    %2838 = vmatprep.mubr.bf16.mxu0 0
    %2839 = vmatmul.mubr.bf16.gmra.mrb[0].mxu0 %v2795
    %v2840 = vpop.f32.mrb[0].mxu0
    %v2841 = vadd.f32 0.0, %v2840
    %v2842 = vpop.f32.mrb[0].mxu0
    %v2843 = vpop.f32.mrb[0].mxu0
    %v2844 = vadd.f32 0.0, %v2843
    %v2845 = vpop.f32.mrb[0].mxu0
    %2846 = vmatprep.mubr.bf16.mxu0 0
    %2847 = vmatmul.mubr.bf16.gmra.mrb[0].mxu0 %v2798
    %v2848 = vpop.f32.mrb[0].mxu0
    %v2849 = vadd.f32 0.0, %v2848
    %v2850 = vpop.f32.mrb[0].mxu0
    %v2851 = vpop.f32.mrb[0].mxu0
    %v2852 = vadd.f32 0.0, %v2851
    %v2853 = vpop.f32.mrb[0].mxu0
    %2854 = vmatprep.mubr.bf16.mxu0 0
    %2855 = vmatmul.mubr.bf16.gmra.mrb[0].mxu0 %v2801
    %v2856 = vpop.f32.mrb[0].mxu0
    %v2857 = vadd.f32 0.0, %v2856
    %v2858 = vpop.f32.mrb[0].mxu0
    %v2859 = vpop.f32.mrb[0].mxu0
    %v2860 = vadd.f32 0.0, %v2859
    %v2861 = vpop.f32.mrb[0].mxu0
    %2862 = vmatprep.mubr.bf16.mxu0 0
    %2863 = vmatmul.mubr.bf16.gmra.mrb[0].mxu0 %v2804
    %v2864 = vpop.f32.mrb[0].mxu0
    %v2865 = vadd.f32 0.0, %v2864
    %v2866 = vpop.f32.mrb[0].mxu0
    %v2867 = vpop.f32.mrb[0].mxu0
    %v2868 = vadd.f32 0.0, %v2867
    %v2869 = vpop.f32.mrb[0].mxu0
    %2870 = vdwg.mxu0
    %v2872 = vsel %vm681, %v2488, 0
    %v2875 = vsel %vm681, %v2489, 0
    %v2878 = vsel %vm681, %v2490, 0
    %v2881 = vsel %vm681, %v2491, 0
    %2883 = vmatprep.subr.bf16.mxu0 0
    %2884 = vmatpush1.bf16.msra.mxu0 %v1353
    %2885 = vmatprep.subr.bf16.mxu0 0
    %2886 = vmatpush1.bf16.msra.mxu0 %v1354
    %2887 = vmatprep.subr.bf16.mxu0 0
    %2888 = vmatpush1.bf16.msra.mxu0 0
    %2889 = vmatprep.subr.bf16.mxu0 0
    %2890 = vmatpush1.bf16.msra.mxu0 0
    %2891 = vmatprep.subr.bf16.mxu0 0
    %2892 = vmatpush1.bf16.msra.mxu0 0
    %2893 = vmatprep.subr.bf16.mxu0 0
    %2894 = vmatpush1.bf16.msra.mxu0 0
    %2895 = vmatprep.subr.bf16.mxu0 0
    %2896 = vmatpush1.bf16.msra.mxu0 0
    %2897 = vmatprep.subr.bf16.mxu0 0
    %2898 = vmatpush1.bf16.msra.mxu0 0
    %2899 = vmatprep.subr.bf16.mxu0 0
    %2900 = vmatpush1.bf16.msra.mxu0 0
    %2901 = vmatprep.subr.bf16.mxu0 0
    %2902 = vmatpush1.bf16.msra.mxu0 0
    %2903 = vmatprep.subr.bf16.mxu0 0
    %2904 = vmatpush1.bf16.msra.mxu0 0
    %2905 = vmatprep.subr.bf16.mxu0 0
    %2906 = vmatpush1.bf16.msra.mxu0 0
    %2907 = vmatprep.subr.bf16.mxu0 0
    %2908 = vmatpush1.bf16.msra.mxu0 0
    %2909 = vmatprep.subr.bf16.mxu0 0
    %2910 = vmatpush1.bf16.msra.mxu0 0
    %2911 = vmatprep.subr.bf16.mxu0 0
    %2912 = vmatpush1.bf16.msra.mxu0 0
    %2913 = vmatprep.subr.bf16.mxu0 0
    %2914 = vmatpush1.bf16.msra.mxu0 0
    %2915 = vmatprep.mubr.bf16.mxu0 0
    %2916 = vmatmul.mubr.bf16.gmra.mrb[0].mxu0 %v2872
    %v2917 = vpop.f32.mrb[0].mxu0
    %v2918 = vadd.f32 %v2841, %v2917
    %v2919 = vpop.f32.mrb[0].mxu0
    %v2920 = vpop.f32.mrb[0].mxu0
    %v2921 = vadd.f32 %v2844, %v2920
    %v2922 = vpop.f32.mrb[0].mxu0
    %2923 = vmatprep.mubr.bf16.mxu0 0
    %2924 = vmatmul.mubr.bf16.gmra.mrb[0].mxu0 %v2875
    %v2925 = vpop.f32.mrb[0].mxu0
    %v2926 = vadd.f32 %v2849, %v2925
    %v2927 = vpop.f32.mrb[0].mxu0
    %v2928 = vpop.f32.mrb[0].mxu0
    %v2929 = vadd.f32 %v2852, %v2928
    %v2930 = vpop.f32.mrb[0].mxu0
    %2931 = vmatprep.mubr.bf16.mxu0 0
    %2932 = vmatmul.mubr.bf16.gmra.mrb[0].mxu0 %v2878
    %v2933 = vpop.f32.mrb[0].mxu0
    %v2934 = vadd.f32 %v2857, %v2933
    %v2935 = vpop.f32.mrb[0].mxu0
    %v2936 = vpop.f32.mrb[0].mxu0
    %v2937 = vadd.f32 %v2860, %v2936
    %v2938 = vpop.f32.mrb[0].mxu0
    %2939 = vmatprep.mubr.bf16.mxu0 0
    %2940 = vmatmul.mubr.bf16.gmra.mrb[0].mxu0 %v2881
    %v2941 = vpop.f32.mrb[0].mxu0
    %v2942 = vadd.f32 %v2865, %v2941
    %v2943 = vpop.f32.mrb[0].mxu0
    %v2944 = vpop.f32.mrb[0].mxu0
    %v2945 = vadd.f32 %v2868, %v2944
    %v2946 = vpop.f32.mrb[0].mxu0
    %2947 = vdwg.mxu0
    %2948 = vrot.lane.b32.xlu0 %v2218, 64
    %v2949 = vpop.permute.xlu0 %2948
    %2950 = vrot.lane.b32.xlu0 %v2219, 64
    %v2951 = vpop.permute.xlu0 %2950
    %2952 = vrot.lane.b32.xlu0 %v2220, 64
    %v2953 = vpop.permute.xlu0 %2952
    %2954 = vrot.lane.b32.xlu0 %v2221, 64
    %v2955 = vpop.permute.xlu0 %2954
    %2956 = vrot.lane.b32.xlu0 %v2222, 64
    %v2957 = vpop.permute.xlu0 %2956
    %2958 = vrot.lane.b32.xlu0 %v2223, 64
    %v2959 = vpop.permute.xlu0 %2958
    %2960 = vrot.lane.b32.xlu0 %v2224, 64
    %v2961 = vpop.permute.xlu0 %2960
    %2962 = vrot.lane.b32.xlu0 %v2225, 64
    %v2963 = vpop.permute.xlu0 %2962
    %v2965 = vsel %vm681, %v2949, 0
    %v2968 = vsel %vm681, %v2951, 0
    %v2971 = vsel %vm681, %v2953, 0
    %v2974 = vsel %vm681, %v2955, 0
    %v2977 = vsel %vm681, %v2957, 0
    %v2980 = vsel %vm681, %v2959, 0
    %v2983 = vsel %vm681, %v2961, 0
    %v2986 = vsel %vm681, %v2963, 0
    %2988 = vmatprep.subr.bf16.mxu0 0
    %2989 = vmatpush1.bf16.xpose.msra.mxu0 %v2977
    %2990 = vmatprep.subr.bf16.mxu0 0
    %2991 = vmatpush1.bf16.xpose.msra.mxu0 %v2980
    %2992 = vmatprep.subr.bf16.mxu0 0
    %2993 = vmatpush1.bf16.xpose.msra.mxu0 %v2983
    %2994 = vmatprep.subr.bf16.mxu0 0
    %2995 = vmatpush1.bf16.xpose.msra.mxu0 %v2986
    %2996 = vmatprep.subr.bf16.mxu0 0
    %2997 = vmatpush1.bf16.xpose.msra.mxu0 0
    %2998 = vmatprep.subr.bf16.mxu0 0
    %2999 = vmatpush1.bf16.xpose.msra.mxu0 0
    %3000 = vmatprep.subr.bf16.mxu0 0
    %3001 = vmatpush1.bf16.xpose.msra.mxu0 0
    %3002 = vmatprep.subr.bf16.mxu0 0
    %3003 = vmatpush1.bf16.xpose.msra.mxu0 0
    %3004 = vmatprep.subr.bf16.mxu0 0
    %3005 = vmatpush1.bf16.xpose.msra.mxu0 0
    %3006 = vmatprep.subr.bf16.mxu0 0
    %3007 = vmatpush1.bf16.xpose.msra.mxu0 0
    %3008 = vmatprep.subr.bf16.mxu0 0
    %3009 = vmatpush1.bf16.xpose.msra.mxu0 0
    %3010 = vmatprep.subr.bf16.mxu0 0
    %3011 = vmatpush1.bf16.xpose.msra.mxu0 0
    %3012 = vmatprep.subr.bf16.mxu0 0
    %3013 = vmatpush1.bf16.xpose.msra.mxu0 0
    %3014 = vmatprep.subr.bf16.mxu0 0
    %3015 = vmatpush1.bf16.xpose.msra.mxu0 0
    %3016 = vmatprep.subr.bf16.mxu0 0
    %3017 = vmatpush1.bf16.xpose.msra.mxu0 0
    %3018 = vmatprep.subr.bf16.mxu0 0
    %3019 = vmatpush1.bf16.xpose.msra.mxu0 0
    %3020 = vmatprep.mubr.bf16.mxu0 0
    %3021 = vmatmul.mubr.bf16.gmra.mrb[0].mxu0 %v2965
    %v3022 = vpop.f32.mrb[0].mxu0
    %v3023 = vadd.f32 0.0, %v3022
    %v3024 = vpop.f32.mrb[0].mxu0
    %v3025 = vpop.f32.mrb[0].mxu0
    %v3026 = vadd.f32 0.0, %v3025
    %v3027 = vpop.f32.mrb[0].mxu0
    %3028 = vmatprep.mubr.bf16.mxu0 0
    %3029 = vmatmul.mubr.bf16.gmra.mrb[0].mxu0 %v2968
    %v3030 = vpop.f32.mrb[0].mxu0
    %v3031 = vadd.f32 0.0, %v3030
    %v3032 = vpop.f32.mrb[0].mxu0
    %v3033 = vpop.f32.mrb[0].mxu0
    %v3034 = vadd.f32 0.0, %v3033
    %v3035 = vpop.f32.mrb[0].mxu0
    %3036 = vmatprep.mubr.bf16.mxu0 0
    %3037 = vmatmul.mubr.bf16.gmra.mrb[0].mxu0 %v2971
    %v3038 = vpop.f32.mrb[0].mxu0
    %v3039 = vadd.f32 0.0, %v3038
    %v3040 = vpop.f32.mrb[0].mxu0
    %v3041 = vpop.f32.mrb[0].mxu0
    %v3042 = vadd.f32 0.0, %v3041
    %v3043 = vpop.f32.mrb[0].mxu0
    %3044 = vmatprep.mubr.bf16.mxu0 0
    %3045 = vmatmul.mubr.bf16.gmra.mrb[0].mxu0 %v2974
    %v3046 = vpop.f32.mrb[0].mxu0
    %v3047 = vadd.f32 0.0, %v3046
    %v3048 = vpop.f32.mrb[0].mxu0
    %v3049 = vpop.f32.mrb[0].mxu0
    %v3050 = vadd.f32 0.0, %v3049
    %v3051 = vpop.f32.mrb[0].mxu0
    %3052 = vdwg.mxu0
    %v3053 = vsel %vm771, %v3023, -inf
    %3054 = vmax.xlane.f32.xlu0 %v3053
    %v3055 = vpop.xlane.xlu0 %3054
    %v3056 = vsel %vm771, %v3026, -inf
    %3057 = vmax.xlane.f32.xlu0 %v3056
    %v3058 = vpop.xlane.xlu0 %3057
    %v3059 = vsel %vm771, %v3031, -inf
    %3060 = vmax.xlane.f32.xlu0 %v3059
    %v3061 = vpop.xlane.xlu0 %3060
    %v3062 = vsel %vm771, %v3034, -inf
    %3063 = vmax.xlane.f32.xlu0 %v3062
    %v3064 = vpop.xlane.xlu0 %3063
    %v3065 = vsel %vm771, %v3039, -inf
    %3066 = vmax.xlane.f32.xlu0 %v3065
    %v3067 = vpop.xlane.xlu0 %3066
    %v3068 = vsel %vm771, %v3042, -inf
    %3069 = vmax.xlane.f32.xlu0 %v3068
    %v3070 = vpop.xlane.xlu0 %3069
    %v3071 = vsel %vm771, %v3047, -inf
    %3072 = vmax.xlane.f32.xlu0 %v3071
    %v3073 = vpop.xlane.xlu0 %3072
    %v3074 = vsel %vm771, %v3050, -inf
    %3075 = vmax.xlane.f32.xlu0 %v3074
    %v3076 = vpop.xlane.xlu0 %3075
    %v3077 = vsub.f32 %v3023, %v3055
    %v3078 = vsub.f32 %v3026, %v3058
    %v3079 = vsub.f32 %v3031, %v3061
    %v3080 = vsub.f32 %v3034, %v3064
    %v3081 = vsub.f32 %v3039, %v3067
    %v3082 = vsub.f32 %v3042, %v3070
    %v3083 = vsub.f32 %v3047, %v3073
    %v3084 = vsub.f32 %v3050, %v3076
    %v3085 = vmul.f32 %v3077, 1.442695
    %v3086 = vpow.pop %v3085
    %v3087 = vmul.f32 %v3078, 1.442695
    %v3088 = vpow.pop %v3087
    %v3089 = vmul.f32 %v3079, 1.442695
    %v3090 = vpow.pop %v3089
    %v3091 = vmul.f32 %v3080, 1.442695
    %v3092 = vpow.pop %v3091
    %v3093 = vmul.f32 %v3081, 1.442695
    %v3094 = vpow.pop %v3093
    %v3095 = vmul.f32 %v3082, 1.442695
    %v3096 = vpow.pop %v3095
    %v3097 = vmul.f32 %v3083, 1.442695
    %v3098 = vpow.pop %v3097
    %v3099 = vmul.f32 %v3084, 1.442695
    %v3100 = vpow.pop %v3099
    %v3101 = vsel %vm771, %v3086, 0.0
    %3102 = vadd.xlane.f32.xlu0 %v3101
    %v3103 = vpop.xlane.xlu0 %3102
    %v3104 = vsel %vm771, %v3088, 0.0
    %3105 = vadd.xlane.f32.xlu0 %v3104
    %v3106 = vpop.xlane.xlu0 %3105
    %v3107 = vsel %vm771, %v3090, 0.0
    %3108 = vadd.xlane.f32.xlu0 %v3107
    %v3109 = vpop.xlane.xlu0 %3108
    %v3110 = vsel %vm771, %v3092, 0.0
    %3111 = vadd.xlane.f32.xlu0 %v3110
    %v3112 = vpop.xlane.xlu0 %3111
    %v3113 = vsel %vm771, %v3094, 0.0
    %3114 = vadd.xlane.f32.xlu0 %v3113
    %v3115 = vpop.xlane.xlu0 %3114
    %v3116 = vsel %vm771, %v3096, 0.0
    %3117 = vadd.xlane.f32.xlu0 %v3116
    %v3118 = vpop.xlane.xlu0 %3117
    %v3119 = vsel %vm771, %v3098, 0.0
    %3120 = vadd.xlane.f32.xlu0 %v3119
    %v3121 = vpop.xlane.xlu0 %3120
    %v3122 = vsel %vm771, %v3100, 0.0
    %3123 = vadd.xlane.f32.xlu0 %v3122
    %v3124 = vpop.xlane.xlu0 %3123
    %v3125 = vrcp.pop %v3103
    %v3126 = vrcp.pop %v3106
    %v3127 = vrcp.pop %v3109
    %v3128 = vrcp.pop %v3112
    %v3129 = vrcp.pop %v3115
    %v3130 = vrcp.pop %v3118
    %v3131 = vrcp.pop %v3121
    %v3132 = vrcp.pop %v3124
    %v3133 = vmul.f32 %v3086, %v3125
    %v3134 = vmul.f32 %v3088, %v3126
    %v3135 = vmul.f32 %v3090, %v3127
    %v3136 = vmul.f32 %v3092, %v3128
    %v3137 = vmul.f32 %v3094, %v3129
    %v3138 = vmul.f32 %v3096, %v3130
    %v3139 = vmul.f32 %v3098, %v3131
    %v3140 = vmul.f32 %v3100, %v3132
    %v3141 = vpack.c.bf16 %v3134, %v3133
    %v3142 = vpack.c.bf16 %v3136, %v3135
    %v3143 = vpack.c.bf16 %v3138, %v3137
    %v3144 = vpack.c.bf16 %v3140, %v3139
    %3145 = vrot.lane.b32.xlu0 %v2226, 64
    %v3146 = vpop.permute.xlu0 %3145
    %3147 = vrot.lane.b32.xlu0 %v2227, 64
    %v3148 = vpop.permute.xlu0 %3147
    %3149 = vrot.lane.b32.xlu0 %v2228, 64
    %v3150 = vpop.permute.xlu0 %3149
    %3151 = vrot.lane.b32.xlu0 %v2229, 64
    %v3152 = vpop.permute.xlu0 %3151
    %v3158 = vsel %vm771, %v3141, 0
    %v3161 = vsel %vm771, %v3142, 0
    %v3164 = vsel %vm771, %v3143, 0
    %v3167 = vsel %vm771, %v3144, 0
    %3169 = vmatprep.subr.bf16.mxu0 0
    %3170 = vmatpush1.bf16.msra.mxu0 %v3146
    %3171 = vmatprep.subr.bf16.mxu0 0
    %3172 = vmatpush1.bf16.msra.mxu0 %v3148
    %3173 = vmatprep.subr.bf16.mxu0 0
    %3174 = vmatpush1.bf16.msra.mxu0 %v3150
    %3175 = vmatprep.subr.bf16.mxu0 0
    %3176 = vmatpush1.bf16.msra.mxu0 %v3152
    %3177 = vmatprep.subr.bf16.mxu0 0
    %3178 = vmatpush1.bf16.msra.mxu0 0
    %3179 = vmatprep.subr.bf16.mxu0 0
    %3180 = vmatpush1.bf16.msra.mxu0 0
    %3181 = vmatprep.subr.bf16.mxu0 0
    %3182 = vmatpush1.bf16.msra.mxu0 0
    %3183 = vmatprep.subr.bf16.mxu0 0
    %3184 = vmatpush1.bf16.msra.mxu0 0
    %3185 = vmatprep.subr.bf16.mxu0 0
    %3186 = vmatpush1.bf16.msra.mxu0 0
    %3187 = vmatprep.subr.bf16.mxu0 0
    %3188 = vmatpush1.bf16.msra.mxu0 0
    %3189 = vmatprep.subr.bf16.mxu0 0
    %3190 = vmatpush1.bf16.msra.mxu0 0
    %3191 = vmatprep.subr.bf16.mxu0 0
    %3192 = vmatpush1.bf16.msra.mxu0 0
    %3193 = vmatprep.subr.bf16.mxu0 0
    %3194 = vmatpush1.bf16.msra.mxu0 0
    %3195 = vmatprep.subr.bf16.mxu0 0
    %3196 = vmatpush1.bf16.msra.mxu0 0
    %3197 = vmatprep.subr.bf16.mxu0 0
    %3198 = vmatpush1.bf16.msra.mxu0 0
    %3199 = vmatprep.subr.bf16.mxu0 0
    %3200 = vmatpush1.bf16.msra.mxu0 0
    %3201 = vmatprep.mubr.bf16.mxu0 0
    %3202 = vmatmul.mubr.bf16.gmra.mrb[0].mxu0 %v3158
    %v3203 = vpop.f32.mrb[0].mxu0
    %v3204 = vadd.f32 0.0, %v3203
    %v3205 = vpop.f32.mrb[0].mxu0
    %v3206 = vpop.f32.mrb[0].mxu0
    %v3207 = vadd.f32 0.0, %v3206
    %v3208 = vpop.f32.mrb[0].mxu0
    %3209 = vmatprep.mubr.bf16.mxu0 0
    %3210 = vmatmul.mubr.bf16.gmra.mrb[0].mxu0 %v3161
    %v3211 = vpop.f32.mrb[0].mxu0
    %v3212 = vadd.f32 0.0, %v3211
    %v3213 = vpop.f32.mrb[0].mxu0
    %v3214 = vpop.f32.mrb[0].mxu0
    %v3215 = vadd.f32 0.0, %v3214
    %v3216 = vpop.f32.mrb[0].mxu0
    %3217 = vmatprep.mubr.bf16.mxu0 0
    %3218 = vmatmul.mubr.bf16.gmra.mrb[0].mxu0 %v3164
    %v3219 = vpop.f32.mrb[0].mxu0
    %v3220 = vadd.f32 0.0, %v3219
    %v3221 = vpop.f32.mrb[0].mxu0
    %v3222 = vpop.f32.mrb[0].mxu0
    %v3223 = vadd.f32 0.0, %v3222
    %v3224 = vpop.f32.mrb[0].mxu0
    %3225 = vmatprep.mubr.bf16.mxu0 0
    %3226 = vmatmul.mubr.bf16.gmra.mrb[0].mxu0 %v3167
    %v3227 = vpop.f32.mrb[0].mxu0
    %v3228 = vadd.f32 0.0, %v3227
    %v3229 = vpop.f32.mrb[0].mxu0
    %v3230 = vpop.f32.mrb[0].mxu0
    %v3231 = vadd.f32 0.0, %v3230
    %v3232 = vpop.f32.mrb[0].mxu0
    %3233 = vdwg.mxu0
    %v3234 = vpack.c.bf16 %v3207, %v3204
    %v3235 = vpack.c.bf16 %v3215, %v3212
    %v3236 = vpack.c.bf16 %v3223, %v3220
    %v3237 = vpack.c.bf16 %v3231, %v3228
    %v3239 = vsel %vm681, %v3234, 0
    %v3242 = vsel %vm681, %v3235, 0
    %v3245 = vsel %vm681, %v3236, 0
    %v3248 = vsel %vm681, %v3237, 0
    %3250 = vmatprep.subr.bf16.mxu0 0
    %3251 = vmatpush1.bf16.msra.mxu0 %v1737
    %3252 = vmatprep.subr.bf16.mxu0 0
    %3253 = vmatpush1.bf16.msra.mxu0 %v1738
    %3254 = vmatprep.subr.bf16.mxu0 0
    %3255 = vmatpush1.bf16.msra.mxu0 0
    %3256 = vmatprep.subr.bf16.mxu0 0
    %3257 = vmatpush1.bf16.msra.mxu0 0
    %3258 = vmatprep.subr.bf16.mxu0 0
    %3259 = vmatpush1.bf16.msra.mxu0 0
    %3260 = vmatprep.subr.bf16.mxu0 0
    %3261 = vmatpush1.bf16.msra.mxu0 0
    %3262 = vmatprep.subr.bf16.mxu0 0
    %3263 = vmatpush1.bf16.msra.mxu0 0
    %3264 = vmatprep.subr.bf16.mxu0 0
    %3265 = vmatpush1.bf16.msra.mxu0 0
    %3266 = vmatprep.subr.bf16.mxu0 0
    %3267 = vmatpush1.bf16.msra.mxu0 0
    %3268 = vmatprep.subr.bf16.mxu0 0
    %3269 = vmatpush1.bf16.msra.mxu0 0
    %3270 = vmatprep.subr.bf16.mxu0 0
    %3271 = vmatpush1.bf16.msra.mxu0 0
    %3272 = vmatprep.subr.bf16.mxu0 0
    %3273 = vmatpush1.bf16.msra.mxu0 0
    %3274 = vmatprep.subr.bf16.mxu0 0
    %3275 = vmatpush1.bf16.msra.mxu0 0
    %3276 = vmatprep.subr.bf16.mxu0 0
    %3277 = vmatpush1.bf16.msra.mxu0 0
    %3278 = vmatprep.subr.bf16.mxu0 0
    %3279 = vmatpush1.bf16.msra.mxu0 0
    %3280 = vmatprep.subr.bf16.mxu0 0
    %3281 = vmatpush1.bf16.msra.mxu0 0
    %3282 = vmatprep.mubr.bf16.mxu0 0
    %3283 = vmatmul.mubr.bf16.gmra.mrb[0].mxu0 %v3239
    %v3284 = vpop.f32.mrb[0].mxu0
    %v3285 = vadd.f32 0.0, %v3284
    %v3286 = vpop.f32.mrb[0].mxu0
    %v3287 = vpop.f32.mrb[0].mxu0
    %v3288 = vadd.f32 0.0, %v3287
    %v3289 = vpop.f32.mrb[0].mxu0
    %3290 = vmatprep.mubr.bf16.mxu0 0
    %3291 = vmatmul.mubr.bf16.gmra.mrb[0].mxu0 %v3242
    %v3292 = vpop.f32.mrb[0].mxu0
    %v3293 = vadd.f32 0.0, %v3292
    %v3294 = vpop.f32.mrb[0].mxu0
    %v3295 = vpop.f32.mrb[0].mxu0
    %v3296 = vadd.f32 0.0, %v3295
    %v3297 = vpop.f32.mrb[0].mxu0
    %3298 = vmatprep.mubr.bf16.mxu0 0
    %3299 = vmatmul.mubr.bf16.gmra.mrb[0].mxu0 %v3245
    %v3300 = vpop.f32.mrb[0].mxu0
    %v3301 = vadd.f32 0.0, %v3300
    %v3302 = vpop.f32.mrb[0].mxu0
    %v3303 = vpop.f32.mrb[0].mxu0
    %v3304 = vadd.f32 0.0, %v3303
    %v3305 = vpop.f32.mrb[0].mxu0
    %3306 = vmatprep.mubr.bf16.mxu0 0
    %3307 = vmatmul.mubr.bf16.gmra.mrb[0].mxu0 %v3248
    %v3308 = vpop.f32.mrb[0].mxu0
    %v3309 = vadd.f32 0.0, %v3308
    %v3310 = vpop.f32.mrb[0].mxu0
    %v3311 = vpop.f32.mrb[0].mxu0
    %v3312 = vadd.f32 0.0, %v3311
    %v3313 = vpop.f32.mrb[0].mxu0
    %3314 = vdwg.mxu0
    %v3315 = vadd.f32 %v2918, %v3285
    %v3316 = vadd.f32 %v2921, %v3288
    %v3317 = vadd.f32 %v2926, %v3293
    %v3318 = vadd.f32 %v2929, %v3296
    %v3319 = vadd.f32 %v2934, %v3301
    %v3320 = vadd.f32 %v2937, %v3304
    %v3321 = vadd.f32 %v2942, %v3309
    %v3322 = vadd.f32 %v2945, %v3312
    %3323 = vrot.lane.b32.xlu0 %v2218, 32
    %v3324 = vpop.permute.xlu0 %3323
    %3325 = vrot.lane.b32.xlu0 %v2219, 32
    %v3326 = vpop.permute.xlu0 %3325
    %3327 = vrot.lane.b32.xlu0 %v2220, 32
    %v3328 = vpop.permute.xlu0 %3327
    %3329 = vrot.lane.b32.xlu0 %v2221, 32
    %v3330 = vpop.permute.xlu0 %3329
    %3331 = vrot.lane.b32.xlu0 %v2222, 32
    %v3332 = vpop.permute.xlu0 %3331
    %3333 = vrot.lane.b32.xlu0 %v2223, 32
    %v3334 = vpop.permute.xlu0 %3333
    %3335 = vrot.lane.b32.xlu0 %v2224, 32
    %v3336 = vpop.permute.xlu0 %3335
    %3337 = vrot.lane.b32.xlu0 %v2225, 32
    %v3338 = vpop.permute.xlu0 %3337
    %v3340 = vsel %vm681, %v3324, 0
    %v3343 = vsel %vm681, %v3326, 0
    %v3346 = vsel %vm681, %v3328, 0
    %v3349 = vsel %vm681, %v3330, 0
    %v3352 = vsel %vm681, %v3332, 0
    %v3355 = vsel %vm681, %v3334, 0
    %v3358 = vsel %vm681, %v3336, 0
    %v3361 = vsel %vm681, %v3338, 0
    %3363 = vmatprep.subr.bf16.mxu0 0
    %3364 = vmatpush1.bf16.xpose.msra.mxu0 %v3352
    %3365 = vmatprep.subr.bf16.mxu0 0
    %3366 = vmatpush1.bf16.xpose.msra.mxu0 %v3355
    %3367 = vmatprep.subr.bf16.mxu0 0
    %3368 = vmatpush1.bf16.xpose.msra.mxu0 %v3358
    %3369 = vmatprep.subr.bf16.mxu0 0
    %3370 = vmatpush1.bf16.xpose.msra.mxu0 %v3361
    %3371 = vmatprep.subr.bf16.mxu0 0
    %3372 = vmatpush1.bf16.xpose.msra.mxu0 0
    %3373 = vmatprep.subr.bf16.mxu0 0
    %3374 = vmatpush1.bf16.xpose.msra.mxu0 0
    %3375 = vmatprep.subr.bf16.mxu0 0
    %3376 = vmatpush1.bf16.xpose.msra.mxu0 0
    %3377 = vmatprep.subr.bf16.mxu0 0
    %3378 = vmatpush1.bf16.xpose.msra.mxu0 0
    %3379 = vmatprep.subr.bf16.mxu0 0
    %3380 = vmatpush1.bf16.xpose.msra.mxu0 0
    %3381 = vmatprep.subr.bf16.mxu0 0
    %3382 = vmatpush1.bf16.xpose.msra.mxu0 0
    %3383 = vmatprep.subr.bf16.mxu0 0
    %3384 = vmatpush1.bf16.xpose.msra.mxu0 0
    %3385 = vmatprep.subr.bf16.mxu0 0
    %3386 = vmatpush1.bf16.xpose.msra.mxu0 0
    %3387 = vmatprep.subr.bf16.mxu0 0
    %3388 = vmatpush1.bf16.xpose.msra.mxu0 0
    %3389 = vmatprep.subr.bf16.mxu0 0
    %3390 = vmatpush1.bf16.xpose.msra.mxu0 0
    %3391 = vmatprep.subr.bf16.mxu0 0
    %3392 = vmatpush1.bf16.xpose.msra.mxu0 0
    %3393 = vmatprep.subr.bf16.mxu0 0
    %3394 = vmatpush1.bf16.xpose.msra.mxu0 0
    %3395 = vmatprep.mubr.bf16.mxu0 0
    %3396 = vmatmul.mubr.bf16.gmra.mrb[0].mxu0 %v3340
    %v3397 = vpop.f32.mrb[0].mxu0
    %v3398 = vadd.f32 0.0, %v3397
    %v3399 = vpop.f32.mrb[0].mxu0
    %v3400 = vpop.f32.mrb[0].mxu0
    %v3401 = vadd.f32 0.0, %v3400
    %v3402 = vpop.f32.mrb[0].mxu0
    %3403 = vmatprep.mubr.bf16.mxu0 0
    %3404 = vmatmul.mubr.bf16.gmra.mrb[0].mxu0 %v3343
    %v3405 = vpop.f32.mrb[0].mxu0
    %v3406 = vadd.f32 0.0, %v3405
    %v3407 = vpop.f32.mrb[0].mxu0
    %v3408 = vpop.f32.mrb[0].mxu0
    %v3409 = vadd.f32 0.0, %v3408
    %v3410 = vpop.f32.mrb[0].mxu0
    %3411 = vmatprep.mubr.bf16.mxu0 0
    %3412 = vmatmul.mubr.bf16.gmra.mrb[0].mxu0 %v3346
    %v3413 = vpop.f32.mrb[0].mxu0
    %v3414 = vadd.f32 0.0, %v3413
    %v3415 = vpop.f32.mrb[0].mxu0
    %v3416 = vpop.f32.mrb[0].mxu0
    %v3417 = vadd.f32 0.0, %v3416
    %v3418 = vpop.f32.mrb[0].mxu0
    %3419 = vmatprep.mubr.bf16.mxu0 0
    %3420 = vmatmul.mubr.bf16.gmra.mrb[0].mxu0 %v3349
    %v3421 = vpop.f32.mrb[0].mxu0
    %v3422 = vadd.f32 0.0, %v3421
    %v3423 = vpop.f32.mrb[0].mxu0
    %v3424 = vpop.f32.mrb[0].mxu0
    %v3425 = vadd.f32 0.0, %v3424
    %v3426 = vpop.f32.mrb[0].mxu0
    %3427 = vdwg.mxu0
    %v3428 = vsel %vm771, %v3398, -inf
    %3429 = vmax.xlane.f32.xlu0 %v3428
    %v3430 = vpop.xlane.xlu0 %3429
    %v3431 = vsel %vm771, %v3401, -inf
    %3432 = vmax.xlane.f32.xlu0 %v3431
    %v3433 = vpop.xlane.xlu0 %3432
    %v3434 = vsel %vm771, %v3406, -inf
    %3435 = vmax.xlane.f32.xlu0 %v3434
    %v3436 = vpop.xlane.xlu0 %3435
    %v3437 = vsel %vm771, %v3409, -inf
    %3438 = vmax.xlane.f32.xlu0 %v3437
    %v3439 = vpop.xlane.xlu0 %3438
    %v3440 = vsel %vm771, %v3414, -inf
    %3441 = vmax.xlane.f32.xlu0 %v3440
    %v3442 = vpop.xlane.xlu0 %3441
    %v3443 = vsel %vm771, %v3417, -inf
    %3444 = vmax.xlane.f32.xlu0 %v3443
    %v3445 = vpop.xlane.xlu0 %3444
    %v3446 = vsel %vm771, %v3422, -inf
    %3447 = vmax.xlane.f32.xlu0 %v3446
    %v3448 = vpop.xlane.xlu0 %3447
    %v3449 = vsel %vm771, %v3425, -inf
    %3450 = vmax.xlane.f32.xlu0 %v3449
    %v3451 = vpop.xlane.xlu0 %3450
    %v3452 = vsub.f32 %v3398, %v3430
    %v3453 = vsub.f32 %v3401, %v3433
    %v3454 = vsub.f32 %v3406, %v3436
    %v3455 = vsub.f32 %v3409, %v3439
    %v3456 = vsub.f32 %v3414, %v3442
    %v3457 = vsub.f32 %v3417, %v3445
    %v3458 = vsub.f32 %v3422, %v3448
    %v3459 = vsub.f32 %v3425, %v3451
    %v3460 = vmul.f32 %v3452, 1.442695
    %v3461 = vpow.pop %v3460
    %v3462 = vmul.f32 %v3453, 1.442695
    %v3463 = vpow.pop %v3462
    %v3464 = vmul.f32 %v3454, 1.442695
    %v3465 = vpow.pop %v3464
    %v3466 = vmul.f32 %v3455, 1.442695
    %v3467 = vpow.pop %v3466
    %v3468 = vmul.f32 %v3456, 1.442695
    %v3469 = vpow.pop %v3468
    %v3470 = vmul.f32 %v3457, 1.442695
    %v3471 = vpow.pop %v3470
    %v3472 = vmul.f32 %v3458, 1.442695
    %v3473 = vpow.pop %v3472
    %v3474 = vmul.f32 %v3459, 1.442695
    %v3475 = vpow.pop %v3474
    %v3476 = vsel %vm771, %v3461, 0.0
    %3477 = vadd.xlane.f32.xlu0 %v3476
    %v3478 = vpop.xlane.xlu0 %3477
    %v3479 = vsel %vm771, %v3463, 0.0
    %3480 = vadd.xlane.f32.xlu0 %v3479
    %v3481 = vpop.xlane.xlu0 %3480
    %v3482 = vsel %vm771, %v3465, 0.0
    %3483 = vadd.xlane.f32.xlu0 %v3482
    %v3484 = vpop.xlane.xlu0 %3483
    %v3485 = vsel %vm771, %v3467, 0.0
    %3486 = vadd.xlane.f32.xlu0 %v3485
    %v3487 = vpop.xlane.xlu0 %3486
    %v3488 = vsel %vm771, %v3469, 0.0
    %3489 = vadd.xlane.f32.xlu0 %v3488
    %v3490 = vpop.xlane.xlu0 %3489
    %v3491 = vsel %vm771, %v3471, 0.0
    %3492 = vadd.xlane.f32.xlu0 %v3491
    %v3493 = vpop.xlane.xlu0 %3492
    %v3494 = vsel %vm771, %v3473, 0.0
    %3495 = vadd.xlane.f32.xlu0 %v3494
    %v3496 = vpop.xlane.xlu0 %3495
    %v3497 = vsel %vm771, %v3475, 0.0
    %3498 = vadd.xlane.f32.xlu0 %v3497
    %v3499 = vpop.xlane.xlu0 %3498
    %v3500 = vrcp.pop %v3478
    %v3501 = vrcp.pop %v3481
    %v3502 = vrcp.pop %v3484
    %v3503 = vrcp.pop %v3487
    %v3504 = vrcp.pop %v3490
    %v3505 = vrcp.pop %v3493
    %v3506 = vrcp.pop %v3496
    %v3507 = vrcp.pop %v3499
    %v3508 = vmul.f32 %v3461, %v3500
    %v3509 = vmul.f32 %v3463, %v3501
    %v3510 = vmul.f32 %v3465, %v3502
    %v3511 = vmul.f32 %v3467, %v3503
    %v3512 = vmul.f32 %v3469, %v3504
    %v3513 = vmul.f32 %v3471, %v3505
    %v3514 = vmul.f32 %v3473, %v3506
    %v3515 = vmul.f32 %v3475, %v3507
    %v3516 = vpack.c.bf16 %v3509, %v3508
    %v3517 = vpack.c.bf16 %v3511, %v3510
    %v3518 = vpack.c.bf16 %v3513, %v3512
    %v3519 = vpack.c.bf16 %v3515, %v3514
    %3520 = vrot.lane.b32.xlu0 %v2226, 32
    %v3521 = vpop.permute.xlu0 %3520
    %3522 = vrot.lane.b32.xlu0 %v2227, 32
    %v3523 = vpop.permute.xlu0 %3522
    %3524 = vrot.lane.b32.xlu0 %v2228, 32
    %v3525 = vpop.permute.xlu0 %3524
    %3526 = vrot.lane.b32.xlu0 %v2229, 32
    %v3527 = vpop.permute.xlu0 %3526
    %v3533 = vsel %vm771, %v3516, 0
    %v3536 = vsel %vm771, %v3517, 0
    %v3539 = vsel %vm771, %v3518, 0
    %v3542 = vsel %vm771, %v3519, 0
    %3544 = vmatprep.subr.bf16.mxu0 0
    %3545 = vmatpush1.bf16.msra.mxu0 %v3521
    %3546 = vmatprep.subr.bf16.mxu0 0
    %3547 = vmatpush1.bf16.msra.mxu0 %v3523
    %3548 = vmatprep.subr.bf16.mxu0 0
    %3549 = vmatpush1.bf16.msra.mxu0 %v3525
    %3550 = vmatprep.subr.bf16.mxu0 0
    %3551 = vmatpush1.bf16.msra.mxu0 %v3527
    %3552 = vmatprep.subr.bf16.mxu0 0
    %3553 = vmatpush1.bf16.msra.mxu0 0
    %3554 = vmatprep.subr.bf16.mxu0 0
    %3555 = vmatpush1.bf16.msra.mxu0 0
    %3556 = vmatprep.subr.bf16.mxu0 0
    %3557 = vmatpush1.bf16.msra.mxu0 0
    %3558 = vmatprep.subr.bf16.mxu0 0
    %3559 = vmatpush1.bf16.msra.mxu0 0
    %3560 = vmatprep.subr.bf16.mxu0 0
    %3561 = vmatpush1.bf16.msra.mxu0 0
    %3562 = vmatprep.subr.bf16.mxu0 0
    %3563 = vmatpush1.bf16.msra.mxu0 0
    %3564 = vmatprep.subr.bf16.mxu0 0
    %3565 = vmatpush1.bf16.msra.mxu0 0
    %3566 = vmatprep.subr.bf16.mxu0 0
    %3567 = vmatpush1.bf16.msra.mxu0 0
    %3568 = vmatprep.subr.bf16.mxu0 0
    %3569 = vmatpush1.bf16.msra.mxu0 0
    %3570 = vmatprep.subr.bf16.mxu0 0
    %3571 = vmatpush1.bf16.msra.mxu0 0
    %3572 = vmatprep.subr.bf16.mxu0 0
    %3573 = vmatpush1.bf16.msra.mxu0 0
    %3574 = vmatprep.subr.bf16.mxu0 0
    %3575 = vmatpush1.bf16.msra.mxu0 0
    %3576 = vmatprep.mubr.bf16.mxu0 0
    %3577 = vmatmul.mubr.bf16.gmra.mrb[0].mxu0 %v3533
    %v3578 = vpop.f32.mrb[0].mxu0
    %v3579 = vadd.f32 0.0, %v3578
    %v3580 = vpop.f32.mrb[0].mxu0
    %v3581 = vpop.f32.mrb[0].mxu0
    %v3582 = vadd.f32 0.0, %v3581
    %v3583 = vpop.f32.mrb[0].mxu0
    %3584 = vmatprep.mubr.bf16.mxu0 0
    %3585 = vmatmul.mubr.bf16.gmra.mrb[0].mxu0 %v3536
    %v3586 = vpop.f32.mrb[0].mxu0
    %v3587 = vadd.f32 0.0, %v3586
    %v3588 = vpop.f32.mrb[0].mxu0
    %v3589 = vpop.f32.mrb[0].mxu0
    %v3590 = vadd.f32 0.0, %v3589
    %v3591 = vpop.f32.mrb[0].mxu0
    %3592 = vmatprep.mubr.bf16.mxu0 0
    %3593 = vmatmul.mubr.bf16.gmra.mrb[0].mxu0 %v3539
    %v3594 = vpop.f32.mrb[0].mxu0
    %v3595 = vadd.f32 0.0, %v3594
    %v3596 = vpop.f32.mrb[0].mxu0
    %v3597 = vpop.f32.mrb[0].mxu0
    %v3598 = vadd.f32 0.0, %v3597
    %v3599 = vpop.f32.mrb[0].mxu0
    %3600 = vmatprep.mubr.bf16.mxu0 0
    %3601 = vmatmul.mubr.bf16.gmra.mrb[0].mxu0 %v3542
    %v3602 = vpop.f32.mrb[0].mxu0
    %v3603 = vadd.f32 0.0, %v3602
    %v3604 = vpop.f32.mrb[0].mxu0
    %v3605 = vpop.f32.mrb[0].mxu0
    %v3606 = vadd.f32 0.0, %v3605
    %v3607 = vpop.f32.mrb[0].mxu0
    %3608 = vdwg.mxu0
    %v3609 = vpack.c.bf16 %v3582, %v3579
    %v3610 = vpack.c.bf16 %v3590, %v3587
    %v3611 = vpack.c.bf16 %v3598, %v3595
    %v3612 = vpack.c.bf16 %v3606, %v3603
    %v3614 = vsel %vm681, %v3609, 0
    %v3617 = vsel %vm681, %v3610, 0
    %v3620 = vsel %vm681, %v3611, 0
    %v3623 = vsel %vm681, %v3612, 0
    %3625 = vmatprep.subr.bf16.mxu0 0
    %3626 = vmatpush1.bf16.msra.mxu0 %v2129
    %3627 = vmatprep.subr.bf16.mxu0 0
    %3628 = vmatpush1.bf16.msra.mxu0 %v2130
    %3629 = vmatprep.subr.bf16.mxu0 0
    %3630 = vmatpush1.bf16.msra.mxu0 0
    %3631 = vmatprep.subr.bf16.mxu0 0
    %3632 = vmatpush1.bf16.msra.mxu0 0
    %3633 = vmatprep.subr.bf16.mxu0 0
    %3634 = vmatpush1.bf16.msra.mxu0 0
    %3635 = vmatprep.subr.bf16.mxu0 0
    %3636 = vmatpush1.bf16.msra.mxu0 0
    %3637 = vmatprep.subr.bf16.mxu0 0
    %3638 = vmatpush1.bf16.msra.mxu0 0
    %3639 = vmatprep.subr.bf16.mxu0 0
    %3640 = vmatpush1.bf16.msra.mxu0 0
    %3641 = vmatprep.subr.bf16.mxu0 0
    %3642 = vmatpush1.bf16.msra.mxu0 0
    %3643 = vmatprep.subr.bf16.mxu0 0
    %3644 = vmatpush1.bf16.msra.mxu0 0
    %3645 = vmatprep.subr.bf16.mxu0 0
    %3646 = vmatpush1.bf16.msra.mxu0 0
    %3647 = vmatprep.subr.bf16.mxu0 0
    %3648 = vmatpush1.bf16.msra.mxu0 0
    %3649 = vmatprep.subr.bf16.mxu0 0
    %3650 = vmatpush1.bf16.msra.mxu0 0
    %3651 = vmatprep.subr.bf16.mxu0 0
    %3652 = vmatpush1.bf16.msra.mxu0 0
    %3653 = vmatprep.subr.bf16.mxu0 0
    %3654 = vmatpush1.bf16.msra.mxu0 0
    %3655 = vmatprep.subr.bf16.mxu0 0
    %3656 = vmatpush1.bf16.msra.mxu0 0
    %3657 = vmatprep.mubr.bf16.mxu0 0
    %3658 = vmatmul.mubr.bf16.gmra.mrb[0].mxu0 %v3614
    %v3659 = vpop.f32.mrb[0].mxu0
    %v3660 = vadd.f32 0.0, %v3659
    %v3661 = vpop.f32.mrb[0].mxu0
    %v3662 = vpop.f32.mrb[0].mxu0
    %v3663 = vadd.f32 0.0, %v3662
    %v3664 = vpop.f32.mrb[0].mxu0
    %3665 = vmatprep.mubr.bf16.mxu0 0
    %3666 = vmatmul.mubr.bf16.gmra.mrb[0].mxu0 %v3617
    %v3667 = vpop.f32.mrb[0].mxu0
    %v3668 = vadd.f32 0.0, %v3667
    %v3669 = vpop.f32.mrb[0].mxu0
    %v3670 = vpop.f32.mrb[0].mxu0
    %v3671 = vadd.f32 0.0, %v3670
    %v3672 = vpop.f32.mrb[0].mxu0
    %3673 = vmatprep.mubr.bf16.mxu0 0
    %3674 = vmatmul.mubr.bf16.gmra.mrb[0].mxu0 %v3620
    %v3675 = vpop.f32.mrb[0].mxu0
    %v3676 = vadd.f32 0.0, %v3675
    %v3677 = vpop.f32.mrb[0].mxu0
    %v3678 = vpop.f32.mrb[0].mxu0
    %v3679 = vadd.f32 0.0, %v3678
    %v3680 = vpop.f32.mrb[0].mxu0
    %3681 = vmatprep.mubr.bf16.mxu0 0
    %3682 = vmatmul.mubr.bf16.gmra.mrb[0].mxu0 %v3623
    %v3683 = vpop.f32.mrb[0].mxu0
    %v3684 = vadd.f32 0.0, %v3683
    %v3685 = vpop.f32.mrb[0].mxu0
    %v3686 = vpop.f32.mrb[0].mxu0
    %v3687 = vadd.f32 0.0, %v3686
    %v3688 = vpop.f32.mrb[0].mxu0
    %3689 = vdwg.mxu0
    %v3690 = vadd.f32 %v3315, %v3660
    %v3691 = vadd.f32 %v3316, %v3663
    %v3692 = vadd.f32 %v3317, %v3668
    %v3693 = vadd.f32 %v3318, %v3671
    %v3694 = vadd.f32 %v3319, %v3676
    %v3695 = vadd.f32 %v3320, %v3679
    %v3696 = vadd.f32 %v3321, %v3684
    %v3697 = vadd.f32 %v3322, %v3687
    %v3698 = vadd.f32 %v52, %v2210
    %v3699 = vadd.f32 %v53, %v2211
    %v3700 = vadd.f32 %v54, %v2212
    %v3701 = vadd.f32 %v55, %v2213
    %v3702 = vadd.f32 %v56, %v2214
    %v3703 = vadd.f32 %v57, %v2215
    %v3704 = vadd.f32 %v58, %v2216
    %v3705 = vadd.f32 %v59, %v2217
    %v3706 = vadd.f32 %v60, %v3690
    %v3707 = vadd.f32 %v61, %v3691
    %v3708 = vadd.f32 %v62, %v3692
    %v3709 = vadd.f32 %v63, %v3693
    %v3710 = vadd.f32 %v64, %v3694
    %v3711 = vadd.f32 %v65, %v3695
    %v3712 = vadd.f32 %v66, %v3696
    %v3713 = vadd.f32 %v67, %v3697
    %v3714 = vld [vmem:[%s5] sm:$0x1]
    %v3716 = vlaneseq
    %v3717 = vshrl.u32 %v3716, 7
    %v3718 = vsub.s32 0, %v3717
    %v3719 = vrot.slane %v3714, %v3718
    %v3721 = vadd.f32 %v3698, %v3719
    %v3722 = vadd.f32 %v3699, %v3719
    %v3723 = vadd.f32 %v3700, %v3719
    %v3724 = vadd.f32 %v3701, %v3719
    %v3725 = vadd.f32 %v3702, %v3719
    %v3726 = vadd.f32 %v3703, %v3719
    %v3727 = vadd.f32 %v3704, %v3719
    %v3728 = vadd.f32 %v3705, %v3719
    %v3729 = vadd.f32 %v3706, %v3719
    %v3730 = vadd.f32 %v3707, %v3719
    %v3731 = vadd.f32 %v3708, %v3719
    %v3732 = vadd.f32 %v3709, %v3719
    %v3733 = vadd.f32 %v3710, %v3719
    %v3734 = vadd.f32 %v3711, %v3719
    %v3735 = vadd.f32 %v3712, %v3719
    %v3736 = vadd.f32 %v3713, %v3719
    %v3737 = vld [vmem:[%s6] sm:$0x1]
    %v3738 = vld [vmem:[%s7] sm:$0x1]
    %3739 = vadd.xlane.f32.xlu0 %v3721
    %v3740 = vpop.xlane.xlu0 %3739
    %3741 = vadd.xlane.f32.xlu0 %v3722
    %v3742 = vpop.xlane.xlu0 %3741
    %3743 = vadd.xlane.f32.xlu0 %v3723
    %v3744 = vpop.xlane.xlu0 %3743
    %3745 = vadd.xlane.f32.xlu0 %v3724
    %v3746 = vpop.xlane.xlu0 %3745
    %3747 = vadd.xlane.f32.xlu0 %v3725
    %v3748 = vpop.xlane.xlu0 %3747
    %3749 = vadd.xlane.f32.xlu0 %v3726
    %v3750 = vpop.xlane.xlu0 %3749
    %3751 = vadd.xlane.f32.xlu0 %v3727
    %v3752 = vpop.xlane.xlu0 %3751
    %3753 = vadd.xlane.f32.xlu0 %v3728
    %v3754 = vpop.xlane.xlu0 %3753
    %3755 = vadd.xlane.f32.xlu0 %v3729
    %v3756 = vpop.xlane.xlu0 %3755
    %3757 = vadd.xlane.f32.xlu0 %v3730
    %v3758 = vpop.xlane.xlu0 %3757
    %3759 = vadd.xlane.f32.xlu0 %v3731
    %v3760 = vpop.xlane.xlu0 %3759
    %3761 = vadd.xlane.f32.xlu0 %v3732
    %v3762 = vpop.xlane.xlu0 %3761
    %3763 = vadd.xlane.f32.xlu0 %v3733
    %v3764 = vpop.xlane.xlu0 %3763
    %3765 = vadd.xlane.f32.xlu0 %v3734
    %v3766 = vpop.xlane.xlu0 %3765
    %3767 = vadd.xlane.f32.xlu0 %v3735
    %v3768 = vpop.xlane.xlu0 %3767
    %3769 = vadd.xlane.f32.xlu0 %v3736
    %v3770 = vpop.xlane.xlu0 %3769
    %v3771 = vmul.f32 %v3740, %v102
    %v3772 = vmul.f32 %v3742, %v102
    %v3773 = vmul.f32 %v3744, %v102
    %v3774 = vmul.f32 %v3746, %v102
    %v3775 = vmul.f32 %v3748, %v102
    %v3776 = vmul.f32 %v3750, %v102
    %v3777 = vmul.f32 %v3752, %v102
    %v3778 = vmul.f32 %v3754, %v102
    %v3779 = vmul.f32 %v3756, %v102
    %v3780 = vmul.f32 %v3758, %v102
    %v3781 = vmul.f32 %v3760, %v102
    %v3782 = vmul.f32 %v3762, %v102
    %v3783 = vmul.f32 %v3764, %v102
    %v3784 = vmul.f32 %v3766, %v102
    %v3785 = vmul.f32 %v3768, %v102
    %v3786 = vmul.f32 %v3770, %v102
    %v3787 = vsub.f32 %v3721, %v3771
    %v3788 = vsub.f32 %v3722, %v3772
    %v3789 = vsub.f32 %v3723, %v3773
    %v3790 = vsub.f32 %v3724, %v3774
    %v3791 = vsub.f32 %v3725, %v3775
    %v3792 = vsub.f32 %v3726, %v3776
    %v3793 = vsub.f32 %v3727, %v3777
    %v3794 = vsub.f32 %v3728, %v3778
    %v3795 = vsub.f32 %v3729, %v3779
    %v3796 = vsub.f32 %v3730, %v3780
    %v3797 = vsub.f32 %v3731, %v3781
    %v3798 = vsub.f32 %v3732, %v3782
    %v3799 = vsub.f32 %v3733, %v3783
    %v3800 = vsub.f32 %v3734, %v3784
    %v3801 = vsub.f32 %v3735, %v3785
    %v3802 = vsub.f32 %v3736, %v3786
    %v3803 = vmul.f32 %v3787, %v3787
    %v3804 = vmul.f32 %v3788, %v3788
    %v3805 = vmul.f32 %v3789, %v3789
    %v3806 = vmul.f32 %v3790, %v3790
    %v3807 = vmul.f32 %v3791, %v3791
    %v3808 = vmul.f32 %v3792, %v3792
    %v3809 = vmul.f32 %v3793, %v3793
    %v3810 = vmul.f32 %v3794, %v3794
    %v3811 = vmul.f32 %v3795, %v3795
    %v3812 = vmul.f32 %v3796, %v3796
    %v3813 = vmul.f32 %v3797, %v3797
    %v3814 = vmul.f32 %v3798, %v3798
    %v3815 = vmul.f32 %v3799, %v3799
    %v3816 = vmul.f32 %v3800, %v3800
    %v3817 = vmul.f32 %v3801, %v3801
    %v3818 = vmul.f32 %v3802, %v3802
    %3819 = vadd.xlane.f32.xlu0 %v3803
    %v3820 = vpop.xlane.xlu0 %3819
    %3821 = vadd.xlane.f32.xlu0 %v3804
    %v3822 = vpop.xlane.xlu0 %3821
    %3823 = vadd.xlane.f32.xlu0 %v3805
    %v3824 = vpop.xlane.xlu0 %3823
    %3825 = vadd.xlane.f32.xlu0 %v3806
    %v3826 = vpop.xlane.xlu0 %3825
    %3827 = vadd.xlane.f32.xlu0 %v3807
    %v3828 = vpop.xlane.xlu0 %3827
    %3829 = vadd.xlane.f32.xlu0 %v3808
    %v3830 = vpop.xlane.xlu0 %3829
    %3831 = vadd.xlane.f32.xlu0 %v3809
    %v3832 = vpop.xlane.xlu0 %3831
    %3833 = vadd.xlane.f32.xlu0 %v3810
    %v3834 = vpop.xlane.xlu0 %3833
    %3835 = vadd.xlane.f32.xlu0 %v3811
    %v3836 = vpop.xlane.xlu0 %3835
    %3837 = vadd.xlane.f32.xlu0 %v3812
    %v3838 = vpop.xlane.xlu0 %3837
    %3839 = vadd.xlane.f32.xlu0 %v3813
    %v3840 = vpop.xlane.xlu0 %3839
    %3841 = vadd.xlane.f32.xlu0 %v3814
    %v3842 = vpop.xlane.xlu0 %3841
    %3843 = vadd.xlane.f32.xlu0 %v3815
    %v3844 = vpop.xlane.xlu0 %3843
    %3845 = vadd.xlane.f32.xlu0 %v3816
    %v3846 = vpop.xlane.xlu0 %3845
    %3847 = vadd.xlane.f32.xlu0 %v3817
    %v3848 = vpop.xlane.xlu0 %3847
    %3849 = vadd.xlane.f32.xlu0 %v3818
    %v3850 = vpop.xlane.xlu0 %3849
    %v3851 = vmul.f32 %v3820, %v102
    %v3852 = vmul.f32 %v3822, %v102
    %v3853 = vmul.f32 %v3824, %v102
    %v3854 = vmul.f32 %v3826, %v102
    %v3855 = vmul.f32 %v3828, %v102
    %v3856 = vmul.f32 %v3830, %v102
    %v3857 = vmul.f32 %v3832, %v102
    %v3858 = vmul.f32 %v3834, %v102
    %v3859 = vmul.f32 %v3836, %v102
    %v3860 = vmul.f32 %v3838, %v102
    %v3861 = vmul.f32 %v3840, %v102
    %v3862 = vmul.f32 %v3842, %v102
    %v3863 = vmul.f32 %v3844, %v102
    %v3864 = vmul.f32 %v3846, %v102
    %v3865 = vmul.f32 %v3848, %v102
    %v3866 = vmul.f32 %v3850, %v102
    %v3867 = vadd.f32 %v3851, 1e-05
    %v3868 = vadd.f32 %v3852, 1e-05
    %v3869 = vadd.f32 %v3853, 1e-05
    %v3870 = vadd.f32 %v3854, 1e-05
    %v3871 = vadd.f32 %v3855, 1e-05
    %v3872 = vadd.f32 %v3856, 1e-05
    %v3873 = vadd.f32 %v3857, 1e-05
    %v3874 = vadd.f32 %v3858, 1e-05
    %v3875 = vadd.f32 %v3859, 1e-05
    %v3876 = vadd.f32 %v3860, 1e-05
    %v3877 = vadd.f32 %v3861, 1e-05
    %v3878 = vadd.f32 %v3862, 1e-05
    %v3879 = vadd.f32 %v3863, 1e-05
    %v3880 = vadd.f32 %v3864, 1e-05
    %v3881 = vadd.f32 %v3865, 1e-05
    %v3882 = vadd.f32 %v3866, 1e-05
    %v3883 = vrsqrt.pop %v3867
    %v3884 = vrsqrt.pop %v3868
    %v3885 = vrsqrt.pop %v3869
    %v3886 = vrsqrt.pop %v3870
    %v3887 = vrsqrt.pop %v3871
    %v3888 = vrsqrt.pop %v3872
    %v3889 = vrsqrt.pop %v3873
    %v3890 = vrsqrt.pop %v3874
    %v3891 = vrsqrt.pop %v3875
    %v3892 = vrsqrt.pop %v3876
    %v3893 = vrsqrt.pop %v3877
    %v3894 = vrsqrt.pop %v3878
    %v3895 = vrsqrt.pop %v3879
    %v3896 = vrsqrt.pop %v3880
    %v3897 = vrsqrt.pop %v3881
    %v3898 = vrsqrt.pop %v3882
    %v3899 = vmul.f32 %v3787, %v3883
    %v3900 = vmul.f32 %v3788, %v3884
    %v3901 = vmul.f32 %v3789, %v3885
    %v3902 = vmul.f32 %v3790, %v3886
    %v3903 = vmul.f32 %v3791, %v3887
    %v3904 = vmul.f32 %v3792, %v3888
    %v3905 = vmul.f32 %v3793, %v3889
    %v3906 = vmul.f32 %v3794, %v3890
    %v3907 = vmul.f32 %v3795, %v3891
    %v3908 = vmul.f32 %v3796, %v3892
    %v3909 = vmul.f32 %v3797, %v3893
    %v3910 = vmul.f32 %v3798, %v3894
    %v3911 = vmul.f32 %v3799, %v3895
    %v3912 = vmul.f32 %v3800, %v3896
    %v3913 = vmul.f32 %v3801, %v3897
    %v3914 = vmul.f32 %v3802, %v3898
    %v3916 = vlaneseq
    %v3917 = vshrl.u32 %v3916, 7
    %v3918 = vsub.s32 0, %v3917
    %v3919 = vrot.slane %v3737, %v3918
    %v3921 = vmul.f32 %v3899, %v3919
    %v3922 = vmul.f32 %v3900, %v3919
    %v3923 = vmul.f32 %v3901, %v3919
    %v3924 = vmul.f32 %v3902, %v3919
    %v3925 = vmul.f32 %v3903, %v3919
    %v3926 = vmul.f32 %v3904, %v3919
    %v3927 = vmul.f32 %v3905, %v3919
    %v3928 = vmul.f32 %v3906, %v3919
    %v3929 = vmul.f32 %v3907, %v3919
    %v3930 = vmul.f32 %v3908, %v3919
    %v3931 = vmul.f32 %v3909, %v3919
    %v3932 = vmul.f32 %v3910, %v3919
    %v3933 = vmul.f32 %v3911, %v3919
    %v3934 = vmul.f32 %v3912, %v3919
    %v3935 = vmul.f32 %v3913, %v3919
    %v3936 = vmul.f32 %v3914, %v3919
    %v3938 = vlaneseq
    %v3939 = vshrl.u32 %v3938, 7
    %v3940 = vsub.s32 0, %v3939
    %v3941 = vrot.slane %v3738, %v3940
    %v3943 = vadd.f32 %v3921, %v3941
    %v3944 = vadd.f32 %v3922, %v3941
    %v3945 = vadd.f32 %v3923, %v3941
    %v3946 = vadd.f32 %v3924, %v3941
    %v3947 = vadd.f32 %v3925, %v3941
    %v3948 = vadd.f32 %v3926, %v3941
    %v3949 = vadd.f32 %v3927, %v3941
    %v3950 = vadd.f32 %v3928, %v3941
    %v3951 = vadd.f32 %v3929, %v3941
    %v3952 = vadd.f32 %v3930, %v3941
    %v3953 = vadd.f32 %v3931, %v3941
    %v3954 = vadd.f32 %v3932, %v3941
    %v3955 = vadd.f32 %v3933, %v3941
    %v3956 = vadd.f32 %v3934, %v3941
    %v3957 = vadd.f32 %v3935, %v3941
    %v3958 = vadd.f32 %v3936, %v3941
    %v3959 = vpack.c.bf16 %v3944, %v3943
    %v3960 = vpack.c.bf16 %v3946, %v3945
    %v3961 = vpack.c.bf16 %v3948, %v3947
    %v3962 = vpack.c.bf16 %v3950, %v3949
    %v3963 = vpack.c.bf16 %v3952, %v3951
    %v3964 = vpack.c.bf16 %v3954, %v3953
    %v3965 = vpack.c.bf16 %v3956, %v3955
    %v3966 = vpack.c.bf16 %v3958, %v3957
    %v3967 = vld [vmem:[%s8] sm:$0xff]
    %v3968 = vld [vmem:[%s8 + $0x8] sm:$0xff]
    %v3969 = vld [vmem:[%s8 + $0x10] sm:$0xff]
    %v3970 = vld [vmem:[%s8 + $0x18] sm:$0xff]
    %v3971 = vld [vmem:[%s8 + $0x20] sm:$0xff]
    %v3972 = vld [vmem:[%s8 + $0x28] sm:$0xff]
    %v3973 = vld [vmem:[%s8 + $0x30] sm:$0xff]
    %v3974 = vld [vmem:[%s8 + $0x38] sm:$0xff]
    %v3975 = vld [vmem:[%s8 + $0x40] sm:$0xff]
    %v3976 = vld [vmem:[%s8 + $0x48] sm:$0xff]
    %v3977 = vld [vmem:[%s8 + $0x50] sm:$0xff]
    %v3978 = vld [vmem:[%s8 + $0x58] sm:$0xff]
    %v3979 = vld [vmem:[%s8 + $0x60] sm:$0xff]
    %v3980 = vld [vmem:[%s8 + $0x68] sm:$0xff]
    %v3981 = vld [vmem:[%s8 + $0x70] sm:$0xff]
    %v3982 = vld [vmem:[%s8 + $0x78] sm:$0xff]
    %v3983 = vld [vmem:[%s8 + $0x80] sm:$0xff]
    %v3984 = vld [vmem:[%s8 + $0x88] sm:$0xff]
    %v3985 = vld [vmem:[%s8 + $0x90] sm:$0xff]
    %v3986 = vld [vmem:[%s8 + $0x98] sm:$0xff]
    %v3987 = vld [vmem:[%s8 + $0xa0] sm:$0xff]
    %v3988 = vld [vmem:[%s8 + $0xa8] sm:$0xff]
    %v3989 = vld [vmem:[%s8 + $0xb0] sm:$0xff]
    %v3990 = vld [vmem:[%s8 + $0xb8] sm:$0xff]
    %v3991 = vld [vmem:[%s8 + $0xc0] sm:$0xff]
    %v3992 = vld [vmem:[%s8 + $0xc8] sm:$0xff]
    %v3993 = vld [vmem:[%s8 + $0xd0] sm:$0xff]
    %v3994 = vld [vmem:[%s8 + $0xd8] sm:$0xff]
    %v3995 = vld [vmem:[%s8 + $0xe0] sm:$0xff]
    %v3996 = vld [vmem:[%s8 + $0xe8] sm:$0xff]
    %v3997 = vld [vmem:[%s8 + $0xf0] sm:$0xff]
    %v3998 = vld [vmem:[%s8 + $0xf8] sm:$0xff]
    %v3999 = vld [vmem:[%s9] sm:$0xf]
    %v4001 = vlaneseq
    %v4002 = vshrl.u32 %v4001, 7
    %v4003 = vsub.s32 0, %v4002
    %v4004 = vrot.slane %v3999, %v4003
    %v4005 = vlaneseq
    %v4006 = vshrl.u32 %v4005, 7
    %v4007 = vsub.s32 1, %v4006
    %v4008 = vrot.slane %v3999, %v4007
    %v4009 = vlaneseq
    %v4010 = vshrl.u32 %v4009, 7
    %v4011 = vsub.s32 2, %v4010
    %v4012 = vrot.slane %v3999, %v4011
    %v4013 = vlaneseq
    %v4014 = vshrl.u32 %v4013, 7
    %v4015 = vsub.s32 3, %v4014
    %v4016 = vrot.slane %v3999, %v4015
    %v4053 = vunpack.c.l.b16 %v3967
    %v4054 = vunpack.c.h.b16 %v3967
    %v4055 = vunpack.c.l.b16 %v3968
    %v4056 = vunpack.c.h.b16 %v3968
    %v4057 = vunpack.c.l.b16 %v3969
    %v4058 = vunpack.c.h.b16 %v3969
    %v4059 = vunpack.c.l.b16 %v3970
    %v4060 = vunpack.c.h.b16 %v3970
    %v4061 = vunpack.c.l.b16 %v3971
    %v4062 = vunpack.c.h.b16 %v3971
    %v4063 = vunpack.c.l.b16 %v3972
    %v4064 = vunpack.c.h.b16 %v3972
    %v4065 = vunpack.c.l.b16 %v3973
    %v4066 = vunpack.c.h.b16 %v3973
    %v4067 = vunpack.c.l.b16 %v3974
    %v4068 = vunpack.c.h.b16 %v3974
    %v4069 = vunpack.c.l.b16 %v3975
    %v4070 = vunpack.c.h.b16 %v3975
    %v4071 = vunpack.c.l.b16 %v3976
    %v4072 = vunpack.c.h.b16 %v3976
    %v4073 = vunpack.c.l.b16 %v3977
    %v4074 = vunpack.c.h.b16 %v3977
    %v4075 = vunpack.c.l.b16 %v3978
    %v4076 = vunpack.c.h.b16 %v3978
    %v4077 = vunpack.c.l.b16 %v3979
    %v4078 = vunpack.c.h.b16 %v3979
    %v4079 = vunpack.c.l.b16 %v3980
    %v4080 = vunpack.c.h.b16 %v3980
    %v4081 = vunpack.c.l.b16 %v3981
    %v4082 = vunpack.c.h.b16 %v3981
    %v4083 = vunpack.c.l.b16 %v3982
    %v4084 = vunpack.c.h.b16 %v3982
    %v4085 = vunpack.c.l.b16 %v3983
    %v4086 = vunpack.c.h.b16 %v3983
    %v4087 = vunpack.c.l.b16 %v3984
    %v4088 = vunpack.c.h.b16 %v3984
    %v4089 = vunpack.c.l.b16 %v3985
    %v4090 = vunpack.c.h.b16 %v3985
    %v4091 = vunpack.c.l.b16 %v3986
    %v4092 = vunpack.c.h.b16 %v3986
    %v4093 = vunpack.c.l.b16 %v3987
    %v4094 = vunpack.c.h.b16 %v3987
    %v4095 = vunpack.c.l.b16 %v3988
    %v4096 = vunpack.c.h.b16 %v3988
    %v4097 = vunpack.c.l.b16 %v3989
    %v4098 = vunpack.c.h.b16 %v3989
    %v4099 = vunpack.c.l.b16 %v3990
    %v4100 = vunpack.c.h.b16 %v3990
    %v4101 = vunpack.c.l.b16 %v3991
    %v4102 = vunpack.c.h.b16 %v3991
    %v4103 = vunpack.c.l.b16 %v3992
    %v4104 = vunpack.c.h.b16 %v3992
    %v4105 = vunpack.c.l.b16 %v3993
    %v4106 = vunpack.c.h.b16 %v3993
    %v4107 = vunpack.c.l.b16 %v3994
    %v4108 = vunpack.c.h.b16 %v3994
    %v4109 = vunpack.c.l.b16 %v3995
    %v4110 = vunpack.c.h.b16 %v3995
    %v4111 = vunpack.c.l.b16 %v3996
    %v4112 = vunpack.c.h.b16 %v3996
    %v4113 = vunpack.c.l.b16 %v3997
    %v4114 = vunpack.c.h.b16 %v3997
    %v4115 = vunpack.c.l.b16 %v3998
    %v4116 = vunpack.c.h.b16 %v3998
    %v4117 = vpack.c.b16 %v4057, %v4053
    %v4118 = vpack.c.b16 %v4058, %v4054
    %v4119 = vpack.c.b16 %v4059, %v4055
    %v4120 = vpack.c.b16 %v4060, %v4056
    %v4121 = vpack.c.b16 %v4065, %v4061
    %v4122 = vpack.c.b16 %v4066, %v4062
    %v4123 = vpack.c.b16 %v4067, %v4063
    %v4124 = vpack.c.b16 %v4068, %v4064
    %v4125 = vpack.c.b16 %v4073, %v4069
    %v4126 = vpack.c.b16 %v4074, %v4070
    %v4127 = vpack.c.b16 %v4075, %v4071
    %v4128 = vpack.c.b16 %v4076, %v4072
    %v4129 = vpack.c.b16 %v4081, %v4077
    %v4130 = vpack.c.b16 %v4082, %v4078
    %v4131 = vpack.c.b16 %v4083, %v4079
    %v4132 = vpack.c.b16 %v4084, %v4080
    %v4133 = vpack.c.b16 %v4089, %v4085
    %v4134 = vpack.c.b16 %v4090, %v4086
    %v4135 = vpack.c.b16 %v4091, %v4087
    %v4136 = vpack.c.b16 %v4092, %v4088
    %v4137 = vpack.c.b16 %v4097, %v4093
    %v4138 = vpack.c.b16 %v4098, %v4094
    %v4139 = vpack.c.b16 %v4099, %v4095
    %v4140 = vpack.c.b16 %v4100, %v4096
    %v4141 = vpack.c.b16 %v4105, %v4101
    %v4142 = vpack.c.b16 %v4106, %v4102
    %v4143 = vpack.c.b16 %v4107, %v4103
    %v4144 = vpack.c.b16 %v4108, %v4104
    %v4145 = vpack.c.b16 %v4113, %v4109
    %v4146 = vpack.c.b16 %v4114, %v4110
    %v4147 = vpack.c.b16 %v4115, %v4111
    %v4148 = vpack.c.b16 %v4116, %v4112
    %4181 = vmatprep.subr.bf16.mxu0 %v4118
    %4182 = vmatpush1.bf16.msra.mxu0 %v4117
    %4183 = vmatprep.subr.bf16.mxu0 %v4122
    %4184 = vmatpush1.bf16.msra.mxu0 %v4121
    %4185 = vmatprep.subr.bf16.mxu0 %v4126
    %4186 = vmatpush1.bf16.msra.mxu0 %v4125
    %4187 = vmatprep.subr.bf16.mxu0 %v4130
    %4188 = vmatpush1.bf16.msra.mxu0 %v4129
    %4189 = vmatprep.subr.bf16.mxu0 %v4134
    %4190 = vmatpush1.bf16.msra.mxu0 %v4133
    %4191 = vmatprep.subr.bf16.mxu0 %v4138
    %4192 = vmatpush1.bf16.msra.mxu0 %v4137
    %4193 = vmatprep.subr.bf16.mxu0 %v4142
    %4194 = vmatpush1.bf16.msra.mxu0 %v4141
    %4195 = vmatprep.subr.bf16.mxu0 %v4146
    %4196 = vmatpush1.bf16.msra.mxu0 %v4145
    %4197 = vmatprep.subr.bf16.mxu0 0
    %4198 = vmatpush1.bf16.msra.mxu0 0
    %4199 = vmatprep.subr.bf16.mxu0 0
    %4200 = vmatpush1.bf16.msra.mxu0 0
    %4201 = vmatprep.subr.bf16.mxu0 0
    %4202 = vmatpush1.bf16.msra.mxu0 0
    %4203 = vmatprep.subr.bf16.mxu0 0
    %4204 = vmatpush1.bf16.msra.mxu0 0
    %4205 = vmatprep.subr.bf16.mxu0 0
    %4206 = vmatpush1.bf16.msra.mxu0 0
    %4207 = vmatprep.subr.bf16.mxu0 0
    %4208 = vmatpush1.bf16.msra.mxu0 0
    %4209 = vmatprep.subr.bf16.mxu0 0
    %4210 = vmatpush1.bf16.msra.mxu0 0
    %4211 = vmatprep.subr.bf16.mxu0 0
    %4212 = vmatpush1.bf16.msra.mxu0 0
    %4213 = vmatprep.mubr.bf16.mxu0 0
    %4214 = vmatmul.mubr.bf16.gmra.mrb[0].mxu0 %v3959
    %v4215 = vpop.f32.mrb[0].mxu0
    %v4216 = vadd.f32 %v4004, %v4215
    %v4217 = vpop.f32.mrb[0].mxu0
    %v4218 = vadd.f32 %v4008, %v4217
    %v4219 = vpop.f32.mrb[0].mxu0
    %v4220 = vadd.f32 %v4004, %v4219
    %v4221 = vpop.f32.mrb[0].mxu0
    %v4222 = vadd.f32 %v4008, %v4221
    %4223 = vmatprep.mubr.bf16.mxu0 0
    %4224 = vmatmul.mubr.bf16.gmra.mrb[0].mxu0 %v3960
    %v4225 = vpop.f32.mrb[0].mxu0
    %v4226 = vadd.f32 %v4004, %v4225
    %v4227 = vpop.f32.mrb[0].mxu0
    %v4228 = vadd.f32 %v4008, %v4227
    %v4229 = vpop.f32.mrb[0].mxu0
    %v4230 = vadd.f32 %v4004, %v4229
    %v4231 = vpop.f32.mrb[0].mxu0
    %v4232 = vadd.f32 %v4008, %v4231
    %4233 = vmatprep.mubr.bf16.mxu0 0
    %4234 = vmatmul.mubr.bf16.gmra.mrb[0].mxu0 %v3961
    %v4235 = vpop.f32.mrb[0].mxu0
    %v4236 = vadd.f32 %v4004, %v4235
    %v4237 = vpop.f32.mrb[0].mxu0
    %v4238 = vadd.f32 %v4008, %v4237
    %v4239 = vpop.f32.mrb[0].mxu0
    %v4240 = vadd.f32 %v4004, %v4239
    %v4241 = vpop.f32.mrb[0].mxu0
    %v4242 = vadd.f32 %v4008, %v4241
    %4243 = vmatprep.mubr.bf16.mxu0 0
    %4244 = vmatmul.mubr.bf16.gmra.mrb[0].mxu0 %v3962
    %v4245 = vpop.f32.mrb[0].mxu0
    %v4246 = vadd.f32 %v4004, %v4245
    %v4247 = vpop.f32.mrb[0].mxu0
    %v4248 = vadd.f32 %v4008, %v4247
    %v4249 = vpop.f32.mrb[0].mxu0
    %v4250 = vadd.f32 %v4004, %v4249
    %v4251 = vpop.f32.mrb[0].mxu0
    %v4252 = vadd.f32 %v4008, %v4251
    %4253 = vmatprep.mubr.bf16.mxu0 0
    %4254 = vmatmul.mubr.bf16.gmra.mrb[0].mxu0 %v3963
    %v4255 = vpop.f32.mrb[0].mxu0
    %v4256 = vadd.f32 %v4004, %v4255
    %v4257 = vpop.f32.mrb[0].mxu0
    %v4258 = vadd.f32 %v4008, %v4257
    %v4259 = vpop.f32.mrb[0].mxu0
    %v4260 = vadd.f32 %v4004, %v4259
    %v4261 = vpop.f32.mrb[0].mxu0
    %v4262 = vadd.f32 %v4008, %v4261
    %4263 = vmatprep.mubr.bf16.mxu0 0
    %4264 = vmatmul.mubr.bf16.gmra.mrb[0].mxu0 %v3964
    %v4265 = vpop.f32.mrb[0].mxu0
    %v4266 = vadd.f32 %v4004, %v4265
    %v4267 = vpop.f32.mrb[0].mxu0
    %v4268 = vadd.f32 %v4008, %v4267
    %v4269 = vpop.f32.mrb[0].mxu0
    %v4270 = vadd.f32 %v4004, %v4269
    %v4271 = vpop.f32.mrb[0].mxu0
    %v4272 = vadd.f32 %v4008, %v4271
    %4273 = vmatprep.mubr.bf16.mxu0 0
    %4274 = vmatmul.mubr.bf16.gmra.mrb[0].mxu0 %v3965
    %v4275 = vpop.f32.mrb[0].mxu0
    %v4276 = vadd.f32 %v4004, %v4275
    %v4277 = vpop.f32.mrb[0].mxu0
    %v4278 = vadd.f32 %v4008, %v4277
    %v4279 = vpop.f32.mrb[0].mxu0
    %v4280 = vadd.f32 %v4004, %v4279
    %v4281 = vpop.f32.mrb[0].mxu0
    %v4282 = vadd.f32 %v4008, %v4281
    %4283 = vmatprep.mubr.bf16.mxu0 0
    %4284 = vmatmul.mubr.bf16.gmra.mrb[0].mxu0 %v3966
    %v4285 = vpop.f32.mrb[0].mxu0
    %v4286 = vadd.f32 %v4004, %v4285
    %v4287 = vpop.f32.mrb[0].mxu0
    %v4288 = vadd.f32 %v4008, %v4287
    %v4289 = vpop.f32.mrb[0].mxu0
    %v4290 = vadd.f32 %v4004, %v4289
    %v4291 = vpop.f32.mrb[0].mxu0
    %v4292 = vadd.f32 %v4008, %v4291
    %4293 = vdwg.mxu0
    %4294 = vmatprep.subr.bf16.mxu0 %v4120
    %4295 = vmatpush1.bf16.msra.mxu0 %v4119
    %4296 = vmatprep.subr.bf16.mxu0 %v4124
    %4297 = vmatpush1.bf16.msra.mxu0 %v4123
    %4298 = vmatprep.subr.bf16.mxu0 %v4128
    %4299 = vmatpush1.bf16.msra.mxu0 %v4127
    %4300 = vmatprep.subr.bf16.mxu0 %v4132
    %4301 = vmatpush1.bf16.msra.mxu0 %v4131
    %4302 = vmatprep.subr.bf16.mxu0 %v4136
    %4303 = vmatpush1.bf16.msra.mxu0 %v4135
    %4304 = vmatprep.subr.bf16.mxu0 %v4140
    %4305 = vmatpush1.bf16.msra.mxu0 %v4139
    %4306 = vmatprep.subr.bf16.mxu0 %v4144
    %4307 = vmatpush1.bf16.msra.mxu0 %v4143
    %4308 = vmatprep.subr.bf16.mxu0 %v4148
    %4309 = vmatpush1.bf16.msra.mxu0 %v4147
    %4310 = vmatprep.subr.bf16.mxu0 0
    %4311 = vmatpush1.bf16.msra.mxu0 0
    %4312 = vmatprep.subr.bf16.mxu0 0
    %4313 = vmatpush1.bf16.msra.mxu0 0
    %4314 = vmatprep.subr.bf16.mxu0 0
    %4315 = vmatpush1.bf16.msra.mxu0 0
    %4316 = vmatprep.subr.bf16.mxu0 0
    %4317 = vmatpush1.bf16.msra.mxu0 0
    %4318 = vmatprep.subr.bf16.mxu0 0
    %4319 = vmatpush1.bf16.msra.mxu0 0
    %4320 = vmatprep.subr.bf16.mxu0 0
    %4321 = vmatpush1.bf16.msra.mxu0 0
    %4322 = vmatprep.subr.bf16.mxu0 0
    %4323 = vmatpush1.bf16.msra.mxu0 0
    %4324 = vmatprep.subr.bf16.mxu0 0
    %4325 = vmatpush1.bf16.msra.mxu0 0
    %4326 = vmatprep.mubr.bf16.mxu0 0
    %4327 = vmatmul.mubr.bf16.gmra.mrb[0].mxu0 %v3959
    %v4328 = vpop.f32.mrb[0].mxu0
    %v4329 = vadd.f32 %v4012, %v4328
    %v4330 = vpop.f32.mrb[0].mxu0
    %v4331 = vadd.f32 %v4016, %v4330
    %v4332 = vpop.f32.mrb[0].mxu0
    %v4333 = vadd.f32 %v4012, %v4332
    %v4334 = vpop.f32.mrb[0].mxu0
    %v4335 = vadd.f32 %v4016, %v4334
    %4336 = vmatprep.mubr.bf16.mxu0 0
    %4337 = vmatmul.mubr.bf16.gmra.mrb[0].mxu0 %v3960
    %v4338 = vpop.f32.mrb[0].mxu0
    %v4339 = vadd.f32 %v4012, %v4338
    %v4340 = vpop.f32.mrb[0].mxu0
    %v4341 = vadd.f32 %v4016, %v4340
    %v4342 = vpop.f32.mrb[0].mxu0
    %v4343 = vadd.f32 %v4012, %v4342
    %v4344 = vpop.f32.mrb[0].mxu0
    %v4345 = vadd.f32 %v4016, %v4344
    %4346 = vmatprep.mubr.bf16.mxu0 0
    %4347 = vmatmul.mubr.bf16.gmra.mrb[0].mxu0 %v3961
    %v4348 = vpop.f32.mrb[0].mxu0
    %v4349 = vadd.f32 %v4012, %v4348
    %v4350 = vpop.f32.mrb[0].mxu0
    %v4351 = vadd.f32 %v4016, %v4350
    %v4352 = vpop.f32.mrb[0].mxu0
    %v4353 = vadd.f32 %v4012, %v4352
    %v4354 = vpop.f32.mrb[0].mxu0
    %v4355 = vadd.f32 %v4016, %v4354
    %4356 = vmatprep.mubr.bf16.mxu0 0
    %4357 = vmatmul.mubr.bf16.gmra.mrb[0].mxu0 %v3962
    %v4358 = vpop.f32.mrb[0].mxu0
    %v4359 = vadd.f32 %v4012, %v4358
    %v4360 = vpop.f32.mrb[0].mxu0
    %v4361 = vadd.f32 %v4016, %v4360
    %v4362 = vpop.f32.mrb[0].mxu0
    %v4363 = vadd.f32 %v4012, %v4362
    %v4364 = vpop.f32.mrb[0].mxu0
    %v4365 = vadd.f32 %v4016, %v4364
    %4366 = vmatprep.mubr.bf16.mxu0 0
    %4367 = vmatmul.mubr.bf16.gmra.mrb[0].mxu0 %v3963
    %v4368 = vpop.f32.mrb[0].mxu0
    %v4369 = vadd.f32 %v4012, %v4368
    %v4370 = vpop.f32.mrb[0].mxu0
    %v4371 = vadd.f32 %v4016, %v4370
    %v4372 = vpop.f32.mrb[0].mxu0
    %v4373 = vadd.f32 %v4012, %v4372
    %v4374 = vpop.f32.mrb[0].mxu0
    %v4375 = vadd.f32 %v4016, %v4374
    %4376 = vmatprep.mubr.bf16.mxu0 0
    %4377 = vmatmul.mubr.bf16.gmra.mrb[0].mxu0 %v3964
    %v4378 = vpop.f32.mrb[0].mxu0
    %v4379 = vadd.f32 %v4012, %v4378
    %v4380 = vpop.f32.mrb[0].mxu0
    %v4381 = vadd.f32 %v4016, %v4380
    %v4382 = vpop.f32.mrb[0].mxu0
    %v4383 = vadd.f32 %v4012, %v4382
    %v4384 = vpop.f32.mrb[0].mxu0
    %v4385 = vadd.f32 %v4016, %v4384
    %4386 = vmatprep.mubr.bf16.mxu0 0
    %4387 = vmatmul.mubr.bf16.gmra.mrb[0].mxu0 %v3965
    %v4388 = vpop.f32.mrb[0].mxu0
    %v4389 = vadd.f32 %v4012, %v4388
    %v4390 = vpop.f32.mrb[0].mxu0
    %v4391 = vadd.f32 %v4016, %v4390
    %v4392 = vpop.f32.mrb[0].mxu0
    %v4393 = vadd.f32 %v4012, %v4392
    %v4394 = vpop.f32.mrb[0].mxu0
    %v4395 = vadd.f32 %v4016, %v4394
    %4396 = vmatprep.mubr.bf16.mxu0 0
    %4397 = vmatmul.mubr.bf16.gmra.mrb[0].mxu0 %v3966
    %v4398 = vpop.f32.mrb[0].mxu0
    %v4399 = vadd.f32 %v4012, %v4398
    %v4400 = vpop.f32.mrb[0].mxu0
    %v4401 = vadd.f32 %v4016, %v4400
    %v4402 = vpop.f32.mrb[0].mxu0
    %v4403 = vadd.f32 %v4012, %v4402
    %v4404 = vpop.f32.mrb[0].mxu0
    %v4405 = vadd.f32 %v4016, %v4404
    %4406 = vdwg.mxu0
    %4407 = vst [vmem:[#allocation2] sm:$0xff] 0.0
    %4408 = vst [vmem:[#allocation2 + $0x8] sm:$0xff] 0.0
    %4409 = vst [vmem:[#allocation2 + $0x10] sm:$0xff] 0.0
    %4410 = vst [vmem:[#allocation2 + $0x18] sm:$0xff] 0.0
    %4411 = vst [vmem:[#allocation2 + $0x20] sm:$0xff] 0.0
    %4412 = vst [vmem:[#allocation2 + $0x28] sm:$0xff] 0.0
    %4413 = vst [vmem:[#allocation2 + $0x30] sm:$0xff] 0.0
    %4414 = vst [vmem:[#allocation2 + $0x38] sm:$0xff] 0.0
    %4415 = vst [vmem:[#allocation2 + $0x240] sm:$0xff] 0.0
    %4416 = vst [vmem:[#allocation2 + $0x248] sm:$0xff] 0.0
    %4417 = vst [vmem:[#allocation2 + $0x250] sm:$0xff] 0.0
    %4418 = vst [vmem:[#allocation2 + $0x258] sm:$0xff] 0.0
    %4419 = vst [vmem:[#allocation2 + $0x260] sm:$0xff] 0.0
    %4420 = vst [vmem:[#allocation2 + $0x268] sm:$0xff] 0.0
    %4421 = vst [vmem:[#allocation2 + $0x270] sm:$0xff] 0.0
    %4422 = vst [vmem:[#allocation2 + $0x278] sm:$0xff] 0.0
    %4423 = vst [vmem:[#allocation2 + $0x40] sm:$0xff] %v4216
    %4424 = vst [vmem:[#allocation2 + $0x48] sm:$0xff] %v4218
    %4425 = vst [vmem:[#allocation2 + $0x50] sm:$0xff] %v4329
    %4426 = vst [vmem:[#allocation2 + $0x58] sm:$0xff] %v4331
    %4427 = vst [vmem:[#allocation2 + $0x60] sm:$0xff] %v4220
    %4428 = vst [vmem:[#allocation2 + $0x68] sm:$0xff] %v4222
    %4429 = vst [vmem:[#allocation2 + $0x70] sm:$0xff] %v4333
    %4430 = vst [vmem:[#allocation2 + $0x78] sm:$0xff] %v4335
    %4431 = vst [vmem:[#allocation2 + $0x80] sm:$0xff] %v4226
    %4432 = vst [vmem:[#allocation2 + $0x88] sm:$0xff] %v4228
    %4433 = vst [vmem:[#allocation2 + $0x90] sm:$0xff] %v4339
    %4434 = vst [vmem:[#allocation2 + $0x98] sm:$0xff] %v4341
    %4435 = vst [vmem:[#allocation2 + $0xa0] sm:$0xff] %v4230
    %4436 = vst [vmem:[#allocation2 + $0xa8] sm:$0xff] %v4232
    %4437 = vst [vmem:[#allocation2 + $0xb0] sm:$0xff] %v4343
    %4438 = vst [vmem:[#allocation2 + $0xb8] sm:$0xff] %v4345
    %4439 = vst [vmem:[#allocation2 + $0xc0] sm:$0xff] %v4236
    %4440 = vst [vmem:[#allocation2 + $0xc8] sm:$0xff] %v4238
    %4441 = vst [vmem:[#allocation2 + $0xd0] sm:$0xff] %v4349
    %4442 = vst [vmem:[#allocation2 + $0xd8] sm:$0xff] %v4351
    %4443 = vst [vmem:[#allocation2 + $0xe0] sm:$0xff] %v4240
    %4444 = vst [vmem:[#allocation2 + $0xe8] sm:$0xff] %v4242
    %4445 = vst [vmem:[#allocation2 + $0xf0] sm:$0xff] %v4353
    %4446 = vst [vmem:[#allocation2 + $0xf8] sm:$0xff] %v4355
    %4447 = vst [vmem:[#allocation2 + $0x100] sm:$0xff] %v4246
    %4448 = vst [vmem:[#allocation2 + $0x108] sm:$0xff] %v4248
    %4449 = vst [vmem:[#allocation2 + $0x110] sm:$0xff] %v4359
    %4450 = vst [vmem:[#allocation2 + $0x118] sm:$0xff] %v4361
    %4451 = vst [vmem:[#allocation2 + $0x120] sm:$0xff] %v4250
    %4452 = vst [vmem:[#allocation2 + $0x128] sm:$0xff] %v4252
    %4453 = vst [vmem:[#allocation2 + $0x130] sm:$0xff] %v4363
    %4454 = vst [vmem:[#allocation2 + $0x138] sm:$0xff] %v4365
    %4455 = vst [vmem:[#allocation2 + $0x140] sm:$0xff] %v4256
    %4456 = vst [vmem:[#allocation2 + $0x148] sm:$0xff] %v4258
    %4457 = vst [vmem:[#allocation2 + $0x150] sm:$0xff] %v4369
    %4458 = vst [vmem:[#allocation2 + $0x158] sm:$0xff] %v4371
    %4459 = vst [vmem:[#allocation2 + $0x160] sm:$0xff] %v4260
    %4460 = vst [vmem:[#allocation2 + $0x168] sm:$0xff] %v4262
    %4461 = vst [vmem:[#allocation2 + $0x170] sm:$0xff] %v4373
    %4462 = vst [vmem:[#allocation2 + $0x178] sm:$0xff] %v4375
    %4463 = vst [vmem:[#allocation2 + $0x180] sm:$0xff] %v4266
    %4464 = vst [vmem:[#allocation2 + $0x188] sm:$0xff] %v4268
    %4465 = vst [vmem:[#allocation2 + $0x190] sm:$0xff] %v4379
    %4466 = vst [vmem:[#allocation2 + $0x198] sm:$0xff] %v4381
    %4467 = vst [vmem:[#allocation2 + $0x1a0] sm:$0xff] %v4270
    %4468 = vst [vmem:[#allocation2 + $0x1a8] sm:$0xff] %v4272
    %4469 = vst [vmem:[#allocation2 + $0x1b0] sm:$0xff] %v4383
    %4470 = vst [vmem:[#allocation2 + $0x1b8] sm:$0xff] %v4385
    %4471 = vst [vmem:[#allocation2 + $0x1c0] sm:$0xff] %v4276
    %4472 = vst [vmem:[#allocation2 + $0x1c8] sm:$0xff] %v4278
    %4473 = vst [vmem:[#allocation2 + $0x1d0] sm:$0xff] %v4389
    %4474 = vst [vmem:[#allocation2 + $0x1d8] sm:$0xff] %v4391
    %4475 = vst [vmem:[#allocation2 + $0x1e0] sm:$0xff] %v4280
    %4476 = vst [vmem:[#allocation2 + $0x1e8] sm:$0xff] %v4282
    %4477 = vst [vmem:[#allocation2 + $0x1f0] sm:$0xff] %v4393
    %4478 = vst [vmem:[#allocation2 + $0x1f8] sm:$0xff] %v4395
    %4479 = vst [vmem:[#allocation2 + $0x200] sm:$0xff] %v4286
    %4480 = vst [vmem:[#allocation2 + $0x208] sm:$0xff] %v4288
    %4481 = vst [vmem:[#allocation2 + $0x210] sm:$0xff] %v4399
    %4482 = vst [vmem:[#allocation2 + $0x218] sm:$0xff] %v4401
    %4483 = vst [vmem:[#allocation2 + $0x220] sm:$0xff] %v4290
    %4484 = vst [vmem:[#allocation2 + $0x228] sm:$0xff] %v4292
    %4485 = vst [vmem:[#allocation2 + $0x230] sm:$0xff] %v4403
    %4486 = vst [vmem:[#allocation2 + $0x238] sm:$0xff] %v4405
    %v4487 = vld [vmem:[#allocation2] sm:$0x80]
    %v4488 = vld [vmem:[#allocation2 + $0x8] sm:$0x80]
    %v4489 = vld [vmem:[#allocation2 + $0x10] sm:$0x80]
    %v4490 = vld [vmem:[#allocation2 + $0x18] sm:$0x80]
    %v4491 = vld [vmem:[#allocation2 + $0x20] sm:$0xff]
    %v4492 = vld [vmem:[#allocation2 + $0x28] sm:$0xff]
    %v4493 = vld [vmem:[#allocation2 + $0x30] sm:$0xff]
    %v4494 = vld [vmem:[#allocation2 + $0x38] sm:$0xff]
    %v4495 = vld [vmem:[#allocation2 + $0x40] sm:$0xff]
    %v4496 = vld [vmem:[#allocation2 + $0x48] sm:$0xff]
    %v4497 = vld [vmem:[#allocation2 + $0x50] sm:$0xff]
    %v4498 = vld [vmem:[#allocation2 + $0x58] sm:$0xff]
    %v4499 = vld [vmem:[#allocation2 + $0x60] sm:$0xff]
    %v4500 = vld [vmem:[#allocation2 + $0x68] sm:$0xff]
    %v4501 = vld [vmem:[#allocation2 + $0x70] sm:$0xff]
    %v4502 = vld [vmem:[#allocation2 + $0x78] sm:$0xff]
    %v4503 = vld [vmem:[#allocation2 + $0x80] sm:$0xff]
    %v4504 = vld [vmem:[#allocation2 + $0x88] sm:$0xff]
    %v4505 = vld [vmem:[#allocation2 + $0x90] sm:$0xff]
    %v4506 = vld [vmem:[#allocation2 + $0x98] sm:$0xff]
    %v4507 = vld [vmem:[#allocation2 + $0xa0] sm:$0xff]
    %v4508 = vld [vmem:[#allocation2 + $0xa8] sm:$0xff]
    %v4509 = vld [vmem:[#allocation2 + $0xb0] sm:$0xff]
    %v4510 = vld [vmem:[#allocation2 + $0xb8] sm:$0xff]
    %v4511 = vld [vmem:[#allocation2 + $0xc0] sm:$0xff]
    %v4512 = vld [vmem:[#allocation2 + $0xc8] sm:$0xff]
    %v4513 = vld [vmem:[#allocation2 + $0xd0] sm:$0xff]
    %v4514 = vld [vmem:[#allocation2 + $0xd8] sm:$0xff]
    %v4515 = vld [vmem:[#allocation2 + $0xe0] sm:$0xff]
    %v4516 = vld [vmem:[#allocation2 + $0xe8] sm:$0xff]
    %v4517 = vld [vmem:[#allocation2 + $0xf0] sm:$0xff]
    %v4518 = vld [vmem:[#allocation2 + $0xf8] sm:$0xff]
    %v4519 = vld [vmem:[#allocation2 + $0x100] sm:$0xff]
    %v4520 = vld [vmem:[#allocation2 + $0x108] sm:$0xff]
    %v4521 = vld [vmem:[#allocation2 + $0x110] sm:$0xff]
    %v4522 = vld [vmem:[#allocation2 + $0x118] sm:$0xff]
    %v4523 = vld [vmem:[#allocation2 + $0x120] sm:$0xff]
    %v4524 = vld [vmem:[#allocation2 + $0x128] sm:$0xff]
    %v4525 = vld [vmem:[#allocation2 + $0x130] sm:$0xff]
    %v4526 = vld [vmem:[#allocation2 + $0x138] sm:$0xff]
    %v4527 = vld [vmem:[#allocation2 + $0x140] sm:$0xff]
    %v4528 = vld [vmem:[#allocation2 + $0x148] sm:$0xff]
    %v4529 = vld [vmem:[#allocation2 + $0x150] sm:$0xff]
    %v4530 = vld [vmem:[#allocation2 + $0x158] sm:$0xff]
    %v4531 = vld [vmem:[#allocation2 + $0x160] sm:$0xff]
    %v4532 = vld [vmem:[#allocation2 + $0x168] sm:$0xff]
    %v4533 = vld [vmem:[#allocation2 + $0x170] sm:$0xff]
    %v4534 = vld [vmem:[#allocation2 + $0x178] sm:$0xff]
    %v4535 = vld [vmem:[#allocation2 + $0x180] sm:$0xff]
    %v4536 = vld [vmem:[#allocation2 + $0x188] sm:$0xff]
    %v4537 = vld [vmem:[#allocation2 + $0x190] sm:$0xff]
    %v4538 = vld [vmem:[#allocation2 + $0x198] sm:$0xff]
    %v4539 = vld [vmem:[#allocation2 + $0x1a0] sm:$0xff]
    %v4540 = vld [vmem:[#allocation2 + $0x1a8] sm:$0xff]
    %v4541 = vld [vmem:[#allocation2 + $0x1b0] sm:$0xff]
    %v4542 = vld [vmem:[#allocation2 + $0x1b8] sm:$0xff]
    %v4543 = vld [vmem:[#allocation2 + $0x1c0] sm:$0xff]
    %v4544 = vld [vmem:[#allocation2 + $0x1c8] sm:$0xff]
    %v4545 = vld [vmem:[#allocation2 + $0x1d0] sm:$0xff]
    %v4546 = vld [vmem:[#allocation2 + $0x1d8] sm:$0xff]
    %v4547 = vld [vmem:[#allocation2 + $0x1e0] sm:$0xff]
    %v4548 = vld [vmem:[#allocation2 + $0x1e8] sm:$0xff]
    %v4549 = vld [vmem:[#allocation2 + $0x1f0] sm:$0xff]
    %v4550 = vld [vmem:[#allocation2 + $0x1f8] sm:$0xff]
    %v4551 = vld [vmem:[#allocation2 + $0x200] sm:$0x7f]
    %v4552 = vld [vmem:[#allocation2 + $0x208] sm:$0x7f]
    %v4553 = vld [vmem:[#allocation2 + $0x210] sm:$0x7f]
    %v4554 = vld [vmem:[#allocation2 + $0x218] sm:$0x7f]
    %v4555 = vld [vmem:[%s12] sm:$0xff]
    %v4556 = vld [vmem:[%s12 + $0x8] sm:$0xff]
    %v4557 = vld [vmem:[%s12 + $0x10] sm:$0xff]
    %v4558 = vld [vmem:[%s12 + $0x18] sm:$0xff]
    %v4559 = vld [vmem:[%s12 + $0x20] sm:$0xff]
    %v4560 = vld [vmem:[%s12 + $0x28] sm:$0xff]
    %v4561 = vld [vmem:[%s12 + $0x30] sm:$0xff]
    %v4562 = vld [vmem:[%s12 + $0x38] sm:$0xff]
    %v4563 = vld [vmem:[%s12 + $0x40] sm:$0xff]
    %v4564 = vld [vmem:[%s12 + $0x48] sm:$0xff]
    %v4565 = vld [vmem:[%s12 + $0x50] sm:$0xff]
    %v4566 = vld [vmem:[%s12 + $0x58] sm:$0xff]
    %v4567 = vld [vmem:[%s12 + $0x60] sm:$0xff]
    %v4568 = vld [vmem:[%s12 + $0x68] sm:$0xff]
    %v4569 = vld [vmem:[%s12 + $0x70] sm:$0xff]
    %v4570 = vld [vmem:[%s12 + $0x78] sm:$0xff]
    %4572 = vset.pattern.permute.xlu0 0
    %4573 = vperm.xlu0 %4572, %v4555
    %v4574 = vpop.permute.xlu0 %4573
    %4576 = vset.pattern.permute.xlu0 0
    %4577 = vperm.xlu0 %4576, %v4556
    %v4578 = vpop.permute.xlu0 %4577
    %4580 = vset.pattern.permute.xlu0 0
    %4581 = vperm.xlu0 %4580, %v4557
    %v4582 = vpop.permute.xlu0 %4581
    %4584 = vset.pattern.permute.xlu0 0
    %4585 = vperm.xlu0 %4584, %v4558
    %v4586 = vpop.permute.xlu0 %4585
    %4588 = vset.pattern.permute.xlu0 0
    %4589 = vperm.xlu0 %4588, %v4559
    %v4590 = vpop.permute.xlu0 %4589
    %4592 = vset.pattern.permute.xlu0 0
    %4593 = vperm.xlu0 %4592, %v4560
    %v4594 = vpop.permute.xlu0 %4593
    %4596 = vset.pattern.permute.xlu0 0
    %4597 = vperm.xlu0 %4596, %v4561
    %v4598 = vpop.permute.xlu0 %4597
    %4600 = vset.pattern.permute.xlu0 0
    %4601 = vperm.xlu0 %4600, %v4562
    %v4602 = vpop.permute.xlu0 %4601
    %4604 = vset.pattern.permute.xlu0 0
    %4605 = vperm.xlu0 %4604, %v4563
    %v4606 = vpop.permute.xlu0 %4605
    %4608 = vset.pattern.permute.xlu0 0
    %4609 = vperm.xlu0 %4608, %v4564
    %v4610 = vpop.permute.xlu0 %4609
    %4612 = vset.pattern.permute.xlu0 0
    %4613 = vperm.xlu0 %4612, %v4565
    %v4614 = vpop.permute.xlu0 %4613
    %4616 = vset.pattern.permute.xlu0 0
    %4617 = vperm.xlu0 %4616, %v4566
    %v4618 = vpop.permute.xlu0 %4617
    %4620 = vset.pattern.permute.xlu0 0
    %4621 = vperm.xlu0 %4620, %v4567
    %v4622 = vpop.permute.xlu0 %4621
    %4624 = vset.pattern.permute.xlu0 0
    %4625 = vperm.xlu0 %4624, %v4568
    %v4626 = vpop.permute.xlu0 %4625
    %4628 = vset.pattern.permute.xlu0 0
    %4629 = vperm.xlu0 %4628, %v4569
    %v4630 = vpop.permute.xlu0 %4629
    %4632 = vset.pattern.permute.xlu0 0
    %4633 = vperm.xlu0 %4632, %v4570
    %v4634 = vpop.permute.xlu0 %4633
    %vm4635 = vcmask 1046528
    %v4636 = vrot.slane %v4574, 1
    %v4637 = vrot.slane %v4578, 1
    %v4638 = vsel %vm4635, %v4636, %v4637
    %v4639 = vrot.slane %v4582, 1
    %v4640 = vsel %vm4635, %v4637, %v4639
    %v4641 = vrot.slane %v4586, 1
    %v4642 = vsel %vm4635, %v4639, %v4641
    %v4643 = vrot.slane %v4590, 1
    %v4644 = vsel %vm4635, %v4641, %v4643
    %v4645 = vrot.slane %v4594, 1
    %v4646 = vsel %vm4635, %v4643, %v4645
    %v4647 = vrot.slane %v4598, 1
    %v4648 = vsel %vm4635, %v4645, %v4647
    %v4649 = vrot.slane %v4602, 1
    %v4650 = vsel %vm4635, %v4647, %v4649
    %v4651 = vrot.slane %v4606, 1
    %v4652 = vsel %vm4635, %v4649, %v4651
    %v4653 = vrot.slane %v4610, 1
    %v4654 = vsel %vm4635, %v4651, %v4653
    %v4655 = vrot.slane %v4614, 1
    %v4656 = vsel %vm4635, %v4653, %v4655
    %v4657 = vrot.slane %v4618, 1
    %v4658 = vsel %vm4635, %v4655, %v4657
    %v4659 = vrot.slane %v4622, 1
    %v4660 = vsel %vm4635, %v4657, %v4659
    %v4661 = vrot.slane %v4626, 1
    %v4662 = vsel %vm4635, %v4659, %v4661
    %v4663 = vrot.slane %v4630, 1
    %v4664 = vsel %vm4635, %v4661, %v4663
    %v4665 = vrot.slane %v4634, 1
    %v4666 = vsel %vm4635, %v4663, %v4665
    %v4684 = vmul.f32 %v4487, %v4636
    %v4685 = vmul.f32 %v4488, %v4636
    %v4686 = vmul.f32 %v4489, %v4636
    %v4687 = vmul.f32 %v4490, %v4636
    %v4688 = vmul.f32 %v4491, %v4638
    %v4689 = vmul.f32 %v4492, %v4638
    %v4690 = vmul.f32 %v4493, %v4638
    %v4691 = vmul.f32 %v4494, %v4638
    %v4692 = vmul.f32 %v4495, %v4640
    %v4693 = vmul.f32 %v4496, %v4640
    %v4694 = vmul.f32 %v4497, %v4640
    %v4695 = vmul.f32 %v4498, %v4640
    %v4696 = vmul.f32 %v4499, %v4642
    %v4697 = vmul.f32 %v4500, %v4642
    %v4698 = vmul.f32 %v4501, %v4642
    %v4699 = vmul.f32 %v4502, %v4642
    %v4700 = vmul.f32 %v4503, %v4644
    %v4701 = vmul.f32 %v4504, %v4644
    %v4702 = vmul.f32 %v4505, %v4644
    %v4703 = vmul.f32 %v4506, %v4644
    %v4704 = vmul.f32 %v4507, %v4646
    %v4705 = vmul.f32 %v4508, %v4646
    %v4706 = vmul.f32 %v4509, %v4646
    %v4707 = vmul.f32 %v4510, %v4646
    %v4708 = vmul.f32 %v4511, %v4648
    %v4709 = vmul.f32 %v4512, %v4648
    %v4710 = vmul.f32 %v4513, %v4648
    %v4711 = vmul.f32 %v4514, %v4648
    %v4712 = vmul.f32 %v4515, %v4650
    %v4713 = vmul.f32 %v4516, %v4650
    %v4714 = vmul.f32 %v4517, %v4650
    %v4715 = vmul.f32 %v4518, %v4650
    %v4716 = vmul.f32 %v4519, %v4652
    %v4717 = vmul.f32 %v4520, %v4652
    %v4718 = vmul.f32 %v4521, %v4652
    %v4719 = vmul.f32 %v4522, %v4652
    %v4720 = vmul.f32 %v4523, %v4654
    %v4721 = vmul.f32 %v4524, %v4654
    %v4722 = vmul.f32 %v4525, %v4654
    %v4723 = vmul.f32 %v4526, %v4654
    %v4724 = vmul.f32 %v4527, %v4656
    %v4725 = vmul.f32 %v4528, %v4656
    %v4726 = vmul.f32 %v4529, %v4656
    %v4727 = vmul.f32 %v4530, %v4656
    %v4728 = vmul.f32 %v4531, %v4658
    %v4729 = vmul.f32 %v4532, %v4658
    %v4730 = vmul.f32 %v4533, %v4658
    %v4731 = vmul.f32 %v4534, %v4658
    %v4732 = vmul.f32 %v4535, %v4660
    %v4733 = vmul.f32 %v4536, %v4660
    %v4734 = vmul.f32 %v4537, %v4660
    %v4735 = vmul.f32 %v4538, %v4660
    %v4736 = vmul.f32 %v4539, %v4662
    %v4737 = vmul.f32 %v4540, %v4662
    %v4738 = vmul.f32 %v4541, %v4662
    %v4739 = vmul.f32 %v4542, %v4662
    %v4740 = vmul.f32 %v4543, %v4664
    %v4741 = vmul.f32 %v4544, %v4664
    %v4742 = vmul.f32 %v4545, %v4664
    %v4743 = vmul.f32 %v4546, %v4664
    %v4744 = vmul.f32 %v4547, %v4666
    %v4745 = vmul.f32 %v4548, %v4666
    %v4746 = vmul.f32 %v4549, %v4666
    %v4747 = vmul.f32 %v4550, %v4666
    %v4748 = vmul.f32 %v4551, %v4665
    %v4749 = vmul.f32 %v4552, %v4665
    %v4750 = vmul.f32 %v4553, %v4665
    %v4751 = vmul.f32 %v4554, %v4665
    %v4752 = vld [vmem:[%s10] sm:$0xf]
    %v4754 = vlaneseq
    %v4755 = vshrl.u32 %v4754, 7
    %v4756 = vsub.s32 0, %v4755
    %v4757 = vrot.slane %v4752, %v4756
    %v4758 = vlaneseq
    %v4759 = vshrl.u32 %v4758, 7
    %v4760 = vsub.s32 1, %v4759
    %v4761 = vrot.slane %v4752, %v4760
    %v4762 = vlaneseq
    %v4763 = vshrl.u32 %v4762, 7
    %v4764 = vsub.s32 2, %v4763
    %v4765 = vrot.slane %v4752, %v4764
    %v4766 = vlaneseq
    %v4767 = vshrl.u32 %v4766, 7
    %v4768 = vsub.s32 3, %v4767
    %v4769 = vrot.slane %v4752, %v4768
    %v4774 = vmul.f32 %v4684, %v4757
    %v4775 = vmul.f32 %v4685, %v4761
    %v4776 = vmul.f32 %v4686, %v4765
    %v4777 = vmul.f32 %v4687, %v4769
    %v4778 = vmul.f32 %v4688, %v4757
    %v4779 = vmul.f32 %v4689, %v4761
    %v4780 = vmul.f32 %v4690, %v4765
    %v4781 = vmul.f32 %v4691, %v4769
    %v4782 = vmul.f32 %v4692, %v4757
    %v4783 = vmul.f32 %v4693, %v4761
    %v4784 = vmul.f32 %v4694, %v4765
    %v4785 = vmul.f32 %v4695, %v4769
    %v4786 = vmul.f32 %v4696, %v4757
    %v4787 = vmul.f32 %v4697, %v4761
    %v4788 = vmul.f32 %v4698, %v4765
    %v4789 = vmul.f32 %v4699, %v4769
    %v4790 = vmul.f32 %v4700, %v4757
    %v4791 = vmul.f32 %v4701, %v4761
    %v4792 = vmul.f32 %v4702, %v4765
    %v4793 = vmul.f32 %v4703, %v4769
    %v4794 = vmul.f32 %v4704, %v4757
    %v4795 = vmul.f32 %v4705, %v4761
    %v4796 = vmul.f32 %v4706, %v4765
    %v4797 = vmul.f32 %v4707, %v4769
    %v4798 = vmul.f32 %v4708, %v4757
    %v4799 = vmul.f32 %v4709, %v4761
    %v4800 = vmul.f32 %v4710, %v4765
    %v4801 = vmul.f32 %v4711, %v4769
    %v4802 = vmul.f32 %v4712, %v4757
    %v4803 = vmul.f32 %v4713, %v4761
    %v4804 = vmul.f32 %v4714, %v4765
    %v4805 = vmul.f32 %v4715, %v4769
    %v4806 = vmul.f32 %v4716, %v4757
    %v4807 = vmul.f32 %v4717, %v4761
    %v4808 = vmul.f32 %v4718, %v4765
    %v4809 = vmul.f32 %v4719, %v4769
    %v4810 = vmul.f32 %v4720, %v4757
    %v4811 = vmul.f32 %v4721, %v4761
    %v4812 = vmul.f32 %v4722, %v4765
    %v4813 = vmul.f32 %v4723, %v4769
    %v4814 = vmul.f32 %v4724, %v4757
    %v4815 = vmul.f32 %v4725, %v4761
    %v4816 = vmul.f32 %v4726, %v4765
    %v4817 = vmul.f32 %v4727, %v4769
    %v4818 = vmul.f32 %v4728, %v4757
    %v4819 = vmul.f32 %v4729, %v4761
    %v4820 = vmul.f32 %v4730, %v4765
    %v4821 = vmul.f32 %v4731, %v4769
    %v4822 = vmul.f32 %v4732, %v4757
    %v4823 = vmul.f32 %v4733, %v4761
    %v4824 = vmul.f32 %v4734, %v4765
    %v4825 = vmul.f32 %v4735, %v4769
    %v4826 = vmul.f32 %v4736, %v4757
    %v4827 = vmul.f32 %v4737, %v4761
    %v4828 = vmul.f32 %v4738, %v4765
    %v4829 = vmul.f32 %v4739, %v4769
    %v4830 = vmul.f32 %v4740, %v4757
    %v4831 = vmul.f32 %v4741, %v4761
    %v4832 = vmul.f32 %v4742, %v4765
    %v4833 = vmul.f32 %v4743, %v4769
    %v4834 = vmul.f32 %v4744, %v4757
    %v4835 = vmul.f32 %v4745, %v4761
    %v4836 = vmul.f32 %v4746, %v4765
    %v4837 = vmul.f32 %v4747, %v4769
    %v4838 = vmul.f32 %v4748, %v4757
    %v4839 = vmul.f32 %v4749, %v4761
    %v4840 = vmul.f32 %v4750, %v4765
    %v4841 = vmul.f32 %v4751, %v4769
    %v4842 = vadd.f32 %v4774, 0.0
    %v4843 = vadd.f32 %v4775, 0.0
    %v4844 = vadd.f32 %v4776, 0.0
    %v4845 = vadd.f32 %v4777, 0.0
    %v4846 = vadd.f32 %v4778, 0.0
    %v4847 = vadd.f32 %v4779, 0.0
    %v4848 = vadd.f32 %v4780, 0.0
    %v4849 = vadd.f32 %v4781, 0.0
    %v4850 = vadd.f32 %v4782, 0.0
    %v4851 = vadd.f32 %v4783, 0.0
    %v4852 = vadd.f32 %v4784, 0.0
    %v4853 = vadd.f32 %v4785, 0.0
    %v4854 = vadd.f32 %v4786, 0.0
    %v4855 = vadd.f32 %v4787, 0.0
    %v4856 = vadd.f32 %v4788, 0.0
    %v4857 = vadd.f32 %v4789, 0.0
    %v4858 = vadd.f32 %v4790, 0.0
    %v4859 = vadd.f32 %v4791, 0.0
    %v4860 = vadd.f32 %v4792, 0.0
    %v4861 = vadd.f32 %v4793, 0.0
    %v4862 = vadd.f32 %v4794, 0.0
    %v4863 = vadd.f32 %v4795, 0.0
    %v4864 = vadd.f32 %v4796, 0.0
    %v4865 = vadd.f32 %v4797, 0.0
    %v4866 = vadd.f32 %v4798, 0.0
    %v4867 = vadd.f32 %v4799, 0.0
    %v4868 = vadd.f32 %v4800, 0.0
    %v4869 = vadd.f32 %v4801, 0.0
    %v4870 = vadd.f32 %v4802, 0.0
    %v4871 = vadd.f32 %v4803, 0.0
    %v4872 = vadd.f32 %v4804, 0.0
    %v4873 = vadd.f32 %v4805, 0.0
    %v4874 = vadd.f32 %v4806, 0.0
    %v4875 = vadd.f32 %v4807, 0.0
    %v4876 = vadd.f32 %v4808, 0.0
    %v4877 = vadd.f32 %v4809, 0.0
    %v4878 = vadd.f32 %v4810, 0.0
    %v4879 = vadd.f32 %v4811, 0.0
    %v4880 = vadd.f32 %v4812, 0.0
    %v4881 = vadd.f32 %v4813, 0.0
    %v4882 = vadd.f32 %v4814, 0.0
    %v4883 = vadd.f32 %v4815, 0.0
    %v4884 = vadd.f32 %v4816, 0.0
    %v4885 = vadd.f32 %v4817, 0.0
    %v4886 = vadd.f32 %v4818, 0.0
    %v4887 = vadd.f32 %v4819, 0.0
    %v4888 = vadd.f32 %v4820, 0.0
    %v4889 = vadd.f32 %v4821, 0.0
    %v4890 = vadd.f32 %v4822, 0.0
    %v4891 = vadd.f32 %v4823, 0.0
    %v4892 = vadd.f32 %v4824, 0.0
    %v4893 = vadd.f32 %v4825, 0.0
    %v4894 = vadd.f32 %v4826, 0.0
    %v4895 = vadd.f32 %v4827, 0.0
    %v4896 = vadd.f32 %v4828, 0.0
    %v4897 = vadd.f32 %v4829, 0.0
    %v4898 = vadd.f32 %v4830, 0.0
    %v4899 = vadd.f32 %v4831, 0.0
    %v4900 = vadd.f32 %v4832, 0.0
    %v4901 = vadd.f32 %v4833, 0.0
    %v4902 = vadd.f32 %v4834, 0.0
    %v4903 = vadd.f32 %v4835, 0.0
    %v4904 = vadd.f32 %v4836, 0.0
    %v4905 = vadd.f32 %v4837, 0.0
    %v4906 = vadd.f32 %v4838, 0.0
    %v4907 = vadd.f32 %v4839, 0.0
    %v4908 = vadd.f32 %v4840, 0.0
    %v4909 = vadd.f32 %v4841, 0.0
    %v4910 = vld [vmem:[#allocation2 + $0x200] sm:$0xff]
    %v4911 = vld [vmem:[#allocation2 + $0x208] sm:$0xff]
    %v4912 = vld [vmem:[#allocation2 + $0x210] sm:$0xff]
    %v4913 = vld [vmem:[#allocation2 + $0x218] sm:$0xff]
    %s4914 = scalar_lea.vmem %s12, 128
    %v4915 = vld [vmem:[%s4914] sm:$0xff]
    %v4916 = vld [vmem:[%s4914 + $0x8] sm:$0xff]
    %v4917 = vld [vmem:[%s4914 + $0x10] sm:$0xff]
    %v4918 = vld [vmem:[%s4914 + $0x18] sm:$0xff]
    %v4919 = vld [vmem:[%s4914 + $0x20] sm:$0xff]
    %v4920 = vld [vmem:[%s4914 + $0x28] sm:$0xff]
    %v4921 = vld [vmem:[%s4914 + $0x30] sm:$0xff]
    %v4922 = vld [vmem:[%s4914 + $0x38] sm:$0xff]
    %v4923 = vld [vmem:[%s4914 + $0x40] sm:$0xff]
    %v4924 = vld [vmem:[%s4914 + $0x48] sm:$0xff]
    %v4925 = vld [vmem:[%s4914 + $0x50] sm:$0xff]
    %v4926 = vld [vmem:[%s4914 + $0x58] sm:$0xff]
    %v4927 = vld [vmem:[%s4914 + $0x60] sm:$0xff]
    %v4928 = vld [vmem:[%s4914 + $0x68] sm:$0xff]
    %v4929 = vld [vmem:[%s4914 + $0x70] sm:$0xff]
    %v4930 = vld [vmem:[%s4914 + $0x78] sm:$0xff]
    %4932 = vset.pattern.permute.xlu0 0
    %4933 = vperm.xlu0 %4932, %v4915
    %v4934 = vpop.permute.xlu0 %4933
    %4937 = vset.pattern.permute.xlu0 0
    %4938 = vperm.xlu0 %4937, %v4916
    %v4939 = vpop.permute.xlu0 %4938
    %4942 = vset.pattern.permute.xlu0 0
    %4943 = vperm.xlu0 %4942, %v4917
    %v4944 = vpop.permute.xlu0 %4943
    %4947 = vset.pattern.permute.xlu0 0
    %4948 = vperm.xlu0 %4947, %v4918
    %v4949 = vpop.permute.xlu0 %4948
    %4952 = vset.pattern.permute.xlu0 0
    %4953 = vperm.xlu0 %4952, %v4919
    %v4954 = vpop.permute.xlu0 %4953
    %4957 = vset.pattern.permute.xlu0 0
    %4958 = vperm.xlu0 %4957, %v4920
    %v4959 = vpop.permute.xlu0 %4958
    %4962 = vset.pattern.permute.xlu0 0
    %4963 = vperm.xlu0 %4962, %v4921
    %v4964 = vpop.permute.xlu0 %4963
    %4967 = vset.pattern.permute.xlu0 0
    %4968 = vperm.xlu0 %4967, %v4922
    %v4969 = vpop.permute.xlu0 %4968
    %4972 = vset.pattern.permute.xlu0 0
    %4973 = vperm.xlu0 %4972, %v4923
    %v4974 = vpop.permute.xlu0 %4973
    %4977 = vset.pattern.permute.xlu0 0
    %4978 = vperm.xlu0 %4977, %v4924
    %v4979 = vpop.permute.xlu0 %4978
    %4982 = vset.pattern.permute.xlu0 0
    %4983 = vperm.xlu0 %4982, %v4925
    %v4984 = vpop.permute.xlu0 %4983
    %4987 = vset.pattern.permute.xlu0 0
    %4988 = vperm.xlu0 %4987, %v4926
    %v4989 = vpop.permute.xlu0 %4988
    %4992 = vset.pattern.permute.xlu0 0
    %4993 = vperm.xlu0 %4992, %v4927
    %v4994 = vpop.permute.xlu0 %4993
    %4997 = vset.pattern.permute.xlu0 0
    %4998 = vperm.xlu0 %4997, %v4928
    %v4999 = vpop.permute.xlu0 %4998
    %5002 = vset.pattern.permute.xlu0 0
    %5003 = vperm.xlu0 %5002, %v4929
    %v5004 = vpop.permute.xlu0 %5003
    %5007 = vset.pattern.permute.xlu0 0
    %5008 = vperm.xlu0 %5007, %v4930
    %v5009 = vpop.permute.xlu0 %5008
    %v5011 = vmul.f32 %v4491, %v4934
    %v5012 = vmul.f32 %v4492, %v4934
    %v5013 = vmul.f32 %v4493, %v4934
    %v5014 = vmul.f32 %v4494, %v4934
    %v5015 = vmul.f32 %v4495, %v4939
    %v5016 = vmul.f32 %v4496, %v4939
    %v5017 = vmul.f32 %v4497, %v4939
    %v5018 = vmul.f32 %v4498, %v4939
    %v5019 = vmul.f32 %v4499, %v4944
    %v5020 = vmul.f32 %v4500, %v4944
    %v5021 = vmul.f32 %v4501, %v4944
    %v5022 = vmul.f32 %v4502, %v4944
    %v5023 = vmul.f32 %v4503, %v4949
    %v5024 = vmul.f32 %v4504, %v4949
    %v5025 = vmul.f32 %v4505, %v4949
    %v5026 = vmul.f32 %v4506, %v4949
    %v5027 = vmul.f32 %v4507, %v4954
    %v5028 = vmul.f32 %v4508, %v4954
    %v5029 = vmul.f32 %v4509, %v4954
    %v5030 = vmul.f32 %v4510, %v4954
    %v5031 = vmul.f32 %v4511, %v4959
    %v5032 = vmul.f32 %v4512, %v4959
    %v5033 = vmul.f32 %v4513, %v4959
    %v5034 = vmul.f32 %v4514, %v4959
    %v5035 = vmul.f32 %v4515, %v4964
    %v5036 = vmul.f32 %v4516, %v4964
    %v5037 = vmul.f32 %v4517, %v4964
    %v5038 = vmul.f32 %v4518, %v4964
    %v5039 = vmul.f32 %v4519, %v4969
    %v5040 = vmul.f32 %v4520, %v4969
    %v5041 = vmul.f32 %v4521, %v4969
    %v5042 = vmul.f32 %v4522, %v4969
    %v5043 = vmul.f32 %v4523, %v4974
    %v5044 = vmul.f32 %v4524, %v4974
    %v5045 = vmul.f32 %v4525, %v4974
    %v5046 = vmul.f32 %v4526, %v4974
    %v5047 = vmul.f32 %v4527, %v4979
    %v5048 = vmul.f32 %v4528, %v4979
    %v5049 = vmul.f32 %v4529, %v4979
    %v5050 = vmul.f32 %v4530, %v4979
    %v5051 = vmul.f32 %v4531, %v4984
    %v5052 = vmul.f32 %v4532, %v4984
    %v5053 = vmul.f32 %v4533, %v4984
    %v5054 = vmul.f32 %v4534, %v4984
    %v5055 = vmul.f32 %v4535, %v4989
    %v5056 = vmul.f32 %v4536, %v4989
    %v5057 = vmul.f32 %v4537, %v4989
    %v5058 = vmul.f32 %v4538, %v4989
    %v5059 = vmul.f32 %v4539, %v4994
    %v5060 = vmul.f32 %v4540, %v4994
    %v5061 = vmul.f32 %v4541, %v4994
    %v5062 = vmul.f32 %v4542, %v4994
    %v5063 = vmul.f32 %v4543, %v4999
    %v5064 = vmul.f32 %v4544, %v4999
    %v5065 = vmul.f32 %v4545, %v4999
    %v5066 = vmul.f32 %v4546, %v4999
    %v5067 = vmul.f32 %v4547, %v5004
    %v5068 = vmul.f32 %v4548, %v5004
    %v5069 = vmul.f32 %v4549, %v5004
    %v5070 = vmul.f32 %v4550, %v5004
    %v5071 = vmul.f32 %v4910, %v5009
    %v5072 = vmul.f32 %v4911, %v5009
    %v5073 = vmul.f32 %v4912, %v5009
    %v5074 = vmul.f32 %v4913, %v5009
    %s5075 = scalar_lea.vmem %s10, 4
    %v5076 = vld [vmem:[%s5075] sm:$0xf]
    %v5078 = vlaneseq
    %v5079 = vshrl.u32 %v5078, 7
    %v5080 = vsub.s32 0, %v5079
    %v5081 = vrot.slane %v5076, %v5080
    %v5082 = vlaneseq
    %v5083 = vshrl.u32 %v5082, 7
    %v5084 = vsub.s32 1, %v5083
    %v5085 = vrot.slane %v5076, %v5084
    %v5086 = vlaneseq
    %v5087 = vshrl.u32 %v5086, 7
    %v5088 = vsub.s32 2, %v5087
    %v5089 = vrot.slane %v5076, %v5088
    %v5090 = vlaneseq
    %v5091 = vshrl.u32 %v5090, 7
    %v5092 = vsub.s32 3, %v5091
    %v5093 = vrot.slane %v5076, %v5092
    %v5098 = vmul.f32 %v5011, %v5081
    %v5099 = vmul.f32 %v5012, %v5085
    %v5100 = vmul.f32 %v5013, %v5089
    %v5101 = vmul.f32 %v5014, %v5093
    %v5102 = vmul.f32 %v5015, %v5081
    %v5103 = vmul.f32 %v5016, %v5085
    %v5104 = vmul.f32 %v5017, %v5089
    %v5105 = vmul.f32 %v5018, %v5093
    %v5106 = vmul.f32 %v5019, %v5081
    %v5107 = vmul.f32 %v5020, %v5085
    %v5108 = vmul.f32 %v5021, %v5089
    %v5109 = vmul.f32 %v5022, %v5093
    %v5110 = vmul.f32 %v5023, %v5081
    %v5111 = vmul.f32 %v5024, %v5085
    %v5112 = vmul.f32 %v5025, %v5089
    %v5113 = vmul.f32 %v5026, %v5093
    %v5114 = vmul.f32 %v5027, %v5081
    %v5115 = vmul.f32 %v5028, %v5085
    %v5116 = vmul.f32 %v5029, %v5089
    %v5117 = vmul.f32 %v5030, %v5093
    %v5118 = vmul.f32 %v5031, %v5081
    %v5119 = vmul.f32 %v5032, %v5085
    %v5120 = vmul.f32 %v5033, %v5089
    %v5121 = vmul.f32 %v5034, %v5093
    %v5122 = vmul.f32 %v5035, %v5081
    %v5123 = vmul.f32 %v5036, %v5085
    %v5124 = vmul.f32 %v5037, %v5089
    %v5125 = vmul.f32 %v5038, %v5093
    %v5126 = vmul.f32 %v5039, %v5081
    %v5127 = vmul.f32 %v5040, %v5085
    %v5128 = vmul.f32 %v5041, %v5089
    %v5129 = vmul.f32 %v5042, %v5093
    %v5130 = vmul.f32 %v5043, %v5081
    %v5131 = vmul.f32 %v5044, %v5085
    %v5132 = vmul.f32 %v5045, %v5089
    %v5133 = vmul.f32 %v5046, %v5093
    %v5134 = vmul.f32 %v5047, %v5081
    %v5135 = vmul.f32 %v5048, %v5085
    %v5136 = vmul.f32 %v5049, %v5089
    %v5137 = vmul.f32 %v5050, %v5093
    %v5138 = vmul.f32 %v5051, %v5081
    %v5139 = vmul.f32 %v5052, %v5085
    %v5140 = vmul.f32 %v5053, %v5089
    %v5141 = vmul.f32 %v5054, %v5093
    %v5142 = vmul.f32 %v5055, %v5081
    %v5143 = vmul.f32 %v5056, %v5085
    %v5144 = vmul.f32 %v5057, %v5089
    %v5145 = vmul.f32 %v5058, %v5093
    %v5146 = vmul.f32 %v5059, %v5081
    %v5147 = vmul.f32 %v5060, %v5085
    %v5148 = vmul.f32 %v5061, %v5089
    %v5149 = vmul.f32 %v5062, %v5093
    %v5150 = vmul.f32 %v5063, %v5081
    %v5151 = vmul.f32 %v5064, %v5085
    %v5152 = vmul.f32 %v5065, %v5089
    %v5153 = vmul.f32 %v5066, %v5093
    %v5154 = vmul.f32 %v5067, %v5081
    %v5155 = vmul.f32 %v5068, %v5085
    %v5156 = vmul.f32 %v5069, %v5089
    %v5157 = vmul.f32 %v5070, %v5093
    %v5158 = vmul.f32 %v5071, %v5081
    %v5159 = vmul.f32 %v5072, %v5085
    %v5160 = vmul.f32 %v5073, %v5089
    %v5161 = vmul.f32 %v5074, %v5093
    %v5226 = vrot.slane %v5098, 1
    %v5227 = vrot.slane %v5099, 1
    %v5228 = vrot.slane %v5100, 1
    %v5229 = vrot.slane %v5101, 1
    %v5230 = vrot.slane %v5102, 1
    %v5231 = vsel %vm4635, %v5226, %v5230
    %v5232 = vrot.slane %v5103, 1
    %v5233 = vsel %vm4635, %v5227, %v5232
    %v5234 = vrot.slane %v5104, 1
    %v5235 = vsel %vm4635, %v5228, %v5234
    %v5236 = vrot.slane %v5105, 1
    %v5237 = vsel %vm4635, %v5229, %v5236
    %v5238 = vrot.slane %v5106, 1
    %v5239 = vsel %vm4635, %v5230, %v5238
    %v5240 = vrot.slane %v5107, 1
    %v5241 = vsel %vm4635, %v5232, %v5240
    %v5242 = vrot.slane %v5108, 1
    %v5243 = vsel %vm4635, %v5234, %v5242
    %v5244 = vrot.slane %v5109, 1
    %v5245 = vsel %vm4635, %v5236, %v5244
    %v5246 = vrot.slane %v5110, 1
    %v5247 = vsel %vm4635, %v5238, %v5246
    %v5248 = vrot.slane %v5111, 1
    %v5249 = vsel %vm4635, %v5240, %v5248
    %v5250 = vrot.slane %v5112, 1
    %v5251 = vsel %vm4635, %v5242, %v5250
    %v5252 = vrot.slane %v5113, 1
    %v5253 = vsel %vm4635, %v5244, %v5252
    %v5254 = vrot.slane %v5114, 1
    %v5255 = vsel %vm4635, %v5246, %v5254
    %v5256 = vrot.slane %v5115, 1
    %v5257 = vsel %vm4635, %v5248, %v5256
    %v5258 = vrot.slane %v5116, 1
    %v5259 = vsel %vm4635, %v5250, %v5258
    %v5260 = vrot.slane %v5117, 1
    %v5261 = vsel %vm4635, %v5252, %v5260
    %v5262 = vrot.slane %v5118, 1
    %v5263 = vsel %vm4635, %v5254, %v5262
    %v5264 = vrot.slane %v5119, 1
    %v5265 = vsel %vm4635, %v5256, %v5264
    %v5266 = vrot.slane %v5120, 1
    %v5267 = vsel %vm4635, %v5258, %v5266
    %v5268 = vrot.slane %v5121, 1
    %v5269 = vsel %vm4635, %v5260, %v5268
    %v5270 = vrot.slane %v5122, 1
    %v5271 = vsel %vm4635, %v5262, %v5270
    %v5272 = vrot.slane %v5123, 1
    %v5273 = vsel %vm4635, %v5264, %v5272
    %v5274 = vrot.slane %v5124, 1
    %v5275 = vsel %vm4635, %v5266, %v5274
    %v5276 = vrot.slane %v5125, 1
    %v5277 = vsel %vm4635, %v5268, %v5276
    %v5278 = vrot.slane %v5126, 1
    %v5279 = vsel %vm4635, %v5270, %v5278
    %v5280 = vrot.slane %v5127, 1
    %v5281 = vsel %vm4635, %v5272, %v5280
    %v5282 = vrot.slane %v5128, 1
    %v5283 = vsel %vm4635, %v5274, %v5282
    %v5284 = vrot.slane %v5129, 1
    %v5285 = vsel %vm4635, %v5276, %v5284
    %v5286 = vrot.slane %v5130, 1
    %v5287 = vsel %vm4635, %v5278, %v5286
    %v5288 = vrot.slane %v5131, 1
    %v5289 = vsel %vm4635, %v5280, %v5288
    %v5290 = vrot.slane %v5132, 1
    %v5291 = vsel %vm4635, %v5282, %v5290
    %v5292 = vrot.slane %v5133, 1
    %v5293 = vsel %vm4635, %v5284, %v5292
    %v5294 = vrot.slane %v5134, 1
    %v5295 = vsel %vm4635, %v5286, %v5294
    %v5296 = vrot.slane %v5135, 1
    %v5297 = vsel %vm4635, %v5288, %v5296
    %v5298 = vrot.slane %v5136, 1
    %v5299 = vsel %vm4635, %v5290, %v5298
    %v5300 = vrot.slane %v5137, 1
    %v5301 = vsel %vm4635, %v5292, %v5300
    %v5302 = vrot.slane %v5138, 1
    %v5303 = vsel %vm4635, %v5294, %v5302
    %v5304 = vrot.slane %v5139, 1
    %v5305 = vsel %vm4635, %v5296, %v5304
    %v5306 = vrot.slane %v5140, 1
    %v5307 = vsel %vm4635, %v5298, %v5306
    %v5308 = vrot.slane %v5141, 1
    %v5309 = vsel %vm4635, %v5300, %v5308
    %v5310 = vrot.slane %v5142, 1
    %v5311 = vsel %vm4635, %v5302, %v5310
    %v5312 = vrot.slane %v5143, 1
    %v5313 = vsel %vm4635, %v5304, %v5312
    %v5314 = vrot.slane %v5144, 1
    %v5315 = vsel %vm4635, %v5306, %v5314
    %v5316 = vrot.slane %v5145, 1
    %v5317 = vsel %vm4635, %v5308, %v5316
    %v5318 = vrot.slane %v5146, 1
    %v5319 = vsel %vm4635, %v5310, %v5318
    %v5320 = vrot.slane %v5147, 1
    %v5321 = vsel %vm4635, %v5312, %v5320
    %v5322 = vrot.slane %v5148, 1
    %v5323 = vsel %vm4635, %v5314, %v5322
    %v5324 = vrot.slane %v5149, 1
    %v5325 = vsel %vm4635, %v5316, %v5324
    %v5326 = vrot.slane %v5150, 1
    %v5327 = vsel %vm4635, %v5318, %v5326
    %v5328 = vrot.slane %v5151, 1
    %v5329 = vsel %vm4635, %v5320, %v5328
    %v5330 = vrot.slane %v5152, 1
    %v5331 = vsel %vm4635, %v5322, %v5330
    %v5332 = vrot.slane %v5153, 1
    %v5333 = vsel %vm4635, %v5324, %v5332
    %v5334 = vrot.slane %v5154, 1
    %v5335 = vsel %vm4635, %v5326, %v5334
    %v5336 = vrot.slane %v5155, 1
    %v5337 = vsel %vm4635, %v5328, %v5336
    %v5338 = vrot.slane %v5156, 1
    %v5339 = vsel %vm4635, %v5330, %v5338
    %v5340 = vrot.slane %v5157, 1
    %v5341 = vsel %vm4635, %v5332, %v5340
    %v5342 = vrot.slane %v5158, 1
    %v5343 = vsel %vm4635, %v5334, %v5342
    %v5344 = vrot.slane %v5159, 1
    %v5345 = vsel %vm4635, %v5336, %v5344
    %v5346 = vrot.slane %v5160, 1
    %v5347 = vsel %vm4635, %v5338, %v5346
    %v5348 = vrot.slane %v5161, 1
    %v5349 = vsel %vm4635, %v5340, %v5348
    %v5418 = vadd.f32 %v4842, %v5226
    %v5419 = vadd.f32 %v4843, %v5227
    %v5420 = vadd.f32 %v4844, %v5228
    %v5421 = vadd.f32 %v4845, %v5229
    %v5422 = vadd.f32 %v4846, %v5231
    %v5423 = vadd.f32 %v4847, %v5233
    %v5424 = vadd.f32 %v4848, %v5235
    %v5425 = vadd.f32 %v4849, %v5237
    %v5426 = vadd.f32 %v4850, %v5239
    %v5427 = vadd.f32 %v4851, %v5241
    %v5428 = vadd.f32 %v4852, %v5243
    %v5429 = vadd.f32 %v4853, %v5245
    %v5430 = vadd.f32 %v4854, %v5247
    %v5431 = vadd.f32 %v4855, %v5249
    %v5432 = vadd.f32 %v4856, %v5251
    %v5433 = vadd.f32 %v4857, %v5253
    %v5434 = vadd.f32 %v4858, %v5255
    %v5435 = vadd.f32 %v4859, %v5257
    %v5436 = vadd.f32 %v4860, %v5259
    %v5437 = vadd.f32 %v4861, %v5261
    %v5438 = vadd.f32 %v4862, %v5263
    %v5439 = vadd.f32 %v4863, %v5265
    %v5440 = vadd.f32 %v4864, %v5267
    %v5441 = vadd.f32 %v4865, %v5269
    %v5442 = vadd.f32 %v4866, %v5271
    %v5443 = vadd.f32 %v4867, %v5273
    %v5444 = vadd.f32 %v4868, %v5275
    %v5445 = vadd.f32 %v4869, %v5277
    %v5446 = vadd.f32 %v4870, %v5279
    %v5447 = vadd.f32 %v4871, %v5281
    %v5448 = vadd.f32 %v4872, %v5283
    %v5449 = vadd.f32 %v4873, %v5285
    %v5450 = vadd.f32 %v4874, %v5287
    %v5451 = vadd.f32 %v4875, %v5289
    %v5452 = vadd.f32 %v4876, %v5291
    %v5453 = vadd.f32 %v4877, %v5293
    %v5454 = vadd.f32 %v4878, %v5295
    %v5455 = vadd.f32 %v4879, %v5297
    %v5456 = vadd.f32 %v4880, %v5299
    %v5457 = vadd.f32 %v4881, %v5301
    %v5458 = vadd.f32 %v4882, %v5303
    %v5459 = vadd.f32 %v4883, %v5305
    %v5460 = vadd.f32 %v4884, %v5307
    %v5461 = vadd.f32 %v4885, %v5309
    %v5462 = vadd.f32 %v4886, %v5311
    %v5463 = vadd.f32 %v4887, %v5313
    %v5464 = vadd.f32 %v4888, %v5315
    %v5465 = vadd.f32 %v4889, %v5317
    %v5466 = vadd.f32 %v4890, %v5319
    %v5467 = vadd.f32 %v4891, %v5321
    %v5468 = vadd.f32 %v4892, %v5323
    %v5469 = vadd.f32 %v4893, %v5325
    %v5470 = vadd.f32 %v4894, %v5327
    %v5471 = vadd.f32 %v4895, %v5329
    %v5472 = vadd.f32 %v4896, %v5331
    %v5473 = vadd.f32 %v4897, %v5333
    %v5474 = vadd.f32 %v4898, %v5335
    %v5475 = vadd.f32 %v4899, %v5337
    %v5476 = vadd.f32 %v4900, %v5339
    %v5477 = vadd.f32 %v4901, %v5341
    %v5478 = vadd.f32 %v4902, %v5343
    %v5479 = vadd.f32 %v4903, %v5345
    %v5480 = vadd.f32 %v4904, %v5347
    %v5481 = vadd.f32 %v4905, %v5349
    %v5482 = vadd.f32 %v4906, %v5342
    %v5483 = vadd.f32 %v4907, %v5344
    %v5484 = vadd.f32 %v4908, %v5346
    %v5485 = vadd.f32 %v4909, %v5348
    %v5486 = vld [vmem:[#allocation2 + $0x20] sm:$0xfe]
    %v5487 = vld [vmem:[#allocation2 + $0x28] sm:$0xfe]
    %v5488 = vld [vmem:[#allocation2 + $0x30] sm:$0xfe]
    %v5489 = vld [vmem:[#allocation2 + $0x38] sm:$0xfe]
    %v5490 = vld [vmem:[#allocation2 + $0x40] sm:$0xff]
    %v5491 = vld [vmem:[#allocation2 + $0x48] sm:$0xff]
    %v5492 = vld [vmem:[#allocation2 + $0x50] sm:$0xff]
    %v5493 = vld [vmem:[#allocation2 + $0x58] sm:$0xff]
    %v5494 = vld [vmem:[#allocation2 + $0x60] sm:$0xff]
    %v5495 = vld [vmem:[#allocation2 + $0x68] sm:$0xff]
    %v5496 = vld [vmem:[#allocation2 + $0x70] sm:$0xff]
    %v5497 = vld [vmem:[#allocation2 + $0x78] sm:$0xff]
    %v5498 = vld [vmem:[#allocation2 + $0x80] sm:$0xff]
    %v5499 = vld [vmem:[#allocation2 + $0x88] sm:$0xff]
    %v5500 = vld [vmem:[#allocation2 + $0x90] sm:$0xff]
    %v5501 = vld [vmem:[#allocation2 + $0x98] sm:$0xff]
    %v5502 = vld [vmem:[#allocation2 + $0xa0] sm:$0xff]
    %v5503 = vld [vmem:[#allocation2 + $0xa8] sm:$0xff]
    %v5504 = vld [vmem:[#allocation2 + $0xb0] sm:$0xff]
    %v5505 = vld [vmem:[#allocation2 + $0xb8] sm:$0xff]
    %v5506 = vld [vmem:[#allocation2 + $0xc0] sm:$0xff]
    %v5507 = vld [vmem:[#allocation2 + $0xc8] sm:$0xff]
    %v5508 = vld [vmem:[#allocation2 + $0xd0] sm:$0xff]
    %v5509 = vld [vmem:[#allocation2 + $0xd8] sm:$0xff]
    %v5510 = vld [vmem:[#allocation2 + $0xe0] sm:$0xff]
    %v5511 = vld [vmem:[#allocation2 + $0xe8] sm:$0xff]
    %v5512 = vld [vmem:[#allocation2 + $0xf0] sm:$0xff]
    %v5513 = vld [vmem:[#allocation2 + $0xf8] sm:$0xff]
    %v5514 = vld [vmem:[#allocation2 + $0x100] sm:$0xff]
    %v5515 = vld [vmem:[#allocation2 + $0x108] sm:$0xff]
    %v5516 = vld [vmem:[#allocation2 + $0x110] sm:$0xff]
    %v5517 = vld [vmem:[#allocation2 + $0x118] sm:$0xff]
    %v5518 = vld [vmem:[#allocation2 + $0x120] sm:$0xff]
    %v5519 = vld [vmem:[#allocation2 + $0x128] sm:$0xff]
    %v5520 = vld [vmem:[#allocation2 + $0x130] sm:$0xff]
    %v5521 = vld [vmem:[#allocation2 + $0x138] sm:$0xff]
    %v5522 = vld [vmem:[#allocation2 + $0x140] sm:$0xff]
    %v5523 = vld [vmem:[#allocation2 + $0x148] sm:$0xff]
    %v5524 = vld [vmem:[#allocation2 + $0x150] sm:$0xff]
    %v5525 = vld [vmem:[#allocation2 + $0x158] sm:$0xff]
    %v5526 = vld [vmem:[#allocation2 + $0x160] sm:$0xff]
    %v5527 = vld [vmem:[#allocation2 + $0x168] sm:$0xff]
    %v5528 = vld [vmem:[#allocation2 + $0x170] sm:$0xff]
    %v5529 = vld [vmem:[#allocation2 + $0x178] sm:$0xff]
    %v5530 = vld [vmem:[#allocation2 + $0x180] sm:$0xff]
    %v5531 = vld [vmem:[#allocation2 + $0x188] sm:$0xff]
    %v5532 = vld [vmem:[#allocation2 + $0x190] sm:$0xff]
    %v5533 = vld [vmem:[#allocation2 + $0x198] sm:$0xff]
    %v5534 = vld [vmem:[#allocation2 + $0x1a0] sm:$0xff]
    %v5535 = vld [vmem:[#allocation2 + $0x1a8] sm:$0xff]
    %v5536 = vld [vmem:[#allocation2 + $0x1b0] sm:$0xff]
    %v5537 = vld [vmem:[#allocation2 + $0x1b8] sm:$0xff]
    %v5538 = vld [vmem:[#allocation2 + $0x1c0] sm:$0xff]
    %v5539 = vld [vmem:[#allocation2 + $0x1c8] sm:$0xff]
    %v5540 = vld [vmem:[#allocation2 + $0x1d0] sm:$0xff]
    %v5541 = vld [vmem:[#allocation2 + $0x1d8] sm:$0xff]
    %v5542 = vld [vmem:[#allocation2 + $0x1e0] sm:$0xff]
    %v5543 = vld [vmem:[#allocation2 + $0x1e8] sm:$0xff]
    %v5544 = vld [vmem:[#allocation2 + $0x1f0] sm:$0xff]
    %v5545 = vld [vmem:[#allocation2 + $0x1f8] sm:$0xff]
    %v5546 = vld [vmem:[#allocation2 + $0x200] sm:$0xff]
    %v5547 = vld [vmem:[#allocation2 + $0x208] sm:$0xff]
    %v5548 = vld [vmem:[#allocation2 + $0x210] sm:$0xff]
    %v5549 = vld [vmem:[#allocation2 + $0x218] sm:$0xff]
    %v5550 = vld [vmem:[#allocation2 + $0x220] sm:$0x1]
    %v5551 = vld [vmem:[#allocation2 + $0x228] sm:$0x1]
    %v5552 = vld [vmem:[#allocation2 + $0x230] sm:$0x1]
    %v5553 = vld [vmem:[#allocation2 + $0x238] sm:$0x1]
    %s5554 = scalar_lea.vmem %s12, 256
    %v5555 = vld [vmem:[%s5554] sm:$0xff]
    %v5556 = vld [vmem:[%s5554 + $0x8] sm:$0xff]
    %v5557 = vld [vmem:[%s5554 + $0x10] sm:$0xff]
    %v5558 = vld [vmem:[%s5554 + $0x18] sm:$0xff]
    %v5559 = vld [vmem:[%s5554 + $0x20] sm:$0xff]
    %v5560 = vld [vmem:[%s5554 + $0x28] sm:$0xff]
    %v5561 = vld [vmem:[%s5554 + $0x30] sm:$0xff]
    %v5562 = vld [vmem:[%s5554 + $0x38] sm:$0xff]
    %v5563 = vld [vmem:[%s5554 + $0x40] sm:$0xff]
    %v5564 = vld [vmem:[%s5554 + $0x48] sm:$0xff]
    %v5565 = vld [vmem:[%s5554 + $0x50] sm:$0xff]
    %v5566 = vld [vmem:[%s5554 + $0x58] sm:$0xff]
    %v5567 = vld [vmem:[%s5554 + $0x60] sm:$0xff]
    %v5568 = vld [vmem:[%s5554 + $0x68] sm:$0xff]
    %v5569 = vld [vmem:[%s5554 + $0x70] sm:$0xff]
    %v5570 = vld [vmem:[%s5554 + $0x78] sm:$0xff]
    %5572 = vset.pattern.permute.xlu0 0
    %5573 = vperm.xlu0 %5572, %v5555
    %v5574 = vpop.permute.xlu0 %5573
    %5576 = vset.pattern.permute.xlu0 0
    %5577 = vperm.xlu0 %5576, %v5556
    %v5578 = vpop.permute.xlu0 %5577
    %5580 = vset.pattern.permute.xlu0 0
    %5581 = vperm.xlu0 %5580, %v5557
    %v5582 = vpop.permute.xlu0 %5581
    %5584 = vset.pattern.permute.xlu0 0
    %5585 = vperm.xlu0 %5584, %v5558
    %v5586 = vpop.permute.xlu0 %5585
    %5588 = vset.pattern.permute.xlu0 0
    %5589 = vperm.xlu0 %5588, %v5559
    %v5590 = vpop.permute.xlu0 %5589
    %5592 = vset.pattern.permute.xlu0 0
    %5593 = vperm.xlu0 %5592, %v5560
    %v5594 = vpop.permute.xlu0 %5593
    %5596 = vset.pattern.permute.xlu0 0
    %5597 = vperm.xlu0 %5596, %v5561
    %v5598 = vpop.permute.xlu0 %5597
    %5600 = vset.pattern.permute.xlu0 0
    %5601 = vperm.xlu0 %5600, %v5562
    %v5602 = vpop.permute.xlu0 %5601
    %5604 = vset.pattern.permute.xlu0 0
    %5605 = vperm.xlu0 %5604, %v5563
    %v5606 = vpop.permute.xlu0 %5605
    %5608 = vset.pattern.permute.xlu0 0
    %5609 = vperm.xlu0 %5608, %v5564
    %v5610 = vpop.permute.xlu0 %5609
    %5612 = vset.pattern.permute.xlu0 0
    %5613 = vperm.xlu0 %5612, %v5565
    %v5614 = vpop.permute.xlu0 %5613
    %5616 = vset.pattern.permute.xlu0 0
    %5617 = vperm.xlu0 %5616, %v5566
    %v5618 = vpop.permute.xlu0 %5617
    %5620 = vset.pattern.permute.xlu0 0
    %5621 = vperm.xlu0 %5620, %v5567
    %v5622 = vpop.permute.xlu0 %5621
    %5624 = vset.pattern.permute.xlu0 0
    %5625 = vperm.xlu0 %5624, %v5568
    %v5626 = vpop.permute.xlu0 %5625
    %5628 = vset.pattern.permute.xlu0 0
    %5629 = vperm.xlu0 %5628, %v5569
    %v5630 = vpop.permute.xlu0 %5629
    %5632 = vset.pattern.permute.xlu0 0
    %5633 = vperm.xlu0 %5632, %v5570
    %v5634 = vpop.permute.xlu0 %5633
    %vm5635 = vcmask 1040384
    %v5636 = vrot.slane %v5574, 7
    %v5637 = vrot.slane %v5578, 7
    %v5638 = vsel %vm5635, %v5636, %v5637
    %v5639 = vrot.slane %v5582, 7
    %v5640 = vsel %vm5635, %v5637, %v5639
    %v5641 = vrot.slane %v5586, 7
    %v5642 = vsel %vm5635, %v5639, %v5641
    %v5643 = vrot.slane %v5590, 7
    %v5644 = vsel %vm5635, %v5641, %v5643
    %v5645 = vrot.slane %v5594, 7
    %v5646 = vsel %vm5635, %v5643, %v5645
    %v5647 = vrot.slane %v5598, 7
    %v5648 = vsel %vm5635, %v5645, %v5647
    %v5649 = vrot.slane %v5602, 7
    %v5650 = vsel %vm5635, %v5647, %v5649
    %v5651 = vrot.slane %v5606, 7
    %v5652 = vsel %vm5635, %v5649, %v5651
    %v5653 = vrot.slane %v5610, 7
    %v5654 = vsel %vm5635, %v5651, %v5653
    %v5655 = vrot.slane %v5614, 7
    %v5656 = vsel %vm5635, %v5653, %v5655
    %v5657 = vrot.slane %v5618, 7
    %v5658 = vsel %vm5635, %v5655, %v5657
    %v5659 = vrot.slane %v5622, 7
    %v5660 = vsel %vm5635, %v5657, %v5659
    %v5661 = vrot.slane %v5626, 7
    %v5662 = vsel %vm5635, %v5659, %v5661
    %v5663 = vrot.slane %v5630, 7
    %v5664 = vsel %vm5635, %v5661, %v5663
    %v5665 = vrot.slane %v5634, 7
    %v5666 = vsel %vm5635, %v5663, %v5665
    %v5684 = vmul.f32 %v5486, %v5636
    %v5685 = vmul.f32 %v5487, %v5636
    %v5686 = vmul.f32 %v5488, %v5636
    %v5687 = vmul.f32 %v5489, %v5636
    %v5688 = vmul.f32 %v5490, %v5638
    %v5689 = vmul.f32 %v5491, %v5638
    %v5690 = vmul.f32 %v5492, %v5638
    %v5691 = vmul.f32 %v5493, %v5638
    %v5692 = vmul.f32 %v5494, %v5640
    %v5693 = vmul.f32 %v5495, %v5640
    %v5694 = vmul.f32 %v5496, %v5640
    %v5695 = vmul.f32 %v5497, %v5640
    %v5696 = vmul.f32 %v5498, %v5642
    %v5697 = vmul.f32 %v5499, %v5642
    %v5698 = vmul.f32 %v5500, %v5642
    %v5699 = vmul.f32 %v5501, %v5642
    %v5700 = vmul.f32 %v5502, %v5644
    %v5701 = vmul.f32 %v5503, %v5644
    %v5702 = vmul.f32 %v5504, %v5644
    %v5703 = vmul.f32 %v5505, %v5644
    %v5704 = vmul.f32 %v5506, %v5646
    %v5705 = vmul.f32 %v5507, %v5646
    %v5706 = vmul.f32 %v5508, %v5646
    %v5707 = vmul.f32 %v5509, %v5646
    %v5708 = vmul.f32 %v5510, %v5648
    %v5709 = vmul.f32 %v5511, %v5648
    %v5710 = vmul.f32 %v5512, %v5648
    %v5711 = vmul.f32 %v5513, %v5648
    %v5712 = vmul.f32 %v5514, %v5650
    %v5713 = vmul.f32 %v5515, %v5650
    %v5714 = vmul.f32 %v5516, %v5650
    %v5715 = vmul.f32 %v5517, %v5650
    %v5716 = vmul.f32 %v5518, %v5652
    %v5717 = vmul.f32 %v5519, %v5652
    %v5718 = vmul.f32 %v5520, %v5652
    %v5719 = vmul.f32 %v5521, %v5652
    %v5720 = vmul.f32 %v5522, %v5654
    %v5721 = vmul.f32 %v5523, %v5654
    %v5722 = vmul.f32 %v5524, %v5654
    %v5723 = vmul.f32 %v5525, %v5654
    %v5724 = vmul.f32 %v5526, %v5656
    %v5725 = vmul.f32 %v5527, %v5656
    %v5726 = vmul.f32 %v5528, %v5656
    %v5727 = vmul.f32 %v5529, %v5656
    %v5728 = vmul.f32 %v5530, %v5658
    %v5729 = vmul.f32 %v5531, %v5658
    %v5730 = vmul.f32 %v5532, %v5658
    %v5731 = vmul.f32 %v5533, %v5658
    %v5732 = vmul.f32 %v5534, %v5660
    %v5733 = vmul.f32 %v5535, %v5660
    %v5734 = vmul.f32 %v5536, %v5660
    %v5735 = vmul.f32 %v5537, %v5660
    %v5736 = vmul.f32 %v5538, %v5662
    %v5737 = vmul.f32 %v5539, %v5662
    %v5738 = vmul.f32 %v5540, %v5662
    %v5739 = vmul.f32 %v5541, %v5662
    %v5740 = vmul.f32 %v5542, %v5664
    %v5741 = vmul.f32 %v5543, %v5664
    %v5742 = vmul.f32 %v5544, %v5664
    %v5743 = vmul.f32 %v5545, %v5664
    %v5744 = vmul.f32 %v5546, %v5666
    %v5745 = vmul.f32 %v5547, %v5666
    %v5746 = vmul.f32 %v5548, %v5666
    %v5747 = vmul.f32 %v5549, %v5666
    %v5748 = vmul.f32 %v5550, %v5665
    %v5749 = vmul.f32 %v5551, %v5665
    %v5750 = vmul.f32 %v5552, %v5665
    %v5751 = vmul.f32 %v5553, %v5665
    %s5752 = scalar_lea.vmem %s10, 8
    %v5753 = vld [vmem:[%s5752] sm:$0xf]
    %v5755 = vlaneseq
    %v5756 = vshrl.u32 %v5755, 7
    %v5757 = vsub.s32 0, %v5756
    %v5758 = vrot.slane %v5753, %v5757
    %v5759 = vlaneseq
    %v5760 = vshrl.u32 %v5759, 7
    %v5761 = vsub.s32 1, %v5760
    %v5762 = vrot.slane %v5753, %v5761
    %v5763 = vlaneseq
    %v5764 = vshrl.u32 %v5763, 7
    %v5765 = vsub.s32 2, %v5764
    %v5766 = vrot.slane %v5753, %v5765
    %v5767 = vlaneseq
    %v5768 = vshrl.u32 %v5767, 7
    %v5769 = vsub.s32 3, %v5768
    %v5770 = vrot.slane %v5753, %v5769
    %v5775 = vmul.f32 %v5684, %v5758
    %v5776 = vmul.f32 %v5685, %v5762
    %v5777 = vmul.f32 %v5686, %v5766
    %v5778 = vmul.f32 %v5687, %v5770
    %v5779 = vmul.f32 %v5688, %v5758
    %v5780 = vmul.f32 %v5689, %v5762
    %v5781 = vmul.f32 %v5690, %v5766
    %v5782 = vmul.f32 %v5691, %v5770
    %v5783 = vmul.f32 %v5692, %v5758
    %v5784 = vmul.f32 %v5693, %v5762
    %v5785 = vmul.f32 %v5694, %v5766
    %v5786 = vmul.f32 %v5695, %v5770
    %v5787 = vmul.f32 %v5696, %v5758
    %v5788 = vmul.f32 %v5697, %v5762
    %v5789 = vmul.f32 %v5698, %v5766
    %v5790 = vmul.f32 %v5699, %v5770
    %v5791 = vmul.f32 %v5700, %v5758
    %v5792 = vmul.f32 %v5701, %v5762
    %v5793 = vmul.f32 %v5702, %v5766
    %v5794 = vmul.f32 %v5703, %v5770
    %v5795 = vmul.f32 %v5704, %v5758
    %v5796 = vmul.f32 %v5705, %v5762
    %v5797 = vmul.f32 %v5706, %v5766
    %v5798 = vmul.f32 %v5707, %v5770
    %v5799 = vmul.f32 %v5708, %v5758
    %v5800 = vmul.f32 %v5709, %v5762
    %v5801 = vmul.f32 %v5710, %v5766
    %v5802 = vmul.f32 %v5711, %v5770
    %v5803 = vmul.f32 %v5712, %v5758
    %v5804 = vmul.f32 %v5713, %v5762
    %v5805 = vmul.f32 %v5714, %v5766
    %v5806 = vmul.f32 %v5715, %v5770
    %v5807 = vmul.f32 %v5716, %v5758
    %v5808 = vmul.f32 %v5717, %v5762
    %v5809 = vmul.f32 %v5718, %v5766
    %v5810 = vmul.f32 %v5719, %v5770
    %v5811 = vmul.f32 %v5720, %v5758
    %v5812 = vmul.f32 %v5721, %v5762
    %v5813 = vmul.f32 %v5722, %v5766
    %v5814 = vmul.f32 %v5723, %v5770
    %v5815 = vmul.f32 %v5724, %v5758
    %v5816 = vmul.f32 %v5725, %v5762
    %v5817 = vmul.f32 %v5726, %v5766
    %v5818 = vmul.f32 %v5727, %v5770
    %v5819 = vmul.f32 %v5728, %v5758
    %v5820 = vmul.f32 %v5729, %v5762
    %v5821 = vmul.f32 %v5730, %v5766
    %v5822 = vmul.f32 %v5731, %v5770
    %v5823 = vmul.f32 %v5732, %v5758
    %v5824 = vmul.f32 %v5733, %v5762
    %v5825 = vmul.f32 %v5734, %v5766
    %v5826 = vmul.f32 %v5735, %v5770
    %v5827 = vmul.f32 %v5736, %v5758
    %v5828 = vmul.f32 %v5737, %v5762
    %v5829 = vmul.f32 %v5738, %v5766
    %v5830 = vmul.f32 %v5739, %v5770
    %v5831 = vmul.f32 %v5740, %v5758
    %v5832 = vmul.f32 %v5741, %v5762
    %v5833 = vmul.f32 %v5742, %v5766
    %v5834 = vmul.f32 %v5743, %v5770
    %v5835 = vmul.f32 %v5744, %v5758
    %v5836 = vmul.f32 %v5745, %v5762
    %v5837 = vmul.f32 %v5746, %v5766
    %v5838 = vmul.f32 %v5747, %v5770
    %v5839 = vmul.f32 %v5748, %v5758
    %v5840 = vmul.f32 %v5749, %v5762
    %v5841 = vmul.f32 %v5750, %v5766
    %v5842 = vmul.f32 %v5751, %v5770
    %vm5911 = vcmask 1045504
    %v5912 = vrot.slane %v5775, 2
    %v5913 = vrot.slane %v5776, 2
    %v5914 = vrot.slane %v5777, 2
    %v5915 = vrot.slane %v5778, 2
    %v5916 = vrot.slane %v5779, 2
    %v5917 = vsel %vm5911, %v5912, %v5916
    %v5918 = vrot.slane %v5780, 2
    %v5919 = vsel %vm5911, %v5913, %v5918
    %v5920 = vrot.slane %v5781, 2
    %v5921 = vsel %vm5911, %v5914, %v5920
    %v5922 = vrot.slane %v5782, 2
    %v5923 = vsel %vm5911, %v5915, %v5922
    %v5924 = vrot.slane %v5783, 2
    %v5925 = vsel %vm5911, %v5916, %v5924
    %v5926 = vrot.slane %v5784, 2
    %v5927 = vsel %vm5911, %v5918, %v5926
    %v5928 = vrot.slane %v5785, 2
    %v5929 = vsel %vm5911, %v5920, %v5928
    %v5930 = vrot.slane %v5786, 2
    %v5931 = vsel %vm5911, %v5922, %v5930
    %v5932 = vrot.slane %v5787, 2
    %v5933 = vsel %vm5911, %v5924, %v5932
    %v5934 = vrot.slane %v5788, 2
    %v5935 = vsel %vm5911, %v5926, %v5934
    %v5936 = vrot.slane %v5789, 2
    %v5937 = vsel %vm5911, %v5928, %v5936
    %v5938 = vrot.slane %v5790, 2
    %v5939 = vsel %vm5911, %v5930, %v5938
    %v5940 = vrot.slane %v5791, 2
    %v5941 = vsel %vm5911, %v5932, %v5940
    %v5942 = vrot.slane %v5792, 2
    %v5943 = vsel %vm5911, %v5934, %v5942
    %v5944 = vrot.slane %v5793, 2
    %v5945 = vsel %vm5911, %v5936, %v5944
    %v5946 = vrot.slane %v5794, 2
    %v5947 = vsel %vm5911, %v5938, %v5946
    %v5948 = vrot.slane %v5795, 2
    %v5949 = vsel %vm5911, %v5940, %v5948
    %v5950 = vrot.slane %v5796, 2
    %v5951 = vsel %vm5911, %v5942, %v5950
    %v5952 = vrot.slane %v5797, 2
    %v5953 = vsel %vm5911, %v5944, %v5952
    %v5954 = vrot.slane %v5798, 2
    %v5955 = vsel %vm5911, %v5946, %v5954
    %v5956 = vrot.slane %v5799, 2
    %v5957 = vsel %vm5911, %v5948, %v5956
    %v5958 = vrot.slane %v5800, 2
    %v5959 = vsel %vm5911, %v5950, %v5958
    %v5960 = vrot.slane %v5801, 2
    %v5961 = vsel %vm5911, %v5952, %v5960
    %v5962 = vrot.slane %v5802, 2
    %v5963 = vsel %vm5911, %v5954, %v5962
    %v5964 = vrot.slane %v5803, 2
    %v5965 = vsel %vm5911, %v5956, %v5964
    %v5966 = vrot.slane %v5804, 2
    %v5967 = vsel %vm5911, %v5958, %v5966
    %v5968 = vrot.slane %v5805, 2
    %v5969 = vsel %vm5911, %v5960, %v5968
    %v5970 = vrot.slane %v5806, 2
    %v5971 = vsel %vm5911, %v5962, %v5970
    %v5972 = vrot.slane %v5807, 2
    %v5973 = vsel %vm5911, %v5964, %v5972
    %v5974 = vrot.slane %v5808, 2
    %v5975 = vsel %vm5911, %v5966, %v5974
    %v5976 = vrot.slane %v5809, 2
    %v5977 = vsel %vm5911, %v5968, %v5976
    %v5978 = vrot.slane %v5810, 2
    %v5979 = vsel %vm5911, %v5970, %v5978
    %v5980 = vrot.slane %v5811, 2
    %v5981 = vsel %vm5911, %v5972, %v5980
    %v5982 = vrot.slane %v5812, 2
    %v5983 = vsel %vm5911, %v5974, %v5982
    %v5984 = vrot.slane %v5813, 2
    %v5985 = vsel %vm5911, %v5976, %v5984
    %v5986 = vrot.slane %v5814, 2
    %v5987 = vsel %vm5911, %v5978, %v5986
    %v5988 = vrot.slane %v5815, 2
    %v5989 = vsel %vm5911, %v5980, %v5988
    %v5990 = vrot.slane %v5816, 2
    %v5991 = vsel %vm5911, %v5982, %v5990
    %v5992 = vrot.slane %v5817, 2
    %v5993 = vsel %vm5911, %v5984, %v5992
    %v5994 = vrot.slane %v5818, 2
    %v5995 = vsel %vm5911, %v5986, %v5994
    %v5996 = vrot.slane %v5819, 2
    %v5997 = vsel %vm5911, %v5988, %v5996
    %v5998 = vrot.slane %v5820, 2
    %v5999 = vsel %vm5911, %v5990, %v5998
    %v6000 = vrot.slane %v5821, 2
    %v6001 = vsel %vm5911, %v5992, %v6000
    %v6002 = vrot.slane %v5822, 2
    %v6003 = vsel %vm5911, %v5994, %v6002
    %v6004 = vrot.slane %v5823, 2
    %v6005 = vsel %vm5911, %v5996, %v6004
    %v6006 = vrot.slane %v5824, 2
    %v6007 = vsel %vm5911, %v5998, %v6006
    %v6008 = vrot.slane %v5825, 2
    %v6009 = vsel %vm5911, %v6000, %v6008
    %v6010 = vrot.slane %v5826, 2
    %v6011 = vsel %vm5911, %v6002, %v6010
    %v6012 = vrot.slane %v5827, 2
    %v6013 = vsel %vm5911, %v6004, %v6012
    %v6014 = vrot.slane %v5828, 2
    %v6015 = vsel %vm5911, %v6006, %v6014
    %v6016 = vrot.slane %v5829, 2
    %v6017 = vsel %vm5911, %v6008, %v6016
    %v6018 = vrot.slane %v5830, 2
    %v6019 = vsel %vm5911, %v6010, %v6018
    %v6020 = vrot.slane %v5831, 2
    %v6021 = vsel %vm5911, %v6012, %v6020
    %v6022 = vrot.slane %v5832, 2
    %v6023 = vsel %vm5911, %v6014, %v6022
    %v6024 = vrot.slane %v5833, 2
    %v6025 = vsel %vm5911, %v6016, %v6024
    %v6026 = vrot.slane %v5834, 2
    %v6027 = vsel %vm5911, %v6018, %v6026
    %v6028 = vrot.slane %v5835, 2
    %v6029 = vsel %vm5911, %v6020, %v6028
    %v6030 = vrot.slane %v5836, 2
    %v6031 = vsel %vm5911, %v6022, %v6030
    %v6032 = vrot.slane %v5837, 2
    %v6033 = vsel %vm5911, %v6024, %v6032
    %v6034 = vrot.slane %v5838, 2
    %v6035 = vsel %vm5911, %v6026, %v6034
    %v6036 = vrot.slane %v5839, 2
    %v6037 = vsel %vm5911, %v6028, %v6036
    %v6038 = vrot.slane %v5840, 2
    %v6039 = vsel %vm5911, %v6030, %v6038
    %v6040 = vrot.slane %v5841, 2
    %v6041 = vsel %vm5911, %v6032, %v6040
    %v6042 = vrot.slane %v5842, 2
    %v6043 = vsel %vm5911, %v6034, %v6042
    %v6112 = vadd.f32 %v5418, %v5912
    %v6113 = vadd.f32 %v5419, %v5913
    %v6114 = vadd.f32 %v5420, %v5914
    %v6115 = vadd.f32 %v5421, %v5915
    %v6116 = vadd.f32 %v5422, %v5917
    %v6117 = vadd.f32 %v5423, %v5919
    %v6118 = vadd.f32 %v5424, %v5921
    %v6119 = vadd.f32 %v5425, %v5923
    %v6120 = vadd.f32 %v5426, %v5925
    %v6121 = vadd.f32 %v5427, %v5927
    %v6122 = vadd.f32 %v5428, %v5929
    %v6123 = vadd.f32 %v5429, %v5931
    %v6124 = vadd.f32 %v5430, %v5933
    %v6125 = vadd.f32 %v5431, %v5935
    %v6126 = vadd.f32 %v5432, %v5937
    %v6127 = vadd.f32 %v5433, %v5939
    %v6128 = vadd.f32 %v5434, %v5941
    %v6129 = vadd.f32 %v5435, %v5943
    %v6130 = vadd.f32 %v5436, %v5945
    %v6131 = vadd.f32 %v5437, %v5947
    %v6132 = vadd.f32 %v5438, %v5949
    %v6133 = vadd.f32 %v5439, %v5951
    %v6134 = vadd.f32 %v5440, %v5953
    %v6135 = vadd.f32 %v5441, %v5955
    %v6136 = vadd.f32 %v5442, %v5957
    %v6137 = vadd.f32 %v5443, %v5959
    %v6138 = vadd.f32 %v5444, %v5961
    %v6139 = vadd.f32 %v5445, %v5963
    %v6140 = vadd.f32 %v5446, %v5965
    %v6141 = vadd.f32 %v5447, %v5967
    %v6142 = vadd.f32 %v5448, %v5969
    %v6143 = vadd.f32 %v5449, %v5971
    %v6144 = vadd.f32 %v5450, %v5973
    %v6145 = vadd.f32 %v5451, %v5975
    %v6146 = vadd.f32 %v5452, %v5977
    %v6147 = vadd.f32 %v5453, %v5979
    %v6148 = vadd.f32 %v5454, %v5981
    %v6149 = vadd.f32 %v5455, %v5983
    %v6150 = vadd.f32 %v5456, %v5985
    %v6151 = vadd.f32 %v5457, %v5987
    %v6152 = vadd.f32 %v5458, %v5989
    %v6153 = vadd.f32 %v5459, %v5991
    %v6154 = vadd.f32 %v5460, %v5993
    %v6155 = vadd.f32 %v5461, %v5995
    %v6156 = vadd.f32 %v5462, %v5997
    %v6157 = vadd.f32 %v5463, %v5999
    %v6158 = vadd.f32 %v5464, %v6001
    %v6159 = vadd.f32 %v5465, %v6003
    %v6160 = vadd.f32 %v5466, %v6005
    %v6161 = vadd.f32 %v5467, %v6007
    %v6162 = vadd.f32 %v5468, %v6009
    %v6163 = vadd.f32 %v5469, %v6011
    %v6164 = vadd.f32 %v5470, %v6013
    %v6165 = vadd.f32 %v5471, %v6015
    %v6166 = vadd.f32 %v5472, %v6017
    %v6167 = vadd.f32 %v5473, %v6019
    %v6168 = vadd.f32 %v5474, %v6021
    %v6169 = vadd.f32 %v5475, %v6023
    %v6170 = vadd.f32 %v5476, %v6025
    %v6171 = vadd.f32 %v5477, %v6027
    %v6172 = vadd.f32 %v5478, %v6029
    %v6173 = vadd.f32 %v5479, %v6031
    %v6174 = vadd.f32 %v5480, %v6033
    %v6175 = vadd.f32 %v5481, %v6035
    %v6176 = vadd.f32 %v5482, %v6037
    %v6177 = vadd.f32 %v5483, %v6039
    %v6178 = vadd.f32 %v5484, %v6041
    %v6179 = vadd.f32 %v5485, %v6043
    %v6180 = vld [vmem:[#allocation2 + $0x20] sm:$0x80]
    %v6181 = vld [vmem:[#allocation2 + $0x28] sm:$0x80]
    %v6182 = vld [vmem:[#allocation2 + $0x30] sm:$0x80]
    %v6183 = vld [vmem:[#allocation2 + $0x38] sm:$0x80]
    %v6184 = vld [vmem:[#allocation2 + $0x220] sm:$0x7f]
    %v6185 = vld [vmem:[#allocation2 + $0x228] sm:$0x7f]
    %v6186 = vld [vmem:[#allocation2 + $0x230] sm:$0x7f]
    %v6187 = vld [vmem:[#allocation2 + $0x238] sm:$0x7f]
    %s6188 = scalar_lea.vmem %s12, 384
    %v6189 = vld [vmem:[%s6188] sm:$0xff]
    %v6190 = vld [vmem:[%s6188 + $0x8] sm:$0xff]
    %v6191 = vld [vmem:[%s6188 + $0x10] sm:$0xff]
    %v6192 = vld [vmem:[%s6188 + $0x18] sm:$0xff]
    %v6193 = vld [vmem:[%s6188 + $0x20] sm:$0xff]
    %v6194 = vld [vmem:[%s6188 + $0x28] sm:$0xff]
    %v6195 = vld [vmem:[%s6188 + $0x30] sm:$0xff]
    %v6196 = vld [vmem:[%s6188 + $0x38] sm:$0xff]
    %v6197 = vld [vmem:[%s6188 + $0x40] sm:$0xff]
    %v6198 = vld [vmem:[%s6188 + $0x48] sm:$0xff]
    %v6199 = vld [vmem:[%s6188 + $0x50] sm:$0xff]
    %v6200 = vld [vmem:[%s6188 + $0x58] sm:$0xff]
    %v6201 = vld [vmem:[%s6188 + $0x60] sm:$0xff]
    %v6202 = vld [vmem:[%s6188 + $0x68] sm:$0xff]
    %v6203 = vld [vmem:[%s6188 + $0x70] sm:$0xff]
    %v6204 = vld [vmem:[%s6188 + $0x78] sm:$0xff]
    %6206 = vset.pattern.permute.xlu0 0
    %6207 = vperm.xlu0 %6206, %v6189
    %v6208 = vpop.permute.xlu0 %6207
    %6210 = vset.pattern.permute.xlu0 0
    %6211 = vperm.xlu0 %6210, %v6190
    %v6212 = vpop.permute.xlu0 %6211
    %6214 = vset.pattern.permute.xlu0 0
    %6215 = vperm.xlu0 %6214, %v6191
    %v6216 = vpop.permute.xlu0 %6215
    %6218 = vset.pattern.permute.xlu0 0
    %6219 = vperm.xlu0 %6218, %v6192
    %v6220 = vpop.permute.xlu0 %6219
    %6222 = vset.pattern.permute.xlu0 0
    %6223 = vperm.xlu0 %6222, %v6193
    %v6224 = vpop.permute.xlu0 %6223
    %6226 = vset.pattern.permute.xlu0 0
    %6227 = vperm.xlu0 %6226, %v6194
    %v6228 = vpop.permute.xlu0 %6227
    %6230 = vset.pattern.permute.xlu0 0
    %6231 = vperm.xlu0 %6230, %v6195
    %v6232 = vpop.permute.xlu0 %6231
    %6234 = vset.pattern.permute.xlu0 0
    %6235 = vperm.xlu0 %6234, %v6196
    %v6236 = vpop.permute.xlu0 %6235
    %6238 = vset.pattern.permute.xlu0 0
    %6239 = vperm.xlu0 %6238, %v6197
    %v6240 = vpop.permute.xlu0 %6239
    %6242 = vset.pattern.permute.xlu0 0
    %6243 = vperm.xlu0 %6242, %v6198
    %v6244 = vpop.permute.xlu0 %6243
    %6246 = vset.pattern.permute.xlu0 0
    %6247 = vperm.xlu0 %6246, %v6199
    %v6248 = vpop.permute.xlu0 %6247
    %6250 = vset.pattern.permute.xlu0 0
    %6251 = vperm.xlu0 %6250, %v6200
    %v6252 = vpop.permute.xlu0 %6251
    %6254 = vset.pattern.permute.xlu0 0
    %6255 = vperm.xlu0 %6254, %v6201
    %v6256 = vpop.permute.xlu0 %6255
    %6258 = vset.pattern.permute.xlu0 0
    %6259 = vperm.xlu0 %6258, %v6202
    %v6260 = vpop.permute.xlu0 %6259
    %6262 = vset.pattern.permute.xlu0 0
    %6263 = vperm.xlu0 %6262, %v6203
    %v6264 = vpop.permute.xlu0 %6263
    %6266 = vset.pattern.permute.xlu0 0
    %6267 = vperm.xlu0 %6266, %v6204
    %v6268 = vpop.permute.xlu0 %6267
    %v6269 = vrot.slane %v6208, 1
    %v6270 = vrot.slane %v6212, 1
    %v6271 = vsel %vm4635, %v6269, %v6270
    %v6272 = vrot.slane %v6216, 1
    %v6273 = vsel %vm4635, %v6270, %v6272
    %v6274 = vrot.slane %v6220, 1
    %v6275 = vsel %vm4635, %v6272, %v6274
    %v6276 = vrot.slane %v6224, 1
    %v6277 = vsel %vm4635, %v6274, %v6276
    %v6278 = vrot.slane %v6228, 1
    %v6279 = vsel %vm4635, %v6276, %v6278
    %v6280 = vrot.slane %v6232, 1
    %v6281 = vsel %vm4635, %v6278, %v6280
    %v6282 = vrot.slane %v6236, 1
    %v6283 = vsel %vm4635, %v6280, %v6282
    %v6284 = vrot.slane %v6240, 1
    %v6285 = vsel %vm4635, %v6282, %v6284
    %v6286 = vrot.slane %v6244, 1
    %v6287 = vsel %vm4635, %v6284, %v6286
    %v6288 = vrot.slane %v6248, 1
    %v6289 = vsel %vm4635, %v6286, %v6288
    %v6290 = vrot.slane %v6252, 1
    %v6291 = vsel %vm4635, %v6288, %v6290
    %v6292 = vrot.slane %v6256, 1
    %v6293 = vsel %vm4635, %v6290, %v6292
    %v6294 = vrot.slane %v6260, 1
    %v6295 = vsel %vm4635, %v6292, %v6294
    %v6296 = vrot.slane %v6264, 1
    %v6297 = vsel %vm4635, %v6294, %v6296
    %v6298 = vrot.slane %v6268, 1
    %v6299 = vsel %vm4635, %v6296, %v6298
    %v6317 = vmul.f32 %v6180, %v6269
    %v6318 = vmul.f32 %v6181, %v6269
    %v6319 = vmul.f32 %v6182, %v6269
    %v6320 = vmul.f32 %v6183, %v6269
    %v6321 = vmul.f32 %v5490, %v6271
    %v6322 = vmul.f32 %v5491, %v6271
    %v6323 = vmul.f32 %v5492, %v6271
    %v6324 = vmul.f32 %v5493, %v6271
    %v6325 = vmul.f32 %v5494, %v6273
    %v6326 = vmul.f32 %v5495, %v6273
    %v6327 = vmul.f32 %v5496, %v6273
    %v6328 = vmul.f32 %v5497, %v6273
    %v6329 = vmul.f32 %v5498, %v6275
    %v6330 = vmul.f32 %v5499, %v6275
    %v6331 = vmul.f32 %v5500, %v6275
    %v6332 = vmul.f32 %v5501, %v6275
    %v6333 = vmul.f32 %v5502, %v6277
    %v6334 = vmul.f32 %v5503, %v6277
    %v6335 = vmul.f32 %v5504, %v6277
    %v6336 = vmul.f32 %v5505, %v6277
    %v6337 = vmul.f32 %v5506, %v6279
    %v6338 = vmul.f32 %v5507, %v6279
    %v6339 = vmul.f32 %v5508, %v6279
    %v6340 = vmul.f32 %v5509, %v6279
    %v6341 = vmul.f32 %v5510, %v6281
    %v6342 = vmul.f32 %v5511, %v6281
    %v6343 = vmul.f32 %v5512, %v6281
    %v6344 = vmul.f32 %v5513, %v6281
    %v6345 = vmul.f32 %v5514, %v6283
    %v6346 = vmul.f32 %v5515, %v6283
    %v6347 = vmul.f32 %v5516, %v6283
    %v6348 = vmul.f32 %v5517, %v6283
    %v6349 = vmul.f32 %v5518, %v6285
    %v6350 = vmul.f32 %v5519, %v6285
    %v6351 = vmul.f32 %v5520, %v6285
    %v6352 = vmul.f32 %v5521, %v6285
    %v6353 = vmul.f32 %v5522, %v6287
    %v6354 = vmul.f32 %v5523, %v6287
    %v6355 = vmul.f32 %v5524, %v6287
    %v6356 = vmul.f32 %v5525, %v6287
    %v6357 = vmul.f32 %v5526, %v6289
    %v6358 = vmul.f32 %v5527, %v6289
    %v6359 = vmul.f32 %v5528, %v6289
    %v6360 = vmul.f32 %v5529, %v6289
    %v6361 = vmul.f32 %v5530, %v6291
    %v6362 = vmul.f32 %v5531, %v6291
    %v6363 = vmul.f32 %v5532, %v6291
    %v6364 = vmul.f32 %v5533, %v6291
    %v6365 = vmul.f32 %v5534, %v6293
    %v6366 = vmul.f32 %v5535, %v6293
    %v6367 = vmul.f32 %v5536, %v6293
    %v6368 = vmul.f32 %v5537, %v6293
    %v6369 = vmul.f32 %v5538, %v6295
    %v6370 = vmul.f32 %v5539, %v6295
    %v6371 = vmul.f32 %v5540, %v6295
    %v6372 = vmul.f32 %v5541, %v6295
    %v6373 = vmul.f32 %v5542, %v6297
    %v6374 = vmul.f32 %v5543, %v6297
    %v6375 = vmul.f32 %v5544, %v6297
    %v6376 = vmul.f32 %v5545, %v6297
    %v6377 = vmul.f32 %v5546, %v6299
    %v6378 = vmul.f32 %v5547, %v6299
    %v6379 = vmul.f32 %v5548, %v6299
    %v6380 = vmul.f32 %v5549, %v6299
    %v6381 = vmul.f32 %v6184, %v6298
    %v6382 = vmul.f32 %v6185, %v6298
    %v6383 = vmul.f32 %v6186, %v6298
    %v6384 = vmul.f32 %v6187, %v6298
    %s6385 = scalar_lea.vmem %s10, 12
    %v6386 = vld [vmem:[%s6385] sm:$0xf]
    %v6388 = vlaneseq
    %v6389 = vshrl.u32 %v6388, 7
    %v6390 = vsub.s32 0, %v6389
    %v6391 = vrot.slane %v6386, %v6390
    %v6392 = vlaneseq
    %v6393 = vshrl.u32 %v6392, 7
    %v6394 = vsub.s32 1, %v6393
    %v6395 = vrot.slane %v6386, %v6394
    %v6396 = vlaneseq
    %v6397 = vshrl.u32 %v6396, 7
    %v6398 = vsub.s32 2, %v6397
    %v6399 = vrot.slane %v6386, %v6398
    %v6400 = vlaneseq
    %v6401 = vshrl.u32 %v6400, 7
    %v6402 = vsub.s32 3, %v6401
    %v6403 = vrot.slane %v6386, %v6402
    %v6408 = vmul.f32 %v6317, %v6391
    %v6409 = vmul.f32 %v6318, %v6395
    %v6410 = vmul.f32 %v6319, %v6399
    %v6411 = vmul.f32 %v6320, %v6403
    %v6412 = vmul.f32 %v6321, %v6391
    %v6413 = vmul.f32 %v6322, %v6395
    %v6414 = vmul.f32 %v6323, %v6399
    %v6415 = vmul.f32 %v6324, %v6403
    %v6416 = vmul.f32 %v6325, %v6391
    %v6417 = vmul.f32 %v6326, %v6395
    %v6418 = vmul.f32 %v6327, %v6399
    %v6419 = vmul.f32 %v6328, %v6403
    %v6420 = vmul.f32 %v6329, %v6391
    %v6421 = vmul.f32 %v6330, %v6395
    %v6422 = vmul.f32 %v6331, %v6399
    %v6423 = vmul.f32 %v6332, %v6403
    %v6424 = vmul.f32 %v6333, %v6391
    %v6425 = vmul.f32 %v6334, %v6395
    %v6426 = vmul.f32 %v6335, %v6399
    %v6427 = vmul.f32 %v6336, %v6403
    %v6428 = vmul.f32 %v6337, %v6391
    %v6429 = vmul.f32 %v6338, %v6395
    %v6430 = vmul.f32 %v6339, %v6399
    %v6431 = vmul.f32 %v6340, %v6403
    %v6432 = vmul.f32 %v6341, %v6391
    %v6433 = vmul.f32 %v6342, %v6395
    %v6434 = vmul.f32 %v6343, %v6399
    %v6435 = vmul.f32 %v6344, %v6403
    %v6436 = vmul.f32 %v6345, %v6391
    %v6437 = vmul.f32 %v6346, %v6395
    %v6438 = vmul.f32 %v6347, %v6399
    %v6439 = vmul.f32 %v6348, %v6403
    %v6440 = vmul.f32 %v6349, %v6391
    %v6441 = vmul.f32 %v6350, %v6395
    %v6442 = vmul.f32 %v6351, %v6399
    %v6443 = vmul.f32 %v6352, %v6403
    %v6444 = vmul.f32 %v6353, %v6391
    %v6445 = vmul.f32 %v6354, %v6395
    %v6446 = vmul.f32 %v6355, %v6399
    %v6447 = vmul.f32 %v6356, %v6403
    %v6448 = vmul.f32 %v6357, %v6391
    %v6449 = vmul.f32 %v6358, %v6395
    %v6450 = vmul.f32 %v6359, %v6399
    %v6451 = vmul.f32 %v6360, %v6403
    %v6452 = vmul.f32 %v6361, %v6391
    %v6453 = vmul.f32 %v6362, %v6395
    %v6454 = vmul.f32 %v6363, %v6399
    %v6455 = vmul.f32 %v6364, %v6403
    %v6456 = vmul.f32 %v6365, %v6391
    %v6457 = vmul.f32 %v6366, %v6395
    %v6458 = vmul.f32 %v6367, %v6399
    %v6459 = vmul.f32 %v6368, %v6403
    %v6460 = vmul.f32 %v6369, %v6391
    %v6461 = vmul.f32 %v6370, %v6395
    %v6462 = vmul.f32 %v6371, %v6399
    %v6463 = vmul.f32 %v6372, %v6403
    %v6464 = vmul.f32 %v6373, %v6391
    %v6465 = vmul.f32 %v6374, %v6395
    %v6466 = vmul.f32 %v6375, %v6399
    %v6467 = vmul.f32 %v6376, %v6403
    %v6468 = vmul.f32 %v6377, %v6391
    %v6469 = vmul.f32 %v6378, %v6395
    %v6470 = vmul.f32 %v6379, %v6399
    %v6471 = vmul.f32 %v6380, %v6403
    %v6472 = vmul.f32 %v6381, %v6391
    %v6473 = vmul.f32 %v6382, %v6395
    %v6474 = vmul.f32 %v6383, %v6399
    %v6475 = vmul.f32 %v6384, %v6403
    %v6476 = vadd.f32 %v6112, %v6408
    %v6477 = vadd.f32 %v6113, %v6409
    %v6478 = vadd.f32 %v6114, %v6410
    %v6479 = vadd.f32 %v6115, %v6411
    %v6480 = vadd.f32 %v6116, %v6412
    %v6481 = vadd.f32 %v6117, %v6413
    %v6482 = vadd.f32 %v6118, %v6414
    %v6483 = vadd.f32 %v6119, %v6415
    %v6484 = vadd.f32 %v6120, %v6416
    %v6485 = vadd.f32 %v6121, %v6417
    %v6486 = vadd.f32 %v6122, %v6418
    %v6487 = vadd.f32 %v6123, %v6419
    %v6488 = vadd.f32 %v6124, %v6420
    %v6489 = vadd.f32 %v6125, %v6421
    %v6490 = vadd.f32 %v6126, %v6422
    %v6491 = vadd.f32 %v6127, %v6423
    %v6492 = vadd.f32 %v6128, %v6424
    %v6493 = vadd.f32 %v6129, %v6425
    %v6494 = vadd.f32 %v6130, %v6426
    %v6495 = vadd.f32 %v6131, %v6427
    %v6496 = vadd.f32 %v6132, %v6428
    %v6497 = vadd.f32 %v6133, %v6429
    %v6498 = vadd.f32 %v6134, %v6430
    %v6499 = vadd.f32 %v6135, %v6431
    %v6500 = vadd.f32 %v6136, %v6432
    %v6501 = vadd.f32 %v6137, %v6433
    %v6502 = vadd.f32 %v6138, %v6434
    %v6503 = vadd.f32 %v6139, %v6435
    %v6504 = vadd.f32 %v6140, %v6436
    %v6505 = vadd.f32 %v6141, %v6437
    %v6506 = vadd.f32 %v6142, %v6438
    %v6507 = vadd.f32 %v6143, %v6439
    %v6508 = vadd.f32 %v6144, %v6440
    %v6509 = vadd.f32 %v6145, %v6441
    %v6510 = vadd.f32 %v6146, %v6442
    %v6511 = vadd.f32 %v6147, %v6443
    %v6512 = vadd.f32 %v6148, %v6444
    %v6513 = vadd.f32 %v6149, %v6445
    %v6514 = vadd.f32 %v6150, %v6446
    %v6515 = vadd.f32 %v6151, %v6447
    %v6516 = vadd.f32 %v6152, %v6448
    %v6517 = vadd.f32 %v6153, %v6449
    %v6518 = vadd.f32 %v6154, %v6450
    %v6519 = vadd.f32 %v6155, %v6451
    %v6520 = vadd.f32 %v6156, %v6452
    %v6521 = vadd.f32 %v6157, %v6453
    %v6522 = vadd.f32 %v6158, %v6454
    %v6523 = vadd.f32 %v6159, %v6455
    %v6524 = vadd.f32 %v6160, %v6456
    %v6525 = vadd.f32 %v6161, %v6457
    %v6526 = vadd.f32 %v6162, %v6458
    %v6527 = vadd.f32 %v6163, %v6459
    %v6528 = vadd.f32 %v6164, %v6460
    %v6529 = vadd.f32 %v6165, %v6461
    %v6530 = vadd.f32 %v6166, %v6462
    %v6531 = vadd.f32 %v6167, %v6463
    %v6532 = vadd.f32 %v6168, %v6464
    %v6533 = vadd.f32 %v6169, %v6465
    %v6534 = vadd.f32 %v6170, %v6466
    %v6535 = vadd.f32 %v6171, %v6467
    %v6536 = vadd.f32 %v6172, %v6468
    %v6537 = vadd.f32 %v6173, %v6469
    %v6538 = vadd.f32 %v6174, %v6470
    %v6539 = vadd.f32 %v6175, %v6471
    %v6540 = vadd.f32 %v6176, %v6472
    %v6541 = vadd.f32 %v6177, %v6473
    %v6542 = vadd.f32 %v6178, %v6474
    %v6543 = vadd.f32 %v6179, %v6475
    %v6544 = vld [vmem:[#allocation2 + $0x220] sm:$0xff]
    %v6545 = vld [vmem:[#allocation2 + $0x228] sm:$0xff]
    %v6546 = vld [vmem:[#allocation2 + $0x230] sm:$0xff]
    %v6547 = vld [vmem:[#allocation2 + $0x238] sm:$0xff]
    %s6548 = scalar_lea.vmem %s12, 512
    %v6549 = vld [vmem:[%s6548] sm:$0xff]
    %v6550 = vld [vmem:[%s6548 + $0x8] sm:$0xff]
    %v6551 = vld [vmem:[%s6548 + $0x10] sm:$0xff]
    %v6552 = vld [vmem:[%s6548 + $0x18] sm:$0xff]
    %v6553 = vld [vmem:[%s6548 + $0x20] sm:$0xff]
    %v6554 = vld [vmem:[%s6548 + $0x28] sm:$0xff]
    %v6555 = vld [vmem:[%s6548 + $0x30] sm:$0xff]
    %v6556 = vld [vmem:[%s6548 + $0x38] sm:$0xff]
    %v6557 = vld [vmem:[%s6548 + $0x40] sm:$0xff]
    %v6558 = vld [vmem:[%s6548 + $0x48] sm:$0xff]
    %v6559 = vld [vmem:[%s6548 + $0x50] sm:$0xff]
    %v6560 = vld [vmem:[%s6548 + $0x58] sm:$0xff]
    %v6561 = vld [vmem:[%s6548 + $0x60] sm:$0xff]
    %v6562 = vld [vmem:[%s6548 + $0x68] sm:$0xff]
    %v6563 = vld [vmem:[%s6548 + $0x70] sm:$0xff]
    %v6564 = vld [vmem:[%s6548 + $0x78] sm:$0xff]
    %6566 = vset.pattern.permute.xlu0 0
    %6567 = vperm.xlu0 %6566, %v6549
    %v6568 = vpop.permute.xlu0 %6567
    %6571 = vset.pattern.permute.xlu0 0
    %6572 = vperm.xlu0 %6571, %v6550
    %v6573 = vpop.permute.xlu0 %6572
    %6576 = vset.pattern.permute.xlu0 0
    %6577 = vperm.xlu0 %6576, %v6551
    %v6578 = vpop.permute.xlu0 %6577
    %6581 = vset.pattern.permute.xlu0 0
    %6582 = vperm.xlu0 %6581, %v6552
    %v6583 = vpop.permute.xlu0 %6582
    %6586 = vset.pattern.permute.xlu0 0
    %6587 = vperm.xlu0 %6586, %v6553
    %v6588 = vpop.permute.xlu0 %6587
    %6591 = vset.pattern.permute.xlu0 0
    %6592 = vperm.xlu0 %6591, %v6554
    %v6593 = vpop.permute.xlu0 %6592
    %6596 = vset.pattern.permute.xlu0 0
    %6597 = vperm.xlu0 %6596, %v6555
    %v6598 = vpop.permute.xlu0 %6597
    %6601 = vset.pattern.permute.xlu0 0
    %6602 = vperm.xlu0 %6601, %v6556
    %v6603 = vpop.permute.xlu0 %6602
    %6606 = vset.pattern.permute.xlu0 0
    %6607 = vperm.xlu0 %6606, %v6557
    %v6608 = vpop.permute.xlu0 %6607
    %6611 = vset.pattern.permute.xlu0 0
    %6612 = vperm.xlu0 %6611, %v6558
    %v6613 = vpop.permute.xlu0 %6612
    %6616 = vset.pattern.permute.xlu0 0
    %6617 = vperm.xlu0 %6616, %v6559
    %v6618 = vpop.permute.xlu0 %6617
    %6621 = vset.pattern.permute.xlu0 0
    %6622 = vperm.xlu0 %6621, %v6560
    %v6623 = vpop.permute.xlu0 %6622
    %6626 = vset.pattern.permute.xlu0 0
    %6627 = vperm.xlu0 %6626, %v6561
    %v6628 = vpop.permute.xlu0 %6627
    %6631 = vset.pattern.permute.xlu0 0
    %6632 = vperm.xlu0 %6631, %v6562
    %v6633 = vpop.permute.xlu0 %6632
    %6636 = vset.pattern.permute.xlu0 0
    %6637 = vperm.xlu0 %6636, %v6563
    %v6638 = vpop.permute.xlu0 %6637
    %6641 = vset.pattern.permute.xlu0 0
    %6642 = vperm.xlu0 %6641, %v6564
    %v6643 = vpop.permute.xlu0 %6642
    %v6645 = vmul.f32 %v5490, %v6568
    %v6646 = vmul.f32 %v5491, %v6568
    %v6647 = vmul.f32 %v5492, %v6568
    %v6648 = vmul.f32 %v5493, %v6568
    %v6649 = vmul.f32 %v5494, %v6573
    %v6650 = vmul.f32 %v5495, %v6573
    %v6651 = vmul.f32 %v5496, %v6573
    %v6652 = vmul.f32 %v5497, %v6573
    %v6653 = vmul.f32 %v5498, %v6578
    %v6654 = vmul.f32 %v5499, %v6578
    %v6655 = vmul.f32 %v5500, %v6578
    %v6656 = vmul.f32 %v5501, %v6578
    %v6657 = vmul.f32 %v5502, %v6583
    %v6658 = vmul.f32 %v5503, %v6583
    %v6659 = vmul.f32 %v5504, %v6583
    %v6660 = vmul.f32 %v5505, %v6583
    %v6661 = vmul.f32 %v5506, %v6588
    %v6662 = vmul.f32 %v5507, %v6588
    %v6663 = vmul.f32 %v5508, %v6588
    %v6664 = vmul.f32 %v5509, %v6588
    %v6665 = vmul.f32 %v5510, %v6593
    %v6666 = vmul.f32 %v5511, %v6593
    %v6667 = vmul.f32 %v5512, %v6593
    %v6668 = vmul.f32 %v5513, %v6593
    %v6669 = vmul.f32 %v5514, %v6598
    %v6670 = vmul.f32 %v5515, %v6598
    %v6671 = vmul.f32 %v5516, %v6598
    %v6672 = vmul.f32 %v5517, %v6598
    %v6673 = vmul.f32 %v5518, %v6603
    %v6674 = vmul.f32 %v5519, %v6603
    %v6675 = vmul.f32 %v5520, %v6603
    %v6676 = vmul.f32 %v5521, %v6603
    %v6677 = vmul.f32 %v5522, %v6608
    %v6678 = vmul.f32 %v5523, %v6608
    %v6679 = vmul.f32 %v5524, %v6608
    %v6680 = vmul.f32 %v5525, %v6608
    %v6681 = vmul.f32 %v5526, %v6613
    %v6682 = vmul.f32 %v5527, %v6613
    %v6683 = vmul.f32 %v5528, %v6613
    %v6684 = vmul.f32 %v5529, %v6613
    %v6685 = vmul.f32 %v5530, %v6618
    %v6686 = vmul.f32 %v5531, %v6618
    %v6687 = vmul.f32 %v5532, %v6618
    %v6688 = vmul.f32 %v5533, %v6618
    %v6689 = vmul.f32 %v5534, %v6623
    %v6690 = vmul.f32 %v5535, %v6623
    %v6691 = vmul.f32 %v5536, %v6623
    %v6692 = vmul.f32 %v5537, %v6623
    %v6693 = vmul.f32 %v5538, %v6628
    %v6694 = vmul.f32 %v5539, %v6628
    %v6695 = vmul.f32 %v5540, %v6628
    %v6696 = vmul.f32 %v5541, %v6628
    %v6697 = vmul.f32 %v5542, %v6633
    %v6698 = vmul.f32 %v5543, %v6633
    %v6699 = vmul.f32 %v5544, %v6633
    %v6700 = vmul.f32 %v5545, %v6633
    %v6701 = vmul.f32 %v5546, %v6638
    %v6702 = vmul.f32 %v5547, %v6638
    %v6703 = vmul.f32 %v5548, %v6638
    %v6704 = vmul.f32 %v5549, %v6638
    %v6705 = vmul.f32 %v6544, %v6643
    %v6706 = vmul.f32 %v6545, %v6643
    %v6707 = vmul.f32 %v6546, %v6643
    %v6708 = vmul.f32 %v6547, %v6643
    %s6709 = scalar_lea.vmem %s10, 16
    %v6710 = vld [vmem:[%s6709] sm:$0xf]
    %v6712 = vlaneseq
    %v6713 = vshrl.u32 %v6712, 7
    %v6714 = vsub.s32 0, %v6713
    %v6715 = vrot.slane %v6710, %v6714
    %v6716 = vlaneseq
    %v6717 = vshrl.u32 %v6716, 7
    %v6718 = vsub.s32 1, %v6717
    %v6719 = vrot.slane %v6710, %v6718
    %v6720 = vlaneseq
    %v6721 = vshrl.u32 %v6720, 7
    %v6722 = vsub.s32 2, %v6721
    %v6723 = vrot.slane %v6710, %v6722
    %v6724 = vlaneseq
    %v6725 = vshrl.u32 %v6724, 7
    %v6726 = vsub.s32 3, %v6725
    %v6727 = vrot.slane %v6710, %v6726
    %v6732 = vmul.f32 %v6645, %v6715
    %v6733 = vmul.f32 %v6646, %v6719
    %v6734 = vmul.f32 %v6647, %v6723
    %v6735 = vmul.f32 %v6648, %v6727
    %v6736 = vmul.f32 %v6649, %v6715
    %v6737 = vmul.f32 %v6650, %v6719
    %v6738 = vmul.f32 %v6651, %v6723
    %v6739 = vmul.f32 %v6652, %v6727
    %v6740 = vmul.f32 %v6653, %v6715
    %v6741 = vmul.f32 %v6654, %v6719
    %v6742 = vmul.f32 %v6655, %v6723
    %v6743 = vmul.f32 %v6656, %v6727
    %v6744 = vmul.f32 %v6657, %v6715
    %v6745 = vmul.f32 %v6658, %v6719
    %v6746 = vmul.f32 %v6659, %v6723
    %v6747 = vmul.f32 %v6660, %v6727
    %v6748 = vmul.f32 %v6661, %v6715
    %v6749 = vmul.f32 %v6662, %v6719
    %v6750 = vmul.f32 %v6663, %v6723
    %v6751 = vmul.f32 %v6664, %v6727
    %v6752 = vmul.f32 %v6665, %v6715
    %v6753 = vmul.f32 %v6666, %v6719
    %v6754 = vmul.f32 %v6667, %v6723
    %v6755 = vmul.f32 %v6668, %v6727
    %v6756 = vmul.f32 %v6669, %v6715
    %v6757 = vmul.f32 %v6670, %v6719
    %v6758 = vmul.f32 %v6671, %v6723
    %v6759 = vmul.f32 %v6672, %v6727
    %v6760 = vmul.f32 %v6673, %v6715
    %v6761 = vmul.f32 %v6674, %v6719
    %v6762 = vmul.f32 %v6675, %v6723
    %v6763 = vmul.f32 %v6676, %v6727
    %v6764 = vmul.f32 %v6677, %v6715
    %v6765 = vmul.f32 %v6678, %v6719
    %v6766 = vmul.f32 %v6679, %v6723
    %v6767 = vmul.f32 %v6680, %v6727
    %v6768 = vmul.f32 %v6681, %v6715
    %v6769 = vmul.f32 %v6682, %v6719
    %v6770 = vmul.f32 %v6683, %v6723
    %v6771 = vmul.f32 %v6684, %v6727
    %v6772 = vmul.f32 %v6685, %v6715
    %v6773 = vmul.f32 %v6686, %v6719
    %v6774 = vmul.f32 %v6687, %v6723
    %v6775 = vmul.f32 %v6688, %v6727
    %v6776 = vmul.f32 %v6689, %v6715
    %v6777 = vmul.f32 %v6690, %v6719
    %v6778 = vmul.f32 %v6691, %v6723
    %v6779 = vmul.f32 %v6692, %v6727
    %v6780 = vmul.f32 %v6693, %v6715
    %v6781 = vmul.f32 %v6694, %v6719
    %v6782 = vmul.f32 %v6695, %v6723
    %v6783 = vmul.f32 %v6696, %v6727
    %v6784 = vmul.f32 %v6697, %v6715
    %v6785 = vmul.f32 %v6698, %v6719
    %v6786 = vmul.f32 %v6699, %v6723
    %v6787 = vmul.f32 %v6700, %v6727
    %v6788 = vmul.f32 %v6701, %v6715
    %v6789 = vmul.f32 %v6702, %v6719
    %v6790 = vmul.f32 %v6703, %v6723
    %v6791 = vmul.f32 %v6704, %v6727
    %v6792 = vmul.f32 %v6705, %v6715
    %v6793 = vmul.f32 %v6706, %v6719
    %v6794 = vmul.f32 %v6707, %v6723
    %v6795 = vmul.f32 %v6708, %v6727
    %v6860 = vrot.slane %v6732, 1
    %v6861 = vrot.slane %v6733, 1
    %v6862 = vrot.slane %v6734, 1
    %v6863 = vrot.slane %v6735, 1
    %v6864 = vrot.slane %v6736, 1
    %v6865 = vsel %vm4635, %v6860, %v6864
    %v6866 = vrot.slane %v6737, 1
    %v6867 = vsel %vm4635, %v6861, %v6866
    %v6868 = vrot.slane %v6738, 1
    %v6869 = vsel %vm4635, %v6862, %v6868
    %v6870 = vrot.slane %v6739, 1
    %v6871 = vsel %vm4635, %v6863, %v6870
    %v6872 = vrot.slane %v6740, 1
    %v6873 = vsel %vm4635, %v6864, %v6872
    %v6874 = vrot.slane %v6741, 1
    %v6875 = vsel %vm4635, %v6866, %v6874
    %v6876 = vrot.slane %v6742, 1
    %v6877 = vsel %vm4635, %v6868, %v6876
    %v6878 = vrot.slane %v6743, 1
    %v6879 = vsel %vm4635, %v6870, %v6878
    %v6880 = vrot.slane %v6744, 1
    %v6881 = vsel %vm4635, %v6872, %v6880
    %v6882 = vrot.slane %v6745, 1
    %v6883 = vsel %vm4635, %v6874, %v6882
    %v6884 = vrot.slane %v6746, 1
    %v6885 = vsel %vm4635, %v6876, %v6884
    %v6886 = vrot.slane %v6747, 1
    %v6887 = vsel %vm4635, %v6878, %v6886
    %v6888 = vrot.slane %v6748, 1
    %v6889 = vsel %vm4635, %v6880, %v6888
    %v6890 = vrot.slane %v6749, 1
    %v6891 = vsel %vm4635, %v6882, %v6890
    %v6892 = vrot.slane %v6750, 1
    %v6893 = vsel %vm4635, %v6884, %v6892
    %v6894 = vrot.slane %v6751, 1
    %v6895 = vsel %vm4635, %v6886, %v6894
    %v6896 = vrot.slane %v6752, 1
    %v6897 = vsel %vm4635, %v6888, %v6896
    %v6898 = vrot.slane %v6753, 1
    %v6899 = vsel %vm4635, %v6890, %v6898
    %v6900 = vrot.slane %v6754, 1
    %v6901 = vsel %vm4635, %v6892, %v6900
    %v6902 = vrot.slane %v6755, 1
    %v6903 = vsel %vm4635, %v6894, %v6902
    %v6904 = vrot.slane %v6756, 1
    %v6905 = vsel %vm4635, %v6896, %v6904
    %v6906 = vrot.slane %v6757, 1
    %v6907 = vsel %vm4635, %v6898, %v6906
    %v6908 = vrot.slane %v6758, 1
    %v6909 = vsel %vm4635, %v6900, %v6908
    %v6910 = vrot.slane %v6759, 1
    %v6911 = vsel %vm4635, %v6902, %v6910
    %v6912 = vrot.slane %v6760, 1
    %v6913 = vsel %vm4635, %v6904, %v6912
    %v6914 = vrot.slane %v6761, 1
    %v6915 = vsel %vm4635, %v6906, %v6914
    %v6916 = vrot.slane %v6762, 1
    %v6917 = vsel %vm4635, %v6908, %v6916
    %v6918 = vrot.slane %v6763, 1
    %v6919 = vsel %vm4635, %v6910, %v6918
    %v6920 = vrot.slane %v6764, 1
    %v6921 = vsel %vm4635, %v6912, %v6920
    %v6922 = vrot.slane %v6765, 1
    %v6923 = vsel %vm4635, %v6914, %v6922
    %v6924 = vrot.slane %v6766, 1
    %v6925 = vsel %vm4635, %v6916, %v6924
    %v6926 = vrot.slane %v6767, 1
    %v6927 = vsel %vm4635, %v6918, %v6926
    %v6928 = vrot.slane %v6768, 1
    %v6929 = vsel %vm4635, %v6920, %v6928
    %v6930 = vrot.slane %v6769, 1
    %v6931 = vsel %vm4635, %v6922, %v6930
    %v6932 = vrot.slane %v6770, 1
    %v6933 = vsel %vm4635, %v6924, %v6932
    %v6934 = vrot.slane %v6771, 1
    %v6935 = vsel %vm4635, %v6926, %v6934
    %v6936 = vrot.slane %v6772, 1
    %v6937 = vsel %vm4635, %v6928, %v6936
    %v6938 = vrot.slane %v6773, 1
    %v6939 = vsel %vm4635, %v6930, %v6938
    %v6940 = vrot.slane %v6774, 1
    %v6941 = vsel %vm4635, %v6932, %v6940
    %v6942 = vrot.slane %v6775, 1
    %v6943 = vsel %vm4635, %v6934, %v6942
    %v6944 = vrot.slane %v6776, 1
    %v6945 = vsel %vm4635, %v6936, %v6944
    %v6946 = vrot.slane %v6777, 1
    %v6947 = vsel %vm4635, %v6938, %v6946
    %v6948 = vrot.slane %v6778, 1
    %v6949 = vsel %vm4635, %v6940, %v6948
    %v6950 = vrot.slane %v6779, 1
    %v6951 = vsel %vm4635, %v6942, %v6950
    %v6952 = vrot.slane %v6780, 1
    %v6953 = vsel %vm4635, %v6944, %v6952
    %v6954 = vrot.slane %v6781, 1
    %v6955 = vsel %vm4635, %v6946, %v6954
    %v6956 = vrot.slane %v6782, 1
    %v6957 = vsel %vm4635, %v6948, %v6956
    %v6958 = vrot.slane %v6783, 1
    %v6959 = vsel %vm4635, %v6950, %v6958
    %v6960 = vrot.slane %v6784, 1
    %v6961 = vsel %vm4635, %v6952, %v6960
    %v6962 = vrot.slane %v6785, 1
    %v6963 = vsel %vm4635, %v6954, %v6962
    %v6964 = vrot.slane %v6786, 1
    %v6965 = vsel %vm4635, %v6956, %v6964
    %v6966 = vrot.slane %v6787, 1
    %v6967 = vsel %vm4635, %v6958, %v6966
    %v6968 = vrot.slane %v6788, 1
    %v6969 = vsel %vm4635, %v6960, %v6968
    %v6970 = vrot.slane %v6789, 1
    %v6971 = vsel %vm4635, %v6962, %v6970
    %v6972 = vrot.slane %v6790, 1
    %v6973 = vsel %vm4635, %v6964, %v6972
    %v6974 = vrot.slane %v6791, 1
    %v6975 = vsel %vm4635, %v6966, %v6974
    %v6976 = vrot.slane %v6792, 1
    %v6977 = vsel %vm4635, %v6968, %v6976
    %v6978 = vrot.slane %v6793, 1
    %v6979 = vsel %vm4635, %v6970, %v6978
    %v6980 = vrot.slane %v6794, 1
    %v6981 = vsel %vm4635, %v6972, %v6980
    %v6982 = vrot.slane %v6795, 1
    %v6983 = vsel %vm4635, %v6974, %v6982
    %v7052 = vadd.f32 %v6476, %v6860
    %v7053 = vadd.f32 %v6477, %v6861
    %v7054 = vadd.f32 %v6478, %v6862
    %v7055 = vadd.f32 %v6479, %v6863
    %v7056 = vadd.f32 %v6480, %v6865
    %v7057 = vadd.f32 %v6481, %v6867
    %v7058 = vadd.f32 %v6482, %v6869
    %v7059 = vadd.f32 %v6483, %v6871
    %v7060 = vadd.f32 %v6484, %v6873
    %v7061 = vadd.f32 %v6485, %v6875
    %v7062 = vadd.f32 %v6486, %v6877
    %v7063 = vadd.f32 %v6487, %v6879
    %v7064 = vadd.f32 %v6488, %v6881
    %v7065 = vadd.f32 %v6489, %v6883
    %v7066 = vadd.f32 %v6490, %v6885
    %v7067 = vadd.f32 %v6491, %v6887
    %v7068 = vadd.f32 %v6492, %v6889
    %v7069 = vadd.f32 %v6493, %v6891
    %v7070 = vadd.f32 %v6494, %v6893
    %v7071 = vadd.f32 %v6495, %v6895
    %v7072 = vadd.f32 %v6496, %v6897
    %v7073 = vadd.f32 %v6497, %v6899
    %v7074 = vadd.f32 %v6498, %v6901
    %v7075 = vadd.f32 %v6499, %v6903
    %v7076 = vadd.f32 %v6500, %v6905
    %v7077 = vadd.f32 %v6501, %v6907
    %v7078 = vadd.f32 %v6502, %v6909
    %v7079 = vadd.f32 %v6503, %v6911
    %v7080 = vadd.f32 %v6504, %v6913
    %v7081 = vadd.f32 %v6505, %v6915
    %v7082 = vadd.f32 %v6506, %v6917
    %v7083 = vadd.f32 %v6507, %v6919
    %v7084 = vadd.f32 %v6508, %v6921
    %v7085 = vadd.f32 %v6509, %v6923
    %v7086 = vadd.f32 %v6510, %v6925
    %v7087 = vadd.f32 %v6511, %v6927
    %v7088 = vadd.f32 %v6512, %v6929
    %v7089 = vadd.f32 %v6513, %v6931
    %v7090 = vadd.f32 %v6514, %v6933
    %v7091 = vadd.f32 %v6515, %v6935
    %v7092 = vadd.f32 %v6516, %v6937
    %v7093 = vadd.f32 %v6517, %v6939
    %v7094 = vadd.f32 %v6518, %v6941
    %v7095 = vadd.f32 %v6519, %v6943
    %v7096 = vadd.f32 %v6520, %v6945
    %v7097 = vadd.f32 %v6521, %v6947
    %v7098 = vadd.f32 %v6522, %v6949
    %v7099 = vadd.f32 %v6523, %v6951
    %v7100 = vadd.f32 %v6524, %v6953
    %v7101 = vadd.f32 %v6525, %v6955
    %v7102 = vadd.f32 %v6526, %v6957
    %v7103 = vadd.f32 %v6527, %v6959
    %v7104 = vadd.f32 %v6528, %v6961
    %v7105 = vadd.f32 %v6529, %v6963
    %v7106 = vadd.f32 %v6530, %v6965
    %v7107 = vadd.f32 %v6531, %v6967
    %v7108 = vadd.f32 %v6532, %v6969
    %v7109 = vadd.f32 %v6533, %v6971
    %v7110 = vadd.f32 %v6534, %v6973
    %v7111 = vadd.f32 %v6535, %v6975
    %v7112 = vadd.f32 %v6536, %v6977
    %v7113 = vadd.f32 %v6537, %v6979
    %v7114 = vadd.f32 %v6538, %v6981
    %v7115 = vadd.f32 %v6539, %v6983
    %v7116 = vadd.f32 %v6540, %v6976
    %v7117 = vadd.f32 %v6541, %v6978
    %v7118 = vadd.f32 %v6542, %v6980
    %v7119 = vadd.f32 %v6543, %v6982
    %v7120 = vld [vmem:[#allocation2 + $0x40] sm:$0xfe]
    %v7121 = vld [vmem:[#allocation2 + $0x48] sm:$0xfe]
    %v7122 = vld [vmem:[#allocation2 + $0x50] sm:$0xfe]
    %v7123 = vld [vmem:[#allocation2 + $0x58] sm:$0xfe]
    %v7124 = vld [vmem:[#allocation2 + $0x60] sm:$0xff]
    %v7125 = vld [vmem:[#allocation2 + $0x68] sm:$0xff]
    %v7126 = vld [vmem:[#allocation2 + $0x70] sm:$0xff]
    %v7127 = vld [vmem:[#allocation2 + $0x78] sm:$0xff]
    %v7128 = vld [vmem:[#allocation2 + $0x80] sm:$0xff]
    %v7129 = vld [vmem:[#allocation2 + $0x88] sm:$0xff]
    %v7130 = vld [vmem:[#allocation2 + $0x90] sm:$0xff]
    %v7131 = vld [vmem:[#allocation2 + $0x98] sm:$0xff]
    %v7132 = vld [vmem:[#allocation2 + $0xa0] sm:$0xff]
    %v7133 = vld [vmem:[#allocation2 + $0xa8] sm:$0xff]
    %v7134 = vld [vmem:[#allocation2 + $0xb0] sm:$0xff]
    %v7135 = vld [vmem:[#allocation2 + $0xb8] sm:$0xff]
    %v7136 = vld [vmem:[#allocation2 + $0xc0] sm:$0xff]
    %v7137 = vld [vmem:[#allocation2 + $0xc8] sm:$0xff]
    %v7138 = vld [vmem:[#allocation2 + $0xd0] sm:$0xff]
    %v7139 = vld [vmem:[#allocation2 + $0xd8] sm:$0xff]
    %v7140 = vld [vmem:[#allocation2 + $0xe0] sm:$0xff]
    %v7141 = vld [vmem:[#allocation2 + $0xe8] sm:$0xff]
    %v7142 = vld [vmem:[#allocation2 + $0xf0] sm:$0xff]
    %v7143 = vld [vmem:[#allocation2 + $0xf8] sm:$0xff]
    %v7144 = vld [vmem:[#allocation2 + $0x100] sm:$0xff]
    %v7145 = vld [vmem:[#allocation2 + $0x108] sm:$0xff]
    %v7146 = vld [vmem:[#allocation2 + $0x110] sm:$0xff]
    %v7147 = vld [vmem:[#allocation2 + $0x118] sm:$0xff]
    %v7148 = vld [vmem:[#allocation2 + $0x120] sm:$0xff]
    %v7149 = vld [vmem:[#allocation2 + $0x128] sm:$0xff]
    %v7150 = vld [vmem:[#allocation2 + $0x130] sm:$0xff]
    %v7151 = vld [vmem:[#allocation2 + $0x138] sm:$0xff]
    %v7152 = vld [vmem:[#allocation2 + $0x140] sm:$0xff]
    %v7153 = vld [vmem:[#allocation2 + $0x148] sm:$0xff]
    %v7154 = vld [vmem:[#allocation2 + $0x150] sm:$0xff]
    %v7155 = vld [vmem:[#allocation2 + $0x158] sm:$0xff]
    %v7156 = vld [vmem:[#allocation2 + $0x160] sm:$0xff]
    %v7157 = vld [vmem:[#allocation2 + $0x168] sm:$0xff]
    %v7158 = vld [vmem:[#allocation2 + $0x170] sm:$0xff]
    %v7159 = vld [vmem:[#allocation2 + $0x178] sm:$0xff]
    %v7160 = vld [vmem:[#allocation2 + $0x180] sm:$0xff]
    %v7161 = vld [vmem:[#allocation2 + $0x188] sm:$0xff]
    %v7162 = vld [vmem:[#allocation2 + $0x190] sm:$0xff]
    %v7163 = vld [vmem:[#allocation2 + $0x198] sm:$0xff]
    %v7164 = vld [vmem:[#allocation2 + $0x1a0] sm:$0xff]
    %v7165 = vld [vmem:[#allocation2 + $0x1a8] sm:$0xff]
    %v7166 = vld [vmem:[#allocation2 + $0x1b0] sm:$0xff]
    %v7167 = vld [vmem:[#allocation2 + $0x1b8] sm:$0xff]
    %v7168 = vld [vmem:[#allocation2 + $0x1c0] sm:$0xff]
    %v7169 = vld [vmem:[#allocation2 + $0x1c8] sm:$0xff]
    %v7170 = vld [vmem:[#allocation2 + $0x1d0] sm:$0xff]
    %v7171 = vld [vmem:[#allocation2 + $0x1d8] sm:$0xff]
    %v7172 = vld [vmem:[#allocation2 + $0x1e0] sm:$0xff]
    %v7173 = vld [vmem:[#allocation2 + $0x1e8] sm:$0xff]
    %v7174 = vld [vmem:[#allocation2 + $0x1f0] sm:$0xff]
    %v7175 = vld [vmem:[#allocation2 + $0x1f8] sm:$0xff]
    %v7176 = vld [vmem:[#allocation2 + $0x200] sm:$0xff]
    %v7177 = vld [vmem:[#allocation2 + $0x208] sm:$0xff]
    %v7178 = vld [vmem:[#allocation2 + $0x210] sm:$0xff]
    %v7179 = vld [vmem:[#allocation2 + $0x218] sm:$0xff]
    %v7180 = vld [vmem:[#allocation2 + $0x220] sm:$0xff]
    %v7181 = vld [vmem:[#allocation2 + $0x228] sm:$0xff]
    %v7182 = vld [vmem:[#allocation2 + $0x230] sm:$0xff]
    %v7183 = vld [vmem:[#allocation2 + $0x238] sm:$0xff]
    %v7184 = vld [vmem:[#allocation2 + $0x240] sm:$0x1]
    %v7185 = vld [vmem:[#allocation2 + $0x248] sm:$0x1]
    %v7186 = vld [vmem:[#allocation2 + $0x250] sm:$0x1]
    %v7187 = vld [vmem:[#allocation2 + $0x258] sm:$0x1]
    %s7188 = scalar_lea.vmem %s12, 640
    %v7189 = vld [vmem:[%s7188] sm:$0xff]
    %v7190 = vld [vmem:[%s7188 + $0x8] sm:$0xff]
    %v7191 = vld [vmem:[%s7188 + $0x10] sm:$0xff]
    %v7192 = vld [vmem:[%s7188 + $0x18] sm:$0xff]
    %v7193 = vld [vmem:[%s7188 + $0x20] sm:$0xff]
    %v7194 = vld [vmem:[%s7188 + $0x28] sm:$0xff]
    %v7195 = vld [vmem:[%s7188 + $0x30] sm:$0xff]
    %v7196 = vld [vmem:[%s7188 + $0x38] sm:$0xff]
    %v7197 = vld [vmem:[%s7188 + $0x40] sm:$0xff]
    %v7198 = vld [vmem:[%s7188 + $0x48] sm:$0xff]
    %v7199 = vld [vmem:[%s7188 + $0x50] sm:$0xff]
    %v7200 = vld [vmem:[%s7188 + $0x58] sm:$0xff]
    %v7201 = vld [vmem:[%s7188 + $0x60] sm:$0xff]
    %v7202 = vld [vmem:[%s7188 + $0x68] sm:$0xff]
    %v7203 = vld [vmem:[%s7188 + $0x70] sm:$0xff]
    %v7204 = vld [vmem:[%s7188 + $0x78] sm:$0xff]
    %7206 = vset.pattern.permute.xlu0 0
    %7207 = vperm.xlu0 %7206, %v7189
    %v7208 = vpop.permute.xlu0 %7207
    %7210 = vset.pattern.permute.xlu0 0
    %7211 = vperm.xlu0 %7210, %v7190
    %v7212 = vpop.permute.xlu0 %7211
    %7214 = vset.pattern.permute.xlu0 0
    %7215 = vperm.xlu0 %7214, %v7191
    %v7216 = vpop.permute.xlu0 %7215
    %7218 = vset.pattern.permute.xlu0 0
    %7219 = vperm.xlu0 %7218, %v7192
    %v7220 = vpop.permute.xlu0 %7219
    %7222 = vset.pattern.permute.xlu0 0
    %7223 = vperm.xlu0 %7222, %v7193
    %v7224 = vpop.permute.xlu0 %7223
    %7226 = vset.pattern.permute.xlu0 0
    %7227 = vperm.xlu0 %7226, %v7194
    %v7228 = vpop.permute.xlu0 %7227
    %7230 = vset.pattern.permute.xlu0 0
    %7231 = vperm.xlu0 %7230, %v7195
    %v7232 = vpop.permute.xlu0 %7231
    %7234 = vset.pattern.permute.xlu0 0
    %7235 = vperm.xlu0 %7234, %v7196
    %v7236 = vpop.permute.xlu0 %7235
    %7238 = vset.pattern.permute.xlu0 0
    %7239 = vperm.xlu0 %7238, %v7197
    %v7240 = vpop.permute.xlu0 %7239
    %7242 = vset.pattern.permute.xlu0 0
    %7243 = vperm.xlu0 %7242, %v7198
    %v7244 = vpop.permute.xlu0 %7243
    %7246 = vset.pattern.permute.xlu0 0
    %7247 = vperm.xlu0 %7246, %v7199
    %v7248 = vpop.permute.xlu0 %7247
    %7250 = vset.pattern.permute.xlu0 0
    %7251 = vperm.xlu0 %7250, %v7200
    %v7252 = vpop.permute.xlu0 %7251
    %7254 = vset.pattern.permute.xlu0 0
    %7255 = vperm.xlu0 %7254, %v7201
    %v7256 = vpop.permute.xlu0 %7255
    %7258 = vset.pattern.permute.xlu0 0
    %7259 = vperm.xlu0 %7258, %v7202
    %v7260 = vpop.permute.xlu0 %7259
    %7262 = vset.pattern.permute.xlu0 0
    %7263 = vperm.xlu0 %7262, %v7203
    %v7264 = vpop.permute.xlu0 %7263
    %7266 = vset.pattern.permute.xlu0 0
    %7267 = vperm.xlu0 %7266, %v7204
    %v7268 = vpop.permute.xlu0 %7267
    %v7269 = vrot.slane %v7208, 7
    %v7270 = vrot.slane %v7212, 7
    %v7271 = vsel %vm5635, %v7269, %v7270
    %v7272 = vrot.slane %v7216, 7
    %v7273 = vsel %vm5635, %v7270, %v7272
    %v7274 = vrot.slane %v7220, 7
    %v7275 = vsel %vm5635, %v7272, %v7274
    %v7276 = vrot.slane %v7224, 7
    %v7277 = vsel %vm5635, %v7274, %v7276
    %v7278 = vrot.slane %v7228, 7
    %v7279 = vsel %vm5635, %v7276, %v7278
    %v7280 = vrot.slane %v7232, 7
    %v7281 = vsel %vm5635, %v7278, %v7280
    %v7282 = vrot.slane %v7236, 7
    %v7283 = vsel %vm5635, %v7280, %v7282
    %v7284 = vrot.slane %v7240, 7
    %v7285 = vsel %vm5635, %v7282, %v7284
    %v7286 = vrot.slane %v7244, 7
    %v7287 = vsel %vm5635, %v7284, %v7286
    %v7288 = vrot.slane %v7248, 7
    %v7289 = vsel %vm5635, %v7286, %v7288
    %v7290 = vrot.slane %v7252, 7
    %v7291 = vsel %vm5635, %v7288, %v7290
    %v7292 = vrot.slane %v7256, 7
    %v7293 = vsel %vm5635, %v7290, %v7292
    %v7294 = vrot.slane %v7260, 7
    %v7295 = vsel %vm5635, %v7292, %v7294
    %v7296 = vrot.slane %v7264, 7
    %v7297 = vsel %vm5635, %v7294, %v7296
    %v7298 = vrot.slane %v7268, 7
    %v7299 = vsel %vm5635, %v7296, %v7298
    %v7317 = vmul.f32 %v7120, %v7269
    %v7318 = vmul.f32 %v7121, %v7269
    %v7319 = vmul.f32 %v7122, %v7269
    %v7320 = vmul.f32 %v7123, %v7269
    %v7321 = vmul.f32 %v7124, %v7271
    %v7322 = vmul.f32 %v7125, %v7271
    %v7323 = vmul.f32 %v7126, %v7271
    %v7324 = vmul.f32 %v7127, %v7271
    %v7325 = vmul.f32 %v7128, %v7273
    %v7326 = vmul.f32 %v7129, %v7273
    %v7327 = vmul.f32 %v7130, %v7273
    %v7328 = vmul.f32 %v7131, %v7273
    %v7329 = vmul.f32 %v7132, %v7275
    %v7330 = vmul.f32 %v7133, %v7275
    %v7331 = vmul.f32 %v7134, %v7275
    %v7332 = vmul.f32 %v7135, %v7275
    %v7333 = vmul.f32 %v7136, %v7277
    %v7334 = vmul.f32 %v7137, %v7277
    %v7335 = vmul.f32 %v7138, %v7277
    %v7336 = vmul.f32 %v7139, %v7277
    %v7337 = vmul.f32 %v7140, %v7279
    %v7338 = vmul.f32 %v7141, %v7279
    %v7339 = vmul.f32 %v7142, %v7279
    %v7340 = vmul.f32 %v7143, %v7279
    %v7341 = vmul.f32 %v7144, %v7281
    %v7342 = vmul.f32 %v7145, %v7281
    %v7343 = vmul.f32 %v7146, %v7281
    %v7344 = vmul.f32 %v7147, %v7281
    %v7345 = vmul.f32 %v7148, %v7283
    %v7346 = vmul.f32 %v7149, %v7283
    %v7347 = vmul.f32 %v7150, %v7283
    %v7348 = vmul.f32 %v7151, %v7283
    %v7349 = vmul.f32 %v7152, %v7285
    %v7350 = vmul.f32 %v7153, %v7285
    %v7351 = vmul.f32 %v7154, %v7285
    %v7352 = vmul.f32 %v7155, %v7285
    %v7353 = vmul.f32 %v7156, %v7287
    %v7354 = vmul.f32 %v7157, %v7287
    %v7355 = vmul.f32 %v7158, %v7287
    %v7356 = vmul.f32 %v7159, %v7287
    %v7357 = vmul.f32 %v7160, %v7289
    %v7358 = vmul.f32 %v7161, %v7289
    %v7359 = vmul.f32 %v7162, %v7289
    %v7360 = vmul.f32 %v7163, %v7289
    %v7361 = vmul.f32 %v7164, %v7291
    %v7362 = vmul.f32 %v7165, %v7291
    %v7363 = vmul.f32 %v7166, %v7291
    %v7364 = vmul.f32 %v7167, %v7291
    %v7365 = vmul.f32 %v7168, %v7293
    %v7366 = vmul.f32 %v7169, %v7293
    %v7367 = vmul.f32 %v7170, %v7293
    %v7368 = vmul.f32 %v7171, %v7293
    %v7369 = vmul.f32 %v7172, %v7295
    %v7370 = vmul.f32 %v7173, %v7295
    %v7371 = vmul.f32 %v7174, %v7295
    %v7372 = vmul.f32 %v7175, %v7295
    %v7373 = vmul.f32 %v7176, %v7297
    %v7374 = vmul.f32 %v7177, %v7297
    %v7375 = vmul.f32 %v7178, %v7297
    %v7376 = vmul.f32 %v7179, %v7297
    %v7377 = vmul.f32 %v7180, %v7299
    %v7378 = vmul.f32 %v7181, %v7299
    %v7379 = vmul.f32 %v7182, %v7299
    %v7380 = vmul.f32 %v7183, %v7299
    %v7381 = vmul.f32 %v7184, %v7298
    %v7382 = vmul.f32 %v7185, %v7298
    %v7383 = vmul.f32 %v7186, %v7298
    %v7384 = vmul.f32 %v7187, %v7298
    %s7385 = scalar_lea.vmem %s10, 20
    %v7386 = vld [vmem:[%s7385] sm:$0xf]
    %v7388 = vlaneseq
    %v7389 = vshrl.u32 %v7388, 7
    %v7390 = vsub.s32 0, %v7389
    %v7391 = vrot.slane %v7386, %v7390
    %v7392 = vlaneseq
    %v7393 = vshrl.u32 %v7392, 7
    %v7394 = vsub.s32 1, %v7393
    %v7395 = vrot.slane %v7386, %v7394
    %v7396 = vlaneseq
    %v7397 = vshrl.u32 %v7396, 7
    %v7398 = vsub.s32 2, %v7397
    %v7399 = vrot.slane %v7386, %v7398
    %v7400 = vlaneseq
    %v7401 = vshrl.u32 %v7400, 7
    %v7402 = vsub.s32 3, %v7401
    %v7403 = vrot.slane %v7386, %v7402
    %v7408 = vmul.f32 %v7317, %v7391
    %v7409 = vmul.f32 %v7318, %v7395
    %v7410 = vmul.f32 %v7319, %v7399
    %v7411 = vmul.f32 %v7320, %v7403
    %v7412 = vmul.f32 %v7321, %v7391
    %v7413 = vmul.f32 %v7322, %v7395
    %v7414 = vmul.f32 %v7323, %v7399
    %v7415 = vmul.f32 %v7324, %v7403
    %v7416 = vmul.f32 %v7325, %v7391
    %v7417 = vmul.f32 %v7326, %v7395
    %v7418 = vmul.f32 %v7327, %v7399
    %v7419 = vmul.f32 %v7328, %v7403
    %v7420 = vmul.f32 %v7329, %v7391
    %v7421 = vmul.f32 %v7330, %v7395
    %v7422 = vmul.f32 %v7331, %v7399
    %v7423 = vmul.f32 %v7332, %v7403
    %v7424 = vmul.f32 %v7333, %v7391
    %v7425 = vmul.f32 %v7334, %v7395
    %v7426 = vmul.f32 %v7335, %v7399
    %v7427 = vmul.f32 %v7336, %v7403
    %v7428 = vmul.f32 %v7337, %v7391
    %v7429 = vmul.f32 %v7338, %v7395
    %v7430 = vmul.f32 %v7339, %v7399
    %v7431 = vmul.f32 %v7340, %v7403
    %v7432 = vmul.f32 %v7341, %v7391
    %v7433 = vmul.f32 %v7342, %v7395
    %v7434 = vmul.f32 %v7343, %v7399
    %v7435 = vmul.f32 %v7344, %v7403
    %v7436 = vmul.f32 %v7345, %v7391
    %v7437 = vmul.f32 %v7346, %v7395
    %v7438 = vmul.f32 %v7347, %v7399
    %v7439 = vmul.f32 %v7348, %v7403
    %v7440 = vmul.f32 %v7349, %v7391
    %v7441 = vmul.f32 %v7350, %v7395
    %v7442 = vmul.f32 %v7351, %v7399
    %v7443 = vmul.f32 %v7352, %v7403
    %v7444 = vmul.f32 %v7353, %v7391
    %v7445 = vmul.f32 %v7354, %v7395
    %v7446 = vmul.f32 %v7355, %v7399
    %v7447 = vmul.f32 %v7356, %v7403
    %v7448 = vmul.f32 %v7357, %v7391
    %v7449 = vmul.f32 %v7358, %v7395
    %v7450 = vmul.f32 %v7359, %v7399
    %v7451 = vmul.f32 %v7360, %v7403
    %v7452 = vmul.f32 %v7361, %v7391
    %v7453 = vmul.f32 %v7362, %v7395
    %v7454 = vmul.f32 %v7363, %v7399
    %v7455 = vmul.f32 %v7364, %v7403
    %v7456 = vmul.f32 %v7365, %v7391
    %v7457 = vmul.f32 %v7366, %v7395
    %v7458 = vmul.f32 %v7367, %v7399
    %v7459 = vmul.f32 %v7368, %v7403
    %v7460 = vmul.f32 %v7369, %v7391
    %v7461 = vmul.f32 %v7370, %v7395
    %v7462 = vmul.f32 %v7371, %v7399
    %v7463 = vmul.f32 %v7372, %v7403
    %v7464 = vmul.f32 %v7373, %v7391
    %v7465 = vmul.f32 %v7374, %v7395
    %v7466 = vmul.f32 %v7375, %v7399
    %v7467 = vmul.f32 %v7376, %v7403
    %v7468 = vmul.f32 %v7377, %v7391
    %v7469 = vmul.f32 %v7378, %v7395
    %v7470 = vmul.f32 %v7379, %v7399
    %v7471 = vmul.f32 %v7380, %v7403
    %v7472 = vmul.f32 %v7381, %v7391
    %v7473 = vmul.f32 %v7382, %v7395
    %v7474 = vmul.f32 %v7383, %v7399
    %v7475 = vmul.f32 %v7384, %v7403
    %v7544 = vrot.slane %v7408, 2
    %v7545 = vrot.slane %v7409, 2
    %v7546 = vrot.slane %v7410, 2
    %v7547 = vrot.slane %v7411, 2
    %v7548 = vrot.slane %v7412, 2
    %v7549 = vsel %vm5911, %v7544, %v7548
    %v7550 = vrot.slane %v7413, 2
    %v7551 = vsel %vm5911, %v7545, %v7550
    %v7552 = vrot.slane %v7414, 2
    %v7553 = vsel %vm5911, %v7546, %v7552
    %v7554 = vrot.slane %v7415, 2
    %v7555 = vsel %vm5911, %v7547, %v7554
    %v7556 = vrot.slane %v7416, 2
    %v7557 = vsel %vm5911, %v7548, %v7556
    %v7558 = vrot.slane %v7417, 2
    %v7559 = vsel %vm5911, %v7550, %v7558
    %v7560 = vrot.slane %v7418, 2
    %v7561 = vsel %vm5911, %v7552, %v7560
    %v7562 = vrot.slane %v7419, 2
    %v7563 = vsel %vm5911, %v7554, %v7562
    %v7564 = vrot.slane %v7420, 2
    %v7565 = vsel %vm5911, %v7556, %v7564
    %v7566 = vrot.slane %v7421, 2
    %v7567 = vsel %vm5911, %v7558, %v7566
    %v7568 = vrot.slane %v7422, 2
    %v7569 = vsel %vm5911, %v7560, %v7568
    %v7570 = vrot.slane %v7423, 2
    %v7571 = vsel %vm5911, %v7562, %v7570
    %v7572 = vrot.slane %v7424, 2
    %v7573 = vsel %vm5911, %v7564, %v7572
    %v7574 = vrot.slane %v7425, 2
    %v7575 = vsel %vm5911, %v7566, %v7574
    %v7576 = vrot.slane %v7426, 2
    %v7577 = vsel %vm5911, %v7568, %v7576
    %v7578 = vrot.slane %v7427, 2
    %v7579 = vsel %vm5911, %v7570, %v7578
    %v7580 = vrot.slane %v7428, 2
    %v7581 = vsel %vm5911, %v7572, %v7580
    %v7582 = vrot.slane %v7429, 2
    %v7583 = vsel %vm5911, %v7574, %v7582
    %v7584 = vrot.slane %v7430, 2
    %v7585 = vsel %vm5911, %v7576, %v7584
    %v7586 = vrot.slane %v7431, 2
    %v7587 = vsel %vm5911, %v7578, %v7586
    %v7588 = vrot.slane %v7432, 2
    %v7589 = vsel %vm5911, %v7580, %v7588
    %v7590 = vrot.slane %v7433, 2
    %v7591 = vsel %vm5911, %v7582, %v7590
    %v7592 = vrot.slane %v7434, 2
    %v7593 = vsel %vm5911, %v7584, %v7592
    %v7594 = vrot.slane %v7435, 2
    %v7595 = vsel %vm5911, %v7586, %v7594
    %v7596 = vrot.slane %v7436, 2
    %v7597 = vsel %vm5911, %v7588, %v7596
    %v7598 = vrot.slane %v7437, 2
    %v7599 = vsel %vm5911, %v7590, %v7598
    %v7600 = vrot.slane %v7438, 2
    %v7601 = vsel %vm5911, %v7592, %v7600
    %v7602 = vrot.slane %v7439, 2
    %v7603 = vsel %vm5911, %v7594, %v7602
    %v7604 = vrot.slane %v7440, 2
    %v7605 = vsel %vm5911, %v7596, %v7604
    %v7606 = vrot.slane %v7441, 2
    %v7607 = vsel %vm5911, %v7598, %v7606
    %v7608 = vrot.slane %v7442, 2
    %v7609 = vsel %vm5911, %v7600, %v7608
    %v7610 = vrot.slane %v7443, 2
    %v7611 = vsel %vm5911, %v7602, %v7610
    %v7612 = vrot.slane %v7444, 2
    %v7613 = vsel %vm5911, %v7604, %v7612
    %v7614 = vrot.slane %v7445, 2
    %v7615 = vsel %vm5911, %v7606, %v7614
    %v7616 = vrot.slane %v7446, 2
    %v7617 = vsel %vm5911, %v7608, %v7616
    %v7618 = vrot.slane %v7447, 2
    %v7619 = vsel %vm5911, %v7610, %v7618
    %v7620 = vrot.slane %v7448, 2
    %v7621 = vsel %vm5911, %v7612, %v7620
    %v7622 = vrot.slane %v7449, 2
    %v7623 = vsel %vm5911, %v7614, %v7622
    %v7624 = vrot.slane %v7450, 2
    %v7625 = vsel %vm5911, %v7616, %v7624
    %v7626 = vrot.slane %v7451, 2
    %v7627 = vsel %vm5911, %v7618, %v7626
    %v7628 = vrot.slane %v7452, 2
    %v7629 = vsel %vm5911, %v7620, %v7628
    %v7630 = vrot.slane %v7453, 2
    %v7631 = vsel %vm5911, %v7622, %v7630
    %v7632 = vrot.slane %v7454, 2
    %v7633 = vsel %vm5911, %v7624, %v7632
    %v7634 = vrot.slane %v7455, 2
    %v7635 = vsel %vm5911, %v7626, %v7634
    %v7636 = vrot.slane %v7456, 2
    %v7637 = vsel %vm5911, %v7628, %v7636
    %v7638 = vrot.slane %v7457, 2
    %v7639 = vsel %vm5911, %v7630, %v7638
    %v7640 = vrot.slane %v7458, 2
    %v7641 = vsel %vm5911, %v7632, %v7640
    %v7642 = vrot.slane %v7459, 2
    %v7643 = vsel %vm5911, %v7634, %v7642
    %v7644 = vrot.slane %v7460, 2
    %v7645 = vsel %vm5911, %v7636, %v7644
    %v7646 = vrot.slane %v7461, 2
    %v7647 = vsel %vm5911, %v7638, %v7646
    %v7648 = vrot.slane %v7462, 2
    %v7649 = vsel %vm5911, %v7640, %v7648
    %v7650 = vrot.slane %v7463, 2
    %v7651 = vsel %vm5911, %v7642, %v7650
    %v7652 = vrot.slane %v7464, 2
    %v7653 = vsel %vm5911, %v7644, %v7652
    %v7654 = vrot.slane %v7465, 2
    %v7655 = vsel %vm5911, %v7646, %v7654
    %v7656 = vrot.slane %v7466, 2
    %v7657 = vsel %vm5911, %v7648, %v7656
    %v7658 = vrot.slane %v7467, 2
    %v7659 = vsel %vm5911, %v7650, %v7658
    %v7660 = vrot.slane %v7468, 2
    %v7661 = vsel %vm5911, %v7652, %v7660
    %v7662 = vrot.slane %v7469, 2
    %v7663 = vsel %vm5911, %v7654, %v7662
    %v7664 = vrot.slane %v7470, 2
    %v7665 = vsel %vm5911, %v7656, %v7664
    %v7666 = vrot.slane %v7471, 2
    %v7667 = vsel %vm5911, %v7658, %v7666
    %v7668 = vrot.slane %v7472, 2
    %v7669 = vsel %vm5911, %v7660, %v7668
    %v7670 = vrot.slane %v7473, 2
    %v7671 = vsel %vm5911, %v7662, %v7670
    %v7672 = vrot.slane %v7474, 2
    %v7673 = vsel %vm5911, %v7664, %v7672
    %v7674 = vrot.slane %v7475, 2
    %v7675 = vsel %vm5911, %v7666, %v7674
    %v7744 = vadd.f32 %v7052, %v7544
    %v7745 = vadd.f32 %v7053, %v7545
    %v7746 = vadd.f32 %v7054, %v7546
    %v7747 = vadd.f32 %v7055, %v7547
    %v7748 = vadd.f32 %v7056, %v7549
    %v7749 = vadd.f32 %v7057, %v7551
    %v7750 = vadd.f32 %v7058, %v7553
    %v7751 = vadd.f32 %v7059, %v7555
    %v7752 = vadd.f32 %v7060, %v7557
    %v7753 = vadd.f32 %v7061, %v7559
    %v7754 = vadd.f32 %v7062, %v7561
    %v7755 = vadd.f32 %v7063, %v7563
    %v7756 = vadd.f32 %v7064, %v7565
    %v7757 = vadd.f32 %v7065, %v7567
    %v7758 = vadd.f32 %v7066, %v7569
    %v7759 = vadd.f32 %v7067, %v7571
    %v7760 = vadd.f32 %v7068, %v7573
    %v7761 = vadd.f32 %v7069, %v7575
    %v7762 = vadd.f32 %v7070, %v7577
    %v7763 = vadd.f32 %v7071, %v7579
    %v7764 = vadd.f32 %v7072, %v7581
    %v7765 = vadd.f32 %v7073, %v7583
    %v7766 = vadd.f32 %v7074, %v7585
    %v7767 = vadd.f32 %v7075, %v7587
    %v7768 = vadd.f32 %v7076, %v7589
    %v7769 = vadd.f32 %v7077, %v7591
    %v7770 = vadd.f32 %v7078, %v7593
    %v7771 = vadd.f32 %v7079, %v7595
    %v7772 = vadd.f32 %v7080, %v7597
    %v7773 = vadd.f32 %v7081, %v7599
    %v7774 = vadd.f32 %v7082, %v7601
    %v7775 = vadd.f32 %v7083, %v7603
    %v7776 = vadd.f32 %v7084, %v7605
    %v7777 = vadd.f32 %v7085, %v7607
    %v7778 = vadd.f32 %v7086, %v7609
    %v7779 = vadd.f32 %v7087, %v7611
    %v7780 = vadd.f32 %v7088, %v7613
    %v7781 = vadd.f32 %v7089, %v7615
    %v7782 = vadd.f32 %v7090, %v7617
    %v7783 = vadd.f32 %v7091, %v7619
    %v7784 = vadd.f32 %v7092, %v7621
    %v7785 = vadd.f32 %v7093, %v7623
    %v7786 = vadd.f32 %v7094, %v7625
    %v7787 = vadd.f32 %v7095, %v7627
    %v7788 = vadd.f32 %v7096, %v7629
    %v7789 = vadd.f32 %v7097, %v7631
    %v7790 = vadd.f32 %v7098, %v7633
    %v7791 = vadd.f32 %v7099, %v7635
    %v7792 = vadd.f32 %v7100, %v7637
    %v7793 = vadd.f32 %v7101, %v7639
    %v7794 = vadd.f32 %v7102, %v7641
    %v7795 = vadd.f32 %v7103, %v7643
    %v7796 = vadd.f32 %v7104, %v7645
    %v7797 = vadd.f32 %v7105, %v7647
    %v7798 = vadd.f32 %v7106, %v7649
    %v7799 = vadd.f32 %v7107, %v7651
    %v7800 = vadd.f32 %v7108, %v7653
    %v7801 = vadd.f32 %v7109, %v7655
    %v7802 = vadd.f32 %v7110, %v7657
    %v7803 = vadd.f32 %v7111, %v7659
    %v7804 = vadd.f32 %v7112, %v7661
    %v7805 = vadd.f32 %v7113, %v7663
    %v7806 = vadd.f32 %v7114, %v7665
    %v7807 = vadd.f32 %v7115, %v7667
    %v7808 = vadd.f32 %v7116, %v7669
    %v7809 = vadd.f32 %v7117, %v7671
    %v7810 = vadd.f32 %v7118, %v7673
    %v7811 = vadd.f32 %v7119, %v7675
    %v7812 = vld [vmem:[#allocation2 + $0x40] sm:$0x80]
    %v7813 = vld [vmem:[#allocation2 + $0x48] sm:$0x80]
    %v7814 = vld [vmem:[#allocation2 + $0x50] sm:$0x80]
    %v7815 = vld [vmem:[#allocation2 + $0x58] sm:$0x80]
    %v7816 = vld [vmem:[#allocation2 + $0x240] sm:$0x7f]
    %v7817 = vld [vmem:[#allocation2 + $0x248] sm:$0x7f]
    %v7818 = vld [vmem:[#allocation2 + $0x250] sm:$0x7f]
    %v7819 = vld [vmem:[#allocation2 + $0x258] sm:$0x7f]
    %s7820 = scalar_lea.vmem %s12, 768
    %v7821 = vld [vmem:[%s7820] sm:$0xff]
    %v7822 = vld [vmem:[%s7820 + $0x8] sm:$0xff]
    %v7823 = vld [vmem:[%s7820 + $0x10] sm:$0xff]
    %v7824 = vld [vmem:[%s7820 + $0x18] sm:$0xff]
    %v7825 = vld [vmem:[%s7820 + $0x20] sm:$0xff]
    %v7826 = vld [vmem:[%s7820 + $0x28] sm:$0xff]
    %v7827 = vld [vmem:[%s7820 + $0x30] sm:$0xff]
    %v7828 = vld [vmem:[%s7820 + $0x38] sm:$0xff]
    %v7829 = vld [vmem:[%s7820 + $0x40] sm:$0xff]
    %v7830 = vld [vmem:[%s7820 + $0x48] sm:$0xff]
    %v7831 = vld [vmem:[%s7820 + $0x50] sm:$0xff]
    %v7832 = vld [vmem:[%s7820 + $0x58] sm:$0xff]
    %v7833 = vld [vmem:[%s7820 + $0x60] sm:$0xff]
    %v7834 = vld [vmem:[%s7820 + $0x68] sm:$0xff]
    %v7835 = vld [vmem:[%s7820 + $0x70] sm:$0xff]
    %v7836 = vld [vmem:[%s7820 + $0x78] sm:$0xff]
    %7838 = vset.pattern.permute.xlu0 0
    %7839 = vperm.xlu0 %7838, %v7821
    %v7840 = vpop.permute.xlu0 %7839
    %7842 = vset.pattern.permute.xlu0 0
    %7843 = vperm.xlu0 %7842, %v7822
    %v7844 = vpop.permute.xlu0 %7843
    %7846 = vset.pattern.permute.xlu0 0
    %7847 = vperm.xlu0 %7846, %v7823
    %v7848 = vpop.permute.xlu0 %7847
    %7850 = vset.pattern.permute.xlu0 0
    %7851 = vperm.xlu0 %7850, %v7824
    %v7852 = vpop.permute.xlu0 %7851
    %7854 = vset.pattern.permute.xlu0 0
    %7855 = vperm.xlu0 %7854, %v7825
    %v7856 = vpop.permute.xlu0 %7855
    %7858 = vset.pattern.permute.xlu0 0
    %7859 = vperm.xlu0 %7858, %v7826
    %v7860 = vpop.permute.xlu0 %7859
    %7862 = vset.pattern.permute.xlu0 0
    %7863 = vperm.xlu0 %7862, %v7827
    %v7864 = vpop.permute.xlu0 %7863
    %7866 = vset.pattern.permute.xlu0 0
    %7867 = vperm.xlu0 %7866, %v7828
    %v7868 = vpop.permute.xlu0 %7867
    %7870 = vset.pattern.permute.xlu0 0
    %7871 = vperm.xlu0 %7870, %v7829
    %v7872 = vpop.permute.xlu0 %7871
    %7874 = vset.pattern.permute.xlu0 0
    %7875 = vperm.xlu0 %7874, %v7830
    %v7876 = vpop.permute.xlu0 %7875
    %7878 = vset.pattern.permute.xlu0 0
    %7879 = vperm.xlu0 %7878, %v7831
    %v7880 = vpop.permute.xlu0 %7879
    %7882 = vset.pattern.permute.xlu0 0
    %7883 = vperm.xlu0 %7882, %v7832
    %v7884 = vpop.permute.xlu0 %7883
    %7886 = vset.pattern.permute.xlu0 0
    %7887 = vperm.xlu0 %7886, %v7833
    %v7888 = vpop.permute.xlu0 %7887
    %7890 = vset.pattern.permute.xlu0 0
    %7891 = vperm.xlu0 %7890, %v7834
    %v7892 = vpop.permute.xlu0 %7891
    %7894 = vset.pattern.permute.xlu0 0
    %7895 = vperm.xlu0 %7894, %v7835
    %v7896 = vpop.permute.xlu0 %7895
    %7898 = vset.pattern.permute.xlu0 0
    %7899 = vperm.xlu0 %7898, %v7836
    %v7900 = vpop.permute.xlu0 %7899
    %v7901 = vrot.slane %v7840, 1
    %v7902 = vrot.slane %v7844, 1
    %v7903 = vsel %vm4635, %v7901, %v7902
    %v7904 = vrot.slane %v7848, 1
    %v7905 = vsel %vm4635, %v7902, %v7904
    %v7906 = vrot.slane %v7852, 1
    %v7907 = vsel %vm4635, %v7904, %v7906
    %v7908 = vrot.slane %v7856, 1
    %v7909 = vsel %vm4635, %v7906, %v7908
    %v7910 = vrot.slane %v7860, 1
    %v7911 = vsel %vm4635, %v7908, %v7910
    %v7912 = vrot.slane %v7864, 1
    %v7913 = vsel %vm4635, %v7910, %v7912
    %v7914 = vrot.slane %v7868, 1
    %v7915 = vsel %vm4635, %v7912, %v7914
    %v7916 = vrot.slane %v7872, 1
    %v7917 = vsel %vm4635, %v7914, %v7916
    %v7918 = vrot.slane %v7876, 1
    %v7919 = vsel %vm4635, %v7916, %v7918
    %v7920 = vrot.slane %v7880, 1
    %v7921 = vsel %vm4635, %v7918, %v7920
    %v7922 = vrot.slane %v7884, 1
    %v7923 = vsel %vm4635, %v7920, %v7922
    %v7924 = vrot.slane %v7888, 1
    %v7925 = vsel %vm4635, %v7922, %v7924
    %v7926 = vrot.slane %v7892, 1
    %v7927 = vsel %vm4635, %v7924, %v7926
    %v7928 = vrot.slane %v7896, 1
    %v7929 = vsel %vm4635, %v7926, %v7928
    %v7930 = vrot.slane %v7900, 1
    %v7931 = vsel %vm4635, %v7928, %v7930
    %v7949 = vmul.f32 %v7812, %v7901
    %v7950 = vmul.f32 %v7813, %v7901
    %v7951 = vmul.f32 %v7814, %v7901
    %v7952 = vmul.f32 %v7815, %v7901
    %v7953 = vmul.f32 %v7124, %v7903
    %v7954 = vmul.f32 %v7125, %v7903
    %v7955 = vmul.f32 %v7126, %v7903
    %v7956 = vmul.f32 %v7127, %v7903
    %v7957 = vmul.f32 %v7128, %v7905
    %v7958 = vmul.f32 %v7129, %v7905
    %v7959 = vmul.f32 %v7130, %v7905
    %v7960 = vmul.f32 %v7131, %v7905
    %v7961 = vmul.f32 %v7132, %v7907
    %v7962 = vmul.f32 %v7133, %v7907
    %v7963 = vmul.f32 %v7134, %v7907
    %v7964 = vmul.f32 %v7135, %v7907
    %v7965 = vmul.f32 %v7136, %v7909
    %v7966 = vmul.f32 %v7137, %v7909
    %v7967 = vmul.f32 %v7138, %v7909
    %v7968 = vmul.f32 %v7139, %v7909
    %v7969 = vmul.f32 %v7140, %v7911
    %v7970 = vmul.f32 %v7141, %v7911
    %v7971 = vmul.f32 %v7142, %v7911
    %v7972 = vmul.f32 %v7143, %v7911
    %v7973 = vmul.f32 %v7144, %v7913
    %v7974 = vmul.f32 %v7145, %v7913
    %v7975 = vmul.f32 %v7146, %v7913
    %v7976 = vmul.f32 %v7147, %v7913
    %v7977 = vmul.f32 %v7148, %v7915
    %v7978 = vmul.f32 %v7149, %v7915
    %v7979 = vmul.f32 %v7150, %v7915
    %v7980 = vmul.f32 %v7151, %v7915
    %v7981 = vmul.f32 %v7152, %v7917
    %v7982 = vmul.f32 %v7153, %v7917
    %v7983 = vmul.f32 %v7154, %v7917
    %v7984 = vmul.f32 %v7155, %v7917
    %v7985 = vmul.f32 %v7156, %v7919
    %v7986 = vmul.f32 %v7157, %v7919
    %v7987 = vmul.f32 %v7158, %v7919
    %v7988 = vmul.f32 %v7159, %v7919
    %v7989 = vmul.f32 %v7160, %v7921
    %v7990 = vmul.f32 %v7161, %v7921
    %v7991 = vmul.f32 %v7162, %v7921
    %v7992 = vmul.f32 %v7163, %v7921
    %v7993 = vmul.f32 %v7164, %v7923
    %v7994 = vmul.f32 %v7165, %v7923
    %v7995 = vmul.f32 %v7166, %v7923
    %v7996 = vmul.f32 %v7167, %v7923
    %v7997 = vmul.f32 %v7168, %v7925
    %v7998 = vmul.f32 %v7169, %v7925
    %v7999 = vmul.f32 %v7170, %v7925
    %v8000 = vmul.f32 %v7171, %v7925
    %v8001 = vmul.f32 %v7172, %v7927
    %v8002 = vmul.f32 %v7173, %v7927
    %v8003 = vmul.f32 %v7174, %v7927
    %v8004 = vmul.f32 %v7175, %v7927
    %v8005 = vmul.f32 %v7176, %v7929
    %v8006 = vmul.f32 %v7177, %v7929
    %v8007 = vmul.f32 %v7178, %v7929
    %v8008 = vmul.f32 %v7179, %v7929
    %v8009 = vmul.f32 %v7180, %v7931
    %v8010 = vmul.f32 %v7181, %v7931
    %v8011 = vmul.f32 %v7182, %v7931
    %v8012 = vmul.f32 %v7183, %v7931
    %v8013 = vmul.f32 %v7816, %v7930
    %v8014 = vmul.f32 %v7817, %v7930
    %v8015 = vmul.f32 %v7818, %v7930
    %v8016 = vmul.f32 %v7819, %v7930
    %s8017 = scalar_lea.vmem %s10, 24
    %v8018 = vld [vmem:[%s8017] sm:$0xf]
    %v8020 = vlaneseq
    %v8021 = vshrl.u32 %v8020, 7
    %v8022 = vsub.s32 0, %v8021
    %v8023 = vrot.slane %v8018, %v8022
    %v8024 = vlaneseq
    %v8025 = vshrl.u32 %v8024, 7
    %v8026 = vsub.s32 1, %v8025
    %v8027 = vrot.slane %v8018, %v8026
    %v8028 = vlaneseq
    %v8029 = vshrl.u32 %v8028, 7
    %v8030 = vsub.s32 2, %v8029
    %v8031 = vrot.slane %v8018, %v8030
    %v8032 = vlaneseq
    %v8033 = vshrl.u32 %v8032, 7
    %v8034 = vsub.s32 3, %v8033
    %v8035 = vrot.slane %v8018, %v8034
    %v8040 = vmul.f32 %v7949, %v8023
    %v8041 = vmul.f32 %v7950, %v8027
    %v8042 = vmul.f32 %v7951, %v8031
    %v8043 = vmul.f32 %v7952, %v8035
    %v8044 = vmul.f32 %v7953, %v8023
    %v8045 = vmul.f32 %v7954, %v8027
    %v8046 = vmul.f32 %v7955, %v8031
    %v8047 = vmul.f32 %v7956, %v8035
    %v8048 = vmul.f32 %v7957, %v8023
    %v8049 = vmul.f32 %v7958, %v8027
    %v8050 = vmul.f32 %v7959, %v8031
    %v8051 = vmul.f32 %v7960, %v8035
    %v8052 = vmul.f32 %v7961, %v8023
    %v8053 = vmul.f32 %v7962, %v8027
    %v8054 = vmul.f32 %v7963, %v8031
    %v8055 = vmul.f32 %v7964, %v8035
    %v8056 = vmul.f32 %v7965, %v8023
    %v8057 = vmul.f32 %v7966, %v8027
    %v8058 = vmul.f32 %v7967, %v8031
    %v8059 = vmul.f32 %v7968, %v8035
    %v8060 = vmul.f32 %v7969, %v8023
    %v8061 = vmul.f32 %v7970, %v8027
    %v8062 = vmul.f32 %v7971, %v8031
    %v8063 = vmul.f32 %v7972, %v8035
    %v8064 = vmul.f32 %v7973, %v8023
    %v8065 = vmul.f32 %v7974, %v8027
    %v8066 = vmul.f32 %v7975, %v8031
    %v8067 = vmul.f32 %v7976, %v8035
    %v8068 = vmul.f32 %v7977, %v8023
    %v8069 = vmul.f32 %v7978, %v8027
    %v8070 = vmul.f32 %v7979, %v8031
    %v8071 = vmul.f32 %v7980, %v8035
    %v8072 = vmul.f32 %v7981, %v8023
    %v8073 = vmul.f32 %v7982, %v8027
    %v8074 = vmul.f32 %v7983, %v8031
    %v8075 = vmul.f32 %v7984, %v8035
    %v8076 = vmul.f32 %v7985, %v8023
    %v8077 = vmul.f32 %v7986, %v8027
    %v8078 = vmul.f32 %v7987, %v8031
    %v8079 = vmul.f32 %v7988, %v8035
    %v8080 = vmul.f32 %v7989, %v8023
    %v8081 = vmul.f32 %v7990, %v8027
    %v8082 = vmul.f32 %v7991, %v8031
    %v8083 = vmul.f32 %v7992, %v8035
    %v8084 = vmul.f32 %v7993, %v8023
    %v8085 = vmul.f32 %v7994, %v8027
    %v8086 = vmul.f32 %v7995, %v8031
    %v8087 = vmul.f32 %v7996, %v8035
    %v8088 = vmul.f32 %v7997, %v8023
    %v8089 = vmul.f32 %v7998, %v8027
    %v8090 = vmul.f32 %v7999, %v8031
    %v8091 = vmul.f32 %v8000, %v8035
    %v8092 = vmul.f32 %v8001, %v8023
    %v8093 = vmul.f32 %v8002, %v8027
    %v8094 = vmul.f32 %v8003, %v8031
    %v8095 = vmul.f32 %v8004, %v8035
    %v8096 = vmul.f32 %v8005, %v8023
    %v8097 = vmul.f32 %v8006, %v8027
    %v8098 = vmul.f32 %v8007, %v8031
    %v8099 = vmul.f32 %v8008, %v8035
    %v8100 = vmul.f32 %v8009, %v8023
    %v8101 = vmul.f32 %v8010, %v8027
    %v8102 = vmul.f32 %v8011, %v8031
    %v8103 = vmul.f32 %v8012, %v8035
    %v8104 = vmul.f32 %v8013, %v8023
    %v8105 = vmul.f32 %v8014, %v8027
    %v8106 = vmul.f32 %v8015, %v8031
    %v8107 = vmul.f32 %v8016, %v8035
    %v8108 = vadd.f32 %v7744, %v8040
    %v8109 = vadd.f32 %v7745, %v8041
    %v8110 = vadd.f32 %v7746, %v8042
    %v8111 = vadd.f32 %v7747, %v8043
    %v8112 = vadd.f32 %v7748, %v8044
    %v8113 = vadd.f32 %v7749, %v8045
    %v8114 = vadd.f32 %v7750, %v8046
    %v8115 = vadd.f32 %v7751, %v8047
    %v8116 = vadd.f32 %v7752, %v8048
    %v8117 = vadd.f32 %v7753, %v8049
    %v8118 = vadd.f32 %v7754, %v8050
    %v8119 = vadd.f32 %v7755, %v8051
    %v8120 = vadd.f32 %v7756, %v8052
    %v8121 = vadd.f32 %v7757, %v8053
    %v8122 = vadd.f32 %v7758, %v8054
    %v8123 = vadd.f32 %v7759, %v8055
    %v8124 = vadd.f32 %v7760, %v8056
    %v8125 = vadd.f32 %v7761, %v8057
    %v8126 = vadd.f32 %v7762, %v8058
    %v8127 = vadd.f32 %v7763, %v8059
    %v8128 = vadd.f32 %v7764, %v8060
    %v8129 = vadd.f32 %v7765, %v8061
    %v8130 = vadd.f32 %v7766, %v8062
    %v8131 = vadd.f32 %v7767, %v8063
    %v8132 = vadd.f32 %v7768, %v8064
    %v8133 = vadd.f32 %v7769, %v8065
    %v8134 = vadd.f32 %v7770, %v8066
    %v8135 = vadd.f32 %v7771, %v8067
    %v8136 = vadd.f32 %v7772, %v8068
    %v8137 = vadd.f32 %v7773, %v8069
    %v8138 = vadd.f32 %v7774, %v8070
    %v8139 = vadd.f32 %v7775, %v8071
    %v8140 = vadd.f32 %v7776, %v8072
    %v8141 = vadd.f32 %v7777, %v8073
    %v8142 = vadd.f32 %v7778, %v8074
    %v8143 = vadd.f32 %v7779, %v8075
    %v8144 = vadd.f32 %v7780, %v8076
    %v8145 = vadd.f32 %v7781, %v8077
    %v8146 = vadd.f32 %v7782, %v8078
    %v8147 = vadd.f32 %v7783, %v8079
    %v8148 = vadd.f32 %v7784, %v8080
    %v8149 = vadd.f32 %v7785, %v8081
    %v8150 = vadd.f32 %v7786, %v8082
    %v8151 = vadd.f32 %v7787, %v8083
    %v8152 = vadd.f32 %v7788, %v8084
    %v8153 = vadd.f32 %v7789, %v8085
    %v8154 = vadd.f32 %v7790, %v8086
    %v8155 = vadd.f32 %v7791, %v8087
    %v8156 = vadd.f32 %v7792, %v8088
    %v8157 = vadd.f32 %v7793, %v8089
    %v8158 = vadd.f32 %v7794, %v8090
    %v8159 = vadd.f32 %v7795, %v8091
    %v8160 = vadd.f32 %v7796, %v8092
    %v8161 = vadd.f32 %v7797, %v8093
    %v8162 = vadd.f32 %v7798, %v8094
    %v8163 = vadd.f32 %v7799, %v8095
    %v8164 = vadd.f32 %v7800, %v8096
    %v8165 = vadd.f32 %v7801, %v8097
    %v8166 = vadd.f32 %v7802, %v8098
    %v8167 = vadd.f32 %v7803, %v8099
    %v8168 = vadd.f32 %v7804, %v8100
    %v8169 = vadd.f32 %v7805, %v8101
    %v8170 = vadd.f32 %v7806, %v8102
    %v8171 = vadd.f32 %v7807, %v8103
    %v8172 = vadd.f32 %v7808, %v8104
    %v8173 = vadd.f32 %v7809, %v8105
    %v8174 = vadd.f32 %v7810, %v8106
    %v8175 = vadd.f32 %v7811, %v8107
    %v8176 = vld [vmem:[#allocation2 + $0x240] sm:$0xff]
    %v8177 = vld [vmem:[#allocation2 + $0x248] sm:$0xff]
    %v8178 = vld [vmem:[#allocation2 + $0x250] sm:$0xff]
    %v8179 = vld [vmem:[#allocation2 + $0x258] sm:$0xff]
    %s8180 = scalar_lea.vmem %s12, 896
    %v8181 = vld [vmem:[%s8180] sm:$0xff]
    %v8182 = vld [vmem:[%s8180 + $0x8] sm:$0xff]
    %v8183 = vld [vmem:[%s8180 + $0x10] sm:$0xff]
    %v8184 = vld [vmem:[%s8180 + $0x18] sm:$0xff]
    %v8185 = vld [vmem:[%s8180 + $0x20] sm:$0xff]
    %v8186 = vld [vmem:[%s8180 + $0x28] sm:$0xff]
    %v8187 = vld [vmem:[%s8180 + $0x30] sm:$0xff]
    %v8188 = vld [vmem:[%s8180 + $0x38] sm:$0xff]
    %v8189 = vld [vmem:[%s8180 + $0x40] sm:$0xff]
    %v8190 = vld [vmem:[%s8180 + $0x48] sm:$0xff]
    %v8191 = vld [vmem:[%s8180 + $0x50] sm:$0xff]
    %v8192 = vld [vmem:[%s8180 + $0x58] sm:$0xff]
    %v8193 = vld [vmem:[%s8180 + $0x60] sm:$0xff]
    %v8194 = vld [vmem:[%s8180 + $0x68] sm:$0xff]
    %v8195 = vld [vmem:[%s8180 + $0x70] sm:$0xff]
    %v8196 = vld [vmem:[%s8180 + $0x78] sm:$0xff]
    %8198 = vset.pattern.permute.xlu0 0
    %8199 = vperm.xlu0 %8198, %v8181
    %v8200 = vpop.permute.xlu0 %8199
    %8203 = vset.pattern.permute.xlu0 0
    %8204 = vperm.xlu0 %8203, %v8182
    %v8205 = vpop.permute.xlu0 %8204
    %8208 = vset.pattern.permute.xlu0 0
    %8209 = vperm.xlu0 %8208, %v8183
    %v8210 = vpop.permute.xlu0 %8209
    %8213 = vset.pattern.permute.xlu0 0
    %8214 = vperm.xlu0 %8213, %v8184
    %v8215 = vpop.permute.xlu0 %8214
    %8218 = vset.pattern.permute.xlu0 0
    %8219 = vperm.xlu0 %8218, %v8185
    %v8220 = vpop.permute.xlu0 %8219
    %8223 = vset.pattern.permute.xlu0 0
    %8224 = vperm.xlu0 %8223, %v8186
    %v8225 = vpop.permute.xlu0 %8224
    %8228 = vset.pattern.permute.xlu0 0
    %8229 = vperm.xlu0 %8228, %v8187
    %v8230 = vpop.permute.xlu0 %8229
    %8233 = vset.pattern.permute.xlu0 0
    %8234 = vperm.xlu0 %8233, %v8188
    %v8235 = vpop.permute.xlu0 %8234
    %8238 = vset.pattern.permute.xlu0 0
    %8239 = vperm.xlu0 %8238, %v8189
    %v8240 = vpop.permute.xlu0 %8239
    %8243 = vset.pattern.permute.xlu0 0
    %8244 = vperm.xlu0 %8243, %v8190
    %v8245 = vpop.permute.xlu0 %8244
    %8248 = vset.pattern.permute.xlu0 0
    %8249 = vperm.xlu0 %8248, %v8191
    %v8250 = vpop.permute.xlu0 %8249
    %8253 = vset.pattern.permute.xlu0 0
    %8254 = vperm.xlu0 %8253, %v8192
    %v8255 = vpop.permute.xlu0 %8254
    %8258 = vset.pattern.permute.xlu0 0
    %8259 = vperm.xlu0 %8258, %v8193
    %v8260 = vpop.permute.xlu0 %8259
    %8263 = vset.pattern.permute.xlu0 0
    %8264 = vperm.xlu0 %8263, %v8194
    %v8265 = vpop.permute.xlu0 %8264
    %8268 = vset.pattern.permute.xlu0 0
    %8269 = vperm.xlu0 %8268, %v8195
    %v8270 = vpop.permute.xlu0 %8269
    %8273 = vset.pattern.permute.xlu0 0
    %8274 = vperm.xlu0 %8273, %v8196
    %v8275 = vpop.permute.xlu0 %8274
    %v8277 = vmul.f32 %v7124, %v8200
    %v8278 = vmul.f32 %v7125, %v8200
    %v8279 = vmul.f32 %v7126, %v8200
    %v8280 = vmul.f32 %v7127, %v8200
    %v8281 = vmul.f32 %v7128, %v8205
    %v8282 = vmul.f32 %v7129, %v8205
    %v8283 = vmul.f32 %v7130, %v8205
    %v8284 = vmul.f32 %v7131, %v8205
    %v8285 = vmul.f32 %v7132, %v8210
    %v8286 = vmul.f32 %v7133, %v8210
    %v8287 = vmul.f32 %v7134, %v8210
    %v8288 = vmul.f32 %v7135, %v8210
    %v8289 = vmul.f32 %v7136, %v8215
    %v8290 = vmul.f32 %v7137, %v8215
    %v8291 = vmul.f32 %v7138, %v8215
    %v8292 = vmul.f32 %v7139, %v8215
    %v8293 = vmul.f32 %v7140, %v8220
    %v8294 = vmul.f32 %v7141, %v8220
    %v8295 = vmul.f32 %v7142, %v8220
    %v8296 = vmul.f32 %v7143, %v8220
    %v8297 = vmul.f32 %v7144, %v8225
    %v8298 = vmul.f32 %v7145, %v8225
    %v8299 = vmul.f32 %v7146, %v8225
    %v8300 = vmul.f32 %v7147, %v8225
    %v8301 = vmul.f32 %v7148, %v8230
    %v8302 = vmul.f32 %v7149, %v8230
    %v8303 = vmul.f32 %v7150, %v8230
    %v8304 = vmul.f32 %v7151, %v8230
    %v8305 = vmul.f32 %v7152, %v8235
    %v8306 = vmul.f32 %v7153, %v8235
    %v8307 = vmul.f32 %v7154, %v8235
    %v8308 = vmul.f32 %v7155, %v8235
    %v8309 = vmul.f32 %v7156, %v8240
    %v8310 = vmul.f32 %v7157, %v8240
    %v8311 = vmul.f32 %v7158, %v8240
    %v8312 = vmul.f32 %v7159, %v8240
    %v8313 = vmul.f32 %v7160, %v8245
    %v8314 = vmul.f32 %v7161, %v8245
    %v8315 = vmul.f32 %v7162, %v8245
    %v8316 = vmul.f32 %v7163, %v8245
    %v8317 = vmul.f32 %v7164, %v8250
    %v8318 = vmul.f32 %v7165, %v8250
    %v8319 = vmul.f32 %v7166, %v8250
    %v8320 = vmul.f32 %v7167, %v8250
    %v8321 = vmul.f32 %v7168, %v8255
    %v8322 = vmul.f32 %v7169, %v8255
    %v8323 = vmul.f32 %v7170, %v8255
    %v8324 = vmul.f32 %v7171, %v8255
    %v8325 = vmul.f32 %v7172, %v8260
    %v8326 = vmul.f32 %v7173, %v8260
    %v8327 = vmul.f32 %v7174, %v8260
    %v8328 = vmul.f32 %v7175, %v8260
    %v8329 = vmul.f32 %v7176, %v8265
    %v8330 = vmul.f32 %v7177, %v8265
    %v8331 = vmul.f32 %v7178, %v8265
    %v8332 = vmul.f32 %v7179, %v8265
    %v8333 = vmul.f32 %v7180, %v8270
    %v8334 = vmul.f32 %v7181, %v8270
    %v8335 = vmul.f32 %v7182, %v8270
    %v8336 = vmul.f32 %v7183, %v8270
    %v8337 = vmul.f32 %v8176, %v8275
    %v8338 = vmul.f32 %v8177, %v8275
    %v8339 = vmul.f32 %v8178, %v8275
    %v8340 = vmul.f32 %v8179, %v8275
    %s8341 = scalar_lea.vmem %s10, 28
    %v8342 = vld [vmem:[%s8341] sm:$0xf]
    %v8344 = vlaneseq
    %v8345 = vshrl.u32 %v8344, 7
    %v8346 = vsub.s32 0, %v8345
    %v8347 = vrot.slane %v8342, %v8346
    %v8348 = vlaneseq
    %v8349 = vshrl.u32 %v8348, 7
    %v8350 = vsub.s32 1, %v8349
    %v8351 = vrot.slane %v8342, %v8350
    %v8352 = vlaneseq
    %v8353 = vshrl.u32 %v8352, 7
    %v8354 = vsub.s32 2, %v8353
    %v8355 = vrot.slane %v8342, %v8354
    %v8356 = vlaneseq
    %v8357 = vshrl.u32 %v8356, 7
    %v8358 = vsub.s32 3, %v8357
    %v8359 = vrot.slane %v8342, %v8358
    %v8364 = vmul.f32 %v8277, %v8347
    %v8365 = vmul.f32 %v8278, %v8351
    %v8366 = vmul.f32 %v8279, %v8355
    %v8367 = vmul.f32 %v8280, %v8359
    %v8368 = vmul.f32 %v8281, %v8347
    %v8369 = vmul.f32 %v8282, %v8351
    %v8370 = vmul.f32 %v8283, %v8355
    %v8371 = vmul.f32 %v8284, %v8359
    %v8372 = vmul.f32 %v8285, %v8347
    %v8373 = vmul.f32 %v8286, %v8351
    %v8374 = vmul.f32 %v8287, %v8355
    %v8375 = vmul.f32 %v8288, %v8359
    %v8376 = vmul.f32 %v8289, %v8347
    %v8377 = vmul.f32 %v8290, %v8351
    %v8378 = vmul.f32 %v8291, %v8355
    %v8379 = vmul.f32 %v8292, %v8359
    %v8380 = vmul.f32 %v8293, %v8347
    %v8381 = vmul.f32 %v8294, %v8351
    %v8382 = vmul.f32 %v8295, %v8355
    %v8383 = vmul.f32 %v8296, %v8359
    %v8384 = vmul.f32 %v8297, %v8347
    %v8385 = vmul.f32 %v8298, %v8351
    %v8386 = vmul.f32 %v8299, %v8355
    %v8387 = vmul.f32 %v8300, %v8359
    %v8388 = vmul.f32 %v8301, %v8347
    %v8389 = vmul.f32 %v8302, %v8351
    %v8390 = vmul.f32 %v8303, %v8355
    %v8391 = vmul.f32 %v8304, %v8359
    %v8392 = vmul.f32 %v8305, %v8347
    %v8393 = vmul.f32 %v8306, %v8351
    %v8394 = vmul.f32 %v8307, %v8355
    %v8395 = vmul.f32 %v8308, %v8359
    %v8396 = vmul.f32 %v8309, %v8347
    %v8397 = vmul.f32 %v8310, %v8351
    %v8398 = vmul.f32 %v8311, %v8355
    %v8399 = vmul.f32 %v8312, %v8359
    %v8400 = vmul.f32 %v8313, %v8347
    %v8401 = vmul.f32 %v8314, %v8351
    %v8402 = vmul.f32 %v8315, %v8355
    %v8403 = vmul.f32 %v8316, %v8359
    %v8404 = vmul.f32 %v8317, %v8347
    %v8405 = vmul.f32 %v8318, %v8351
    %v8406 = vmul.f32 %v8319, %v8355
    %v8407 = vmul.f32 %v8320, %v8359
    %v8408 = vmul.f32 %v8321, %v8347
    %v8409 = vmul.f32 %v8322, %v8351
    %v8410 = vmul.f32 %v8323, %v8355
    %v8411 = vmul.f32 %v8324, %v8359
    %v8412 = vmul.f32 %v8325, %v8347
    %v8413 = vmul.f32 %v8326, %v8351
    %v8414 = vmul.f32 %v8327, %v8355
    %v8415 = vmul.f32 %v8328, %v8359
    %v8416 = vmul.f32 %v8329, %v8347
    %v8417 = vmul.f32 %v8330, %v8351
    %v8418 = vmul.f32 %v8331, %v8355
    %v8419 = vmul.f32 %v8332, %v8359
    %v8420 = vmul.f32 %v8333, %v8347
    %v8421 = vmul.f32 %v8334, %v8351
    %v8422 = vmul.f32 %v8335, %v8355
    %v8423 = vmul.f32 %v8336, %v8359
    %v8424 = vmul.f32 %v8337, %v8347
    %v8425 = vmul.f32 %v8338, %v8351
    %v8426 = vmul.f32 %v8339, %v8355
    %v8427 = vmul.f32 %v8340, %v8359
    %v8492 = vrot.slane %v8364, 1
    %v8493 = vrot.slane %v8365, 1
    %v8494 = vrot.slane %v8366, 1
    %v8495 = vrot.slane %v8367, 1
    %v8496 = vrot.slane %v8368, 1
    %v8497 = vsel %vm4635, %v8492, %v8496
    %v8498 = vrot.slane %v8369, 1
    %v8499 = vsel %vm4635, %v8493, %v8498
    %v8500 = vrot.slane %v8370, 1
    %v8501 = vsel %vm4635, %v8494, %v8500
    %v8502 = vrot.slane %v8371, 1
    %v8503 = vsel %vm4635, %v8495, %v8502
    %v8504 = vrot.slane %v8372, 1
    %v8505 = vsel %vm4635, %v8496, %v8504
    %v8506 = vrot.slane %v8373, 1
    %v8507 = vsel %vm4635, %v8498, %v8506
    %v8508 = vrot.slane %v8374, 1
    %v8509 = vsel %vm4635, %v8500, %v8508
    %v8510 = vrot.slane %v8375, 1
    %v8511 = vsel %vm4635, %v8502, %v8510
    %v8512 = vrot.slane %v8376, 1
    %v8513 = vsel %vm4635, %v8504, %v8512
    %v8514 = vrot.slane %v8377, 1
    %v8515 = vsel %vm4635, %v8506, %v8514
    %v8516 = vrot.slane %v8378, 1
    %v8517 = vsel %vm4635, %v8508, %v8516
    %v8518 = vrot.slane %v8379, 1
    %v8519 = vsel %vm4635, %v8510, %v8518
    %v8520 = vrot.slane %v8380, 1
    %v8521 = vsel %vm4635, %v8512, %v8520
    %v8522 = vrot.slane %v8381, 1
    %v8523 = vsel %vm4635, %v8514, %v8522
    %v8524 = vrot.slane %v8382, 1
    %v8525 = vsel %vm4635, %v8516, %v8524
    %v8526 = vrot.slane %v8383, 1
    %v8527 = vsel %vm4635, %v8518, %v8526
    %v8528 = vrot.slane %v8384, 1
    %v8529 = vsel %vm4635, %v8520, %v8528
    %v8530 = vrot.slane %v8385, 1
    %v8531 = vsel %vm4635, %v8522, %v8530
    %v8532 = vrot.slane %v8386, 1
    %v8533 = vsel %vm4635, %v8524, %v8532
    %v8534 = vrot.slane %v8387, 1
    %v8535 = vsel %vm4635, %v8526, %v8534
    %v8536 = vrot.slane %v8388, 1
    %v8537 = vsel %vm4635, %v8528, %v8536
    %v8538 = vrot.slane %v8389, 1
    %v8539 = vsel %vm4635, %v8530, %v8538
    %v8540 = vrot.slane %v8390, 1
    %v8541 = vsel %vm4635, %v8532, %v8540
    %v8542 = vrot.slane %v8391, 1
    %v8543 = vsel %vm4635, %v8534, %v8542
    %v8544 = vrot.slane %v8392, 1
    %v8545 = vsel %vm4635, %v8536, %v8544
    %v8546 = vrot.slane %v8393, 1
    %v8547 = vsel %vm4635, %v8538, %v8546
    %v8548 = vrot.slane %v8394, 1
    %v8549 = vsel %vm4635, %v8540, %v8548
    %v8550 = vrot.slane %v8395, 1
    %v8551 = vsel %vm4635, %v8542, %v8550
    %v8552 = vrot.slane %v8396, 1
    %v8553 = vsel %vm4635, %v8544, %v8552
    %v8554 = vrot.slane %v8397, 1
    %v8555 = vsel %vm4635, %v8546, %v8554
    %v8556 = vrot.slane %v8398, 1
    %v8557 = vsel %vm4635, %v8548, %v8556
    %v8558 = vrot.slane %v8399, 1
    %v8559 = vsel %vm4635, %v8550, %v8558
    %v8560 = vrot.slane %v8400, 1
    %v8561 = vsel %vm4635, %v8552, %v8560
    %v8562 = vrot.slane %v8401, 1
    %v8563 = vsel %vm4635, %v8554, %v8562
    %v8564 = vrot.slane %v8402, 1
    %v8565 = vsel %vm4635, %v8556, %v8564
    %v8566 = vrot.slane %v8403, 1
    %v8567 = vsel %vm4635, %v8558, %v8566
    %v8568 = vrot.slane %v8404, 1
    %v8569 = vsel %vm4635, %v8560, %v8568
    %v8570 = vrot.slane %v8405, 1
    %v8571 = vsel %vm4635, %v8562, %v8570
    %v8572 = vrot.slane %v8406, 1
    %v8573 = vsel %vm4635, %v8564, %v8572
    %v8574 = vrot.slane %v8407, 1
    %v8575 = vsel %vm4635, %v8566, %v8574
    %v8576 = vrot.slane %v8408, 1
    %v8577 = vsel %vm4635, %v8568, %v8576
    %v8578 = vrot.slane %v8409, 1
    %v8579 = vsel %vm4635, %v8570, %v8578
    %v8580 = vrot.slane %v8410, 1
    %v8581 = vsel %vm4635, %v8572, %v8580
    %v8582 = vrot.slane %v8411, 1
    %v8583 = vsel %vm4635, %v8574, %v8582
    %v8584 = vrot.slane %v8412, 1
    %v8585 = vsel %vm4635, %v8576, %v8584
    %v8586 = vrot.slane %v8413, 1
    %v8587 = vsel %vm4635, %v8578, %v8586
    %v8588 = vrot.slane %v8414, 1
    %v8589 = vsel %vm4635, %v8580, %v8588
    %v8590 = vrot.slane %v8415, 1
    %v8591 = vsel %vm4635, %v8582, %v8590
    %v8592 = vrot.slane %v8416, 1
    %v8593 = vsel %vm4635, %v8584, %v8592
    %v8594 = vrot.slane %v8417, 1
    %v8595 = vsel %vm4635, %v8586, %v8594
    %v8596 = vrot.slane %v8418, 1
    %v8597 = vsel %vm4635, %v8588, %v8596
    %v8598 = vrot.slane %v8419, 1
    %v8599 = vsel %vm4635, %v8590, %v8598
    %v8600 = vrot.slane %v8420, 1
    %v8601 = vsel %vm4635, %v8592, %v8600
    %v8602 = vrot.slane %v8421, 1
    %v8603 = vsel %vm4635, %v8594, %v8602
    %v8604 = vrot.slane %v8422, 1
    %v8605 = vsel %vm4635, %v8596, %v8604
    %v8606 = vrot.slane %v8423, 1
    %v8607 = vsel %vm4635, %v8598, %v8606
    %v8608 = vrot.slane %v8424, 1
    %v8609 = vsel %vm4635, %v8600, %v8608
    %v8610 = vrot.slane %v8425, 1
    %v8611 = vsel %vm4635, %v8602, %v8610
    %v8612 = vrot.slane %v8426, 1
    %v8613 = vsel %vm4635, %v8604, %v8612
    %v8614 = vrot.slane %v8427, 1
    %v8615 = vsel %vm4635, %v8606, %v8614
    %v8684 = vadd.f32 %v8108, %v8492
    %v8685 = vadd.f32 %v8109, %v8493
    %v8686 = vadd.f32 %v8110, %v8494
    %v8687 = vadd.f32 %v8111, %v8495
    %v8688 = vadd.f32 %v8112, %v8497
    %v8689 = vadd.f32 %v8113, %v8499
    %v8690 = vadd.f32 %v8114, %v8501
    %v8691 = vadd.f32 %v8115, %v8503
    %v8692 = vadd.f32 %v8116, %v8505
    %v8693 = vadd.f32 %v8117, %v8507
    %v8694 = vadd.f32 %v8118, %v8509
    %v8695 = vadd.f32 %v8119, %v8511
    %v8696 = vadd.f32 %v8120, %v8513
    %v8697 = vadd.f32 %v8121, %v8515
    %v8698 = vadd.f32 %v8122, %v8517
    %v8699 = vadd.f32 %v8123, %v8519
    %v8700 = vadd.f32 %v8124, %v8521
    %v8701 = vadd.f32 %v8125, %v8523
    %v8702 = vadd.f32 %v8126, %v8525
    %v8703 = vadd.f32 %v8127, %v8527
    %v8704 = vadd.f32 %v8128, %v8529
    %v8705 = vadd.f32 %v8129, %v8531
    %v8706 = vadd.f32 %v8130, %v8533
    %v8707 = vadd.f32 %v8131, %v8535
    %v8708 = vadd.f32 %v8132, %v8537
    %v8709 = vadd.f32 %v8133, %v8539
    %v8710 = vadd.f32 %v8134, %v8541
    %v8711 = vadd.f32 %v8135, %v8543
    %v8712 = vadd.f32 %v8136, %v8545
    %v8713 = vadd.f32 %v8137, %v8547
    %v8714 = vadd.f32 %v8138, %v8549
    %v8715 = vadd.f32 %v8139, %v8551
    %v8716 = vadd.f32 %v8140, %v8553
    %v8717 = vadd.f32 %v8141, %v8555
    %v8718 = vadd.f32 %v8142, %v8557
    %v8719 = vadd.f32 %v8143, %v8559
    %v8720 = vadd.f32 %v8144, %v8561
    %v8721 = vadd.f32 %v8145, %v8563
    %v8722 = vadd.f32 %v8146, %v8565
    %v8723 = vadd.f32 %v8147, %v8567
    %v8724 = vadd.f32 %v8148, %v8569
    %v8725 = vadd.f32 %v8149, %v8571
    %v8726 = vadd.f32 %v8150, %v8573
    %v8727 = vadd.f32 %v8151, %v8575
    %v8728 = vadd.f32 %v8152, %v8577
    %v8729 = vadd.f32 %v8153, %v8579
    %v8730 = vadd.f32 %v8154, %v8581
    %v8731 = vadd.f32 %v8155, %v8583
    %v8732 = vadd.f32 %v8156, %v8585
    %v8733 = vadd.f32 %v8157, %v8587
    %v8734 = vadd.f32 %v8158, %v8589
    %v8735 = vadd.f32 %v8159, %v8591
    %v8736 = vadd.f32 %v8160, %v8593
    %v8737 = vadd.f32 %v8161, %v8595
    %v8738 = vadd.f32 %v8162, %v8597
    %v8739 = vadd.f32 %v8163, %v8599
    %v8740 = vadd.f32 %v8164, %v8601
    %v8741 = vadd.f32 %v8165, %v8603
    %v8742 = vadd.f32 %v8166, %v8605
    %v8743 = vadd.f32 %v8167, %v8607
    %v8744 = vadd.f32 %v8168, %v8609
    %v8745 = vadd.f32 %v8169, %v8611
    %v8746 = vadd.f32 %v8170, %v8613
    %v8747 = vadd.f32 %v8171, %v8615
    %v8748 = vadd.f32 %v8172, %v8608
    %v8749 = vadd.f32 %v8173, %v8610
    %v8750 = vadd.f32 %v8174, %v8612
    %v8751 = vadd.f32 %v8175, %v8614
    %v8752 = vld [vmem:[#allocation2 + $0x60] sm:$0xfe]
    %v8753 = vld [vmem:[#allocation2 + $0x68] sm:$0xfe]
    %v8754 = vld [vmem:[#allocation2 + $0x70] sm:$0xfe]
    %v8755 = vld [vmem:[#allocation2 + $0x78] sm:$0xfe]
    %v8756 = vld [vmem:[#allocation2 + $0x80] sm:$0xff]
    %v8757 = vld [vmem:[#allocation2 + $0x88] sm:$0xff]
    %v8758 = vld [vmem:[#allocation2 + $0x90] sm:$0xff]
    %v8759 = vld [vmem:[#allocation2 + $0x98] sm:$0xff]
    %v8760 = vld [vmem:[#allocation2 + $0xa0] sm:$0xff]
    %v8761 = vld [vmem:[#allocation2 + $0xa8] sm:$0xff]
    %v8762 = vld [vmem:[#allocation2 + $0xb0] sm:$0xff]
    %v8763 = vld [vmem:[#allocation2 + $0xb8] sm:$0xff]
    %v8764 = vld [vmem:[#allocation2 + $0xc0] sm:$0xff]
    %v8765 = vld [vmem:[#allocation2 + $0xc8] sm:$0xff]
    %v8766 = vld [vmem:[#allocation2 + $0xd0] sm:$0xff]
    %v8767 = vld [vmem:[#allocation2 + $0xd8] sm:$0xff]
    %v8768 = vld [vmem:[#allocation2 + $0xe0] sm:$0xff]
    %v8769 = vld [vmem:[#allocation2 + $0xe8] sm:$0xff]
    %v8770 = vld [vmem:[#allocation2 + $0xf0] sm:$0xff]
    %v8771 = vld [vmem:[#allocation2 + $0xf8] sm:$0xff]
    %v8772 = vld [vmem:[#allocation2 + $0x100] sm:$0xff]
    %v8773 = vld [vmem:[#allocation2 + $0x108] sm:$0xff]
    %v8774 = vld [vmem:[#allocation2 + $0x110] sm:$0xff]
    %v8775 = vld [vmem:[#allocation2 + $0x118] sm:$0xff]
    %v8776 = vld [vmem:[#allocation2 + $0x120] sm:$0xff]
    %v8777 = vld [vmem:[#allocation2 + $0x128] sm:$0xff]
    %v8778 = vld [vmem:[#allocation2 + $0x130] sm:$0xff]
    %v8779 = vld [vmem:[#allocation2 + $0x138] sm:$0xff]
    %v8780 = vld [vmem:[#allocation2 + $0x140] sm:$0xff]
    %v8781 = vld [vmem:[#allocation2 + $0x148] sm:$0xff]
    %v8782 = vld [vmem:[#allocation2 + $0x150] sm:$0xff]
    %v8783 = vld [vmem:[#allocation2 + $0x158] sm:$0xff]
    %v8784 = vld [vmem:[#allocation2 + $0x160] sm:$0xff]
    %v8785 = vld [vmem:[#allocation2 + $0x168] sm:$0xff]
    %v8786 = vld [vmem:[#allocation2 + $0x170] sm:$0xff]
    %v8787 = vld [vmem:[#allocation2 + $0x178] sm:$0xff]
    %v8788 = vld [vmem:[#allocation2 + $0x180] sm:$0xff]
    %v8789 = vld [vmem:[#allocation2 + $0x188] sm:$0xff]
    %v8790 = vld [vmem:[#allocation2 + $0x190] sm:$0xff]
    %v8791 = vld [vmem:[#allocation2 + $0x198] sm:$0xff]
    %v8792 = vld [vmem:[#allocation2 + $0x1a0] sm:$0xff]
    %v8793 = vld [vmem:[#allocation2 + $0x1a8] sm:$0xff]
    %v8794 = vld [vmem:[#allocation2 + $0x1b0] sm:$0xff]
    %v8795 = vld [vmem:[#allocation2 + $0x1b8] sm:$0xff]
    %v8796 = vld [vmem:[#allocation2 + $0x1c0] sm:$0xff]
    %v8797 = vld [vmem:[#allocation2 + $0x1c8] sm:$0xff]
    %v8798 = vld [vmem:[#allocation2 + $0x1d0] sm:$0xff]
    %v8799 = vld [vmem:[#allocation2 + $0x1d8] sm:$0xff]
    %v8800 = vld [vmem:[#allocation2 + $0x1e0] sm:$0xff]
    %v8801 = vld [vmem:[#allocation2 + $0x1e8] sm:$0xff]
    %v8802 = vld [vmem:[#allocation2 + $0x1f0] sm:$0xff]
    %v8803 = vld [vmem:[#allocation2 + $0x1f8] sm:$0xff]
    %v8804 = vld [vmem:[#allocation2 + $0x200] sm:$0xff]
    %v8805 = vld [vmem:[#allocation2 + $0x208] sm:$0xff]
    %v8806 = vld [vmem:[#allocation2 + $0x210] sm:$0xff]
    %v8807 = vld [vmem:[#allocation2 + $0x218] sm:$0xff]
    %v8808 = vld [vmem:[#allocation2 + $0x220] sm:$0xff]
    %v8809 = vld [vmem:[#allocation2 + $0x228] sm:$0xff]
    %v8810 = vld [vmem:[#allocation2 + $0x230] sm:$0xff]
    %v8811 = vld [vmem:[#allocation2 + $0x238] sm:$0xff]
    %v8812 = vld [vmem:[#allocation2 + $0x240] sm:$0xff]
    %v8813 = vld [vmem:[#allocation2 + $0x248] sm:$0xff]
    %v8814 = vld [vmem:[#allocation2 + $0x250] sm:$0xff]
    %v8815 = vld [vmem:[#allocation2 + $0x258] sm:$0xff]
    %v8816 = vld [vmem:[#allocation2 + $0x260] sm:$0x1]
    %v8817 = vld [vmem:[#allocation2 + $0x268] sm:$0x1]
    %v8818 = vld [vmem:[#allocation2 + $0x270] sm:$0x1]
    %v8819 = vld [vmem:[#allocation2 + $0x278] sm:$0x1]
    %s8820 = scalar_lea.vmem %s12, 1024
    %v8821 = vld [vmem:[%s8820] sm:$0xff]
    %v8822 = vld [vmem:[%s8820 + $0x8] sm:$0xff]
    %v8823 = vld [vmem:[%s8820 + $0x10] sm:$0xff]
    %v8824 = vld [vmem:[%s8820 + $0x18] sm:$0xff]
    %v8825 = vld [vmem:[%s8820 + $0x20] sm:$0xff]
    %v8826 = vld [vmem:[%s8820 + $0x28] sm:$0xff]
    %v8827 = vld [vmem:[%s8820 + $0x30] sm:$0xff]
    %v8828 = vld [vmem:[%s8820 + $0x38] sm:$0xff]
    %v8829 = vld [vmem:[%s8820 + $0x40] sm:$0xff]
    %v8830 = vld [vmem:[%s8820 + $0x48] sm:$0xff]
    %v8831 = vld [vmem:[%s8820 + $0x50] sm:$0xff]
    %v8832 = vld [vmem:[%s8820 + $0x58] sm:$0xff]
    %v8833 = vld [vmem:[%s8820 + $0x60] sm:$0xff]
    %v8834 = vld [vmem:[%s8820 + $0x68] sm:$0xff]
    %v8835 = vld [vmem:[%s8820 + $0x70] sm:$0xff]
    %v8836 = vld [vmem:[%s8820 + $0x78] sm:$0xff]
    %8838 = vset.pattern.permute.xlu0 0
    %8839 = vperm.xlu0 %8838, %v8821
    %v8840 = vpop.permute.xlu0 %8839
    %8842 = vset.pattern.permute.xlu0 0
    %8843 = vperm.xlu0 %8842, %v8822
    %v8844 = vpop.permute.xlu0 %8843
    %8846 = vset.pattern.permute.xlu0 0
    %8847 = vperm.xlu0 %8846, %v8823
    %v8848 = vpop.permute.xlu0 %8847
    %8850 = vset.pattern.permute.xlu0 0
    %8851 = vperm.xlu0 %8850, %v8824
    %v8852 = vpop.permute.xlu0 %8851
    %8854 = vset.pattern.permute.xlu0 0
    %8855 = vperm.xlu0 %8854, %v8825
    %v8856 = vpop.permute.xlu0 %8855
    %8858 = vset.pattern.permute.xlu0 0
    %8859 = vperm.xlu0 %8858, %v8826
    %v8860 = vpop.permute.xlu0 %8859
    %8862 = vset.pattern.permute.xlu0 0
    %8863 = vperm.xlu0 %8862, %v8827
    %v8864 = vpop.permute.xlu0 %8863
    %8866 = vset.pattern.permute.xlu0 0
    %8867 = vperm.xlu0 %8866, %v8828
    %v8868 = vpop.permute.xlu0 %8867
    %8870 = vset.pattern.permute.xlu0 0
    %8871 = vperm.xlu0 %8870, %v8829
    %v8872 = vpop.permute.xlu0 %8871
    %8874 = vset.pattern.permute.xlu0 0
    %8875 = vperm.xlu0 %8874, %v8830
    %v8876 = vpop.permute.xlu0 %8875
    %8878 = vset.pattern.permute.xlu0 0
    %8879 = vperm.xlu0 %8878, %v8831
    %v8880 = vpop.permute.xlu0 %8879
    %8882 = vset.pattern.permute.xlu0 0
    %8883 = vperm.xlu0 %8882, %v8832
    %v8884 = vpop.permute.xlu0 %8883
    %8886 = vset.pattern.permute.xlu0 0
    %8887 = vperm.xlu0 %8886, %v8833
    %v8888 = vpop.permute.xlu0 %8887
    %8890 = vset.pattern.permute.xlu0 0
    %8891 = vperm.xlu0 %8890, %v8834
    %v8892 = vpop.permute.xlu0 %8891
    %8894 = vset.pattern.permute.xlu0 0
    %8895 = vperm.xlu0 %8894, %v8835
    %v8896 = vpop.permute.xlu0 %8895
    %8898 = vset.pattern.permute.xlu0 0
    %8899 = vperm.xlu0 %8898, %v8836
    %v8900 = vpop.permute.xlu0 %8899
    %v8901 = vrot.slane %v8840, 7
    %v8902 = vrot.slane %v8844, 7
    %v8903 = vsel %vm5635, %v8901, %v8902
    %v8904 = vrot.slane %v8848, 7
    %v8905 = vsel %vm5635, %v8902, %v8904
    %v8906 = vrot.slane %v8852, 7
    %v8907 = vsel %vm5635, %v8904, %v8906
    %v8908 = vrot.slane %v8856, 7
    %v8909 = vsel %vm5635, %v8906, %v8908
    %v8910 = vrot.slane %v8860, 7
    %v8911 = vsel %vm5635, %v8908, %v8910
    %v8912 = vrot.slane %v8864, 7
    %v8913 = vsel %vm5635, %v8910, %v8912
    %v8914 = vrot.slane %v8868, 7
    %v8915 = vsel %vm5635, %v8912, %v8914
    %v8916 = vrot.slane %v8872, 7
    %v8917 = vsel %vm5635, %v8914, %v8916
    %v8918 = vrot.slane %v8876, 7
    %v8919 = vsel %vm5635, %v8916, %v8918
    %v8920 = vrot.slane %v8880, 7
    %v8921 = vsel %vm5635, %v8918, %v8920
    %v8922 = vrot.slane %v8884, 7
    %v8923 = vsel %vm5635, %v8920, %v8922
    %v8924 = vrot.slane %v8888, 7
    %v8925 = vsel %vm5635, %v8922, %v8924
    %v8926 = vrot.slane %v8892, 7
    %v8927 = vsel %vm5635, %v8924, %v8926
    %v8928 = vrot.slane %v8896, 7
    %v8929 = vsel %vm5635, %v8926, %v8928
    %v8930 = vrot.slane %v8900, 7
    %v8931 = vsel %vm5635, %v8928, %v8930
    %v8949 = vmul.f32 %v8752, %v8901
    %v8950 = vmul.f32 %v8753, %v8901
    %v8951 = vmul.f32 %v8754, %v8901
    %v8952 = vmul.f32 %v8755, %v8901
    %v8953 = vmul.f32 %v8756, %v8903
    %v8954 = vmul.f32 %v8757, %v8903
    %v8955 = vmul.f32 %v8758, %v8903
    %v8956 = vmul.f32 %v8759, %v8903
    %v8957 = vmul.f32 %v8760, %v8905
    %v8958 = vmul.f32 %v8761, %v8905
    %v8959 = vmul.f32 %v8762, %v8905
    %v8960 = vmul.f32 %v8763, %v8905
    %v8961 = vmul.f32 %v8764, %v8907
    %v8962 = vmul.f32 %v8765, %v8907
    %v8963 = vmul.f32 %v8766, %v8907
    %v8964 = vmul.f32 %v8767, %v8907
    %v8965 = vmul.f32 %v8768, %v8909
    %v8966 = vmul.f32 %v8769, %v8909
    %v8967 = vmul.f32 %v8770, %v8909
    %v8968 = vmul.f32 %v8771, %v8909
    %v8969 = vmul.f32 %v8772, %v8911
    %v8970 = vmul.f32 %v8773, %v8911
    %v8971 = vmul.f32 %v8774, %v8911
    %v8972 = vmul.f32 %v8775, %v8911
    %v8973 = vmul.f32 %v8776, %v8913
    %v8974 = vmul.f32 %v8777, %v8913
    %v8975 = vmul.f32 %v8778, %v8913
    %v8976 = vmul.f32 %v8779, %v8913
    %v8977 = vmul.f32 %v8780, %v8915
    %v8978 = vmul.f32 %v8781, %v8915
    %v8979 = vmul.f32 %v8782, %v8915
    %v8980 = vmul.f32 %v8783, %v8915
    %v8981 = vmul.f32 %v8784, %v8917
    %v8982 = vmul.f32 %v8785, %v8917
    %v8983 = vmul.f32 %v8786, %v8917
    %v8984 = vmul.f32 %v8787, %v8917
    %v8985 = vmul.f32 %v8788, %v8919
    %v8986 = vmul.f32 %v8789, %v8919
    %v8987 = vmul.f32 %v8790, %v8919
    %v8988 = vmul.f32 %v8791, %v8919
    %v8989 = vmul.f32 %v8792, %v8921
    %v8990 = vmul.f32 %v8793, %v8921
    %v8991 = vmul.f32 %v8794, %v8921
    %v8992 = vmul.f32 %v8795, %v8921
    %v8993 = vmul.f32 %v8796, %v8923
    %v8994 = vmul.f32 %v8797, %v8923
    %v8995 = vmul.f32 %v8798, %v8923
    %v8996 = vmul.f32 %v8799, %v8923
    %v8997 = vmul.f32 %v8800, %v8925
    %v8998 = vmul.f32 %v8801, %v8925
    %v8999 = vmul.f32 %v8802, %v8925
    %v9000 = vmul.f32 %v8803, %v8925
    %v9001 = vmul.f32 %v8804, %v8927
    %v9002 = vmul.f32 %v8805, %v8927
    %v9003 = vmul.f32 %v8806, %v8927
    %v9004 = vmul.f32 %v8807, %v8927
    %v9005 = vmul.f32 %v8808, %v8929
    %v9006 = vmul.f32 %v8809, %v8929
    %v9007 = vmul.f32 %v8810, %v8929
    %v9008 = vmul.f32 %v8811, %v8929
    %v9009 = vmul.f32 %v8812, %v8931
    %v9010 = vmul.f32 %v8813, %v8931
    %v9011 = vmul.f32 %v8814, %v8931
    %v9012 = vmul.f32 %v8815, %v8931
    %v9013 = vmul.f32 %v8816, %v8930
    %v9014 = vmul.f32 %v8817, %v8930
    %v9015 = vmul.f32 %v8818, %v8930
    %v9016 = vmul.f32 %v8819, %v8930
    %s9017 = scalar_lea.vmem %s10, 32
    %v9018 = vld [vmem:[%s9017] sm:$0xf]
    %v9020 = vlaneseq
    %v9021 = vshrl.u32 %v9020, 7
    %v9022 = vsub.s32 0, %v9021
    %v9023 = vrot.slane %v9018, %v9022
    %v9024 = vlaneseq
    %v9025 = vshrl.u32 %v9024, 7
    %v9026 = vsub.s32 1, %v9025
    %v9027 = vrot.slane %v9018, %v9026
    %v9028 = vlaneseq
    %v9029 = vshrl.u32 %v9028, 7
    %v9030 = vsub.s32 2, %v9029
    %v9031 = vrot.slane %v9018, %v9030
    %v9032 = vlaneseq
    %v9033 = vshrl.u32 %v9032, 7
    %v9034 = vsub.s32 3, %v9033
    %v9035 = vrot.slane %v9018, %v9034
    %v9040 = vmul.f32 %v8949, %v9023
    %v9041 = vmul.f32 %v8950, %v9027
    %v9042 = vmul.f32 %v8951, %v9031
    %v9043 = vmul.f32 %v8952, %v9035
    %v9044 = vmul.f32 %v8953, %v9023
    %v9045 = vmul.f32 %v8954, %v9027
    %v9046 = vmul.f32 %v8955, %v9031
    %v9047 = vmul.f32 %v8956, %v9035
    %v9048 = vmul.f32 %v8957, %v9023
    %v9049 = vmul.f32 %v8958, %v9027
    %v9050 = vmul.f32 %v8959, %v9031
    %v9051 = vmul.f32 %v8960, %v9035
    %v9052 = vmul.f32 %v8961, %v9023
    %v9053 = vmul.f32 %v8962, %v9027
    %v9054 = vmul.f32 %v8963, %v9031
    %v9055 = vmul.f32 %v8964, %v9035
    %v9056 = vmul.f32 %v8965, %v9023
    %v9057 = vmul.f32 %v8966, %v9027
    %v9058 = vmul.f32 %v8967, %v9031
    %v9059 = vmul.f32 %v8968, %v9035
    %v9060 = vmul.f32 %v8969, %v9023
    %v9061 = vmul.f32 %v8970, %v9027
    %v9062 = vmul.f32 %v8971, %v9031
    %v9063 = vmul.f32 %v8972, %v9035
    %v9064 = vmul.f32 %v8973, %v9023
    %v9065 = vmul.f32 %v8974, %v9027
    %v9066 = vmul.f32 %v8975, %v9031
    %v9067 = vmul.f32 %v8976, %v9035
    %v9068 = vmul.f32 %v8977, %v9023
    %v9069 = vmul.f32 %v8978, %v9027
    %v9070 = vmul.f32 %v8979, %v9031
    %v9071 = vmul.f32 %v8980, %v9035
    %v9072 = vmul.f32 %v8981, %v9023
    %v9073 = vmul.f32 %v8982, %v9027
    %v9074 = vmul.f32 %v8983, %v9031
    %v9075 = vmul.f32 %v8984, %v9035
    %v9076 = vmul.f32 %v8985, %v9023
    %v9077 = vmul.f32 %v8986, %v9027
    %v9078 = vmul.f32 %v8987, %v9031
    %v9079 = vmul.f32 %v8988, %v9035
    %v9080 = vmul.f32 %v8989, %v9023
    %v9081 = vmul.f32 %v8990, %v9027
    %v9082 = vmul.f32 %v8991, %v9031
    %v9083 = vmul.f32 %v8992, %v9035
    %v9084 = vmul.f32 %v8993, %v9023
    %v9085 = vmul.f32 %v8994, %v9027
    %v9086 = vmul.f32 %v8995, %v9031
    %v9087 = vmul.f32 %v8996, %v9035
    %v9088 = vmul.f32 %v8997, %v9023
    %v9089 = vmul.f32 %v8998, %v9027
    %v9090 = vmul.f32 %v8999, %v9031
    %v9091 = vmul.f32 %v9000, %v9035
    %v9092 = vmul.f32 %v9001, %v9023
    %v9093 = vmul.f32 %v9002, %v9027
    %v9094 = vmul.f32 %v9003, %v9031
    %v9095 = vmul.f32 %v9004, %v9035
    %v9096 = vmul.f32 %v9005, %v9023
    %v9097 = vmul.f32 %v9006, %v9027
    %v9098 = vmul.f32 %v9007, %v9031
    %v9099 = vmul.f32 %v9008, %v9035
    %v9100 = vmul.f32 %v9009, %v9023
    %v9101 = vmul.f32 %v9010, %v9027
    %v9102 = vmul.f32 %v9011, %v9031
    %v9103 = vmul.f32 %v9012, %v9035
    %v9104 = vmul.f32 %v9013, %v9023
    %v9105 = vmul.f32 %v9014, %v9027
    %v9106 = vmul.f32 %v9015, %v9031
    %v9107 = vmul.f32 %v9016, %v9035
    %v9176 = vrot.slane %v9040, 2
    %v9177 = vrot.slane %v9041, 2
    %v9178 = vrot.slane %v9042, 2
    %v9179 = vrot.slane %v9043, 2
    %v9180 = vrot.slane %v9044, 2
    %v9181 = vsel %vm5911, %v9176, %v9180
    %v9182 = vrot.slane %v9045, 2
    %v9183 = vsel %vm5911, %v9177, %v9182
    %v9184 = vrot.slane %v9046, 2
    %v9185 = vsel %vm5911, %v9178, %v9184
    %v9186 = vrot.slane %v9047, 2
    %v9187 = vsel %vm5911, %v9179, %v9186
    %v9188 = vrot.slane %v9048, 2
    %v9189 = vsel %vm5911, %v9180, %v9188
    %v9190 = vrot.slane %v9049, 2
    %v9191 = vsel %vm5911, %v9182, %v9190
    %v9192 = vrot.slane %v9050, 2
    %v9193 = vsel %vm5911, %v9184, %v9192
    %v9194 = vrot.slane %v9051, 2
    %v9195 = vsel %vm5911, %v9186, %v9194
    %v9196 = vrot.slane %v9052, 2
    %v9197 = vsel %vm5911, %v9188, %v9196
    %v9198 = vrot.slane %v9053, 2
    %v9199 = vsel %vm5911, %v9190, %v9198
    %v9200 = vrot.slane %v9054, 2
    %v9201 = vsel %vm5911, %v9192, %v9200
    %v9202 = vrot.slane %v9055, 2
    %v9203 = vsel %vm5911, %v9194, %v9202
    %v9204 = vrot.slane %v9056, 2
    %v9205 = vsel %vm5911, %v9196, %v9204
    %v9206 = vrot.slane %v9057, 2
    %v9207 = vsel %vm5911, %v9198, %v9206
    %v9208 = vrot.slane %v9058, 2
    %v9209 = vsel %vm5911, %v9200, %v9208
    %v9210 = vrot.slane %v9059, 2
    %v9211 = vsel %vm5911, %v9202, %v9210
    %v9212 = vrot.slane %v9060, 2
    %v9213 = vsel %vm5911, %v9204, %v9212
    %v9214 = vrot.slane %v9061, 2
    %v9215 = vsel %vm5911, %v9206, %v9214
    %v9216 = vrot.slane %v9062, 2
    %v9217 = vsel %vm5911, %v9208, %v9216
    %v9218 = vrot.slane %v9063, 2
    %v9219 = vsel %vm5911, %v9210, %v9218
    %v9220 = vrot.slane %v9064, 2
    %v9221 = vsel %vm5911, %v9212, %v9220
    %v9222 = vrot.slane %v9065, 2
    %v9223 = vsel %vm5911, %v9214, %v9222
    %v9224 = vrot.slane %v9066, 2
    %v9225 = vsel %vm5911, %v9216, %v9224
    %v9226 = vrot.slane %v9067, 2
    %v9227 = vsel %vm5911, %v9218, %v9226
    %v9228 = vrot.slane %v9068, 2
    %v9229 = vsel %vm5911, %v9220, %v9228
    %v9230 = vrot.slane %v9069, 2
    %v9231 = vsel %vm5911, %v9222, %v9230
    %v9232 = vrot.slane %v9070, 2
    %v9233 = vsel %vm5911, %v9224, %v9232
    %v9234 = vrot.slane %v9071, 2
    %v9235 = vsel %vm5911, %v9226, %v9234
    %v9236 = vrot.slane %v9072, 2
    %v9237 = vsel %vm5911, %v9228, %v9236
    %v9238 = vrot.slane %v9073, 2
    %v9239 = vsel %vm5911, %v9230, %v9238
    %v9240 = vrot.slane %v9074, 2
    %v9241 = vsel %vm5911, %v9232, %v9240
    %v9242 = vrot.slane %v9075, 2
    %v9243 = vsel %vm5911, %v9234, %v9242
    %v9244 = vrot.slane %v9076, 2
    %v9245 = vsel %vm5911, %v9236, %v9244
    %v9246 = vrot.slane %v9077, 2
    %v9247 = vsel %vm5911, %v9238, %v9246
    %v9248 = vrot.slane %v9078, 2
    %v9249 = vsel %vm5911, %v9240, %v9248
    %v9250 = vrot.slane %v9079, 2
    %v9251 = vsel %vm5911, %v9242, %v9250
    %v9252 = vrot.slane %v9080, 2
    %v9253 = vsel %vm5911, %v9244, %v9252
    %v9254 = vrot.slane %v9081, 2
    %v9255 = vsel %vm5911, %v9246, %v9254
    %v9256 = vrot.slane %v9082, 2
    %v9257 = vsel %vm5911, %v9248, %v9256
    %v9258 = vrot.slane %v9083, 2
    %v9259 = vsel %vm5911, %v9250, %v9258
    %v9260 = vrot.slane %v9084, 2
    %v9261 = vsel %vm5911, %v9252, %v9260
    %v9262 = vrot.slane %v9085, 2
    %v9263 = vsel %vm5911, %v9254, %v9262
    %v9264 = vrot.slane %v9086, 2
    %v9265 = vsel %vm5911, %v9256, %v9264
    %v9266 = vrot.slane %v9087, 2
    %v9267 = vsel %vm5911, %v9258, %v9266
    %v9268 = vrot.slane %v9088, 2
    %v9269 = vsel %vm5911, %v9260, %v9268
    %v9270 = vrot.slane %v9089, 2
    %v9271 = vsel %vm5911, %v9262, %v9270
    %v9272 = vrot.slane %v9090, 2
    %v9273 = vsel %vm5911, %v9264, %v9272
    %v9274 = vrot.slane %v9091, 2
    %v9275 = vsel %vm5911, %v9266, %v9274
    %v9276 = vrot.slane %v9092, 2
    %v9277 = vsel %vm5911, %v9268, %v9276
    %v9278 = vrot.slane %v9093, 2
    %v9279 = vsel %vm5911, %v9270, %v9278
    %v9280 = vrot.slane %v9094, 2
    %v9281 = vsel %vm5911, %v9272, %v9280
    %v9282 = vrot.slane %v9095, 2
    %v9283 = vsel %vm5911, %v9274, %v9282
    %v9284 = vrot.slane %v9096, 2
    %v9285 = vsel %vm5911, %v9276, %v9284
    %v9286 = vrot.slane %v9097, 2
    %v9287 = vsel %vm5911, %v9278, %v9286
    %v9288 = vrot.slane %v9098, 2
    %v9289 = vsel %vm5911, %v9280, %v9288
    %v9290 = vrot.slane %v9099, 2
    %v9291 = vsel %vm5911, %v9282, %v9290
    %v9292 = vrot.slane %v9100, 2
    %v9293 = vsel %vm5911, %v9284, %v9292
    %v9294 = vrot.slane %v9101, 2
    %v9295 = vsel %vm5911, %v9286, %v9294
    %v9296 = vrot.slane %v9102, 2
    %v9297 = vsel %vm5911, %v9288, %v9296
    %v9298 = vrot.slane %v9103, 2
    %v9299 = vsel %vm5911, %v9290, %v9298
    %v9300 = vrot.slane %v9104, 2
    %v9301 = vsel %vm5911, %v9292, %v9300
    %v9302 = vrot.slane %v9105, 2
    %v9303 = vsel %vm5911, %v9294, %v9302
    %v9304 = vrot.slane %v9106, 2
    %v9305 = vsel %vm5911, %v9296, %v9304
    %v9306 = vrot.slane %v9107, 2
    %v9307 = vsel %vm5911, %v9298, %v9306
    %v9376 = vadd.f32 %v8684, %v9176
    %v9377 = vadd.f32 %v8685, %v9177
    %v9378 = vadd.f32 %v8686, %v9178
    %v9379 = vadd.f32 %v8687, %v9179
    %v9380 = vadd.f32 %v8688, %v9181
    %v9381 = vadd.f32 %v8689, %v9183
    %v9382 = vadd.f32 %v8690, %v9185
    %v9383 = vadd.f32 %v8691, %v9187
    %v9384 = vadd.f32 %v8692, %v9189
    %v9385 = vadd.f32 %v8693, %v9191
    %v9386 = vadd.f32 %v8694, %v9193
    %v9387 = vadd.f32 %v8695, %v9195
    %v9388 = vadd.f32 %v8696, %v9197
    %v9389 = vadd.f32 %v8697, %v9199
    %v9390 = vadd.f32 %v8698, %v9201
    %v9391 = vadd.f32 %v8699, %v9203
    %v9392 = vadd.f32 %v8700, %v9205
    %v9393 = vadd.f32 %v8701, %v9207
    %v9394 = vadd.f32 %v8702, %v9209
    %v9395 = vadd.f32 %v8703, %v9211
    %v9396 = vadd.f32 %v8704, %v9213
    %v9397 = vadd.f32 %v8705, %v9215
    %v9398 = vadd.f32 %v8706, %v9217
    %v9399 = vadd.f32 %v8707, %v9219
    %v9400 = vadd.f32 %v8708, %v9221
    %v9401 = vadd.f32 %v8709, %v9223
    %v9402 = vadd.f32 %v8710, %v9225
    %v9403 = vadd.f32 %v8711, %v9227
    %v9404 = vadd.f32 %v8712, %v9229
    %v9405 = vadd.f32 %v8713, %v9231
    %v9406 = vadd.f32 %v8714, %v9233
    %v9407 = vadd.f32 %v8715, %v9235
    %v9408 = vadd.f32 %v8716, %v9237
    %v9409 = vadd.f32 %v8717, %v9239
    %v9410 = vadd.f32 %v8718, %v9241
    %v9411 = vadd.f32 %v8719, %v9243
    %v9412 = vadd.f32 %v8720, %v9245
    %v9413 = vadd.f32 %v8721, %v9247
    %v9414 = vadd.f32 %v8722, %v9249
    %v9415 = vadd.f32 %v8723, %v9251
    %v9416 = vadd.f32 %v8724, %v9253
    %v9417 = vadd.f32 %v8725, %v9255
    %v9418 = vadd.f32 %v8726, %v9257
    %v9419 = vadd.f32 %v8727, %v9259
    %v9420 = vadd.f32 %v8728, %v9261
    %v9421 = vadd.f32 %v8729, %v9263
    %v9422 = vadd.f32 %v8730, %v9265
    %v9423 = vadd.f32 %v8731, %v9267
    %v9424 = vadd.f32 %v8732, %v9269
    %v9425 = vadd.f32 %v8733, %v9271
    %v9426 = vadd.f32 %v8734, %v9273
    %v9427 = vadd.f32 %v8735, %v9275
    %v9428 = vadd.f32 %v8736, %v9277
    %v9429 = vadd.f32 %v8737, %v9279
    %v9430 = vadd.f32 %v8738, %v9281
    %v9431 = vadd.f32 %v8739, %v9283
    %v9432 = vadd.f32 %v8740, %v9285
    %v9433 = vadd.f32 %v8741, %v9287
    %v9434 = vadd.f32 %v8742, %v9289
    %v9435 = vadd.f32 %v8743, %v9291
    %v9436 = vadd.f32 %v8744, %v9293
    %v9437 = vadd.f32 %v8745, %v9295
    %v9438 = vadd.f32 %v8746, %v9297
    %v9439 = vadd.f32 %v8747, %v9299
    %v9440 = vadd.f32 %v8748, %v9301
    %v9441 = vadd.f32 %v8749, %v9303
    %v9442 = vadd.f32 %v8750, %v9305
    %v9443 = vadd.f32 %v8751, %v9307
    %v9444 = vld [vmem:[%s11] sm:$0xf]
    %v9446 = vlaneseq
    %v9447 = vshrl.u32 %v9446, 7
    %v9448 = vsub.s32 0, %v9447
    %v9449 = vrot.slane %v9444, %v9448
    %v9450 = vlaneseq
    %v9451 = vshrl.u32 %v9450, 7
    %v9452 = vsub.s32 1, %v9451
    %v9453 = vrot.slane %v9444, %v9452
    %v9454 = vlaneseq
    %v9455 = vshrl.u32 %v9454, 7
    %v9456 = vsub.s32 2, %v9455
    %v9457 = vrot.slane %v9444, %v9456
    %v9458 = vlaneseq
    %v9459 = vshrl.u32 %v9458, 7
    %v9460 = vsub.s32 3, %v9459
    %v9461 = vrot.slane %v9444, %v9460
    %v9466 = vadd.f32 %v9376, %v9449
    %v9467 = vadd.f32 %v9377, %v9453
    %v9468 = vadd.f32 %v9378, %v9457
    %v9469 = vadd.f32 %v9379, %v9461
    %v9470 = vadd.f32 %v9380, %v9449
    %v9471 = vadd.f32 %v9381, %v9453
    %v9472 = vadd.f32 %v9382, %v9457
    %v9473 = vadd.f32 %v9383, %v9461
    %v9474 = vadd.f32 %v9384, %v9449
    %v9475 = vadd.f32 %v9385, %v9453
    %v9476 = vadd.f32 %v9386, %v9457
    %v9477 = vadd.f32 %v9387, %v9461
    %v9478 = vadd.f32 %v9388, %v9449
    %v9479 = vadd.f32 %v9389, %v9453
    %v9480 = vadd.f32 %v9390, %v9457
    %v9481 = vadd.f32 %v9391, %v9461
    %v9482 = vadd.f32 %v9392, %v9449
    %v9483 = vadd.f32 %v9393, %v9453
    %v9484 = vadd.f32 %v9394, %v9457
    %v9485 = vadd.f32 %v9395, %v9461
    %v9486 = vadd.f32 %v9396, %v9449
    %v9487 = vadd.f32 %v9397, %v9453
    %v9488 = vadd.f32 %v9398, %v9457
    %v9489 = vadd.f32 %v9399, %v9461
    %v9490 = vadd.f32 %v9400, %v9449
    %v9491 = vadd.f32 %v9401, %v9453
    %v9492 = vadd.f32 %v9402, %v9457
    %v9493 = vadd.f32 %v9403, %v9461
    %v9494 = vadd.f32 %v9404, %v9449
    %v9495 = vadd.f32 %v9405, %v9453
    %v9496 = vadd.f32 %v9406, %v9457
    %v9497 = vadd.f32 %v9407, %v9461
    %v9498 = vadd.f32 %v9408, %v9449
    %v9499 = vadd.f32 %v9409, %v9453
    %v9500 = vadd.f32 %v9410, %v9457
    %v9501 = vadd.f32 %v9411, %v9461
    %v9502 = vadd.f32 %v9412, %v9449
    %v9503 = vadd.f32 %v9413, %v9453
    %v9504 = vadd.f32 %v9414, %v9457
    %v9505 = vadd.f32 %v9415, %v9461
    %v9506 = vadd.f32 %v9416, %v9449
    %v9507 = vadd.f32 %v9417, %v9453
    %v9508 = vadd.f32 %v9418, %v9457
    %v9509 = vadd.f32 %v9419, %v9461
    %v9510 = vadd.f32 %v9420, %v9449
    %v9511 = vadd.f32 %v9421, %v9453
    %v9512 = vadd.f32 %v9422, %v9457
    %v9513 = vadd.f32 %v9423, %v9461
    %v9514 = vadd.f32 %v9424, %v9449
    %v9515 = vadd.f32 %v9425, %v9453
    %v9516 = vadd.f32 %v9426, %v9457
    %v9517 = vadd.f32 %v9427, %v9461
    %v9518 = vadd.f32 %v9428, %v9449
    %v9519 = vadd.f32 %v9429, %v9453
    %v9520 = vadd.f32 %v9430, %v9457
    %v9521 = vadd.f32 %v9431, %v9461
    %v9522 = vadd.f32 %v9432, %v9449
    %v9523 = vadd.f32 %v9433, %v9453
    %v9524 = vadd.f32 %v9434, %v9457
    %v9525 = vadd.f32 %v9435, %v9461
    %v9526 = vadd.f32 %v9436, %v9449
    %v9527 = vadd.f32 %v9437, %v9453
    %v9528 = vadd.f32 %v9438, %v9457
    %v9529 = vadd.f32 %v9439, %v9461
    %v9530 = vadd.f32 %v9440, %v9449
    %v9531 = vadd.f32 %v9441, %v9453
    %v9532 = vadd.f32 %v9442, %v9457
    %v9533 = vadd.f32 %v9443, %v9461
    %v9534 = vmul.f32 %v9466, 0.5
    %v9535 = vmul.f32 %v9467, 0.5
    %v9536 = vmul.f32 %v9468, 0.5
    %v9537 = vmul.f32 %v9469, 0.5
    %v9538 = vmul.f32 %v9470, 0.5
    %v9539 = vmul.f32 %v9471, 0.5
    %v9540 = vmul.f32 %v9472, 0.5
    %v9541 = vmul.f32 %v9473, 0.5
    %v9542 = vmul.f32 %v9474, 0.5
    %v9543 = vmul.f32 %v9475, 0.5
    %v9544 = vmul.f32 %v9476, 0.5
    %v9545 = vmul.f32 %v9477, 0.5
    %v9546 = vmul.f32 %v9478, 0.5
    %v9547 = vmul.f32 %v9479, 0.5
    %v9548 = vmul.f32 %v9480, 0.5
    %v9549 = vmul.f32 %v9481, 0.5
    %v9550 = vmul.f32 %v9482, 0.5
    %v9551 = vmul.f32 %v9483, 0.5
    %v9552 = vmul.f32 %v9484, 0.5
    %v9553 = vmul.f32 %v9485, 0.5
    %v9554 = vmul.f32 %v9486, 0.5
    %v9555 = vmul.f32 %v9487, 0.5
    %v9556 = vmul.f32 %v9488, 0.5
    %v9557 = vmul.f32 %v9489, 0.5
    %v9558 = vmul.f32 %v9490, 0.5
    %v9559 = vmul.f32 %v9491, 0.5
    %v9560 = vmul.f32 %v9492, 0.5
    %v9561 = vmul.f32 %v9493, 0.5
    %v9562 = vmul.f32 %v9494, 0.5
    %v9563 = vmul.f32 %v9495, 0.5
    %v9564 = vmul.f32 %v9496, 0.5
    %v9565 = vmul.f32 %v9497, 0.5
    %v9566 = vmul.f32 %v9498, 0.5
    %v9567 = vmul.f32 %v9499, 0.5
    %v9568 = vmul.f32 %v9500, 0.5
    %v9569 = vmul.f32 %v9501, 0.5
    %v9570 = vmul.f32 %v9502, 0.5
    %v9571 = vmul.f32 %v9503, 0.5
    %v9572 = vmul.f32 %v9504, 0.5
    %v9573 = vmul.f32 %v9505, 0.5
    %v9574 = vmul.f32 %v9506, 0.5
    %v9575 = vmul.f32 %v9507, 0.5
    %v9576 = vmul.f32 %v9508, 0.5
    %v9577 = vmul.f32 %v9509, 0.5
    %v9578 = vmul.f32 %v9510, 0.5
    %v9579 = vmul.f32 %v9511, 0.5
    %v9580 = vmul.f32 %v9512, 0.5
    %v9581 = vmul.f32 %v9513, 0.5
    %v9582 = vmul.f32 %v9514, 0.5
    %v9583 = vmul.f32 %v9515, 0.5
    %v9584 = vmul.f32 %v9516, 0.5
    %v9585 = vmul.f32 %v9517, 0.5
    %v9586 = vmul.f32 %v9518, 0.5
    %v9587 = vmul.f32 %v9519, 0.5
    %v9588 = vmul.f32 %v9520, 0.5
    %v9589 = vmul.f32 %v9521, 0.5
    %v9590 = vmul.f32 %v9522, 0.5
    %v9591 = vmul.f32 %v9523, 0.5
    %v9592 = vmul.f32 %v9524, 0.5
    %v9593 = vmul.f32 %v9525, 0.5
    %v9594 = vmul.f32 %v9526, 0.5
    %v9595 = vmul.f32 %v9527, 0.5
    %v9596 = vmul.f32 %v9528, 0.5
    %v9597 = vmul.f32 %v9529, 0.5
    %v9598 = vmul.f32 %v9530, 0.5
    %v9599 = vmul.f32 %v9531, 0.5
    %v9600 = vmul.f32 %v9532, 0.5
    %v9601 = vmul.f32 %v9533, 0.5
    %v9602 = vmul.f32 %v9466, 0.70710677
    %v9603 = vmul.f32 %v9467, 0.70710677
    %v9604 = vmul.f32 %v9468, 0.70710677
    %v9605 = vmul.f32 %v9469, 0.70710677
    %v9606 = vmul.f32 %v9470, 0.70710677
    %v9607 = vmul.f32 %v9471, 0.70710677
    %v9608 = vmul.f32 %v9472, 0.70710677
    %v9609 = vmul.f32 %v9473, 0.70710677
    %v9610 = vmul.f32 %v9474, 0.70710677
    %v9611 = vmul.f32 %v9475, 0.70710677
    %v9612 = vmul.f32 %v9476, 0.70710677
    %v9613 = vmul.f32 %v9477, 0.70710677
    %v9614 = vmul.f32 %v9478, 0.70710677
    %v9615 = vmul.f32 %v9479, 0.70710677
    %v9616 = vmul.f32 %v9480, 0.70710677
    %v9617 = vmul.f32 %v9481, 0.70710677
    %v9618 = vmul.f32 %v9482, 0.70710677
    %v9619 = vmul.f32 %v9483, 0.70710677
    %v9620 = vmul.f32 %v9484, 0.70710677
    %v9621 = vmul.f32 %v9485, 0.70710677
    %v9622 = vmul.f32 %v9486, 0.70710677
    %v9623 = vmul.f32 %v9487, 0.70710677
    %v9624 = vmul.f32 %v9488, 0.70710677
    %v9625 = vmul.f32 %v9489, 0.70710677
    %v9626 = vmul.f32 %v9490, 0.70710677
    %v9627 = vmul.f32 %v9491, 0.70710677
    %v9628 = vmul.f32 %v9492, 0.70710677
    %v9629 = vmul.f32 %v9493, 0.70710677
    %v9630 = vmul.f32 %v9494, 0.70710677
    %v9631 = vmul.f32 %v9495, 0.70710677
    %v9632 = vmul.f32 %v9496, 0.70710677
    %v9633 = vmul.f32 %v9497, 0.70710677
    %v9634 = vmul.f32 %v9498, 0.70710677
    %v9635 = vmul.f32 %v9499, 0.70710677
    %v9636 = vmul.f32 %v9500, 0.70710677
    %v9637 = vmul.f32 %v9501, 0.70710677
    %v9638 = vmul.f32 %v9502, 0.70710677
    %v9639 = vmul.f32 %v9503, 0.70710677
    %v9640 = vmul.f32 %v9504, 0.70710677
    %v9641 = vmul.f32 %v9505, 0.70710677
    %v9642 = vmul.f32 %v9506, 0.70710677
    %v9643 = vmul.f32 %v9507, 0.70710677
    %v9644 = vmul.f32 %v9508, 0.70710677
    %v9645 = vmul.f32 %v9509, 0.70710677
    %v9646 = vmul.f32 %v9510, 0.70710677
    %v9647 = vmul.f32 %v9511, 0.70710677
    %v9648 = vmul.f32 %v9512, 0.70710677
    %v9649 = vmul.f32 %v9513, 0.70710677
    %v9650 = vmul.f32 %v9514, 0.70710677
    %v9651 = vmul.f32 %v9515, 0.70710677
    %v9652 = vmul.f32 %v9516, 0.70710677
    %v9653 = vmul.f32 %v9517, 0.70710677
    %v9654 = vmul.f32 %v9518, 0.70710677
    %v9655 = vmul.f32 %v9519, 0.70710677
    %v9656 = vmul.f32 %v9520, 0.70710677
    %v9657 = vmul.f32 %v9521, 0.70710677
    %v9658 = vmul.f32 %v9522, 0.70710677
    %v9659 = vmul.f32 %v9523, 0.70710677
    %v9660 = vmul.f32 %v9524, 0.70710677
    %v9661 = vmul.f32 %v9525, 0.70710677
    %v9662 = vmul.f32 %v9526, 0.70710677
    %v9663 = vmul.f32 %v9527, 0.70710677
    %v9664 = vmul.f32 %v9528, 0.70710677
    %v9665 = vmul.f32 %v9529, 0.70710677
    %v9666 = vmul.f32 %v9530, 0.70710677
    %v9667 = vmul.f32 %v9531, 0.70710677
    %v9668 = vmul.f32 %v9532, 0.70710677
    %v9669 = vmul.f32 %v9533, 0.70710677
    %v9670 = verf.f32.pop %v9602
    %v9671 = verf.f32.pop %v9603
    %v9672 = verf.f32.pop %v9604
    %v9673 = verf.f32.pop %v9605
    %v9674 = verf.f32.pop %v9606
    %v9675 = verf.f32.pop %v9607
    %v9676 = verf.f32.pop %v9608
    %v9677 = verf.f32.pop %v9609
    %v9678 = verf.f32.pop %v9610
    %v9679 = verf.f32.pop %v9611
    %v9680 = verf.f32.pop %v9612
    %v9681 = verf.f32.pop %v9613
    %v9682 = verf.f32.pop %v9614
    %v9683 = verf.f32.pop %v9615
    %v9684 = verf.f32.pop %v9616
    %v9685 = verf.f32.pop %v9617
    %v9686 = verf.f32.pop %v9618
    %v9687 = verf.f32.pop %v9619
    %v9688 = verf.f32.pop %v9620
    %v9689 = verf.f32.pop %v9621
    %v9690 = verf.f32.pop %v9622
    %v9691 = verf.f32.pop %v9623
    %v9692 = verf.f32.pop %v9624
    %v9693 = verf.f32.pop %v9625
    %v9694 = verf.f32.pop %v9626
    %v9695 = verf.f32.pop %v9627
    %v9696 = verf.f32.pop %v9628
    %v9697 = verf.f32.pop %v9629
    %v9698 = verf.f32.pop %v9630
    %v9699 = verf.f32.pop %v9631
    %v9700 = verf.f32.pop %v9632
    %v9701 = verf.f32.pop %v9633
    %v9702 = verf.f32.pop %v9634
    %v9703 = verf.f32.pop %v9635
    %v9704 = verf.f32.pop %v9636
    %v9705 = verf.f32.pop %v9637
    %v9706 = verf.f32.pop %v9638
    %v9707 = verf.f32.pop %v9639
    %v9708 = verf.f32.pop %v9640
    %v9709 = verf.f32.pop %v9641
    %v9710 = verf.f32.pop %v9642
    %v9711 = verf.f32.pop %v9643
    %v9712 = verf.f32.pop %v9644
    %v9713 = verf.f32.pop %v9645
    %v9714 = verf.f32.pop %v9646
    %v9715 = verf.f32.pop %v9647
    %v9716 = verf.f32.pop %v9648
    %v9717 = verf.f32.pop %v9649
    %v9718 = verf.f32.pop %v9650
    %v9719 = verf.f32.pop %v9651
    %v9720 = verf.f32.pop %v9652
    %v9721 = verf.f32.pop %v9653
    %v9722 = verf.f32.pop %v9654
    %v9723 = verf.f32.pop %v9655
    %v9724 = verf.f32.pop %v9656
    %v9725 = verf.f32.pop %v9657
    %v9726 = verf.f32.pop %v9658
    %v9727 = verf.f32.pop %v9659
    %v9728 = verf.f32.pop %v9660
    %v9729 = verf.f32.pop %v9661
    %v9730 = verf.f32.pop %v9662
    %v9731 = verf.f32.pop %v9663
    %v9732 = verf.f32.pop %v9664
    %v9733 = verf.f32.pop %v9665
    %v9734 = verf.f32.pop %v9666
    %v9735 = verf.f32.pop %v9667
    %v9736 = verf.f32.pop %v9668
    %v9737 = verf.f32.pop %v9669
    %v9738 = vadd.f32 %v9670, 1.0
    %v9739 = vadd.f32 %v9671, 1.0
    %v9740 = vadd.f32 %v9672, 1.0
    %v9741 = vadd.f32 %v9673, 1.0
    %v9742 = vadd.f32 %v9674, 1.0
    %v9743 = vadd.f32 %v9675, 1.0
    %v9744 = vadd.f32 %v9676, 1.0
    %v9745 = vadd.f32 %v9677, 1.0
    %v9746 = vadd.f32 %v9678, 1.0
    %v9747 = vadd.f32 %v9679, 1.0
    %v9748 = vadd.f32 %v9680, 1.0
    %v9749 = vadd.f32 %v9681, 1.0
    %v9750 = vadd.f32 %v9682, 1.0
    %v9751 = vadd.f32 %v9683, 1.0
    %v9752 = vadd.f32 %v9684, 1.0
    %v9753 = vadd.f32 %v9685, 1.0
    %v9754 = vadd.f32 %v9686, 1.0
    %v9755 = vadd.f32 %v9687, 1.0
    %v9756 = vadd.f32 %v9688, 1.0
    %v9757 = vadd.f32 %v9689, 1.0
    %v9758 = vadd.f32 %v9690, 1.0
    %v9759 = vadd.f32 %v9691, 1.0
    %v9760 = vadd.f32 %v9692, 1.0
    %v9761 = vadd.f32 %v9693, 1.0
    %v9762 = vadd.f32 %v9694, 1.0
    %v9763 = vadd.f32 %v9695, 1.0
    %v9764 = vadd.f32 %v9696, 1.0
    %v9765 = vadd.f32 %v9697, 1.0
    %v9766 = vadd.f32 %v9698, 1.0
    %v9767 = vadd.f32 %v9699, 1.0
    %v9768 = vadd.f32 %v9700, 1.0
    %v9769 = vadd.f32 %v9701, 1.0
    %v9770 = vadd.f32 %v9702, 1.0
    %v9771 = vadd.f32 %v9703, 1.0
    %v9772 = vadd.f32 %v9704, 1.0
    %v9773 = vadd.f32 %v9705, 1.0
    %v9774 = vadd.f32 %v9706, 1.0
    %v9775 = vadd.f32 %v9707, 1.0
    %v9776 = vadd.f32 %v9708, 1.0
    %v9777 = vadd.f32 %v9709, 1.0
    %v9778 = vadd.f32 %v9710, 1.0
    %v9779 = vadd.f32 %v9711, 1.0
    %v9780 = vadd.f32 %v9712, 1.0
    %v9781 = vadd.f32 %v9713, 1.0
    %v9782 = vadd.f32 %v9714, 1.0
    %v9783 = vadd.f32 %v9715, 1.0
    %v9784 = vadd.f32 %v9716, 1.0
    %v9785 = vadd.f32 %v9717, 1.0
    %v9786 = vadd.f32 %v9718, 1.0
    %v9787 = vadd.f32 %v9719, 1.0
    %v9788 = vadd.f32 %v9720, 1.0
    %v9789 = vadd.f32 %v9721, 1.0
    %v9790 = vadd.f32 %v9722, 1.0
    %v9791 = vadd.f32 %v9723, 1.0
    %v9792 = vadd.f32 %v9724, 1.0
    %v9793 = vadd.f32 %v9725, 1.0
    %v9794 = vadd.f32 %v9726, 1.0
    %v9795 = vadd.f32 %v9727, 1.0
    %v9796 = vadd.f32 %v9728, 1.0
    %v9797 = vadd.f32 %v9729, 1.0
    %v9798 = vadd.f32 %v9730, 1.0
    %v9799 = vadd.f32 %v9731, 1.0
    %v9800 = vadd.f32 %v9732, 1.0
    %v9801 = vadd.f32 %v9733, 1.0
    %v9802 = vadd.f32 %v9734, 1.0
    %v9803 = vadd.f32 %v9735, 1.0
    %v9804 = vadd.f32 %v9736, 1.0
    %v9805 = vadd.f32 %v9737, 1.0
    %v9806 = vmul.f32 %v9534, %v9738
    %v9807 = vmul.f32 %v9535, %v9739
    %v9808 = vmul.f32 %v9536, %v9740
    %v9809 = vmul.f32 %v9537, %v9741
    %v9810 = vmul.f32 %v9538, %v9742
    %v9811 = vmul.f32 %v9539, %v9743
    %v9812 = vmul.f32 %v9540, %v9744
    %v9813 = vmul.f32 %v9541, %v9745
    %v9814 = vmul.f32 %v9542, %v9746
    %v9815 = vmul.f32 %v9543, %v9747
    %v9816 = vmul.f32 %v9544, %v9748
    %v9817 = vmul.f32 %v9545, %v9749
    %v9818 = vmul.f32 %v9546, %v9750
    %v9819 = vmul.f32 %v9547, %v9751
    %v9820 = vmul.f32 %v9548, %v9752
    %v9821 = vmul.f32 %v9549, %v9753
    %v9822 = vmul.f32 %v9550, %v9754
    %v9823 = vmul.f32 %v9551, %v9755
    %v9824 = vmul.f32 %v9552, %v9756
    %v9825 = vmul.f32 %v9553, %v9757
    %v9826 = vmul.f32 %v9554, %v9758
    %v9827 = vmul.f32 %v9555, %v9759
    %v9828 = vmul.f32 %v9556, %v9760
    %v9829 = vmul.f32 %v9557, %v9761
    %v9830 = vmul.f32 %v9558, %v9762
    %v9831 = vmul.f32 %v9559, %v9763
    %v9832 = vmul.f32 %v9560, %v9764
    %v9833 = vmul.f32 %v9561, %v9765
    %v9834 = vmul.f32 %v9562, %v9766
    %v9835 = vmul.f32 %v9563, %v9767
    %v9836 = vmul.f32 %v9564, %v9768
    %v9837 = vmul.f32 %v9565, %v9769
    %v9838 = vmul.f32 %v9566, %v9770
    %v9839 = vmul.f32 %v9567, %v9771
    %v9840 = vmul.f32 %v9568, %v9772
    %v9841 = vmul.f32 %v9569, %v9773
    %v9842 = vmul.f32 %v9570, %v9774
    %v9843 = vmul.f32 %v9571, %v9775
    %v9844 = vmul.f32 %v9572, %v9776
    %v9845 = vmul.f32 %v9573, %v9777
    %v9846 = vmul.f32 %v9574, %v9778
    %v9847 = vmul.f32 %v9575, %v9779
    %v9848 = vmul.f32 %v9576, %v9780
    %v9849 = vmul.f32 %v9577, %v9781
    %v9850 = vmul.f32 %v9578, %v9782
    %v9851 = vmul.f32 %v9579, %v9783
    %v9852 = vmul.f32 %v9580, %v9784
    %v9853 = vmul.f32 %v9581, %v9785
    %v9854 = vmul.f32 %v9582, %v9786
    %v9855 = vmul.f32 %v9583, %v9787
    %v9856 = vmul.f32 %v9584, %v9788
    %v9857 = vmul.f32 %v9585, %v9789
    %v9858 = vmul.f32 %v9586, %v9790
    %v9859 = vmul.f32 %v9587, %v9791
    %v9860 = vmul.f32 %v9588, %v9792
    %v9861 = vmul.f32 %v9589, %v9793
    %v9862 = vmul.f32 %v9590, %v9794
    %v9863 = vmul.f32 %v9591, %v9795
    %v9864 = vmul.f32 %v9592, %v9796
    %v9865 = vmul.f32 %v9593, %v9797
    %v9866 = vmul.f32 %v9594, %v9798
    %v9867 = vmul.f32 %v9595, %v9799
    %v9868 = vmul.f32 %v9596, %v9800
    %v9869 = vmul.f32 %v9597, %v9801
    %v9870 = vmul.f32 %v9598, %v9802
    %v9871 = vmul.f32 %v9599, %v9803
    %v9872 = vmul.f32 %v9600, %v9804
    %v9873 = vmul.f32 %v9601, %v9805
    %v9874 = vpack.c.bf16 %v9810, %v9806
    %v9875 = vpack.c.bf16 %v9811, %v9807
    %v9876 = vpack.c.bf16 %v9812, %v9808
    %v9877 = vpack.c.bf16 %v9813, %v9809
    %v9878 = vpack.c.bf16 %v9818, %v9814
    %v9879 = vpack.c.bf16 %v9819, %v9815
    %v9880 = vpack.c.bf16 %v9820, %v9816
    %v9881 = vpack.c.bf16 %v9821, %v9817
    %v9882 = vpack.c.bf16 %v9826, %v9822
    %v9883 = vpack.c.bf16 %v9827, %v9823
    %v9884 = vpack.c.bf16 %v9828, %v9824
    %v9885 = vpack.c.bf16 %v9829, %v9825
    %v9886 = vpack.c.bf16 %v9834, %v9830
    %v9887 = vpack.c.bf16 %v9835, %v9831
    %v9888 = vpack.c.bf16 %v9836, %v9832
    %v9889 = vpack.c.bf16 %v9837, %v9833
    %v9890 = vpack.c.bf16 %v9842, %v9838
    %v9891 = vpack.c.bf16 %v9843, %v9839
    %v9892 = vpack.c.bf16 %v9844, %v9840
    %v9893 = vpack.c.bf16 %v9845, %v9841
    %v9894 = vpack.c.bf16 %v9850, %v9846
    %v9895 = vpack.c.bf16 %v9851, %v9847
    %v9896 = vpack.c.bf16 %v9852, %v9848
    %v9897 = vpack.c.bf16 %v9853, %v9849
    %v9898 = vpack.c.bf16 %v9858, %v9854
    %v9899 = vpack.c.bf16 %v9859, %v9855
    %v9900 = vpack.c.bf16 %v9860, %v9856
    %v9901 = vpack.c.bf16 %v9861, %v9857
    %v9902 = vpack.c.bf16 %v9866, %v9862
    %v9903 = vpack.c.bf16 %v9867, %v9863
    %v9904 = vpack.c.bf16 %v9868, %v9864
    %v9905 = vpack.c.bf16 %v9869, %v9865
    %v9906 = vpack.c.bf16 %v9870, %v9870
    %v9907 = vpack.c.bf16 %v9871, %v9871
    %v9908 = vpack.c.bf16 %v9872, %v9872
    %v9909 = vpack.c.bf16 %v9873, %v9873
    %v9910 = vld [vmem:[%s13] sm:$0xf]
    %v9911 = vld [vmem:[%s13 + $0x4] sm:$0xf]
    %v9912 = vld [vmem:[%s13 + $0x8] sm:$0xf]
    %v9913 = vld [vmem:[%s13 + $0xc] sm:$0xf]
    %v9914 = vld [vmem:[%s13 + $0x10] sm:$0xf]
    %v9915 = vld [vmem:[%s13 + $0x14] sm:$0xf]
    %v9916 = vld [vmem:[%s13 + $0x18] sm:$0xf]
    %v9917 = vld [vmem:[%s13 + $0x1c] sm:$0xf]
    %v9918 = vld [vmem:[%s13 + $0x20] sm:$0xf]
    %v9919 = vld [vmem:[%s13 + $0x24] sm:$0xf]
    %v9920 = vld [vmem:[%s13 + $0x28] sm:$0xf]
    %v9921 = vld [vmem:[%s13 + $0x2c] sm:$0xf]
    %v9922 = vld [vmem:[%s13 + $0x30] sm:$0xf]
    %v9923 = vld [vmem:[%s13 + $0x34] sm:$0xf]
    %v9924 = vld [vmem:[%s13 + $0x38] sm:$0xf]
    %v9925 = vld [vmem:[%s13 + $0x3c] sm:$0xf]
    %v9926 = vld [vmem:[%s13 + $0x40] sm:$0xf]
    %v9927 = vld [vmem:[%s13 + $0x44] sm:$0xf]
    %v9928 = vld [vmem:[%s13 + $0x48] sm:$0xf]
    %v9929 = vld [vmem:[%s13 + $0x4c] sm:$0xf]
    %v9930 = vld [vmem:[%s13 + $0x50] sm:$0xf]
    %v9931 = vld [vmem:[%s13 + $0x54] sm:$0xf]
    %v9932 = vld [vmem:[%s13 + $0x58] sm:$0xf]
    %v9933 = vld [vmem:[%s13 + $0x5c] sm:$0xf]
    %v9934 = vld [vmem:[%s13 + $0x60] sm:$0xf]
    %v9935 = vld [vmem:[%s13 + $0x64] sm:$0xf]
    %v9936 = vld [vmem:[%s13 + $0x68] sm:$0xf]
    %v9937 = vld [vmem:[%s13 + $0x6c] sm:$0xf]
    %v9938 = vld [vmem:[%s13 + $0x70] sm:$0xf]
    %v9939 = vld [vmem:[%s13 + $0x74] sm:$0xf]
    %v9940 = vld [vmem:[%s13 + $0x78] sm:$0xf]
    %v9941 = vld [vmem:[%s13 + $0x7c] sm:$0xf]
    %v9942 = vld [vmem:[%s13 + $0x80] sm:$0xf]
    %v9943 = vld [vmem:[%s13 + $0x84] sm:$0xf]
    %v9944 = vld [vmem:[%s13 + $0x88] sm:$0xf]
    %v9945 = vld [vmem:[%s13 + $0x8c] sm:$0xf]
    %v9946 = vld [vmem:[%s13 + $0x90] sm:$0xf]
    %v9947 = vld [vmem:[%s13 + $0x94] sm:$0xf]
    %v9948 = vld [vmem:[%s13 + $0x98] sm:$0xf]
    %v9949 = vld [vmem:[%s13 + $0x9c] sm:$0xf]
    %v9950 = vld [vmem:[%s13 + $0xa0] sm:$0xf]
    %v9951 = vld [vmem:[%s13 + $0xa4] sm:$0xf]
    %v9952 = vld [vmem:[%s13 + $0xa8] sm:$0xf]
    %v9953 = vld [vmem:[%s13 + $0xac] sm:$0xf]
    %v9954 = vld [vmem:[%s13 + $0xb0] sm:$0xf]
    %v9955 = vld [vmem:[%s13 + $0xb4] sm:$0xf]
    %v9956 = vld [vmem:[%s13 + $0xb8] sm:$0xf]
    %v9957 = vld [vmem:[%s13 + $0xbc] sm:$0xf]
    %v9958 = vld [vmem:[%s13 + $0xc0] sm:$0xf]
    %v9959 = vld [vmem:[%s13 + $0xc4] sm:$0xf]
    %v9960 = vld [vmem:[%s13 + $0xc8] sm:$0xf]
    %v9961 = vld [vmem:[%s13 + $0xcc] sm:$0xf]
    %v9962 = vld [vmem:[%s13 + $0xd0] sm:$0xf]
    %v9963 = vld [vmem:[%s13 + $0xd4] sm:$0xf]
    %v9964 = vld [vmem:[%s13 + $0xd8] sm:$0xf]
    %v9965 = vld [vmem:[%s13 + $0xdc] sm:$0xf]
    %v9966 = vld [vmem:[%s13 + $0xe0] sm:$0xf]
    %v9967 = vld [vmem:[%s13 + $0xe4] sm:$0xf]
    %v9968 = vld [vmem:[%s13 + $0xe8] sm:$0xf]
    %v9969 = vld [vmem:[%s13 + $0xec] sm:$0xf]
    %v9970 = vld [vmem:[%s13 + $0xf0] sm:$0xf]
    %v9971 = vld [vmem:[%s13 + $0xf4] sm:$0xf]
    %v9972 = vld [vmem:[%s13 + $0xf8] sm:$0xf]
    %v9973 = vld [vmem:[%s13 + $0xfc] sm:$0xf]
    %v9974 = vld [vmem:[%s14] sm:$0x1]
    %v9976 = vlaneseq
    %v9977 = vshrl.u32 %v9976, 7
    %v9978 = vsub.s32 0, %v9977
    %v9979 = vrot.slane %v9974, %v9978
    %vm9981 = vsmask.f32 4352
    %v9983 = vshrl.u32 %v9874, 16
    %v9985 = vrot.slane %v9983, 3
    %v9986 = vshll.u32 %v9874, 16
    %v9988 = vrot.slane %v9986, 4
    %v9989 = vor.u32 %v9985, %v9988
    %v9991 = vshrl.u32 %v9878, 16
    %v9993 = vrot.slane %v9991, 3
    %v9994 = vshll.u32 %v9878, 16
    %v9996 = vrot.slane %v9994, 4
    %v9997 = vor.u32 %v9993, %v9996
    %v9998 = vsel %vm9981, %v9989, %v9997
    %v10000 = vshrl.u32 %v9875, 16
    %v10002 = vrot.slane %v10000, 3
    %v10003 = vshll.u32 %v9875, 16
    %v10005 = vrot.slane %v10003, 4
    %v10006 = vor.u32 %v10002, %v10005
    %v10008 = vshrl.u32 %v9879, 16
    %v10010 = vrot.slane %v10008, 3
    %v10011 = vshll.u32 %v9879, 16
    %v10013 = vrot.slane %v10011, 4
    %v10014 = vor.u32 %v10010, %v10013
    %v10015 = vsel %vm9981, %v10006, %v10014
    %v10017 = vshrl.u32 %v9876, 16
    %v10019 = vrot.slane %v10017, 3
    %v10020 = vshll.u32 %v9876, 16
    %v10022 = vrot.slane %v10020, 4
    %v10023 = vor.u32 %v10019, %v10022
    %v10025 = vshrl.u32 %v9880, 16
    %v10027 = vrot.slane %v10025, 3
    %v10028 = vshll.u32 %v9880, 16
    %v10030 = vrot.slane %v10028, 4
    %v10031 = vor.u32 %v10027, %v10030
    %v10032 = vsel %vm9981, %v10023, %v10031
    %v10034 = vshrl.u32 %v9877, 16
    %v10036 = vrot.slane %v10034, 3
    %v10037 = vshll.u32 %v9877, 16
    %v10039 = vrot.slane %v10037, 4
    %v10040 = vor.u32 %v10036, %v10039
    %v10042 = vshrl.u32 %v9881, 16
    %v10044 = vrot.slane %v10042, 3
    %v10045 = vshll.u32 %v9881, 16
    %v10047 = vrot.slane %v10045, 4
    %v10048 = vor.u32 %v10044, %v10047
    %v10049 = vsel %vm9981, %v10040, %v10048
    %v10051 = vshrl.u32 %v9882, 16
    %v10053 = vrot.slane %v10051, 3
    %v10054 = vshll.u32 %v9882, 16
    %v10056 = vrot.slane %v10054, 4
    %v10057 = vor.u32 %v10053, %v10056
    %v10058 = vsel %vm9981, %v9997, %v10057
    %v10060 = vshrl.u32 %v9883, 16
    %v10062 = vrot.slane %v10060, 3
    %v10063 = vshll.u32 %v9883, 16
    %v10065 = vrot.slane %v10063, 4
    %v10066 = vor.u32 %v10062, %v10065
    %v10067 = vsel %vm9981, %v10014, %v10066
    %v10069 = vshrl.u32 %v9884, 16
    %v10071 = vrot.slane %v10069, 3
    %v10072 = vshll.u32 %v9884, 16
    %v10074 = vrot.slane %v10072, 4
    %v10075 = vor.u32 %v10071, %v10074
    %v10076 = vsel %vm9981, %v10031, %v10075
    %v10078 = vshrl.u32 %v9885, 16
    %v10080 = vrot.slane %v10078, 3
    %v10081 = vshll.u32 %v9885, 16
    %v10083 = vrot.slane %v10081, 4
    %v10084 = vor.u32 %v10080, %v10083
    %v10085 = vsel %vm9981, %v10048, %v10084
    %v10087 = vshrl.u32 %v9886, 16
    %v10089 = vrot.slane %v10087, 3
    %v10090 = vshll.u32 %v9886, 16
    %v10092 = vrot.slane %v10090, 4
    %v10093 = vor.u32 %v10089, %v10092
    %v10094 = vsel %vm9981, %v10057, %v10093
    %v10096 = vshrl.u32 %v9887, 16
    %v10098 = vrot.slane %v10096, 3
    %v10099 = vshll.u32 %v9887, 16
    %v10101 = vrot.slane %v10099, 4
    %v10102 = vor.u32 %v10098, %v10101
    %v10103 = vsel %vm9981, %v10066, %v10102
    %v10105 = vshrl.u32 %v9888, 16
    %v10107 = vrot.slane %v10105, 3
    %v10108 = vshll.u32 %v9888, 16
    %v10110 = vrot.slane %v10108, 4
    %v10111 = vor.u32 %v10107, %v10110
    %v10112 = vsel %vm9981, %v10075, %v10111
    %v10114 = vshrl.u32 %v9889, 16
    %v10116 = vrot.slane %v10114, 3
    %v10117 = vshll.u32 %v9889, 16
    %v10119 = vrot.slane %v10117, 4
    %v10120 = vor.u32 %v10116, %v10119
    %v10121 = vsel %vm9981, %v10084, %v10120
    %v10123 = vshrl.u32 %v9890, 16
    %v10125 = vrot.slane %v10123, 3
    %v10126 = vshll.u32 %v9890, 16
    %v10128 = vrot.slane %v10126, 4
    %v10129 = vor.u32 %v10125, %v10128
    %v10130 = vsel %vm9981, %v10093, %v10129
    %v10132 = vshrl.u32 %v9891, 16
    %v10134 = vrot.slane %v10132, 3
    %v10135 = vshll.u32 %v9891, 16
    %v10137 = vrot.slane %v10135, 4
    %v10138 = vor.u32 %v10134, %v10137
    %v10139 = vsel %vm9981, %v10102, %v10138
    %v10141 = vshrl.u32 %v9892, 16
    %v10143 = vrot.slane %v10141, 3
    %v10144 = vshll.u32 %v9892, 16
    %v10146 = vrot.slane %v10144, 4
    %v10147 = vor.u32 %v10143, %v10146
    %v10148 = vsel %vm9981, %v10111, %v10147
    %v10150 = vshrl.u32 %v9893, 16
    %v10152 = vrot.slane %v10150, 3
    %v10153 = vshll.u32 %v9893, 16
    %v10155 = vrot.slane %v10153, 4
    %v10156 = vor.u32 %v10152, %v10155
    %v10157 = vsel %vm9981, %v10120, %v10156
    %v10159 = vshrl.u32 %v9894, 16
    %v10161 = vrot.slane %v10159, 3
    %v10162 = vshll.u32 %v9894, 16
    %v10164 = vrot.slane %v10162, 4
    %v10165 = vor.u32 %v10161, %v10164
    %v10166 = vsel %vm9981, %v10129, %v10165
    %v10168 = vshrl.u32 %v9895, 16
    %v10170 = vrot.slane %v10168, 3
    %v10171 = vshll.u32 %v9895, 16
    %v10173 = vrot.slane %v10171, 4
    %v10174 = vor.u32 %v10170, %v10173
    %v10175 = vsel %vm9981, %v10138, %v10174
    %v10177 = vshrl.u32 %v9896, 16
    %v10179 = vrot.slane %v10177, 3
    %v10180 = vshll.u32 %v9896, 16
    %v10182 = vrot.slane %v10180, 4
    %v10183 = vor.u32 %v10179, %v10182
    %v10184 = vsel %vm9981, %v10147, %v10183
    %v10186 = vshrl.u32 %v9897, 16
    %v10188 = vrot.slane %v10186, 3
    %v10189 = vshll.u32 %v9897, 16
    %v10191 = vrot.slane %v10189, 4
    %v10192 = vor.u32 %v10188, %v10191
    %v10193 = vsel %vm9981, %v10156, %v10192
    %v10195 = vshrl.u32 %v9898, 16
    %v10197 = vrot.slane %v10195, 3
    %v10198 = vshll.u32 %v9898, 16
    %v10200 = vrot.slane %v10198, 4
    %v10201 = vor.u32 %v10197, %v10200
    %v10202 = vsel %vm9981, %v10165, %v10201
    %v10204 = vshrl.u32 %v9899, 16
    %v10206 = vrot.slane %v10204, 3
    %v10207 = vshll.u32 %v9899, 16
    %v10209 = vrot.slane %v10207, 4
    %v10210 = vor.u32 %v10206, %v10209
    %v10211 = vsel %vm9981, %v10174, %v10210
    %v10213 = vshrl.u32 %v9900, 16
    %v10215 = vrot.slane %v10213, 3
    %v10216 = vshll.u32 %v9900, 16
    %v10218 = vrot.slane %v10216, 4
    %v10219 = vor.u32 %v10215, %v10218
    %v10220 = vsel %vm9981, %v10183, %v10219
    %v10222 = vshrl.u32 %v9901, 16
    %v10224 = vrot.slane %v10222, 3
    %v10225 = vshll.u32 %v9901, 16
    %v10227 = vrot.slane %v10225, 4
    %v10228 = vor.u32 %v10224, %v10227
    %v10229 = vsel %vm9981, %v10192, %v10228
    %v10231 = vshrl.u32 %v9902, 16
    %v10233 = vrot.slane %v10231, 3
    %v10234 = vshll.u32 %v9902, 16
    %v10236 = vrot.slane %v10234, 4
    %v10237 = vor.u32 %v10233, %v10236
    %v10238 = vsel %vm9981, %v10201, %v10237
    %v10240 = vshrl.u32 %v9903, 16
    %v10242 = vrot.slane %v10240, 3
    %v10243 = vshll.u32 %v9903, 16
    %v10245 = vrot.slane %v10243, 4
    %v10246 = vor.u32 %v10242, %v10245
    %v10247 = vsel %vm9981, %v10210, %v10246
    %v10249 = vshrl.u32 %v9904, 16
    %v10251 = vrot.slane %v10249, 3
    %v10252 = vshll.u32 %v9904, 16
    %v10254 = vrot.slane %v10252, 4
    %v10255 = vor.u32 %v10251, %v10254
    %v10256 = vsel %vm9981, %v10219, %v10255
    %v10258 = vshrl.u32 %v9905, 16
    %v10260 = vrot.slane %v10258, 3
    %v10261 = vshll.u32 %v9905, 16
    %v10263 = vrot.slane %v10261, 4
    %v10264 = vor.u32 %v10260, %v10263
    %v10265 = vsel %vm9981, %v10228, %v10264
    %v10267 = vshrl.u32 %v9906, 16
    %v10269 = vrot.slane %v10267, 3
    %v10270 = vshll.u32 %v9906, 16
    %v10272 = vrot.slane %v10270, 4
    %v10273 = vor.u32 %v10269, %v10272
    %v10274 = vsel %vm9981, %v10237, %v10273
    %v10276 = vshrl.u32 %v9907, 16
    %v10278 = vrot.slane %v10276, 3
    %v10279 = vshll.u32 %v9907, 16
    %v10281 = vrot.slane %v10279, 4
    %v10282 = vor.u32 %v10278, %v10281
    %v10283 = vsel %vm9981, %v10246, %v10282
    %v10285 = vshrl.u32 %v9908, 16
    %v10287 = vrot.slane %v10285, 3
    %v10288 = vshll.u32 %v9908, 16
    %v10290 = vrot.slane %v10288, 4
    %v10291 = vor.u32 %v10287, %v10290
    %v10292 = vsel %vm9981, %v10255, %v10291
    %v10294 = vshrl.u32 %v9909, 16
    %v10296 = vrot.slane %v10294, 3
    %v10297 = vshll.u32 %v9909, 16
    %v10299 = vrot.slane %v10297, 4
    %v10300 = vor.u32 %v10296, %v10299
    %v10301 = vsel %vm9981, %v10264, %v10300
    %v10398 = vunpack.c.l.b16 %v9910
    %v10399 = vunpack.c.l.b16 %v9911
    %v10400 = vunpack.c.l.b16 %v9912
    %v10401 = vunpack.c.l.b16 %v9913
    %v10402 = vunpack.c.l.b16 %v9914
    %v10403 = vunpack.c.l.b16 %v9915
    %v10404 = vunpack.c.l.b16 %v9916
    %v10405 = vunpack.c.l.b16 %v9917
    %v10406 = vunpack.c.l.b16 %v9918
    %v10407 = vunpack.c.l.b16 %v9919
    %v10408 = vunpack.c.l.b16 %v9920
    %v10409 = vunpack.c.l.b16 %v9921
    %v10410 = vunpack.c.l.b16 %v9922
    %v10411 = vunpack.c.l.b16 %v9923
    %v10412 = vunpack.c.l.b16 %v9924
    %v10413 = vunpack.c.l.b16 %v9925
    %v10414 = vunpack.c.l.b16 %v9926
    %v10415 = vunpack.c.l.b16 %v9927
    %v10416 = vunpack.c.l.b16 %v9928
    %v10417 = vunpack.c.l.b16 %v9929
    %v10418 = vunpack.c.l.b16 %v9930
    %v10419 = vunpack.c.l.b16 %v9931
    %v10420 = vunpack.c.l.b16 %v9932
    %v10421 = vunpack.c.l.b16 %v9933
    %v10422 = vunpack.c.l.b16 %v9934
    %v10423 = vunpack.c.l.b16 %v9935
    %v10424 = vunpack.c.l.b16 %v9936
    %v10425 = vunpack.c.l.b16 %v9937
    %v10426 = vunpack.c.l.b16 %v9938
    %v10427 = vunpack.c.l.b16 %v9939
    %v10428 = vunpack.c.l.b16 %v9940
    %v10429 = vunpack.c.l.b16 %v9941
    %v10430 = vunpack.c.l.b16 %v9942
    %v10431 = vunpack.c.l.b16 %v9943
    %v10432 = vunpack.c.l.b16 %v9944
    %v10433 = vunpack.c.l.b16 %v9945
    %v10434 = vunpack.c.l.b16 %v9946
    %v10435 = vunpack.c.l.b16 %v9947
    %v10436 = vunpack.c.l.b16 %v9948
    %v10437 = vunpack.c.l.b16 %v9949
    %v10438 = vunpack.c.l.b16 %v9950
    %v10439 = vunpack.c.l.b16 %v9951
    %v10440 = vunpack.c.l.b16 %v9952
    %v10441 = vunpack.c.l.b16 %v9953
    %v10442 = vunpack.c.l.b16 %v9954
    %v10443 = vunpack.c.l.b16 %v9955
    %v10444 = vunpack.c.l.b16 %v9956
    %v10445 = vunpack.c.l.b16 %v9957
    %v10446 = vunpack.c.l.b16 %v9958
    %v10447 = vunpack.c.l.b16 %v9959
    %v10448 = vunpack.c.l.b16 %v9960
    %v10449 = vunpack.c.l.b16 %v9961
    %v10450 = vunpack.c.l.b16 %v9962
    %v10451 = vunpack.c.l.b16 %v9963
    %v10452 = vunpack.c.l.b16 %v9964
    %v10453 = vunpack.c.l.b16 %v9965
    %v10454 = vunpack.c.l.b16 %v9966
    %v10455 = vunpack.c.l.b16 %v9967
    %v10456 = vunpack.c.l.b16 %v9968
    %v10457 = vunpack.c.l.b16 %v9969
    %v10458 = vunpack.c.l.b16 %v9970
    %v10459 = vunpack.c.l.b16 %v9971
    %v10460 = vunpack.c.l.b16 %v9972
    %v10461 = vunpack.c.l.b16 %v9973
    %v10462 = vpack.c.b16 %v10399, %v10398
    %v10463 = vpack.c.b16 %v10401, %v10400
    %v10464 = vpack.c.b16 %v10403, %v10402
    %v10465 = vpack.c.b16 %v10405, %v10404
    %v10466 = vpack.c.b16 %v10407, %v10406
    %v10467 = vpack.c.b16 %v10409, %v10408
    %v10468 = vpack.c.b16 %v10411, %v10410
    %v10469 = vpack.c.b16 %v10413, %v10412
    %v10470 = vpack.c.b16 %v10415, %v10414
    %v10471 = vpack.c.b16 %v10417, %v10416
    %v10472 = vpack.c.b16 %v10419, %v10418
    %v10473 = vpack.c.b16 %v10421, %v10420
    %v10474 = vpack.c.b16 %v10423, %v10422
    %v10475 = vpack.c.b16 %v10425, %v10424
    %v10476 = vpack.c.b16 %v10427, %v10426
    %v10477 = vpack.c.b16 %v10429, %v10428
    %v10478 = vpack.c.b16 %v10431, %v10430
    %v10479 = vpack.c.b16 %v10433, %v10432
    %v10480 = vpack.c.b16 %v10435, %v10434
    %v10481 = vpack.c.b16 %v10437, %v10436
    %v10482 = vpack.c.b16 %v10439, %v10438
    %v10483 = vpack.c.b16 %v10441, %v10440
    %v10484 = vpack.c.b16 %v10443, %v10442
    %v10485 = vpack.c.b16 %v10445, %v10444
    %v10486 = vpack.c.b16 %v10447, %v10446
    %v10487 = vpack.c.b16 %v10449, %v10448
    %v10488 = vpack.c.b16 %v10451, %v10450
    %v10489 = vpack.c.b16 %v10453, %v10452
    %v10490 = vpack.c.b16 %v10455, %v10454
    %v10491 = vpack.c.b16 %v10457, %v10456
    %v10492 = vpack.c.b16 %v10459, %v10458
    %v10493 = vpack.c.b16 %v10461, %v10460
    %10526 = vmatprep.subr.bf16.mxu0 0
    %10527 = vmatpush1.bf16.msra.mxu0 %v10462
    %10528 = vmatprep.subr.bf16.mxu0 0
    %10529 = vmatpush1.bf16.msra.mxu0 %v10463
    %10530 = vmatprep.subr.bf16.mxu0 0
    %10531 = vmatpush1.bf16.msra.mxu0 %v10464
    %10532 = vmatprep.subr.bf16.mxu0 0
    %10533 = vmatpush1.bf16.msra.mxu0 %v10465
    %10534 = vmatprep.subr.bf16.mxu0 0
    %10535 = vmatpush1.bf16.msra.mxu0 %v10466
    %10536 = vmatprep.subr.bf16.mxu0 0
    %10537 = vmatpush1.bf16.msra.mxu0 %v10467
    %10538 = vmatprep.subr.bf16.mxu0 0
    %10539 = vmatpush1.bf16.msra.mxu0 %v10468
    %10540 = vmatprep.subr.bf16.mxu0 0
    %10541 = vmatpush1.bf16.msra.mxu0 %v10469
    %10542 = vmatprep.subr.bf16.mxu0 0
    %10543 = vmatpush1.bf16.msra.mxu0 %v10470
    %10544 = vmatprep.subr.bf16.mxu0 0
    %10545 = vmatpush1.bf16.msra.mxu0 %v10471
    %10546 = vmatprep.subr.bf16.mxu0 0
    %10547 = vmatpush1.bf16.msra.mxu0 %v10472
    %10548 = vmatprep.subr.bf16.mxu0 0
    %10549 = vmatpush1.bf16.msra.mxu0 %v10473
    %10550 = vmatprep.subr.bf16.mxu0 0
    %10551 = vmatpush1.bf16.msra.mxu0 %v10474
    %10552 = vmatprep.subr.bf16.mxu0 0
    %10553 = vmatpush1.bf16.msra.mxu0 %v10475
    %10554 = vmatprep.subr.bf16.mxu0 0
    %10555 = vmatpush1.bf16.msra.mxu0 %v10476
    %10556 = vmatprep.subr.bf16.mxu0 0
    %10557 = vmatpush1.bf16.msra.mxu0 %v10477
    %10558 = vmatprep.mubr.bf16.mxu0 %v10015
    %10559 = vmatmul.mubr.bf16.gmra.mrb[0].mxu0 %v9998
    %v10560 = vpop.f32.mrb[0].mxu0
    %v10561 = vadd.f32 %v9979, %v10560
    %v10562 = vpop.f32.mrb[0].mxu0
    %v10563 = vpop.f32.mrb[0].mxu0
    %v10564 = vadd.f32 %v9979, %v10563
    %v10565 = vpop.f32.mrb[0].mxu0
    %10566 = vmatprep.mubr.bf16.mxu0 %v10067
    %10567 = vmatmul.mubr.bf16.gmra.mrb[0].mxu0 %v10058
    %v10568 = vpop.f32.mrb[0].mxu0
    %v10569 = vadd.f32 %v9979, %v10568
    %v10570 = vpop.f32.mrb[0].mxu0
    %v10571 = vpop.f32.mrb[0].mxu0
    %v10572 = vadd.f32 %v9979, %v10571
    %v10573 = vpop.f32.mrb[0].mxu0
    %10574 = vmatprep.mubr.bf16.mxu0 %v10103
    %10575 = vmatmul.mubr.bf16.gmra.mrb[0].mxu0 %v10094
    %v10576 = vpop.f32.mrb[0].mxu0
    %v10577 = vadd.f32 %v9979, %v10576
    %v10578 = vpop.f32.mrb[0].mxu0
    %v10579 = vpop.f32.mrb[0].mxu0
    %v10580 = vadd.f32 %v9979, %v10579
    %v10581 = vpop.f32.mrb[0].mxu0
    %10582 = vmatprep.mubr.bf16.mxu0 %v10139
    %10583 = vmatmul.mubr.bf16.gmra.mrb[0].mxu0 %v10130
    %v10584 = vpop.f32.mrb[0].mxu0
    %v10585 = vadd.f32 %v9979, %v10584
    %v10586 = vpop.f32.mrb[0].mxu0
    %v10587 = vpop.f32.mrb[0].mxu0
    %v10588 = vadd.f32 %v9979, %v10587
    %v10589 = vpop.f32.mrb[0].mxu0
    %10590 = vmatprep.mubr.bf16.mxu0 %v10175
    %10591 = vmatmul.mubr.bf16.gmra.mrb[0].mxu0 %v10166
    %v10592 = vpop.f32.mrb[0].mxu0
    %v10593 = vadd.f32 %v9979, %v10592
    %v10594 = vpop.f32.mrb[0].mxu0
    %v10595 = vpop.f32.mrb[0].mxu0
    %v10596 = vadd.f32 %v9979, %v10595
    %v10597 = vpop.f32.mrb[0].mxu0
    %10598 = vmatprep.mubr.bf16.mxu0 %v10211
    %10599 = vmatmul.mubr.bf16.gmra.mrb[0].mxu0 %v10202
    %v10600 = vpop.f32.mrb[0].mxu0
    %v10601 = vadd.f32 %v9979, %v10600
    %v10602 = vpop.f32.mrb[0].mxu0
    %v10603 = vpop.f32.mrb[0].mxu0
    %v10604 = vadd.f32 %v9979, %v10603
    %v10605 = vpop.f32.mrb[0].mxu0
    %10606 = vmatprep.mubr.bf16.mxu0 %v10247
    %10607 = vmatmul.mubr.bf16.gmra.mrb[0].mxu0 %v10238
    %v10608 = vpop.f32.mrb[0].mxu0
    %v10609 = vadd.f32 %v9979, %v10608
    %v10610 = vpop.f32.mrb[0].mxu0
    %v10611 = vpop.f32.mrb[0].mxu0
    %v10612 = vadd.f32 %v9979, %v10611
    %v10613 = vpop.f32.mrb[0].mxu0
    %10614 = vmatprep.mubr.bf16.mxu0 %v10283
    %10615 = vmatmul.mubr.bf16.gmra.mrb[0].mxu0 %v10274
    %v10616 = vpop.f32.mrb[0].mxu0
    %v10617 = vadd.f32 %v9979, %v10616
    %v10618 = vpop.f32.mrb[0].mxu0
    %v10619 = vpop.f32.mrb[0].mxu0
    %v10620 = vadd.f32 %v9979, %v10619
    %v10621 = vpop.f32.mrb[0].mxu0
    %10622 = vdwg.mxu0
    %10623 = vmatprep.subr.bf16.mxu0 0
    %10624 = vmatpush1.bf16.msra.mxu0 %v10478
    %10625 = vmatprep.subr.bf16.mxu0 0
    %10626 = vmatpush1.bf16.msra.mxu0 %v10479
    %10627 = vmatprep.subr.bf16.mxu0 0
    %10628 = vmatpush1.bf16.msra.mxu0 %v10480
    %10629 = vmatprep.subr.bf16.mxu0 0
    %10630 = vmatpush1.bf16.msra.mxu0 %v10481
    %10631 = vmatprep.subr.bf16.mxu0 0
    %10632 = vmatpush1.bf16.msra.mxu0 %v10482
    %10633 = vmatprep.subr.bf16.mxu0 0
    %10634 = vmatpush1.bf16.msra.mxu0 %v10483
    %10635 = vmatprep.subr.bf16.mxu0 0
    %10636 = vmatpush1.bf16.msra.mxu0 %v10484
    %10637 = vmatprep.subr.bf16.mxu0 0
    %10638 = vmatpush1.bf16.msra.mxu0 %v10485
    %10639 = vmatprep.subr.bf16.mxu0 0
    %10640 = vmatpush1.bf16.msra.mxu0 %v10486
    %10641 = vmatprep.subr.bf16.mxu0 0
    %10642 = vmatpush1.bf16.msra.mxu0 %v10487
    %10643 = vmatprep.subr.bf16.mxu0 0
    %10644 = vmatpush1.bf16.msra.mxu0 %v10488
    %10645 = vmatprep.subr.bf16.mxu0 0
    %10646 = vmatpush1.bf16.msra.mxu0 %v10489
    %10647 = vmatprep.subr.bf16.mxu0 0
    %10648 = vmatpush1.bf16.msra.mxu0 %v10490
    %10649 = vmatprep.subr.bf16.mxu0 0
    %10650 = vmatpush1.bf16.msra.mxu0 %v10491
    %10651 = vmatprep.subr.bf16.mxu0 0
    %10652 = vmatpush1.bf16.msra.mxu0 %v10492
    %10653 = vmatprep.subr.bf16.mxu0 0
    %10654 = vmatpush1.bf16.msra.mxu0 %v10493
    %10655 = vmatprep.mubr.bf16.mxu0 %v10049
    %10656 = vmatmul.mubr.bf16.gmra.mrb[0].mxu0 %v10032
    %v10657 = vpop.f32.mrb[0].mxu0
    %v10658 = vadd.f32 %v10561, %v10657
    %v10659 = vpop.f32.mrb[0].mxu0
    %v10660 = vpop.f32.mrb[0].mxu0
    %v10661 = vadd.f32 %v10564, %v10660
    %v10662 = vpop.f32.mrb[0].mxu0
    %10663 = vmatprep.mubr.bf16.mxu0 %v10085
    %10664 = vmatmul.mubr.bf16.gmra.mrb[0].mxu0 %v10076
    %v10665 = vpop.f32.mrb[0].mxu0
    %v10666 = vadd.f32 %v10569, %v10665
    %v10667 = vpop.f32.mrb[0].mxu0
    %v10668 = vpop.f32.mrb[0].mxu0
    %v10669 = vadd.f32 %v10572, %v10668
    %v10670 = vpop.f32.mrb[0].mxu0
    %10671 = vmatprep.mubr.bf16.mxu0 %v10121
    %10672 = vmatmul.mubr.bf16.gmra.mrb[0].mxu0 %v10112
    %v10673 = vpop.f32.mrb[0].mxu0
    %v10674 = vadd.f32 %v10577, %v10673
    %v10675 = vpop.f32.mrb[0].mxu0
    %v10676 = vpop.f32.mrb[0].mxu0
    %v10677 = vadd.f32 %v10580, %v10676
    %v10678 = vpop.f32.mrb[0].mxu0
    %10679 = vmatprep.mubr.bf16.mxu0 %v10157
    %10680 = vmatmul.mubr.bf16.gmra.mrb[0].mxu0 %v10148
    %v10681 = vpop.f32.mrb[0].mxu0
    %v10682 = vadd.f32 %v10585, %v10681
    %v10683 = vpop.f32.mrb[0].mxu0
    %v10684 = vpop.f32.mrb[0].mxu0
    %v10685 = vadd.f32 %v10588, %v10684
    %v10686 = vpop.f32.mrb[0].mxu0
    %10687 = vmatprep.mubr.bf16.mxu0 %v10193
    %10688 = vmatmul.mubr.bf16.gmra.mrb[0].mxu0 %v10184
    %v10689 = vpop.f32.mrb[0].mxu0
    %v10690 = vadd.f32 %v10593, %v10689
    %v10691 = vpop.f32.mrb[0].mxu0
    %v10692 = vpop.f32.mrb[0].mxu0
    %v10693 = vadd.f32 %v10596, %v10692
    %v10694 = vpop.f32.mrb[0].mxu0
    %10695 = vmatprep.mubr.bf16.mxu0 %v10229
    %10696 = vmatmul.mubr.bf16.gmra.mrb[0].mxu0 %v10220
    %v10697 = vpop.f32.mrb[0].mxu0
    %v10698 = vadd.f32 %v10601, %v10697
    %v10699 = vpop.f32.mrb[0].mxu0
    %v10700 = vpop.f32.mrb[0].mxu0
    %v10701 = vadd.f32 %v10604, %v10700
    %v10702 = vpop.f32.mrb[0].mxu0
    %10703 = vmatprep.mubr.bf16.mxu0 %v10265
    %10704 = vmatmul.mubr.bf16.gmra.mrb[0].mxu0 %v10256
    %v10705 = vpop.f32.mrb[0].mxu0
    %v10706 = vadd.f32 %v10609, %v10705
    %v10707 = vpop.f32.mrb[0].mxu0
    %v10708 = vpop.f32.mrb[0].mxu0
    %v10709 = vadd.f32 %v10612, %v10708
    %v10710 = vpop.f32.mrb[0].mxu0
    %10711 = vmatprep.mubr.bf16.mxu0 %v10301
    %10712 = vmatmul.mubr.bf16.gmra.mrb[0].mxu0 %v10292
    %v10713 = vpop.f32.mrb[0].mxu0
    %v10714 = vadd.f32 %v10617, %v10713
    %v10715 = vpop.f32.mrb[0].mxu0
    %v10716 = vpop.f32.mrb[0].mxu0
    %v10717 = vadd.f32 %v10620, %v10716
    %v10718 = vpop.f32.mrb[0].mxu0
    %10719 = vdwg.mxu0
    %v10720 = vadd.f32 %v3721, %v10658
    %v10721 = vadd.f32 %v3722, %v10661
    %v10722 = vadd.f32 %v3723, %v10666
    %v10723 = vadd.f32 %v3724, %v10669
    %v10724 = vadd.f32 %v3725, %v10674
    %v10725 = vadd.f32 %v3726, %v10677
    %v10726 = vadd.f32 %v3727, %v10682
    %v10727 = vadd.f32 %v3728, %v10685
    %v10728 = vadd.f32 %v3729, %v10690
    %v10729 = vadd.f32 %v3730, %v10693
    %v10730 = vadd.f32 %v3731, %v10698
    %v10731 = vadd.f32 %v3732, %v10701
    %v10732 = vadd.f32 %v3733, %v10706
    %v10733 = vadd.f32 %v3734, %v10709
    %v10734 = vadd.f32 %v3735, %v10714
    %v10735 = vadd.f32 %v3736, %v10717
    %10736 = vst [vmem:[#allocation3] sm:$0xff] %v10720
    %10737 = vst [vmem:[#allocation3 + $0x8] sm:$0xff] %v10721
    %10738 = vst [vmem:[#allocation3 + $0x10] sm:$0xff] %v10722
    %10739 = vst [vmem:[#allocation3 + $0x18] sm:$0xff] %v10723
    %10740 = vst [vmem:[#allocation3 + $0x20] sm:$0xff] %v10724
    %10741 = vst [vmem:[#allocation3 + $0x28] sm:$0xff] %v10725
    %10742 = vst [vmem:[#allocation3 + $0x30] sm:$0xff] %v10726
    %10743 = vst [vmem:[#allocation3 + $0x38] sm:$0xff] %v10727
    %10744 = vst [vmem:[#allocation3 + $0x40] sm:$0xff] %v10728
    %10745 = vst [vmem:[#allocation3 + $0x48] sm:$0xff] %v10729
    %10746 = vst [vmem:[#allocation3 + $0x50] sm:$0xff] %v10730
    %10747 = vst [vmem:[#allocation3 + $0x58] sm:$0xff] %v10731
    %10748 = vst [vmem:[#allocation3 + $0x60] sm:$0xff] %v10732
    %10749 = vst [vmem:[#allocation3 + $0x68] sm:$0xff] %v10733
    %10750 = vst [vmem:[#allocation3 + $0x70] sm:$0xff] %v10734
    %10751 = vst [vmem:[#allocation3 + $0x78] sm:$0xff] %v10735
    // Predicated region
    $region62: #{tpu_custom_call.1} parent=1 // pred_check
      _
    $region63: #{tpu_custom_call.1} parent=1 // pred_check_branch
      %10753 = sbr.rel (0) target = $region65
    $region64: #{tpu_custom_call.1} parent=1 // pred_region
      %s10755 = ssub.s32 2048, 2048
      %10756 = vsyncadd [#allocation4], %s10755
      %s10757 = sshll.u32 [#allocation3], 4
      %s10758 = int_to_ptr.vmem [resolvable:$true] %s10757
      %10763 = dma.vmem_to_hbm [thread:$0]  %s10758, 2048, %s15, [#allocation4], 128, 128, 8
    $region65: #{tpu_custom_call.1} parent=1 // pred_fallthru
      _
    // Predicated region
    $region66: #{tpu_custom_call.1} parent=1 // pred_check
      _
    $region67: #{tpu_custom_call.1} parent=1 // pred_check_branch
      %10765 = sbr.rel (0) target = $region69
    $region68: #{tpu_custom_call.1} parent=1 // pred_region
      %10766 = dma.done [#allocation4], 2048
    $region69: #{tpu_custom_call.1} parent=1 // pred_fallthru
      _
    %10767 = vsyncpa [#allocation4], 1

</llo_original>
